<compile_context>
chip_gen: v7x
topology: tpu7x:2x2x1
jax: 0.10.0
libtpu: 0.0.40
codegen_flags: <defaults>
</compile_context>

<pallas_src>
import math

import jax
import jax.numpy as jnp
import numpy as np
from jax.experimental import pallas as pl
from jax.experimental.pallas import tpu as pltpu

# --- model hyperparameters (PyTorch defaults from args_defaults) ---
IN_CHANNELS = 32
D_MODEL = 128
N_HEADS = 4
HEAD_DIM = D_MODEL // N_HEADS
NUM_LAYERS = 3
DIM_FF = 512
N_CLASSES = 26
LN_EPS = 1e-5

N_PAD = 128     # classifier output padded to a full lane width


# ----------------------------- kernel helpers ------------------------------
def _mm(x, w):
    """(M,K) @ (K,N) on the MXU: bf16 inputs, f32 accumulation."""
    return jax.lax.dot_general(
        x.astype(jnp.bfloat16), w,
        (((1,), (0,)), ((), ())),
        preferred_element_type=jnp.float32)


def _layer_norm(x, w, b):
    mu = jnp.mean(x, axis=-1, keepdims=True)
    xc = x - mu
    var = jnp.mean(xc * xc, axis=-1, keepdims=True)
    return xc * jax.lax.rsqrt(var + LN_EPS) * w + b


# ------------------------------ Pallas kernel ------------------------------
def transformer_kernel(x_ref, pe_bias_ref, neg_mask_ref,
                       w_in_ref,
                       qkv_w_ref, qkv_b_ref,
                       out_w_ref, out_b_ref,
                       ln1_w_ref, ln1_b_ref,
                       ff1_w_ref, ff1_b_ref,
                       ff2_w_ref, ff2_b_ref,
                       ln2_w_ref, ln2_b_ref,
                       cls_w_ref, cls_b_ref,
                       o_ref):
    TB, S, C = x_ref.shape            # one grid program == TB batch elements
    M = TB * S

    # encoder input linear (K=32) + (bias + positional encoding) in one resident add
    # (dropout == identity, eval mode)
    x2 = x_ref[...].reshape(M, C)                               # bf16 (M, 32)
    h = _mm(x2, w_in_ref[...]).reshape(TB, S, D_MODEL)          # (TB, S, D) f32
    h = h + pe_bias_ref[...]                                    # (S, D) broadcast over TB

    # precomputed additive causal mask, broadcast once per grid step
    neg_mask = jnp.broadcast_to(neg_mask_ref[...][None], (TB, S, S))

    for l in range(NUM_LAYERS):                                 # static unroll (3 layers)
        # ---- multi-head self attention (post-norm TransformerEncoderLayer) ----
        qkv = (_mm(h.reshape(M, D_MODEL), qkv_w_ref[l])
               + qkv_b_ref[l:l + 1, :]).reshape(TB, S, 3 * D_MODEL)
        ow_l = out_w_ref[l]                                     # (D, D) bf16

        attn = jnp.zeros((M, D_MODEL), jnp.float32)
        for hh in range(N_HEADS):                               # static lane slices, no relayout
            q0 = hh * HEAD_DIM
            k0 = D_MODEL + hh * HEAD_DIM
            v0 = 2 * D_MODEL + hh * HEAD_DIM
            q_h = qkv[:, :, q0:q0 + HEAD_DIM].astype(jnp.bfloat16)   # pre-scaled by 1/sqrt(HD)
            k_h = qkv[:, :, k0:k0 + HEAD_DIM].astype(jnp.bfloat16)
            v_h = qkv[:, :, v0:v0 + HEAD_DIM].astype(jnp.bfloat16)

            s_h = jnp.einsum('bqd,bkd->bqk', q_h, k_h,
                             preferred_element_type=jnp.float32)     # (TB, S, S) f32
            s_h = s_h + neg_mask

            m = jnp.max(s_h, axis=-1, keepdims=True)
            e = jnp.exp(s_h - m)
            p = e * pl.reciprocal(jnp.sum(e, axis=-1, keepdims=True), approx=True)

            ctx_h = jnp.einsum('bqk,bkd->bqd', p.astype(jnp.bfloat16), v_h,
                               preferred_element_type=jnp.float32)   # (TB, S, HD)
            # head-summed output projection: ctx_h @ out_w rows [h*HD, (h+1)*HD)
            attn = attn + _mm(ctx_h.reshape(M, HEAD_DIM),
                              ow_l[q0:q0 + HEAD_DIM, :])

        attn = attn.reshape(TB, S, D_MODEL) + out_b_ref[l:l + 1, :]
        h = _layer_norm(h + attn, ln1_w_ref[l:l + 1, :], ln1_b_ref[l:l + 1, :])

        # ---- feed forward (relu), single (M,128)x(128,512) / (M,512)x(512,128) ----
        ff = _mm(h.reshape(M, D_MODEL), ff1_w_ref[l]) + ff1_b_ref[l:l + 1, :]
        ff = jnp.maximum(ff, 0.0)
        ff = _mm(ff, ff2_w_ref[l]) + ff2_b_ref[l:l + 1, :]
        h = _layer_norm(h + ff.reshape(TB, S, D_MODEL),
                        ln2_w_ref[l:l + 1, :], ln2_b_ref[l:l + 1, :])

    # memory.permute(1,2,0).mean(-1) == mean over sequence
    pooled = jnp.mean(h, axis=1)                                # (TB, D)

    # classifier Linear(d_model, n_classes) into a lane-dense (TB, 128) tile
    o_ref[0] = _mm(pooled, cls_w_ref[...]) + cls_b_ref[...]


# ------------------------------- wrappers ----------------------------------
def positional_encoding(seq_len, d_model):
    position = jnp.arange(seq_len, dtype=jnp.float32)[:, None]
    div_term = jnp.exp(jnp.arange(0, d_model, 2, dtype=jnp.float32)
                       * (-math.log(10000.0) / d_model))
    pe = jnp.zeros((seq_len, d_model), jnp.float32)
    pe = pe.at[:, 0::2].set(jnp.sin(position * div_term))
    pe = pe.at[:, 1::2].set(jnp.cos(position * div_term))
    return pe


def init_params(key):
    """All weights stored pre-transposed to (in, out) layout."""
    ks = jax.random.split(key, 12)

    def w(k, shape, scale=0.02):
        return (scale * jax.random.normal(k, shape)).astype(jnp.float32)

    return dict(
        w_in=w(ks[0], (IN_CHANNELS, D_MODEL)),
        b_in=w(ks[1], (1, D_MODEL)),
        qkv_w=w(ks[2], (NUM_LAYERS, D_MODEL, 3 * D_MODEL)),
        qkv_b=w(ks[3], (NUM_LAYERS, 3 * D_MODEL)),
        out_w=w(ks[4], (NUM_LAYERS, D_MODEL, D_MODEL)),
        out_b=w(ks[5], (NUM_LAYERS, D_MODEL)),
        ln1_w=jnp.ones((NUM_LAYERS, D_MODEL), jnp.float32),
        ln1_b=jnp.zeros((NUM_LAYERS, D_MODEL), jnp.float32),
        ff1_w=w(ks[6], (NUM_LAYERS, D_MODEL, DIM_FF)),
        ff1_b=w(ks[7], (NUM_LAYERS, DIM_FF)),
        ff2_w=w(ks[8], (NUM_LAYERS, DIM_FF, D_MODEL)),
        ff2_b=w(ks[9], (NUM_LAYERS, D_MODEL)),
        ln2_w=jnp.ones((NUM_LAYERS, D_MODEL), jnp.float32),
        ln2_b=jnp.zeros((NUM_LAYERS, D_MODEL), jnp.float32),
        cls_w=w(ks[10], (D_MODEL, N_CLASSES)),
        cls_b=w(ks[11], (1, N_CLASSES)),
    )


def _choose_batch_tile(B, S):
    """Batch tile: target TB*S >= 256 rows per matmul, keep >= 2 grid steps
    when possible (v7x has 2 TensorCores), and respect a ~20 MiB live-f32
    VMEM budget (v7x has only 64 MiB physical VMEM)."""
    tb = max(1, min(B, -(-256 // S)))          # ceil(256 / S), capped at B
    if B >= 2 and B < 2 * tb:
        tb = max(1, B // 2)                    # ensure at least 2 grid steps
    def est_bytes(t):
        # h + qkv + ff + attn (f32) + per-head scores/exp (f32)
        return 4 * t * S * (128 + 384 + 512 + 128) + 8 * t * N_HEADS * S * S
    while tb > 1 and est_bytes(tb) > 20 * 1024 * 1024:
        tb = (tb + 1) // 2
    return tb


@jax.jit
def model_forward(x_ncl, params):
    """x_ncl: (batch, in_channels=32, seq_len) float32 -> (batch, n_classes)."""
    B, C, S = x_ncl.shape
    bf16 = jnp.bfloat16
    scale = 1.0 / math.sqrt(HEAD_DIM)

    TB = _choose_batch_tile(B, S)
    G = -(-B // TB)
    B_pad = G * TB

    # glue: NCL -> (B, S, C) bf16 (size-preserving, no 128-lane pad copy),
    # batch zero-padded to a multiple of TB
    x_bsc = jnp.transpose(x_ncl, (0, 2, 1)).astype(bf16)
    if B_pad != B:
        x_bsc = jnp.pad(x_bsc, ((0, B_pad - B), (0, 0), (0, 0)))

    # precomputed resident inputs: (input bias + positional encoding), causal mask
    pe_bias = positional_encoding(S, D_MODEL) + params["b_in"]          # (S, D)
    neg_mask = jnp.triu(jnp.full((S, S), -1e30, jnp.float32), k=1)      # (S, S)

    # fold 1/sqrt(head_dim) into the Q slice of the fused QKV projection
    qkv_w = params["qkv_w"].at[:, :, :D_MODEL].multiply(scale).astype(bf16)
    qkv_b = params["qkv_b"].at[:, :D_MODEL].multiply(scale)

    w_in = params["w_in"].astype(bf16)
    cls_w = jnp.pad(params["cls_w"], ((0, 0), (0, N_PAD - N_CLASSES))).astype(bf16)
    cls_b = jnp.pad(params["cls_b"], ((0, 0), (0, N_PAD - N_CLASSES)))

    weight_args = (
        w_in,
        qkv_w, qkv_b,
        params["out_w"].astype(bf16), params["out_b"],
        params["ln1_w"], params["ln1_b"],
        params["ff1_w"].astype(bf16), params["ff1_b"],
        params["ff2_w"].astype(bf16), params["ff2_b"],
        params["ln2_w"], params["ln2_b"],
        cls_w, cls_b,
    )

    def resident(a):
        # full-array block, constant index map -> stays VMEM-resident across grid
        nd = a.ndim
        return pl.BlockSpec(a.shape, lambda b, _nd=nd: (0,) * _nd)

    in_specs = ([pl.BlockSpec((TB, S, C), lambda b: (b, 0, 0)),
                 pl.BlockSpec((S, D_MODEL), lambda b: (0, 0)),
                 pl.BlockSpec((S, S), lambda b: (0, 0))]
                + [resident(a) for a in weight_args])

    out = pl.pallas_call(
        transformer_kernel,
        out_shape=jax.ShapeDtypeStruct((G, TB, N_PAD), jnp.float32),
        grid=(G,),
        in_specs=in_specs,
        out_specs=pl.BlockSpec((1, TB, N_PAD), lambda b: (b, 0, 0)),
        compiler_params=pltpu.CompilerParams(
            dimension_semantics=("parallel",),       # batch blocks sharded across TCs (v7x)
            vmem_limit_bytes=32 * 1024 * 1024),      # tile selection budgets ~20 MiB live
    )(x_bsc, pe_bias, neg_mask, *weight_args)

    return out.reshape(B_pad, N_PAD)[:B, :N_CLASSES]   # drop batch + class padding


# --------------------------- pure-JAX reference ----------------------------
def _ref_ln(x, w, b):
    mu = jnp.mean(x, axis=-1, keepdims=True)
    xc = x - mu
    var = jnp.mean(xc * xc, axis=-1, keepdims=True)
    return xc * jax.lax.rsqrt(var + LN_EPS) * w + b


def reference_forward(x_ncl, params):
    B, C, S = x_ncl.shape
    x = jnp.transpose(x_ncl, (2, 0, 1))                          # (S, B, C)
    h = x @ params["w_in"] + params["b_in"][0]                   # (S, B, D)
    h = h + positional_encoding(S, D_MODEL)[:, None, :]
    mask = jnp.where(jnp.triu(jnp.ones((S, S)), k=1) > 0, -1e30, 0.0)
    for l in range(NUM_LAYERS):
        qkv = h @ params["qkv_w"][l] + params["qkv_b"][l]
        q, k, v = jnp.split(qkv, 3, axis=-1)

        def heads(t):  # (S,B,D) -> (B,H,S,HD)
            return jnp.transpose(t.reshape(S, B, N_HEADS, HEAD_DIM), (1, 2, 0, 3))

        qh, kh, vh = heads(q), heads(k), heads(v)
        scores = jnp.einsum("bhqd,bhkd->bhqk", qh, kh) / math.sqrt(HEAD_DIM) + mask
        p = jax.nn.softmax(scores, axis=-1)
        ctx = jnp.einsum("bhqk,bhkd->bhqd", p, vh)
        ctx = jnp.transpose(ctx, (2, 0, 1, 3)).reshape(S, B, D_MODEL)
        attn = ctx @ params["out_w"][l] + params["out_b"][l]
        h = _ref_ln(h + attn, params["ln1_w"][l], params["ln1_b"][l])
        ff = jax.nn.relu(h @ params["ff1_w"][l] + params["ff1_b"][l])
        ff = ff @ params["ff2_w"][l] + params["ff2_b"][l]
        h = _ref_ln(h + ff, params["ln2_w"][l], params["ln2_b"][l])
    pooled = jnp.mean(jnp.transpose(h, (1, 2, 0)), axis=-1)      # (B, D)
    return pooled @ params["cls_w"] + params["cls_b"][0]


# ---------------------------------- main -----------------------------------
if __name__ == "__main__":
    key = jax.random.PRNGKey(0)
    kx, kp = jax.random.split(key)
    batch, seq_len = 2, 8
    x = jax.random.normal(kx, (batch, IN_CHANNELS, seq_len), jnp.float32)
    params = init_params(kp)

    out = model_forward(x, params)
    jax.block_until_ready(out)
    assert out.shape == (batch, N_CLASSES)

    ref = reference_forward(x, params)
    # bf16 matmuls (f32 accumulation) + approx softmax reciprocal -> loose tolerance
    np.testing.assert_allclose(np.asarray(out), np.asarray(ref), rtol=5e-2, atol=2e-2)

    print("KERNEL_OK")
</pallas_src>

<mosaic_0001>
module attributes {stable_mosaic.version = 11 : i64} {
  func.func @transformer_kernel(%arg0: i32, %arg1: memref<1x8x32xbf16, #tpu.memory_space<vmem>>, %arg2: memref<8x128xf32, #tpu.memory_space<vmem>>, %arg3: memref<8x8xf32, #tpu.memory_space<vmem>>, %arg4: memref<32x128xbf16, #tpu.memory_space<vmem>>, %arg5: memref<3x128x384xbf16, #tpu.memory_space<vmem>>, %arg6: memref<3x384xf32, #tpu.memory_space<vmem>>, %arg7: memref<3x128x128xbf16, #tpu.memory_space<vmem>>, %arg8: memref<3x128xf32, #tpu.memory_space<vmem>>, %arg9: memref<3x128xf32, #tpu.memory_space<vmem>>, %arg10: memref<3x128xf32, #tpu.memory_space<vmem>>, %arg11: memref<3x128x512xbf16, #tpu.memory_space<vmem>>, %arg12: memref<3x512xf32, #tpu.memory_space<vmem>>, %arg13: memref<3x512x128xbf16, #tpu.memory_space<vmem>>, %arg14: memref<3x128xf32, #tpu.memory_space<vmem>>, %arg15: memref<3x128xf32, #tpu.memory_space<vmem>>, %arg16: memref<3x128xf32, #tpu.memory_space<vmem>>, %arg17: memref<128x128xbf16, #tpu.memory_space<vmem>>, %arg18: memref<1x128xf32, #tpu.memory_space<vmem>>, %arg19: memref<1x1x128xf32, #tpu.memory_space<vmem>>) attributes {dimension_semantics = [#tpu.dimension_semantics<parallel>], iteration_bounds = array<i64: 2>, scalar_prefetch = 0 : i64, scratch_operands = 0 : i64, tpu.core_type = #tpu.core_type<tc>, window_params = [{transform_indices = @transform_0, window_bounds = array<i64: 1, 8, 32>}, {pipeline_mode = #tpu.pipeline_mode<synchronous>, transform_indices = @transform_1, window_bounds = array<i64: 8, 128>}, {pipeline_mode = #tpu.pipeline_mode<synchronous>, transform_indices = @transform_2, window_bounds = array<i64: 8, 8>}, {pipeline_mode = #tpu.pipeline_mode<synchronous>, transform_indices = @transform_3, window_bounds = array<i64: 32, 128>}, {pipeline_mode = #tpu.pipeline_mode<synchronous>, transform_indices = @transform_4, window_bounds = array<i64: 3, 128, 384>}, {pipeline_mode = #tpu.pipeline_mode<synchronous>, transform_indices = @transform_5, window_bounds = array<i64: 3, 384>}, {pipeline_mode = #tpu.pipeline_mode<synchronous>, transform_indices = @transform_6, window_bounds = array<i64: 3, 128, 128>}, {pipeline_mode = #tpu.pipeline_mode<synchronous>, transform_indices = @transform_7, window_bounds = array<i64: 3, 128>}, {pipeline_mode = #tpu.pipeline_mode<synchronous>, transform_indices = @transform_8, window_bounds = array<i64: 3, 128>}, {pipeline_mode = #tpu.pipeline_mode<synchronous>, transform_indices = @transform_9, window_bounds = array<i64: 3, 128>}, {pipeline_mode = #tpu.pipeline_mode<synchronous>, transform_indices = @transform_10, window_bounds = array<i64: 3, 128, 512>}, {pipeline_mode = #tpu.pipeline_mode<synchronous>, transform_indices = @transform_11, window_bounds = array<i64: 3, 512>}, {pipeline_mode = #tpu.pipeline_mode<synchronous>, transform_indices = @transform_12, window_bounds = array<i64: 3, 512, 128>}, {pipeline_mode = #tpu.pipeline_mode<synchronous>, transform_indices = @transform_13, window_bounds = array<i64: 3, 128>}, {pipeline_mode = #tpu.pipeline_mode<synchronous>, transform_indices = @transform_14, window_bounds = array<i64: 3, 128>}, {pipeline_mode = #tpu.pipeline_mode<synchronous>, transform_indices = @transform_15, window_bounds = array<i64: 3, 128>}, {pipeline_mode = #tpu.pipeline_mode<synchronous>, transform_indices = @transform_16, window_bounds = array<i64: 128, 128>}, {pipeline_mode = #tpu.pipeline_mode<synchronous>, transform_indices = @transform_17, window_bounds = array<i64: 1, 128>}, {transform_indices = @transform_18, window_bounds = array<i64: 1, 1, 128>}]} {
    %c0 = arith.constant 0 : index
    %c0_0 = arith.constant 0 : index
    %c0_1 = arith.constant 0 : index
    %0 = vector.load %arg1[%c0, %c0_0, %c0_1] : memref<1x8x32xbf16, #tpu.memory_space<vmem>>, vector<1x8x32xbf16>
    %1 = vector.shape_cast %0 : vector<1x8x32xbf16> to vector<8x32xbf16>
    %c0_2 = arith.constant 0 : index
    %c0_3 = arith.constant 0 : index
    %2 = vector.load %arg4[%c0_2, %c0_3] : memref<32x128xbf16, #tpu.memory_space<vmem>>, vector<32x128xbf16>
    %cst = arith.constant dense<0.000000e+00> : vector<8x128xf32>
    %3 = tpu.matmul %1, %2, %cst {dimension_numbers = #tpu.dot_dimension_numbers<[1], [0], [0], [1], [0, 0, 1, 1], [], []>} : vector<8x32xbf16>, vector<32x128xbf16>, vector<8x128xf32> -> vector<8x128xf32>
    %4 = vector.shape_cast %3 : vector<8x128xf32> to vector<1x8x128xf32>
    %c0_4 = arith.constant 0 : index
    %c0_5 = arith.constant 0 : index
    %5 = vector.load %arg2[%c0_4, %c0_5] : memref<8x128xf32, #tpu.memory_space<vmem>>, vector<8x128xf32>
    %6 = vector.shape_cast %5 : vector<8x128xf32> to vector<1x8x128xf32>
    %7 = arith.addf %4, %6 : vector<1x8x128xf32>
    %c0_6 = arith.constant 0 : index
    %c0_7 = arith.constant 0 : index
    %8 = vector.load %arg3[%c0_6, %c0_7] : memref<8x8xf32, #tpu.memory_space<vmem>>, vector<8x8xf32>
    %9 = vector.shape_cast %8 : vector<8x8xf32> to vector<1x8x8xf32>
    %10 = vector.shape_cast %7 : vector<1x8x128xf32> to vector<8x128xf32>
    %c0_8 = arith.constant 0 : index
    %c0_9 = arith.constant 0 : index
    %c0_10 = arith.constant 0 : index
    %11 = vector.load %arg5[%c0_8, %c0_9, %c0_10] : memref<3x128x384xbf16, #tpu.memory_space<vmem>>, vector<1x128x384xbf16>
    %12 = vector.shape_cast %11 : vector<1x128x384xbf16> to vector<128x384xbf16>
    %13 = arith.truncf %10 : vector<8x128xf32> to vector<8x128xbf16>
    %cst_11 = arith.constant dense<0.000000e+00> : vector<8x384xf32>
    %14 = tpu.matmul %13, %12, %cst_11 {dimension_numbers = #tpu.dot_dimension_numbers<[1], [0], [0], [1], [0, 0, 1, 1], [], []>} : vector<8x128xbf16>, vector<128x384xbf16>, vector<8x384xf32> -> vector<8x384xf32>
    %c0_12 = arith.constant 0 : index
    %c0_13 = arith.constant 0 : index
    %15 = vector.load %arg6[%c0_12, %c0_13] : memref<3x384xf32, #tpu.memory_space<vmem>>, vector<1x384xf32>
    %16 = vector.broadcast %15 : vector<1x384xf32> to vector<8x384xf32>
    %17 = arith.addf %14, %16 : vector<8x384xf32>
    %18 = vector.shape_cast %17 : vector<8x384xf32> to vector<1x8x384xf32>
    %c0_14 = arith.constant 0 : index
    %c0_15 = arith.constant 0 : index
    %c0_16 = arith.constant 0 : index
    %19 = vector.load %arg7[%c0_14, %c0_15, %c0_16] : memref<3x128x128xbf16, #tpu.memory_space<vmem>>, vector<1x128x128xbf16>
    %20 = vector.shape_cast %19 : vector<1x128x128xbf16> to vector<128x128xbf16>
    %cst_17 = arith.constant 0.000000e+00 : f32
    %21 = vector.broadcast %cst_17 : f32 to vector<8x128xf32>
    %22 = vector.extract_strided_slice %18 {offsets = [0, 0, 0], sizes = [1, 8, 32], strides = [1, 1, 1]} : vector<1x8x384xf32> to vector<1x8x32xf32>
    %23 = arith.truncf %22 : vector<1x8x32xf32> to vector<1x8x32xbf16>
    %24 = vector.extract_strided_slice %18 {offsets = [0, 0, 128], sizes = [1, 8, 32], strides = [1, 1, 1]} : vector<1x8x384xf32> to vector<1x8x32xf32>
    %25 = arith.truncf %24 : vector<1x8x32xf32> to vector<1x8x32xbf16>
    %26 = vector.extract_strided_slice %18 {offsets = [0, 0, 256], sizes = [1, 8, 32], strides = [1, 1, 1]} : vector<1x8x384xf32> to vector<1x8x32xf32>
    %27 = arith.truncf %26 : vector<1x8x32xf32> to vector<1x8x32xbf16>
    "tpu.trace_start"() <{level = 10 : i32, message = "bqd,bkd->bqk"}> : () -> ()
    %cst_18 = arith.constant dense<0.000000e+00> : vector<1x8x8xf32>
    %28 = tpu.matmul %23, %25, %cst_18 {dimension_numbers = #tpu.dot_dimension_numbers<[2], [2], [1], [1], [0, 0, 0, 1, 1, 1], [0], [0]>} : vector<1x8x32xbf16>, vector<1x8x32xbf16>, vector<1x8x8xf32> -> vector<1x8x8xf32>
    "tpu.trace_stop"() : () -> ()
    %29 = arith.addf %28, %9 : vector<1x8x8xf32>
    %cst_19 = arith.constant dense<0xFF800000> : vector<1x8xf32>
    %30 = vector.multi_reduction <maximumf>, %29, %cst_19 [2] : vector<1x8x8xf32> to vector<1x8xf32>
    %31 = vector.shape_cast %30 : vector<1x8xf32> to vector<1x8x1xf32>
    %32 = vector.broadcast %31 : vector<1x8x1xf32> to vector<1x8x8xf32>
    %33 = arith.subf %29, %32 : vector<1x8x8xf32>
    %34 = math.exp %33 : vector<1x8x8xf32>
    %cst_20 = arith.constant dense<0.000000e+00> : vector<1x8xf32>
    %35 = vector.multi_reduction <add>, %34, %cst_20 [2] : vector<1x8x8xf32> to vector<1x8xf32>
    %36 = vector.shape_cast %35 : vector<1x8xf32> to vector<1x8x1xf32>
    %37 = tpu.reciprocal %36 {approx = true} : vector<1x8x1xf32> -> vector<1x8x1xf32>
    %38 = vector.broadcast %37 : vector<1x8x1xf32> to vector<1x8x8xf32>
    %39 = arith.mulf %34, %38 : vector<1x8x8xf32>
    %40 = arith.truncf %39 : vector<1x8x8xf32> to vector<1x8x8xbf16>
    "tpu.trace_start"() <{level = 10 : i32, message = "bqk,bkd->bqd"}> : () -> ()
    %cst_21 = arith.constant dense<0.000000e+00> : vector<1x8x32xf32>
    %41 = tpu.matmul %40, %27, %cst_21 {dimension_numbers = #tpu.dot_dimension_numbers<[2], [1], [1], [2], [0, 0, 0, 1, 1, 2], [0], [0]>} : vector<1x8x8xbf16>, vector<1x8x32xbf16>, vector<1x8x32xf32> -> vector<1x8x32xf32>
    "tpu.trace_stop"() : () -> ()
    %42 = vector.shape_cast %41 : vector<1x8x32xf32> to vector<8x32xf32>
    %43 = vector.extract_strided_slice %20 {offsets = [0, 0], sizes = [32, 128], strides = [1, 1]} : vector<128x128xbf16> to vector<32x128xbf16>
    %44 = arith.truncf %42 : vector<8x32xf32> to vector<8x32xbf16>
    %cst_22 = arith.constant dense<0.000000e+00> : vector<8x128xf32>
    %45 = tpu.matmul %44, %43, %cst_22 {dimension_numbers = #tpu.dot_dimension_numbers<[1], [0], [0], [1], [0, 0, 1, 1], [], []>} : vector<8x32xbf16>, vector<32x128xbf16>, vector<8x128xf32> -> vector<8x128xf32>
    %46 = arith.addf %21, %45 : vector<8x128xf32>
    %47 = vector.extract_strided_slice %18 {offsets = [0, 0, 32], sizes = [1, 8, 32], strides = [1, 1, 1]} : vector<1x8x384xf32> to vector<1x8x32xf32>
    %48 = arith.truncf %47 : vector<1x8x32xf32> to vector<1x8x32xbf16>
    %49 = vector.extract_strided_slice %18 {offsets = [0, 0, 160], sizes = [1, 8, 32], strides = [1, 1, 1]} : vector<1x8x384xf32> to vector<1x8x32xf32>
    %50 = arith.truncf %49 : vector<1x8x32xf32> to vector<1x8x32xbf16>
    %51 = vector.extract_strided_slice %18 {offsets = [0, 0, 288], sizes = [1, 8, 32], strides = [1, 1, 1]} : vector<1x8x384xf32> to vector<1x8x32xf32>
    %52 = arith.truncf %51 : vector<1x8x32xf32> to vector<1x8x32xbf16>
    "tpu.trace_start"() <{level = 10 : i32, message = "bqd,bkd->bqk"}> : () -> ()
    %cst_23 = arith.constant dense<0.000000e+00> : vector<1x8x8xf32>
    %53 = tpu.matmul %48, %50, %cst_23 {dimension_numbers = #tpu.dot_dimension_numbers<[2], [2], [1], [1], [0, 0, 0, 1, 1, 1], [0], [0]>} : vector<1x8x32xbf16>, vector<1x8x32xbf16>, vector<1x8x8xf32> -> vector<1x8x8xf32>
    "tpu.trace_stop"() : () -> ()
    %54 = arith.addf %53, %9 : vector<1x8x8xf32>
    %cst_24 = arith.constant dense<0xFF800000> : vector<1x8xf32>
    %55 = vector.multi_reduction <maximumf>, %54, %cst_24 [2] : vector<1x8x8xf32> to vector<1x8xf32>
    %56 = vector.shape_cast %55 : vector<1x8xf32> to vector<1x8x1xf32>
    %57 = vector.broadcast %56 : vector<1x8x1xf32> to vector<1x8x8xf32>
    %58 = arith.subf %54, %57 : vector<1x8x8xf32>
    %59 = math.exp %58 : vector<1x8x8xf32>
    %cst_25 = arith.constant dense<0.000000e+00> : vector<1x8xf32>
    %60 = vector.multi_reduction <add>, %59, %cst_25 [2] : vector<1x8x8xf32> to vector<1x8xf32>
    %61 = vector.shape_cast %60 : vector<1x8xf32> to vector<1x8x1xf32>
    %62 = tpu.reciprocal %61 {approx = true} : vector<1x8x1xf32> -> vector<1x8x1xf32>
    %63 = vector.broadcast %62 : vector<1x8x1xf32> to vector<1x8x8xf32>
    %64 = arith.mulf %59, %63 : vector<1x8x8xf32>
    %65 = arith.truncf %64 : vector<1x8x8xf32> to vector<1x8x8xbf16>
    "tpu.trace_start"() <{level = 10 : i32, message = "bqk,bkd->bqd"}> : () -> ()
    %cst_26 = arith.constant dense<0.000000e+00> : vector<1x8x32xf32>
    %66 = tpu.matmul %65, %52, %cst_26 {dimension_numbers = #tpu.dot_dimension_numbers<[2], [1], [1], [2], [0, 0, 0, 1, 1, 2], [0], [0]>} : vector<1x8x8xbf16>, vector<1x8x32xbf16>, vector<1x8x32xf32> -> vector<1x8x32xf32>
    "tpu.trace_stop"() : () -> ()
    %67 = vector.shape_cast %66 : vector<1x8x32xf32> to vector<8x32xf32>
    %68 = vector.extract_strided_slice %20 {offsets = [32, 0], sizes = [32, 128], strides = [1, 1]} : vector<128x128xbf16> to vector<32x128xbf16>
    %69 = arith.truncf %67 : vector<8x32xf32> to vector<8x32xbf16>
    %cst_27 = arith.constant dense<0.000000e+00> : vector<8x128xf32>
    %70 = tpu.matmul %69, %68, %cst_27 {dimension_numbers = #tpu.dot_dimension_numbers<[1], [0], [0], [1], [0, 0, 1, 1], [], []>} : vector<8x32xbf16>, vector<32x128xbf16>, vector<8x128xf32> -> vector<8x128xf32>
    %71 = arith.addf %46, %70 : vector<8x128xf32>
    %72 = vector.extract_strided_slice %18 {offsets = [0, 0, 64], sizes = [1, 8, 32], strides = [1, 1, 1]} : vector<1x8x384xf32> to vector<1x8x32xf32>
    %73 = arith.truncf %72 : vector<1x8x32xf32> to vector<1x8x32xbf16>
    %74 = vector.extract_strided_slice %18 {offsets = [0, 0, 192], sizes = [1, 8, 32], strides = [1, 1, 1]} : vector<1x8x384xf32> to vector<1x8x32xf32>
    %75 = arith.truncf %74 : vector<1x8x32xf32> to vector<1x8x32xbf16>
    %76 = vector.extract_strided_slice %18 {offsets = [0, 0, 320], sizes = [1, 8, 32], strides = [1, 1, 1]} : vector<1x8x384xf32> to vector<1x8x32xf32>
    %77 = arith.truncf %76 : vector<1x8x32xf32> to vector<1x8x32xbf16>
    "tpu.trace_start"() <{level = 10 : i32, message = "bqd,bkd->bqk"}> : () -> ()
    %cst_28 = arith.constant dense<0.000000e+00> : vector<1x8x8xf32>
    %78 = tpu.matmul %73, %75, %cst_28 {dimension_numbers = #tpu.dot_dimension_numbers<[2], [2], [1], [1], [0, 0, 0, 1, 1, 1], [0], [0]>} : vector<1x8x32xbf16>, vector<1x8x32xbf16>, vector<1x8x8xf32> -> vector<1x8x8xf32>
    "tpu.trace_stop"() : () -> ()
    %79 = arith.addf %78, %9 : vector<1x8x8xf32>
    %cst_29 = arith.constant dense<0xFF800000> : vector<1x8xf32>
    %80 = vector.multi_reduction <maximumf>, %79, %cst_29 [2] : vector<1x8x8xf32> to vector<1x8xf32>
    %81 = vector.shape_cast %80 : vector<1x8xf32> to vector<1x8x1xf32>
    %82 = vector.broadcast %81 : vector<1x8x1xf32> to vector<1x8x8xf32>
    %83 = arith.subf %79, %82 : vector<1x8x8xf32>
    %84 = math.exp %83 : vector<1x8x8xf32>
    %cst_30 = arith.constant dense<0.000000e+00> : vector<1x8xf32>
    %85 = vector.multi_reduction <add>, %84, %cst_30 [2] : vector<1x8x8xf32> to vector<1x8xf32>
    %86 = vector.shape_cast %85 : vector<1x8xf32> to vector<1x8x1xf32>
    %87 = tpu.reciprocal %86 {approx = true} : vector<1x8x1xf32> -> vector<1x8x1xf32>
    %88 = vector.broadcast %87 : vector<1x8x1xf32> to vector<1x8x8xf32>
    %89 = arith.mulf %84, %88 : vector<1x8x8xf32>
    %90 = arith.truncf %89 : vector<1x8x8xf32> to vector<1x8x8xbf16>
    "tpu.trace_start"() <{level = 10 : i32, message = "bqk,bkd->bqd"}> : () -> ()
    %cst_31 = arith.constant dense<0.000000e+00> : vector<1x8x32xf32>
    %91 = tpu.matmul %90, %77, %cst_31 {dimension_numbers = #tpu.dot_dimension_numbers<[2], [1], [1], [2], [0, 0, 0, 1, 1, 2], [0], [0]>} : vector<1x8x8xbf16>, vector<1x8x32xbf16>, vector<1x8x32xf32> -> vector<1x8x32xf32>
    "tpu.trace_stop"() : () -> ()
    %92 = vector.shape_cast %91 : vector<1x8x32xf32> to vector<8x32xf32>
    %93 = vector.extract_strided_slice %20 {offsets = [64, 0], sizes = [32, 128], strides = [1, 1]} : vector<128x128xbf16> to vector<32x128xbf16>
    %94 = arith.truncf %92 : vector<8x32xf32> to vector<8x32xbf16>
    %cst_32 = arith.constant dense<0.000000e+00> : vector<8x128xf32>
    %95 = tpu.matmul %94, %93, %cst_32 {dimension_numbers = #tpu.dot_dimension_numbers<[1], [0], [0], [1], [0, 0, 1, 1], [], []>} : vector<8x32xbf16>, vector<32x128xbf16>, vector<8x128xf32> -> vector<8x128xf32>
    %96 = arith.addf %71, %95 : vector<8x128xf32>
    %97 = vector.extract_strided_slice %18 {offsets = [0, 0, 96], sizes = [1, 8, 32], strides = [1, 1, 1]} : vector<1x8x384xf32> to vector<1x8x32xf32>
    %98 = arith.truncf %97 : vector<1x8x32xf32> to vector<1x8x32xbf16>
    %99 = vector.extract_strided_slice %18 {offsets = [0, 0, 224], sizes = [1, 8, 32], strides = [1, 1, 1]} : vector<1x8x384xf32> to vector<1x8x32xf32>
    %100 = arith.truncf %99 : vector<1x8x32xf32> to vector<1x8x32xbf16>
    %101 = vector.extract_strided_slice %18 {offsets = [0, 0, 352], sizes = [1, 8, 32], strides = [1, 1, 1]} : vector<1x8x384xf32> to vector<1x8x32xf32>
    %102 = arith.truncf %101 : vector<1x8x32xf32> to vector<1x8x32xbf16>
    "tpu.trace_start"() <{level = 10 : i32, message = "bqd,bkd->bqk"}> : () -> ()
    %cst_33 = arith.constant dense<0.000000e+00> : vector<1x8x8xf32>
    %103 = tpu.matmul %98, %100, %cst_33 {dimension_numbers = #tpu.dot_dimension_numbers<[2], [2], [1], [1], [0, 0, 0, 1, 1, 1], [0], [0]>} : vector<1x8x32xbf16>, vector<1x8x32xbf16>, vector<1x8x8xf32> -> vector<1x8x8xf32>
    "tpu.trace_stop"() : () -> ()
    %104 = arith.addf %103, %9 : vector<1x8x8xf32>
    %cst_34 = arith.constant dense<0xFF800000> : vector<1x8xf32>
    %105 = vector.multi_reduction <maximumf>, %104, %cst_34 [2] : vector<1x8x8xf32> to vector<1x8xf32>
    %106 = vector.shape_cast %105 : vector<1x8xf32> to vector<1x8x1xf32>
    %107 = vector.broadcast %106 : vector<1x8x1xf32> to vector<1x8x8xf32>
    %108 = arith.subf %104, %107 : vector<1x8x8xf32>
    %109 = math.exp %108 : vector<1x8x8xf32>
    %cst_35 = arith.constant dense<0.000000e+00> : vector<1x8xf32>
    %110 = vector.multi_reduction <add>, %109, %cst_35 [2] : vector<1x8x8xf32> to vector<1x8xf32>
    %111 = vector.shape_cast %110 : vector<1x8xf32> to vector<1x8x1xf32>
    %112 = tpu.reciprocal %111 {approx = true} : vector<1x8x1xf32> -> vector<1x8x1xf32>
    %113 = vector.broadcast %112 : vector<1x8x1xf32> to vector<1x8x8xf32>
    %114 = arith.mulf %109, %113 : vector<1x8x8xf32>
    %115 = arith.truncf %114 : vector<1x8x8xf32> to vector<1x8x8xbf16>
    "tpu.trace_start"() <{level = 10 : i32, message = "bqk,bkd->bqd"}> : () -> ()
    %cst_36 = arith.constant dense<0.000000e+00> : vector<1x8x32xf32>
    %116 = tpu.matmul %115, %102, %cst_36 {dimension_numbers = #tpu.dot_dimension_numbers<[2], [1], [1], [2], [0, 0, 0, 1, 1, 2], [0], [0]>} : vector<1x8x8xbf16>, vector<1x8x32xbf16>, vector<1x8x32xf32> -> vector<1x8x32xf32>
    "tpu.trace_stop"() : () -> ()
    %117 = vector.shape_cast %116 : vector<1x8x32xf32> to vector<8x32xf32>
    %118 = vector.extract_strided_slice %20 {offsets = [96, 0], sizes = [32, 128], strides = [1, 1]} : vector<128x128xbf16> to vector<32x128xbf16>
    %119 = arith.truncf %117 : vector<8x32xf32> to vector<8x32xbf16>
    %cst_37 = arith.constant dense<0.000000e+00> : vector<8x128xf32>
    %120 = tpu.matmul %119, %118, %cst_37 {dimension_numbers = #tpu.dot_dimension_numbers<[1], [0], [0], [1], [0, 0, 1, 1], [], []>} : vector<8x32xbf16>, vector<32x128xbf16>, vector<8x128xf32> -> vector<8x128xf32>
    %121 = arith.addf %96, %120 : vector<8x128xf32>
    %122 = vector.shape_cast %121 : vector<8x128xf32> to vector<1x8x128xf32>
    %c0_38 = arith.constant 0 : index
    %c0_39 = arith.constant 0 : index
    %123 = vector.load %arg8[%c0_38, %c0_39] : memref<3x128xf32, #tpu.memory_space<vmem>>, vector<1x128xf32>
    %124 = vector.shape_cast %123 : vector<1x128xf32> to vector<1x1x128xf32>
    %125 = vector.broadcast %124 : vector<1x1x128xf32> to vector<1x8x128xf32>
    %126 = arith.addf %122, %125 : vector<1x8x128xf32>
    %127 = arith.addf %7, %126 : vector<1x8x128xf32>
    %c0_40 = arith.constant 0 : index
    %c0_41 = arith.constant 0 : index
    %128 = vector.load %arg9[%c0_40, %c0_41] : memref<3x128xf32, #tpu.memory_space<vmem>>, vector<1x128xf32>
    %c0_42 = arith.constant 0 : index
    %c0_43 = arith.constant 0 : index
    %129 = vector.load %arg10[%c0_42, %c0_43] : memref<3x128xf32, #tpu.memory_space<vmem>>, vector<1x128xf32>
    %cst_44 = arith.constant dense<0.000000e+00> : vector<1x8xf32>
    %130 = vector.multi_reduction <add>, %127, %cst_44 [2] : vector<1x8x128xf32> to vector<1x8xf32>
    %131 = vector.shape_cast %130 : vector<1x8xf32> to vector<1x8x1xf32>
    %cst_45 = arith.constant 1.280000e+02 : f32
    %132 = vector.broadcast %cst_45 : f32 to vector<1x8x1xf32>
    %133 = arith.divf %131, %132 : vector<1x8x1xf32>
    %134 = vector.broadcast %133 : vector<1x8x1xf32> to vector<1x8x128xf32>
    %135 = arith.subf %127, %134 : vector<1x8x128xf32>
    %136 = arith.mulf %135, %135 : vector<1x8x128xf32>
    %cst_46 = arith.constant dense<0.000000e+00> : vector<1x8xf32>
    %137 = vector.multi_reduction <add>, %136, %cst_46 [2] : vector<1x8x128xf32> to vector<1x8xf32>
    %138 = vector.shape_cast %137 : vector<1x8xf32> to vector<1x8x1xf32>
    %cst_47 = arith.constant 1.280000e+02 : f32
    %139 = vector.broadcast %cst_47 : f32 to vector<1x8x1xf32>
    %140 = arith.divf %138, %139 : vector<1x8x1xf32>
    %cst_48 = arith.constant 9.99999974E-6 : f32
    %141 = vector.broadcast %cst_48 : f32 to vector<1x8x1xf32>
    %142 = arith.addf %140, %141 : vector<1x8x1xf32>
    %143 = math.rsqrt %142 : vector<1x8x1xf32>
    %144 = vector.broadcast %143 : vector<1x8x1xf32> to vector<1x8x128xf32>
    %145 = arith.mulf %135, %144 : vector<1x8x128xf32>
    %146 = vector.shape_cast %128 : vector<1x128xf32> to vector<1x1x128xf32>
    %147 = vector.broadcast %146 : vector<1x1x128xf32> to vector<1x8x128xf32>
    %148 = arith.mulf %145, %147 : vector<1x8x128xf32>
    %149 = vector.shape_cast %129 : vector<1x128xf32> to vector<1x1x128xf32>
    %150 = vector.broadcast %149 : vector<1x1x128xf32> to vector<1x8x128xf32>
    %151 = arith.addf %148, %150 : vector<1x8x128xf32>
    %152 = vector.shape_cast %151 : vector<1x8x128xf32> to vector<8x128xf32>
    %c0_49 = arith.constant 0 : index
    %c0_50 = arith.constant 0 : index
    %c0_51 = arith.constant 0 : index
    %153 = vector.load %arg11[%c0_49, %c0_50, %c0_51] : memref<3x128x512xbf16, #tpu.memory_space<vmem>>, vector<1x128x512xbf16>
    %154 = vector.shape_cast %153 : vector<1x128x512xbf16> to vector<128x512xbf16>
    %155 = arith.truncf %152 : vector<8x128xf32> to vector<8x128xbf16>
    %cst_52 = arith.constant dense<0.000000e+00> : vector<8x512xf32>
    %156 = tpu.matmul %155, %154, %cst_52 {dimension_numbers = #tpu.dot_dimension_numbers<[1], [0], [0], [1], [0, 0, 1, 1], [], []>} : vector<8x128xbf16>, vector<128x512xbf16>, vector<8x512xf32> -> vector<8x512xf32>
    %c0_53 = arith.constant 0 : index
    %c0_54 = arith.constant 0 : index
    %157 = vector.load %arg12[%c0_53, %c0_54] : memref<3x512xf32, #tpu.memory_space<vmem>>, vector<1x512xf32>
    %158 = vector.broadcast %157 : vector<1x512xf32> to vector<8x512xf32>
    %159 = arith.addf %156, %158 : vector<8x512xf32>
    %cst_55 = arith.constant 0.000000e+00 : f32
    %160 = vector.broadcast %cst_55 : f32 to vector<8x512xf32>
    %161 = arith.maximumf %159, %160 : vector<8x512xf32>
    %c0_56 = arith.constant 0 : index
    %c0_57 = arith.constant 0 : index
    %c0_58 = arith.constant 0 : index
    %162 = vector.load %arg13[%c0_56, %c0_57, %c0_58] : memref<3x512x128xbf16, #tpu.memory_space<vmem>>, vector<1x512x128xbf16>
    %163 = vector.shape_cast %162 : vector<1x512x128xbf16> to vector<512x128xbf16>
    %164 = arith.truncf %161 : vector<8x512xf32> to vector<8x512xbf16>
    %cst_59 = arith.constant dense<0.000000e+00> : vector<8x128xf32>
    %165 = tpu.matmul %164, %163, %cst_59 {dimension_numbers = #tpu.dot_dimension_numbers<[1], [0], [0], [1], [0, 0, 1, 1], [], []>} : vector<8x512xbf16>, vector<512x128xbf16>, vector<8x128xf32> -> vector<8x128xf32>
    %c0_60 = arith.constant 0 : index
    %c0_61 = arith.constant 0 : index
    %166 = vector.load %arg14[%c0_60, %c0_61] : memref<3x128xf32, #tpu.memory_space<vmem>>, vector<1x128xf32>
    %167 = vector.broadcast %166 : vector<1x128xf32> to vector<8x128xf32>
    %168 = arith.addf %165, %167 : vector<8x128xf32>
    %169 = vector.shape_cast %168 : vector<8x128xf32> to vector<1x8x128xf32>
    %170 = arith.addf %151, %169 : vector<1x8x128xf32>
    %c0_62 = arith.constant 0 : index
    %c0_63 = arith.constant 0 : index
    %171 = vector.load %arg15[%c0_62, %c0_63] : memref<3x128xf32, #tpu.memory_space<vmem>>, vector<1x128xf32>
    %c0_64 = arith.constant 0 : index
    %c0_65 = arith.constant 0 : index
    %172 = vector.load %arg16[%c0_64, %c0_65] : memref<3x128xf32, #tpu.memory_space<vmem>>, vector<1x128xf32>
    %cst_66 = arith.constant dense<0.000000e+00> : vector<1x8xf32>
    %173 = vector.multi_reduction <add>, %170, %cst_66 [2] : vector<1x8x128xf32> to vector<1x8xf32>
    %174 = vector.shape_cast %173 : vector<1x8xf32> to vector<1x8x1xf32>
    %cst_67 = arith.constant 1.280000e+02 : f32
    %175 = vector.broadcast %cst_67 : f32 to vector<1x8x1xf32>
    %176 = arith.divf %174, %175 : vector<1x8x1xf32>
    %177 = vector.broadcast %176 : vector<1x8x1xf32> to vector<1x8x128xf32>
    %178 = arith.subf %170, %177 : vector<1x8x128xf32>
    %179 = arith.mulf %178, %178 : vector<1x8x128xf32>
    %cst_68 = arith.constant dense<0.000000e+00> : vector<1x8xf32>
    %180 = vector.multi_reduction <add>, %179, %cst_68 [2] : vector<1x8x128xf32> to vector<1x8xf32>
    %181 = vector.shape_cast %180 : vector<1x8xf32> to vector<1x8x1xf32>
    %cst_69 = arith.constant 1.280000e+02 : f32
    %182 = vector.broadcast %cst_69 : f32 to vector<1x8x1xf32>
    %183 = arith.divf %181, %182 : vector<1x8x1xf32>
    %cst_70 = arith.constant 9.99999974E-6 : f32
    %184 = vector.broadcast %cst_70 : f32 to vector<1x8x1xf32>
    %185 = arith.addf %183, %184 : vector<1x8x1xf32>
    %186 = math.rsqrt %185 : vector<1x8x1xf32>
    %187 = vector.broadcast %186 : vector<1x8x1xf32> to vector<1x8x128xf32>
    %188 = arith.mulf %178, %187 : vector<1x8x128xf32>
    %189 = vector.shape_cast %171 : vector<1x128xf32> to vector<1x1x128xf32>
    %190 = vector.broadcast %189 : vector<1x1x128xf32> to vector<1x8x128xf32>
    %191 = arith.mulf %188, %190 : vector<1x8x128xf32>
    %192 = vector.shape_cast %172 : vector<1x128xf32> to vector<1x1x128xf32>
    %193 = vector.broadcast %192 : vector<1x1x128xf32> to vector<1x8x128xf32>
    %194 = arith.addf %191, %193 : vector<1x8x128xf32>
    %195 = vector.shape_cast %194 : vector<1x8x128xf32> to vector<8x128xf32>
    %c1 = arith.constant 1 : index
    %c0_71 = arith.constant 0 : index
    %c0_72 = arith.constant 0 : index
    %196 = vector.load %arg5[%c1, %c0_71, %c0_72] : memref<3x128x384xbf16, #tpu.memory_space<vmem>>, vector<1x128x384xbf16>
    %197 = vector.shape_cast %196 : vector<1x128x384xbf16> to vector<128x384xbf16>
    %198 = arith.truncf %195 : vector<8x128xf32> to vector<8x128xbf16>
    %cst_73 = arith.constant dense<0.000000e+00> : vector<8x384xf32>
    %199 = tpu.matmul %198, %197, %cst_73 {dimension_numbers = #tpu.dot_dimension_numbers<[1], [0], [0], [1], [0, 0, 1, 1], [], []>} : vector<8x128xbf16>, vector<128x384xbf16>, vector<8x384xf32> -> vector<8x384xf32>
    %c1_74 = arith.constant 1 : index
    %c0_75 = arith.constant 0 : index
    %200 = vector.load %arg6[%c1_74, %c0_75] : memref<3x384xf32, #tpu.memory_space<vmem>>, vector<1x384xf32>
    %201 = vector.broadcast %200 : vector<1x384xf32> to vector<8x384xf32>
    %202 = arith.addf %199, %201 : vector<8x384xf32>
    %203 = vector.shape_cast %202 : vector<8x384xf32> to vector<1x8x384xf32>
    %c1_76 = arith.constant 1 : index
    %c0_77 = arith.constant 0 : index
    %c0_78 = arith.constant 0 : index
    %204 = vector.load %arg7[%c1_76, %c0_77, %c0_78] : memref<3x128x128xbf16, #tpu.memory_space<vmem>>, vector<1x128x128xbf16>
    %205 = vector.shape_cast %204 : vector<1x128x128xbf16> to vector<128x128xbf16>
    %cst_79 = arith.constant 0.000000e+00 : f32
    %206 = vector.broadcast %cst_79 : f32 to vector<8x128xf32>
    %207 = vector.extract_strided_slice %203 {offsets = [0, 0, 0], sizes = [1, 8, 32], strides = [1, 1, 1]} : vector<1x8x384xf32> to vector<1x8x32xf32>
    %208 = arith.truncf %207 : vector<1x8x32xf32> to vector<1x8x32xbf16>
    %209 = vector.extract_strided_slice %203 {offsets = [0, 0, 128], sizes = [1, 8, 32], strides = [1, 1, 1]} : vector<1x8x384xf32> to vector<1x8x32xf32>
    %210 = arith.truncf %209 : vector<1x8x32xf32> to vector<1x8x32xbf16>
    %211 = vector.extract_strided_slice %203 {offsets = [0, 0, 256], sizes = [1, 8, 32], strides = [1, 1, 1]} : vector<1x8x384xf32> to vector<1x8x32xf32>
    %212 = arith.truncf %211 : vector<1x8x32xf32> to vector<1x8x32xbf16>
    "tpu.trace_start"() <{level = 10 : i32, message = "bqd,bkd->bqk"}> : () -> ()
    %cst_80 = arith.constant dense<0.000000e+00> : vector<1x8x8xf32>
    %213 = tpu.matmul %208, %210, %cst_80 {dimension_numbers = #tpu.dot_dimension_numbers<[2], [2], [1], [1], [0, 0, 0, 1, 1, 1], [0], [0]>} : vector<1x8x32xbf16>, vector<1x8x32xbf16>, vector<1x8x8xf32> -> vector<1x8x8xf32>
    "tpu.trace_stop"() : () -> ()
    %214 = arith.addf %213, %9 : vector<1x8x8xf32>
    %cst_81 = arith.constant dense<0xFF800000> : vector<1x8xf32>
    %215 = vector.multi_reduction <maximumf>, %214, %cst_81 [2] : vector<1x8x8xf32> to vector<1x8xf32>
    %216 = vector.shape_cast %215 : vector<1x8xf32> to vector<1x8x1xf32>
    %217 = vector.broadcast %216 : vector<1x8x1xf32> to vector<1x8x8xf32>
    %218 = arith.subf %214, %217 : vector<1x8x8xf32>
    %219 = math.exp %218 : vector<1x8x8xf32>
    %cst_82 = arith.constant dense<0.000000e+00> : vector<1x8xf32>
    %220 = vector.multi_reduction <add>, %219, %cst_82 [2] : vector<1x8x8xf32> to vector<1x8xf32>
    %221 = vector.shape_cast %220 : vector<1x8xf32> to vector<1x8x1xf32>
    %222 = tpu.reciprocal %221 {approx = true} : vector<1x8x1xf32> -> vector<1x8x1xf32>
    %223 = vector.broadcast %222 : vector<1x8x1xf32> to vector<1x8x8xf32>
    %224 = arith.mulf %219, %223 : vector<1x8x8xf32>
    %225 = arith.truncf %224 : vector<1x8x8xf32> to vector<1x8x8xbf16>
    "tpu.trace_start"() <{level = 10 : i32, message = "bqk,bkd->bqd"}> : () -> ()
    %cst_83 = arith.constant dense<0.000000e+00> : vector<1x8x32xf32>
    %226 = tpu.matmul %225, %212, %cst_83 {dimension_numbers = #tpu.dot_dimension_numbers<[2], [1], [1], [2], [0, 0, 0, 1, 1, 2], [0], [0]>} : vector<1x8x8xbf16>, vector<1x8x32xbf16>, vector<1x8x32xf32> -> vector<1x8x32xf32>
    "tpu.trace_stop"() : () -> ()
    %227 = vector.shape_cast %226 : vector<1x8x32xf32> to vector<8x32xf32>
    %228 = vector.extract_strided_slice %205 {offsets = [0, 0], sizes = [32, 128], strides = [1, 1]} : vector<128x128xbf16> to vector<32x128xbf16>
    %229 = arith.truncf %227 : vector<8x32xf32> to vector<8x32xbf16>
    %cst_84 = arith.constant dense<0.000000e+00> : vector<8x128xf32>
    %230 = tpu.matmul %229, %228, %cst_84 {dimension_numbers = #tpu.dot_dimension_numbers<[1], [0], [0], [1], [0, 0, 1, 1], [], []>} : vector<8x32xbf16>, vector<32x128xbf16>, vector<8x128xf32> -> vector<8x128xf32>
    %231 = arith.addf %206, %230 : vector<8x128xf32>
    %232 = vector.extract_strided_slice %203 {offsets = [0, 0, 32], sizes = [1, 8, 32], strides = [1, 1, 1]} : vector<1x8x384xf32> to vector<1x8x32xf32>
    %233 = arith.truncf %232 : vector<1x8x32xf32> to vector<1x8x32xbf16>
    %234 = vector.extract_strided_slice %203 {offsets = [0, 0, 160], sizes = [1, 8, 32], strides = [1, 1, 1]} : vector<1x8x384xf32> to vector<1x8x32xf32>
    %235 = arith.truncf %234 : vector<1x8x32xf32> to vector<1x8x32xbf16>
    %236 = vector.extract_strided_slice %203 {offsets = [0, 0, 288], sizes = [1, 8, 32], strides = [1, 1, 1]} : vector<1x8x384xf32> to vector<1x8x32xf32>
    %237 = arith.truncf %236 : vector<1x8x32xf32> to vector<1x8x32xbf16>
    "tpu.trace_start"() <{level = 10 : i32, message = "bqd,bkd->bqk"}> : () -> ()
    %cst_85 = arith.constant dense<0.000000e+00> : vector<1x8x8xf32>
    %238 = tpu.matmul %233, %235, %cst_85 {dimension_numbers = #tpu.dot_dimension_numbers<[2], [2], [1], [1], [0, 0, 0, 1, 1, 1], [0], [0]>} : vector<1x8x32xbf16>, vector<1x8x32xbf16>, vector<1x8x8xf32> -> vector<1x8x8xf32>
    "tpu.trace_stop"() : () -> ()
    %239 = arith.addf %238, %9 : vector<1x8x8xf32>
    %cst_86 = arith.constant dense<0xFF800000> : vector<1x8xf32>
    %240 = vector.multi_reduction <maximumf>, %239, %cst_86 [2] : vector<1x8x8xf32> to vector<1x8xf32>
    %241 = vector.shape_cast %240 : vector<1x8xf32> to vector<1x8x1xf32>
    %242 = vector.broadcast %241 : vector<1x8x1xf32> to vector<1x8x8xf32>
    %243 = arith.subf %239, %242 : vector<1x8x8xf32>
    %244 = math.exp %243 : vector<1x8x8xf32>
    %cst_87 = arith.constant dense<0.000000e+00> : vector<1x8xf32>
    %245 = vector.multi_reduction <add>, %244, %cst_87 [2] : vector<1x8x8xf32> to vector<1x8xf32>
    %246 = vector.shape_cast %245 : vector<1x8xf32> to vector<1x8x1xf32>
    %247 = tpu.reciprocal %246 {approx = true} : vector<1x8x1xf32> -> vector<1x8x1xf32>
    %248 = vector.broadcast %247 : vector<1x8x1xf32> to vector<1x8x8xf32>
    %249 = arith.mulf %244, %248 : vector<1x8x8xf32>
    %250 = arith.truncf %249 : vector<1x8x8xf32> to vector<1x8x8xbf16>
    "tpu.trace_start"() <{level = 10 : i32, message = "bqk,bkd->bqd"}> : () -> ()
    %cst_88 = arith.constant dense<0.000000e+00> : vector<1x8x32xf32>
    %251 = tpu.matmul %250, %237, %cst_88 {dimension_numbers = #tpu.dot_dimension_numbers<[2], [1], [1], [2], [0, 0, 0, 1, 1, 2], [0], [0]>} : vector<1x8x8xbf16>, vector<1x8x32xbf16>, vector<1x8x32xf32> -> vector<1x8x32xf32>
    "tpu.trace_stop"() : () -> ()
    %252 = vector.shape_cast %251 : vector<1x8x32xf32> to vector<8x32xf32>
    %253 = vector.extract_strided_slice %205 {offsets = [32, 0], sizes = [32, 128], strides = [1, 1]} : vector<128x128xbf16> to vector<32x128xbf16>
    %254 = arith.truncf %252 : vector<8x32xf32> to vector<8x32xbf16>
    %cst_89 = arith.constant dense<0.000000e+00> : vector<8x128xf32>
    %255 = tpu.matmul %254, %253, %cst_89 {dimension_numbers = #tpu.dot_dimension_numbers<[1], [0], [0], [1], [0, 0, 1, 1], [], []>} : vector<8x32xbf16>, vector<32x128xbf16>, vector<8x128xf32> -> vector<8x128xf32>
    %256 = arith.addf %231, %255 : vector<8x128xf32>
    %257 = vector.extract_strided_slice %203 {offsets = [0, 0, 64], sizes = [1, 8, 32], strides = [1, 1, 1]} : vector<1x8x384xf32> to vector<1x8x32xf32>
    %258 = arith.truncf %257 : vector<1x8x32xf32> to vector<1x8x32xbf16>
    %259 = vector.extract_strided_slice %203 {offsets = [0, 0, 192], sizes = [1, 8, 32], strides = [1, 1, 1]} : vector<1x8x384xf32> to vector<1x8x32xf32>
    %260 = arith.truncf %259 : vector<1x8x32xf32> to vector<1x8x32xbf16>
    %261 = vector.extract_strided_slice %203 {offsets = [0, 0, 320], sizes = [1, 8, 32], strides = [1, 1, 1]} : vector<1x8x384xf32> to vector<1x8x32xf32>
    %262 = arith.truncf %261 : vector<1x8x32xf32> to vector<1x8x32xbf16>
    "tpu.trace_start"() <{level = 10 : i32, message = "bqd,bkd->bqk"}> : () -> ()
    %cst_90 = arith.constant dense<0.000000e+00> : vector<1x8x8xf32>
    %263 = tpu.matmul %258, %260, %cst_90 {dimension_numbers = #tpu.dot_dimension_numbers<[2], [2], [1], [1], [0, 0, 0, 1, 1, 1], [0], [0]>} : vector<1x8x32xbf16>, vector<1x8x32xbf16>, vector<1x8x8xf32> -> vector<1x8x8xf32>
    "tpu.trace_stop"() : () -> ()
    %264 = arith.addf %263, %9 : vector<1x8x8xf32>
    %cst_91 = arith.constant dense<0xFF800000> : vector<1x8xf32>
    %265 = vector.multi_reduction <maximumf>, %264, %cst_91 [2] : vector<1x8x8xf32> to vector<1x8xf32>
    %266 = vector.shape_cast %265 : vector<1x8xf32> to vector<1x8x1xf32>
    %267 = vector.broadcast %266 : vector<1x8x1xf32> to vector<1x8x8xf32>
    %268 = arith.subf %264, %267 : vector<1x8x8xf32>
    %269 = math.exp %268 : vector<1x8x8xf32>
    %cst_92 = arith.constant dense<0.000000e+00> : vector<1x8xf32>
    %270 = vector.multi_reduction <add>, %269, %cst_92 [2] : vector<1x8x8xf32> to vector<1x8xf32>
    %271 = vector.shape_cast %270 : vector<1x8xf32> to vector<1x8x1xf32>
    %272 = tpu.reciprocal %271 {approx = true} : vector<1x8x1xf32> -> vector<1x8x1xf32>
    %273 = vector.broadcast %272 : vector<1x8x1xf32> to vector<1x8x8xf32>
    %274 = arith.mulf %269, %273 : vector<1x8x8xf32>
    %275 = arith.truncf %274 : vector<1x8x8xf32> to vector<1x8x8xbf16>
    "tpu.trace_start"() <{level = 10 : i32, message = "bqk,bkd->bqd"}> : () -> ()
    %cst_93 = arith.constant dense<0.000000e+00> : vector<1x8x32xf32>
    %276 = tpu.matmul %275, %262, %cst_93 {dimension_numbers = #tpu.dot_dimension_numbers<[2], [1], [1], [2], [0, 0, 0, 1, 1, 2], [0], [0]>} : vector<1x8x8xbf16>, vector<1x8x32xbf16>, vector<1x8x32xf32> -> vector<1x8x32xf32>
    "tpu.trace_stop"() : () -> ()
    %277 = vector.shape_cast %276 : vector<1x8x32xf32> to vector<8x32xf32>
    %278 = vector.extract_strided_slice %205 {offsets = [64, 0], sizes = [32, 128], strides = [1, 1]} : vector<128x128xbf16> to vector<32x128xbf16>
    %279 = arith.truncf %277 : vector<8x32xf32> to vector<8x32xbf16>
    %cst_94 = arith.constant dense<0.000000e+00> : vector<8x128xf32>
    %280 = tpu.matmul %279, %278, %cst_94 {dimension_numbers = #tpu.dot_dimension_numbers<[1], [0], [0], [1], [0, 0, 1, 1], [], []>} : vector<8x32xbf16>, vector<32x128xbf16>, vector<8x128xf32> -> vector<8x128xf32>
    %281 = arith.addf %256, %280 : vector<8x128xf32>
    %282 = vector.extract_strided_slice %203 {offsets = [0, 0, 96], sizes = [1, 8, 32], strides = [1, 1, 1]} : vector<1x8x384xf32> to vector<1x8x32xf32>
    %283 = arith.truncf %282 : vector<1x8x32xf32> to vector<1x8x32xbf16>
    %284 = vector.extract_strided_slice %203 {offsets = [0, 0, 224], sizes = [1, 8, 32], strides = [1, 1, 1]} : vector<1x8x384xf32> to vector<1x8x32xf32>
    %285 = arith.truncf %284 : vector<1x8x32xf32> to vector<1x8x32xbf16>
    %286 = vector.extract_strided_slice %203 {offsets = [0, 0, 352], sizes = [1, 8, 32], strides = [1, 1, 1]} : vector<1x8x384xf32> to vector<1x8x32xf32>
    %287 = arith.truncf %286 : vector<1x8x32xf32> to vector<1x8x32xbf16>
    "tpu.trace_start"() <{level = 10 : i32, message = "bqd,bkd->bqk"}> : () -> ()
    %cst_95 = arith.constant dense<0.000000e+00> : vector<1x8x8xf32>
    %288 = tpu.matmul %283, %285, %cst_95 {dimension_numbers = #tpu.dot_dimension_numbers<[2], [2], [1], [1], [0, 0, 0, 1, 1, 1], [0], [0]>} : vector<1x8x32xbf16>, vector<1x8x32xbf16>, vector<1x8x8xf32> -> vector<1x8x8xf32>
    "tpu.trace_stop"() : () -> ()
    %289 = arith.addf %288, %9 : vector<1x8x8xf32>
    %cst_96 = arith.constant dense<0xFF800000> : vector<1x8xf32>
    %290 = vector.multi_reduction <maximumf>, %289, %cst_96 [2] : vector<1x8x8xf32> to vector<1x8xf32>
    %291 = vector.shape_cast %290 : vector<1x8xf32> to vector<1x8x1xf32>
    %292 = vector.broadcast %291 : vector<1x8x1xf32> to vector<1x8x8xf32>
    %293 = arith.subf %289, %292 : vector<1x8x8xf32>
    %294 = math.exp %293 : vector<1x8x8xf32>
    %cst_97 = arith.constant dense<0.000000e+00> : vector<1x8xf32>
    %295 = vector.multi_reduction <add>, %294, %cst_97 [2] : vector<1x8x8xf32> to vector<1x8xf32>
    %296 = vector.shape_cast %295 : vector<1x8xf32> to vector<1x8x1xf32>
    %297 = tpu.reciprocal %296 {approx = true} : vector<1x8x1xf32> -> vector<1x8x1xf32>
    %298 = vector.broadcast %297 : vector<1x8x1xf32> to vector<1x8x8xf32>
    %299 = arith.mulf %294, %298 : vector<1x8x8xf32>
    %300 = arith.truncf %299 : vector<1x8x8xf32> to vector<1x8x8xbf16>
    "tpu.trace_start"() <{level = 10 : i32, message = "bqk,bkd->bqd"}> : () -> ()
    %cst_98 = arith.constant dense<0.000000e+00> : vector<1x8x32xf32>
    %301 = tpu.matmul %300, %287, %cst_98 {dimension_numbers = #tpu.dot_dimension_numbers<[2], [1], [1], [2], [0, 0, 0, 1, 1, 2], [0], [0]>} : vector<1x8x8xbf16>, vector<1x8x32xbf16>, vector<1x8x32xf32> -> vector<1x8x32xf32>
    "tpu.trace_stop"() : () -> ()
    %302 = vector.shape_cast %301 : vector<1x8x32xf32> to vector<8x32xf32>
    %303 = vector.extract_strided_slice %205 {offsets = [96, 0], sizes = [32, 128], strides = [1, 1]} : vector<128x128xbf16> to vector<32x128xbf16>
    %304 = arith.truncf %302 : vector<8x32xf32> to vector<8x32xbf16>
    %cst_99 = arith.constant dense<0.000000e+00> : vector<8x128xf32>
    %305 = tpu.matmul %304, %303, %cst_99 {dimension_numbers = #tpu.dot_dimension_numbers<[1], [0], [0], [1], [0, 0, 1, 1], [], []>} : vector<8x32xbf16>, vector<32x128xbf16>, vector<8x128xf32> -> vector<8x128xf32>
    %306 = arith.addf %281, %305 : vector<8x128xf32>
    %307 = vector.shape_cast %306 : vector<8x128xf32> to vector<1x8x128xf32>
    %c1_100 = arith.constant 1 : index
    %c0_101 = arith.constant 0 : index
    %308 = vector.load %arg8[%c1_100, %c0_101] : memref<3x128xf32, #tpu.memory_space<vmem>>, vector<1x128xf32>
    %309 = vector.shape_cast %308 : vector<1x128xf32> to vector<1x1x128xf32>
    %310 = vector.broadcast %309 : vector<1x1x128xf32> to vector<1x8x128xf32>
    %311 = arith.addf %307, %310 : vector<1x8x128xf32>
    %312 = arith.addf %194, %311 : vector<1x8x128xf32>
    %c1_102 = arith.constant 1 : index
    %c0_103 = arith.constant 0 : index
    %313 = vector.load %arg9[%c1_102, %c0_103] : memref<3x128xf32, #tpu.memory_space<vmem>>, vector<1x128xf32>
    %c1_104 = arith.constant 1 : index
    %c0_105 = arith.constant 0 : index
    %314 = vector.load %arg10[%c1_104, %c0_105] : memref<3x128xf32, #tpu.memory_space<vmem>>, vector<1x128xf32>
    %cst_106 = arith.constant dense<0.000000e+00> : vector<1x8xf32>
    %315 = vector.multi_reduction <add>, %312, %cst_106 [2] : vector<1x8x128xf32> to vector<1x8xf32>
    %316 = vector.shape_cast %315 : vector<1x8xf32> to vector<1x8x1xf32>
    %cst_107 = arith.constant 1.280000e+02 : f32
    %317 = vector.broadcast %cst_107 : f32 to vector<1x8x1xf32>
    %318 = arith.divf %316, %317 : vector<1x8x1xf32>
    %319 = vector.broadcast %318 : vector<1x8x1xf32> to vector<1x8x128xf32>
    %320 = arith.subf %312, %319 : vector<1x8x128xf32>
    %321 = arith.mulf %320, %320 : vector<1x8x128xf32>
    %cst_108 = arith.constant dense<0.000000e+00> : vector<1x8xf32>
    %322 = vector.multi_reduction <add>, %321, %cst_108 [2] : vector<1x8x128xf32> to vector<1x8xf32>
    %323 = vector.shape_cast %322 : vector<1x8xf32> to vector<1x8x1xf32>
    %cst_109 = arith.constant 1.280000e+02 : f32
    %324 = vector.broadcast %cst_109 : f32 to vector<1x8x1xf32>
    %325 = arith.divf %323, %324 : vector<1x8x1xf32>
    %cst_110 = arith.constant 9.99999974E-6 : f32
    %326 = vector.broadcast %cst_110 : f32 to vector<1x8x1xf32>
    %327 = arith.addf %325, %326 : vector<1x8x1xf32>
    %328 = math.rsqrt %327 : vector<1x8x1xf32>
    %329 = vector.broadcast %328 : vector<1x8x1xf32> to vector<1x8x128xf32>
    %330 = arith.mulf %320, %329 : vector<1x8x128xf32>
    %331 = vector.shape_cast %313 : vector<1x128xf32> to vector<1x1x128xf32>
    %332 = vector.broadcast %331 : vector<1x1x128xf32> to vector<1x8x128xf32>
    %333 = arith.mulf %330, %332 : vector<1x8x128xf32>
    %334 = vector.shape_cast %314 : vector<1x128xf32> to vector<1x1x128xf32>
    %335 = vector.broadcast %334 : vector<1x1x128xf32> to vector<1x8x128xf32>
    %336 = arith.addf %333, %335 : vector<1x8x128xf32>
    %337 = vector.shape_cast %336 : vector<1x8x128xf32> to vector<8x128xf32>
    %c1_111 = arith.constant 1 : index
    %c0_112 = arith.constant 0 : index
    %c0_113 = arith.constant 0 : index
    %338 = vector.load %arg11[%c1_111, %c0_112, %c0_113] : memref<3x128x512xbf16, #tpu.memory_space<vmem>>, vector<1x128x512xbf16>
    %339 = vector.shape_cast %338 : vector<1x128x512xbf16> to vector<128x512xbf16>
    %340 = arith.truncf %337 : vector<8x128xf32> to vector<8x128xbf16>
    %cst_114 = arith.constant dense<0.000000e+00> : vector<8x512xf32>
    %341 = tpu.matmul %340, %339, %cst_114 {dimension_numbers = #tpu.dot_dimension_numbers<[1], [0], [0], [1], [0, 0, 1, 1], [], []>} : vector<8x128xbf16>, vector<128x512xbf16>, vector<8x512xf32> -> vector<8x512xf32>
    %c1_115 = arith.constant 1 : index
    %c0_116 = arith.constant 0 : index
    %342 = vector.load %arg12[%c1_115, %c0_116] : memref<3x512xf32, #tpu.memory_space<vmem>>, vector<1x512xf32>
    %343 = vector.broadcast %342 : vector<1x512xf32> to vector<8x512xf32>
    %344 = arith.addf %341, %343 : vector<8x512xf32>
    %cst_117 = arith.constant 0.000000e+00 : f32
    %345 = vector.broadcast %cst_117 : f32 to vector<8x512xf32>
    %346 = arith.maximumf %344, %345 : vector<8x512xf32>
    %c1_118 = arith.constant 1 : index
    %c0_119 = arith.constant 0 : index
    %c0_120 = arith.constant 0 : index
    %347 = vector.load %arg13[%c1_118, %c0_119, %c0_120] : memref<3x512x128xbf16, #tpu.memory_space<vmem>>, vector<1x512x128xbf16>
    %348 = vector.shape_cast %347 : vector<1x512x128xbf16> to vector<512x128xbf16>
    %349 = arith.truncf %346 : vector<8x512xf32> to vector<8x512xbf16>
    %cst_121 = arith.constant dense<0.000000e+00> : vector<8x128xf32>
    %350 = tpu.matmul %349, %348, %cst_121 {dimension_numbers = #tpu.dot_dimension_numbers<[1], [0], [0], [1], [0, 0, 1, 1], [], []>} : vector<8x512xbf16>, vector<512x128xbf16>, vector<8x128xf32> -> vector<8x128xf32>
    %c1_122 = arith.constant 1 : index
    %c0_123 = arith.constant 0 : index
    %351 = vector.load %arg14[%c1_122, %c0_123] : memref<3x128xf32, #tpu.memory_space<vmem>>, vector<1x128xf32>
    %352 = vector.broadcast %351 : vector<1x128xf32> to vector<8x128xf32>
    %353 = arith.addf %350, %352 : vector<8x128xf32>
    %354 = vector.shape_cast %353 : vector<8x128xf32> to vector<1x8x128xf32>
    %355 = arith.addf %336, %354 : vector<1x8x128xf32>
    %c1_124 = arith.constant 1 : index
    %c0_125 = arith.constant 0 : index
    %356 = vector.load %arg15[%c1_124, %c0_125] : memref<3x128xf32, #tpu.memory_space<vmem>>, vector<1x128xf32>
    %c1_126 = arith.constant 1 : index
    %c0_127 = arith.constant 0 : index
    %357 = vector.load %arg16[%c1_126, %c0_127] : memref<3x128xf32, #tpu.memory_space<vmem>>, vector<1x128xf32>
    %cst_128 = arith.constant dense<0.000000e+00> : vector<1x8xf32>
    %358 = vector.multi_reduction <add>, %355, %cst_128 [2] : vector<1x8x128xf32> to vector<1x8xf32>
    %359 = vector.shape_cast %358 : vector<1x8xf32> to vector<1x8x1xf32>
    %cst_129 = arith.constant 1.280000e+02 : f32
    %360 = vector.broadcast %cst_129 : f32 to vector<1x8x1xf32>
    %361 = arith.divf %359, %360 : vector<1x8x1xf32>
    %362 = vector.broadcast %361 : vector<1x8x1xf32> to vector<1x8x128xf32>
    %363 = arith.subf %355, %362 : vector<1x8x128xf32>
    %364 = arith.mulf %363, %363 : vector<1x8x128xf32>
    %cst_130 = arith.constant dense<0.000000e+00> : vector<1x8xf32>
    %365 = vector.multi_reduction <add>, %364, %cst_130 [2] : vector<1x8x128xf32> to vector<1x8xf32>
    %366 = vector.shape_cast %365 : vector<1x8xf32> to vector<1x8x1xf32>
    %cst_131 = arith.constant 1.280000e+02 : f32
    %367 = vector.broadcast %cst_131 : f32 to vector<1x8x1xf32>
    %368 = arith.divf %366, %367 : vector<1x8x1xf32>
    %cst_132 = arith.constant 9.99999974E-6 : f32
    %369 = vector.broadcast %cst_132 : f32 to vector<1x8x1xf32>
    %370 = arith.addf %368, %369 : vector<1x8x1xf32>
    %371 = math.rsqrt %370 : vector<1x8x1xf32>
    %372 = vector.broadcast %371 : vector<1x8x1xf32> to vector<1x8x128xf32>
    %373 = arith.mulf %363, %372 : vector<1x8x128xf32>
    %374 = vector.shape_cast %356 : vector<1x128xf32> to vector<1x1x128xf32>
    %375 = vector.broadcast %374 : vector<1x1x128xf32> to vector<1x8x128xf32>
    %376 = arith.mulf %373, %375 : vector<1x8x128xf32>
    %377 = vector.shape_cast %357 : vector<1x128xf32> to vector<1x1x128xf32>
    %378 = vector.broadcast %377 : vector<1x1x128xf32> to vector<1x8x128xf32>
    %379 = arith.addf %376, %378 : vector<1x8x128xf32>
    %380 = vector.shape_cast %379 : vector<1x8x128xf32> to vector<8x128xf32>
    %c2 = arith.constant 2 : index
    %c0_133 = arith.constant 0 : index
    %c0_134 = arith.constant 0 : index
    %381 = vector.load %arg5[%c2, %c0_133, %c0_134] : memref<3x128x384xbf16, #tpu.memory_space<vmem>>, vector<1x128x384xbf16>
    %382 = vector.shape_cast %381 : vector<1x128x384xbf16> to vector<128x384xbf16>
    %383 = arith.truncf %380 : vector<8x128xf32> to vector<8x128xbf16>
    %cst_135 = arith.constant dense<0.000000e+00> : vector<8x384xf32>
    %384 = tpu.matmul %383, %382, %cst_135 {dimension_numbers = #tpu.dot_dimension_numbers<[1], [0], [0], [1], [0, 0, 1, 1], [], []>} : vector<8x128xbf16>, vector<128x384xbf16>, vector<8x384xf32> -> vector<8x384xf32>
    %c2_136 = arith.constant 2 : index
    %c0_137 = arith.constant 0 : index
    %385 = vector.load %arg6[%c2_136, %c0_137] : memref<3x384xf32, #tpu.memory_space<vmem>>, vector<1x384xf32>
    %386 = vector.broadcast %385 : vector<1x384xf32> to vector<8x384xf32>
    %387 = arith.addf %384, %386 : vector<8x384xf32>
    %388 = vector.shape_cast %387 : vector<8x384xf32> to vector<1x8x384xf32>
    %c2_138 = arith.constant 2 : index
    %c0_139 = arith.constant 0 : index
    %c0_140 = arith.constant 0 : index
    %389 = vector.load %arg7[%c2_138, %c0_139, %c0_140] : memref<3x128x128xbf16, #tpu.memory_space<vmem>>, vector<1x128x128xbf16>
    %390 = vector.shape_cast %389 : vector<1x128x128xbf16> to vector<128x128xbf16>
    %cst_141 = arith.constant 0.000000e+00 : f32
    %391 = vector.broadcast %cst_141 : f32 to vector<8x128xf32>
    %392 = vector.extract_strided_slice %388 {offsets = [0, 0, 0], sizes = [1, 8, 32], strides = [1, 1, 1]} : vector<1x8x384xf32> to vector<1x8x32xf32>
    %393 = arith.truncf %392 : vector<1x8x32xf32> to vector<1x8x32xbf16>
    %394 = vector.extract_strided_slice %388 {offsets = [0, 0, 128], sizes = [1, 8, 32], strides = [1, 1, 1]} : vector<1x8x384xf32> to vector<1x8x32xf32>
    %395 = arith.truncf %394 : vector<1x8x32xf32> to vector<1x8x32xbf16>
    %396 = vector.extract_strided_slice %388 {offsets = [0, 0, 256], sizes = [1, 8, 32], strides = [1, 1, 1]} : vector<1x8x384xf32> to vector<1x8x32xf32>
    %397 = arith.truncf %396 : vector<1x8x32xf32> to vector<1x8x32xbf16>
    "tpu.trace_start"() <{level = 10 : i32, message = "bqd,bkd->bqk"}> : () -> ()
    %cst_142 = arith.constant dense<0.000000e+00> : vector<1x8x8xf32>
    %398 = tpu.matmul %393, %395, %cst_142 {dimension_numbers = #tpu.dot_dimension_numbers<[2], [2], [1], [1], [0, 0, 0, 1, 1, 1], [0], [0]>} : vector<1x8x32xbf16>, vector<1x8x32xbf16>, vector<1x8x8xf32> -> vector<1x8x8xf32>
    "tpu.trace_stop"() : () -> ()
    %399 = arith.addf %398, %9 : vector<1x8x8xf32>
    %cst_143 = arith.constant dense<0xFF800000> : vector<1x8xf32>
    %400 = vector.multi_reduction <maximumf>, %399, %cst_143 [2] : vector<1x8x8xf32> to vector<1x8xf32>
    %401 = vector.shape_cast %400 : vector<1x8xf32> to vector<1x8x1xf32>
    %402 = vector.broadcast %401 : vector<1x8x1xf32> to vector<1x8x8xf32>
    %403 = arith.subf %399, %402 : vector<1x8x8xf32>
    %404 = math.exp %403 : vector<1x8x8xf32>
    %cst_144 = arith.constant dense<0.000000e+00> : vector<1x8xf32>
    %405 = vector.multi_reduction <add>, %404, %cst_144 [2] : vector<1x8x8xf32> to vector<1x8xf32>
    %406 = vector.shape_cast %405 : vector<1x8xf32> to vector<1x8x1xf32>
    %407 = tpu.reciprocal %406 {approx = true} : vector<1x8x1xf32> -> vector<1x8x1xf32>
    %408 = vector.broadcast %407 : vector<1x8x1xf32> to vector<1x8x8xf32>
    %409 = arith.mulf %404, %408 : vector<1x8x8xf32>
    %410 = arith.truncf %409 : vector<1x8x8xf32> to vector<1x8x8xbf16>
    "tpu.trace_start"() <{level = 10 : i32, message = "bqk,bkd->bqd"}> : () -> ()
    %cst_145 = arith.constant dense<0.000000e+00> : vector<1x8x32xf32>
    %411 = tpu.matmul %410, %397, %cst_145 {dimension_numbers = #tpu.dot_dimension_numbers<[2], [1], [1], [2], [0, 0, 0, 1, 1, 2], [0], [0]>} : vector<1x8x8xbf16>, vector<1x8x32xbf16>, vector<1x8x32xf32> -> vector<1x8x32xf32>
    "tpu.trace_stop"() : () -> ()
    %412 = vector.shape_cast %411 : vector<1x8x32xf32> to vector<8x32xf32>
    %413 = vector.extract_strided_slice %390 {offsets = [0, 0], sizes = [32, 128], strides = [1, 1]} : vector<128x128xbf16> to vector<32x128xbf16>
    %414 = arith.truncf %412 : vector<8x32xf32> to vector<8x32xbf16>
    %cst_146 = arith.constant dense<0.000000e+00> : vector<8x128xf32>
    %415 = tpu.matmul %414, %413, %cst_146 {dimension_numbers = #tpu.dot_dimension_numbers<[1], [0], [0], [1], [0, 0, 1, 1], [], []>} : vector<8x32xbf16>, vector<32x128xbf16>, vector<8x128xf32> -> vector<8x128xf32>
    %416 = arith.addf %391, %415 : vector<8x128xf32>
    %417 = vector.extract_strided_slice %388 {offsets = [0, 0, 32], sizes = [1, 8, 32], strides = [1, 1, 1]} : vector<1x8x384xf32> to vector<1x8x32xf32>
    %418 = arith.truncf %417 : vector<1x8x32xf32> to vector<1x8x32xbf16>
    %419 = vector.extract_strided_slice %388 {offsets = [0, 0, 160], sizes = [1, 8, 32], strides = [1, 1, 1]} : vector<1x8x384xf32> to vector<1x8x32xf32>
    %420 = arith.truncf %419 : vector<1x8x32xf32> to vector<1x8x32xbf16>
    %421 = vector.extract_strided_slice %388 {offsets = [0, 0, 288], sizes = [1, 8, 32], strides = [1, 1, 1]} : vector<1x8x384xf32> to vector<1x8x32xf32>
    %422 = arith.truncf %421 : vector<1x8x32xf32> to vector<1x8x32xbf16>
    "tpu.trace_start"() <{level = 10 : i32, message = "bqd,bkd->bqk"}> : () -> ()
    %cst_147 = arith.constant dense<0.000000e+00> : vector<1x8x8xf32>
    %423 = tpu.matmul %418, %420, %cst_147 {dimension_numbers = #tpu.dot_dimension_numbers<[2], [2], [1], [1], [0, 0, 0, 1, 1, 1], [0], [0]>} : vector<1x8x32xbf16>, vector<1x8x32xbf16>, vector<1x8x8xf32> -> vector<1x8x8xf32>
    "tpu.trace_stop"() : () -> ()
    %424 = arith.addf %423, %9 : vector<1x8x8xf32>
    %cst_148 = arith.constant dense<0xFF800000> : vector<1x8xf32>
    %425 = vector.multi_reduction <maximumf>, %424, %cst_148 [2] : vector<1x8x8xf32> to vector<1x8xf32>
    %426 = vector.shape_cast %425 : vector<1x8xf32> to vector<1x8x1xf32>
    %427 = vector.broadcast %426 : vector<1x8x1xf32> to vector<1x8x8xf32>
    %428 = arith.subf %424, %427 : vector<1x8x8xf32>
    %429 = math.exp %428 : vector<1x8x8xf32>
    %cst_149 = arith.constant dense<0.000000e+00> : vector<1x8xf32>
    %430 = vector.multi_reduction <add>, %429, %cst_149 [2] : vector<1x8x8xf32> to vector<1x8xf32>
    %431 = vector.shape_cast %430 : vector<1x8xf32> to vector<1x8x1xf32>
    %432 = tpu.reciprocal %431 {approx = true} : vector<1x8x1xf32> -> vector<1x8x1xf32>
    %433 = vector.broadcast %432 : vector<1x8x1xf32> to vector<1x8x8xf32>
    %434 = arith.mulf %429, %433 : vector<1x8x8xf32>
    %435 = arith.truncf %434 : vector<1x8x8xf32> to vector<1x8x8xbf16>
    "tpu.trace_start"() <{level = 10 : i32, message = "bqk,bkd->bqd"}> : () -> ()
    %cst_150 = arith.constant dense<0.000000e+00> : vector<1x8x32xf32>
    %436 = tpu.matmul %435, %422, %cst_150 {dimension_numbers = #tpu.dot_dimension_numbers<[2], [1], [1], [2], [0, 0, 0, 1, 1, 2], [0], [0]>} : vector<1x8x8xbf16>, vector<1x8x32xbf16>, vector<1x8x32xf32> -> vector<1x8x32xf32>
    "tpu.trace_stop"() : () -> ()
    %437 = vector.shape_cast %436 : vector<1x8x32xf32> to vector<8x32xf32>
    %438 = vector.extract_strided_slice %390 {offsets = [32, 0], sizes = [32, 128], strides = [1, 1]} : vector<128x128xbf16> to vector<32x128xbf16>
    %439 = arith.truncf %437 : vector<8x32xf32> to vector<8x32xbf16>
    %cst_151 = arith.constant dense<0.000000e+00> : vector<8x128xf32>
    %440 = tpu.matmul %439, %438, %cst_151 {dimension_numbers = #tpu.dot_dimension_numbers<[1], [0], [0], [1], [0, 0, 1, 1], [], []>} : vector<8x32xbf16>, vector<32x128xbf16>, vector<8x128xf32> -> vector<8x128xf32>
    %441 = arith.addf %416, %440 : vector<8x128xf32>
    %442 = vector.extract_strided_slice %388 {offsets = [0, 0, 64], sizes = [1, 8, 32], strides = [1, 1, 1]} : vector<1x8x384xf32> to vector<1x8x32xf32>
    %443 = arith.truncf %442 : vector<1x8x32xf32> to vector<1x8x32xbf16>
    %444 = vector.extract_strided_slice %388 {offsets = [0, 0, 192], sizes = [1, 8, 32], strides = [1, 1, 1]} : vector<1x8x384xf32> to vector<1x8x32xf32>
    %445 = arith.truncf %444 : vector<1x8x32xf32> to vector<1x8x32xbf16>
    %446 = vector.extract_strided_slice %388 {offsets = [0, 0, 320], sizes = [1, 8, 32], strides = [1, 1, 1]} : vector<1x8x384xf32> to vector<1x8x32xf32>
    %447 = arith.truncf %446 : vector<1x8x32xf32> to vector<1x8x32xbf16>
    "tpu.trace_start"() <{level = 10 : i32, message = "bqd,bkd->bqk"}> : () -> ()
    %cst_152 = arith.constant dense<0.000000e+00> : vector<1x8x8xf32>
    %448 = tpu.matmul %443, %445, %cst_152 {dimension_numbers = #tpu.dot_dimension_numbers<[2], [2], [1], [1], [0, 0, 0, 1, 1, 1], [0], [0]>} : vector<1x8x32xbf16>, vector<1x8x32xbf16>, vector<1x8x8xf32> -> vector<1x8x8xf32>
    "tpu.trace_stop"() : () -> ()
    %449 = arith.addf %448, %9 : vector<1x8x8xf32>
    %cst_153 = arith.constant dense<0xFF800000> : vector<1x8xf32>
    %450 = vector.multi_reduction <maximumf>, %449, %cst_153 [2] : vector<1x8x8xf32> to vector<1x8xf32>
    %451 = vector.shape_cast %450 : vector<1x8xf32> to vector<1x8x1xf32>
    %452 = vector.broadcast %451 : vector<1x8x1xf32> to vector<1x8x8xf32>
    %453 = arith.subf %449, %452 : vector<1x8x8xf32>
    %454 = math.exp %453 : vector<1x8x8xf32>
    %cst_154 = arith.constant dense<0.000000e+00> : vector<1x8xf32>
    %455 = vector.multi_reduction <add>, %454, %cst_154 [2] : vector<1x8x8xf32> to vector<1x8xf32>
    %456 = vector.shape_cast %455 : vector<1x8xf32> to vector<1x8x1xf32>
    %457 = tpu.reciprocal %456 {approx = true} : vector<1x8x1xf32> -> vector<1x8x1xf32>
    %458 = vector.broadcast %457 : vector<1x8x1xf32> to vector<1x8x8xf32>
    %459 = arith.mulf %454, %458 : vector<1x8x8xf32>
    %460 = arith.truncf %459 : vector<1x8x8xf32> to vector<1x8x8xbf16>
    "tpu.trace_start"() <{level = 10 : i32, message = "bqk,bkd->bqd"}> : () -> ()
    %cst_155 = arith.constant dense<0.000000e+00> : vector<1x8x32xf32>
    %461 = tpu.matmul %460, %447, %cst_155 {dimension_numbers = #tpu.dot_dimension_numbers<[2], [1], [1], [2], [0, 0, 0, 1, 1, 2], [0], [0]>} : vector<1x8x8xbf16>, vector<1x8x32xbf16>, vector<1x8x32xf32> -> vector<1x8x32xf32>
    "tpu.trace_stop"() : () -> ()
    %462 = vector.shape_cast %461 : vector<1x8x32xf32> to vector<8x32xf32>
    %463 = vector.extract_strided_slice %390 {offsets = [64, 0], sizes = [32, 128], strides = [1, 1]} : vector<128x128xbf16> to vector<32x128xbf16>
    %464 = arith.truncf %462 : vector<8x32xf32> to vector<8x32xbf16>
    %cst_156 = arith.constant dense<0.000000e+00> : vector<8x128xf32>
    %465 = tpu.matmul %464, %463, %cst_156 {dimension_numbers = #tpu.dot_dimension_numbers<[1], [0], [0], [1], [0, 0, 1, 1], [], []>} : vector<8x32xbf16>, vector<32x128xbf16>, vector<8x128xf32> -> vector<8x128xf32>
    %466 = arith.addf %441, %465 : vector<8x128xf32>
    %467 = vector.extract_strided_slice %388 {offsets = [0, 0, 96], sizes = [1, 8, 32], strides = [1, 1, 1]} : vector<1x8x384xf32> to vector<1x8x32xf32>
    %468 = arith.truncf %467 : vector<1x8x32xf32> to vector<1x8x32xbf16>
    %469 = vector.extract_strided_slice %388 {offsets = [0, 0, 224], sizes = [1, 8, 32], strides = [1, 1, 1]} : vector<1x8x384xf32> to vector<1x8x32xf32>
    %470 = arith.truncf %469 : vector<1x8x32xf32> to vector<1x8x32xbf16>
    %471 = vector.extract_strided_slice %388 {offsets = [0, 0, 352], sizes = [1, 8, 32], strides = [1, 1, 1]} : vector<1x8x384xf32> to vector<1x8x32xf32>
    %472 = arith.truncf %471 : vector<1x8x32xf32> to vector<1x8x32xbf16>
    "tpu.trace_start"() <{level = 10 : i32, message = "bqd,bkd->bqk"}> : () -> ()
    %cst_157 = arith.constant dense<0.000000e+00> : vector<1x8x8xf32>
    %473 = tpu.matmul %468, %470, %cst_157 {dimension_numbers = #tpu.dot_dimension_numbers<[2], [2], [1], [1], [0, 0, 0, 1, 1, 1], [0], [0]>} : vector<1x8x32xbf16>, vector<1x8x32xbf16>, vector<1x8x8xf32> -> vector<1x8x8xf32>
    "tpu.trace_stop"() : () -> ()
    %474 = arith.addf %473, %9 : vector<1x8x8xf32>
    %cst_158 = arith.constant dense<0xFF800000> : vector<1x8xf32>
    %475 = vector.multi_reduction <maximumf>, %474, %cst_158 [2] : vector<1x8x8xf32> to vector<1x8xf32>
    %476 = vector.shape_cast %475 : vector<1x8xf32> to vector<1x8x1xf32>
    %477 = vector.broadcast %476 : vector<1x8x1xf32> to vector<1x8x8xf32>
    %478 = arith.subf %474, %477 : vector<1x8x8xf32>
    %479 = math.exp %478 : vector<1x8x8xf32>
    %cst_159 = arith.constant dense<0.000000e+00> : vector<1x8xf32>
    %480 = vector.multi_reduction <add>, %479, %cst_159 [2] : vector<1x8x8xf32> to vector<1x8xf32>
    %481 = vector.shape_cast %480 : vector<1x8xf32> to vector<1x8x1xf32>
    %482 = tpu.reciprocal %481 {approx = true} : vector<1x8x1xf32> -> vector<1x8x1xf32>
    %483 = vector.broadcast %482 : vector<1x8x1xf32> to vector<1x8x8xf32>
    %484 = arith.mulf %479, %483 : vector<1x8x8xf32>
    %485 = arith.truncf %484 : vector<1x8x8xf32> to vector<1x8x8xbf16>
    "tpu.trace_start"() <{level = 10 : i32, message = "bqk,bkd->bqd"}> : () -> ()
    %cst_160 = arith.constant dense<0.000000e+00> : vector<1x8x32xf32>
    %486 = tpu.matmul %485, %472, %cst_160 {dimension_numbers = #tpu.dot_dimension_numbers<[2], [1], [1], [2], [0, 0, 0, 1, 1, 2], [0], [0]>} : vector<1x8x8xbf16>, vector<1x8x32xbf16>, vector<1x8x32xf32> -> vector<1x8x32xf32>
    "tpu.trace_stop"() : () -> ()
    %487 = vector.shape_cast %486 : vector<1x8x32xf32> to vector<8x32xf32>
    %488 = vector.extract_strided_slice %390 {offsets = [96, 0], sizes = [32, 128], strides = [1, 1]} : vector<128x128xbf16> to vector<32x128xbf16>
    %489 = arith.truncf %487 : vector<8x32xf32> to vector<8x32xbf16>
    %cst_161 = arith.constant dense<0.000000e+00> : vector<8x128xf32>
    %490 = tpu.matmul %489, %488, %cst_161 {dimension_numbers = #tpu.dot_dimension_numbers<[1], [0], [0], [1], [0, 0, 1, 1], [], []>} : vector<8x32xbf16>, vector<32x128xbf16>, vector<8x128xf32> -> vector<8x128xf32>
    %491 = arith.addf %466, %490 : vector<8x128xf32>
    %492 = vector.shape_cast %491 : vector<8x128xf32> to vector<1x8x128xf32>
    %c2_162 = arith.constant 2 : index
    %c0_163 = arith.constant 0 : index
    %493 = vector.load %arg8[%c2_162, %c0_163] : memref<3x128xf32, #tpu.memory_space<vmem>>, vector<1x128xf32>
    %494 = vector.shape_cast %493 : vector<1x128xf32> to vector<1x1x128xf32>
    %495 = vector.broadcast %494 : vector<1x1x128xf32> to vector<1x8x128xf32>
    %496 = arith.addf %492, %495 : vector<1x8x128xf32>
    %497 = arith.addf %379, %496 : vector<1x8x128xf32>
    %c2_164 = arith.constant 2 : index
    %c0_165 = arith.constant 0 : index
    %498 = vector.load %arg9[%c2_164, %c0_165] : memref<3x128xf32, #tpu.memory_space<vmem>>, vector<1x128xf32>
    %c2_166 = arith.constant 2 : index
    %c0_167 = arith.constant 0 : index
    %499 = vector.load %arg10[%c2_166, %c0_167] : memref<3x128xf32, #tpu.memory_space<vmem>>, vector<1x128xf32>
    %cst_168 = arith.constant dense<0.000000e+00> : vector<1x8xf32>
    %500 = vector.multi_reduction <add>, %497, %cst_168 [2] : vector<1x8x128xf32> to vector<1x8xf32>
    %501 = vector.shape_cast %500 : vector<1x8xf32> to vector<1x8x1xf32>
    %cst_169 = arith.constant 1.280000e+02 : f32
    %502 = vector.broadcast %cst_169 : f32 to vector<1x8x1xf32>
    %503 = arith.divf %501, %502 : vector<1x8x1xf32>
    %504 = vector.broadcast %503 : vector<1x8x1xf32> to vector<1x8x128xf32>
    %505 = arith.subf %497, %504 : vector<1x8x128xf32>
    %506 = arith.mulf %505, %505 : vector<1x8x128xf32>
    %cst_170 = arith.constant dense<0.000000e+00> : vector<1x8xf32>
    %507 = vector.multi_reduction <add>, %506, %cst_170 [2] : vector<1x8x128xf32> to vector<1x8xf32>
    %508 = vector.shape_cast %507 : vector<1x8xf32> to vector<1x8x1xf32>
    %cst_171 = arith.constant 1.280000e+02 : f32
    %509 = vector.broadcast %cst_171 : f32 to vector<1x8x1xf32>
    %510 = arith.divf %508, %509 : vector<1x8x1xf32>
    %cst_172 = arith.constant 9.99999974E-6 : f32
    %511 = vector.broadcast %cst_172 : f32 to vector<1x8x1xf32>
    %512 = arith.addf %510, %511 : vector<1x8x1xf32>
    %513 = math.rsqrt %512 : vector<1x8x1xf32>
    %514 = vector.broadcast %513 : vector<1x8x1xf32> to vector<1x8x128xf32>
    %515 = arith.mulf %505, %514 : vector<1x8x128xf32>
    %516 = vector.shape_cast %498 : vector<1x128xf32> to vector<1x1x128xf32>
    %517 = vector.broadcast %516 : vector<1x1x128xf32> to vector<1x8x128xf32>
    %518 = arith.mulf %515, %517 : vector<1x8x128xf32>
    %519 = vector.shape_cast %499 : vector<1x128xf32> to vector<1x1x128xf32>
    %520 = vector.broadcast %519 : vector<1x1x128xf32> to vector<1x8x128xf32>
    %521 = arith.addf %518, %520 : vector<1x8x128xf32>
    %522 = vector.shape_cast %521 : vector<1x8x128xf32> to vector<8x128xf32>
    %c2_173 = arith.constant 2 : index
    %c0_174 = arith.constant 0 : index
    %c0_175 = arith.constant 0 : index
    %523 = vector.load %arg11[%c2_173, %c0_174, %c0_175] : memref<3x128x512xbf16, #tpu.memory_space<vmem>>, vector<1x128x512xbf16>
    %524 = vector.shape_cast %523 : vector<1x128x512xbf16> to vector<128x512xbf16>
    %525 = arith.truncf %522 : vector<8x128xf32> to vector<8x128xbf16>
    %cst_176 = arith.constant dense<0.000000e+00> : vector<8x512xf32>
    %526 = tpu.matmul %525, %524, %cst_176 {dimension_numbers = #tpu.dot_dimension_numbers<[1], [0], [0], [1], [0, 0, 1, 1], [], []>} : vector<8x128xbf16>, vector<128x512xbf16>, vector<8x512xf32> -> vector<8x512xf32>
    %c2_177 = arith.constant 2 : index
    %c0_178 = arith.constant 0 : index
    %527 = vector.load %arg12[%c2_177, %c0_178] : memref<3x512xf32, #tpu.memory_space<vmem>>, vector<1x512xf32>
    %528 = vector.broadcast %527 : vector<1x512xf32> to vector<8x512xf32>
    %529 = arith.addf %526, %528 : vector<8x512xf32>
    %cst_179 = arith.constant 0.000000e+00 : f32
    %530 = vector.broadcast %cst_179 : f32 to vector<8x512xf32>
    %531 = arith.maximumf %529, %530 : vector<8x512xf32>
    %c2_180 = arith.constant 2 : index
    %c0_181 = arith.constant 0 : index
    %c0_182 = arith.constant 0 : index
    %532 = vector.load %arg13[%c2_180, %c0_181, %c0_182] : memref<3x512x128xbf16, #tpu.memory_space<vmem>>, vector<1x512x128xbf16>
    %533 = vector.shape_cast %532 : vector<1x512x128xbf16> to vector<512x128xbf16>
    %534 = arith.truncf %531 : vector<8x512xf32> to vector<8x512xbf16>
    %cst_183 = arith.constant dense<0.000000e+00> : vector<8x128xf32>
    %535 = tpu.matmul %534, %533, %cst_183 {dimension_numbers = #tpu.dot_dimension_numbers<[1], [0], [0], [1], [0, 0, 1, 1], [], []>} : vector<8x512xbf16>, vector<512x128xbf16>, vector<8x128xf32> -> vector<8x128xf32>
    %c2_184 = arith.constant 2 : index
    %c0_185 = arith.constant 0 : index
    %536 = vector.load %arg14[%c2_184, %c0_185] : memref<3x128xf32, #tpu.memory_space<vmem>>, vector<1x128xf32>
    %537 = vector.broadcast %536 : vector<1x128xf32> to vector<8x128xf32>
    %538 = arith.addf %535, %537 : vector<8x128xf32>
    %539 = vector.shape_cast %538 : vector<8x128xf32> to vector<1x8x128xf32>
    %540 = arith.addf %521, %539 : vector<1x8x128xf32>
    %c2_186 = arith.constant 2 : index
    %c0_187 = arith.constant 0 : index
    %541 = vector.load %arg15[%c2_186, %c0_187] : memref<3x128xf32, #tpu.memory_space<vmem>>, vector<1x128xf32>
    %c2_188 = arith.constant 2 : index
    %c0_189 = arith.constant 0 : index
    %542 = vector.load %arg16[%c2_188, %c0_189] : memref<3x128xf32, #tpu.memory_space<vmem>>, vector<1x128xf32>
    %cst_190 = arith.constant dense<0.000000e+00> : vector<1x8xf32>
    %543 = vector.multi_reduction <add>, %540, %cst_190 [2] : vector<1x8x128xf32> to vector<1x8xf32>
    %544 = vector.shape_cast %543 : vector<1x8xf32> to vector<1x8x1xf32>
    %cst_191 = arith.constant 1.280000e+02 : f32
    %545 = vector.broadcast %cst_191 : f32 to vector<1x8x1xf32>
    %546 = arith.divf %544, %545 : vector<1x8x1xf32>
    %547 = vector.broadcast %546 : vector<1x8x1xf32> to vector<1x8x128xf32>
    %548 = arith.subf %540, %547 : vector<1x8x128xf32>
    %549 = arith.mulf %548, %548 : vector<1x8x128xf32>
    %cst_192 = arith.constant dense<0.000000e+00> : vector<1x8xf32>
    %550 = vector.multi_reduction <add>, %549, %cst_192 [2] : vector<1x8x128xf32> to vector<1x8xf32>
    %551 = vector.shape_cast %550 : vector<1x8xf32> to vector<1x8x1xf32>
    %cst_193 = arith.constant 1.280000e+02 : f32
    %552 = vector.broadcast %cst_193 : f32 to vector<1x8x1xf32>
    %553 = arith.divf %551, %552 : vector<1x8x1xf32>
    %cst_194 = arith.constant 9.99999974E-6 : f32
    %554 = vector.broadcast %cst_194 : f32 to vector<1x8x1xf32>
    %555 = arith.addf %553, %554 : vector<1x8x1xf32>
    %556 = math.rsqrt %555 : vector<1x8x1xf32>
    %557 = vector.broadcast %556 : vector<1x8x1xf32> to vector<1x8x128xf32>
    %558 = arith.mulf %548, %557 : vector<1x8x128xf32>
    %559 = vector.shape_cast %541 : vector<1x128xf32> to vector<1x1x128xf32>
    %560 = vector.broadcast %559 : vector<1x1x128xf32> to vector<1x8x128xf32>
    %561 = arith.mulf %558, %560 : vector<1x8x128xf32>
    %562 = vector.shape_cast %542 : vector<1x128xf32> to vector<1x1x128xf32>
    %563 = vector.broadcast %562 : vector<1x1x128xf32> to vector<1x8x128xf32>
    %564 = arith.addf %561, %563 : vector<1x8x128xf32>
    %cst_195 = arith.constant dense<0.000000e+00> : vector<1x128xf32>
    %565 = vector.multi_reduction <add>, %564, %cst_195 [1] : vector<1x8x128xf32> to vector<1x128xf32>
    %cst_196 = arith.constant 8.000000e+00 : f32
    %566 = vector.broadcast %cst_196 : f32 to vector<1x128xf32>
    %567 = arith.divf %565, %566 : vector<1x128xf32>
    %c0_197 = arith.constant 0 : index
    %c0_198 = arith.constant 0 : index
    %568 = vector.load %arg17[%c0_197, %c0_198] : memref<128x128xbf16, #tpu.memory_space<vmem>>, vector<128x128xbf16>
    %569 = arith.truncf %567 : vector<1x128xf32> to vector<1x128xbf16>
    %cst_199 = arith.constant dense<0.000000e+00> : vector<1x128xf32>
    %570 = tpu.matmul %569, %568, %cst_199 {dimension_numbers = #tpu.dot_dimension_numbers<[1], [0], [0], [1], [0, 0, 1, 1], [], []>} : vector<1x128xbf16>, vector<128x128xbf16>, vector<1x128xf32> -> vector<1x128xf32>
    %c0_200 = arith.constant 0 : index
    %c0_201 = arith.constant 0 : index
    %571 = vector.load %arg18[%c0_200, %c0_201] : memref<1x128xf32, #tpu.memory_space<vmem>>, vector<1x128xf32>
    %572 = arith.addf %570, %571 : vector<1x128xf32>
    %c0_202 = arith.constant 0 : index
    %c0_203 = arith.constant 0 : index
    %c0_204 = arith.constant 0 : index
    %573 = vector.load %arg19[%c0_202, %c0_203, %c0_204] : memref<1x1x128xf32, #tpu.memory_space<vmem>>, vector<1x1x128xf32>
    %574 = vector.shape_cast %573 : vector<1x1x128xf32> to vector<1x128xf32>
    %575 = vector.shape_cast %572 : vector<1x128xf32> to vector<1x1x128xf32>
    tpu.vector_store %arg19[%c0_202, %c0_203, %c0_204], %575 {strides = array<i32>} : memref<1x1x128xf32, #tpu.memory_space<vmem>>, vector<1x1x128xf32>,
    return
  }
  func.func @transform_0(%arg0: i32) -> (i32, i32, i32) {
    %c0_i32 = arith.constant 0 : i32
    %c0_i32_0 = arith.constant 0 : i32
    %c0_i32_1 = arith.constant 0 : i32
    return %arg0, %c0_i32, %c0_i32_0 : i32, i32, i32
  }
  func.func @transform_1(%arg0: i32) -> (i32, i32) {
    %c0_i32 = arith.constant 0 : i32
    %c0_i32_0 = arith.constant 0 : i32
    %c0_i32_1 = arith.constant 0 : i32
    return %c0_i32, %c0_i32_0 : i32, i32
  }
  func.func @transform_2(%arg0: i32) -> (i32, i32) {
    %c0_i32 = arith.constant 0 : i32
    %c0_i32_0 = arith.constant 0 : i32
    %c0_i32_1 = arith.constant 0 : i32
    return %c0_i32, %c0_i32_0 : i32, i32
  }
  func.func @transform_3(%arg0: i32) -> (i32, i32) {
    %c0_i32 = arith.constant 0 : i32
    %c0_i32_0 = arith.constant 0 : i32
    %c0_i32_1 = arith.constant 0 : i32
    return %c0_i32, %c0_i32_0 : i32, i32
  }
  func.func @transform_4(%arg0: i32) -> (i32, i32, i32) {
    %c0_i32 = arith.constant 0 : i32
    %c0_i32_0 = arith.constant 0 : i32
    %c0_i32_1 = arith.constant 0 : i32
    %c0_i32_2 = arith.constant 0 : i32
    return %c0_i32, %c0_i32_0, %c0_i32_1 : i32, i32, i32
  }
  func.func @transform_5(%arg0: i32) -> (i32, i32) {
    %c0_i32 = arith.constant 0 : i32
    %c0_i32_0 = arith.constant 0 : i32
    %c0_i32_1 = arith.constant 0 : i32
    return %c0_i32, %c0_i32_0 : i32, i32
  }
  func.func @transform_6(%arg0: i32) -> (i32, i32, i32) {
    %c0_i32 = arith.constant 0 : i32
    %c0_i32_0 = arith.constant 0 : i32
    %c0_i32_1 = arith.constant 0 : i32
    %c0_i32_2 = arith.constant 0 : i32
    return %c0_i32, %c0_i32_0, %c0_i32_1 : i32, i32, i32
  }
  func.func @transform_7(%arg0: i32) -> (i32, i32) {
    %c0_i32 = arith.constant 0 : i32
    %c0_i32_0 = arith.constant 0 : i32
    %c0_i32_1 = arith.constant 0 : i32
    return %c0_i32, %c0_i32_0 : i32, i32
  }
  func.func @transform_8(%arg0: i32) -> (i32, i32) {
    %c0_i32 = arith.constant 0 : i32
    %c0_i32_0 = arith.constant 0 : i32
    %c0_i32_1 = arith.constant 0 : i32
    return %c0_i32, %c0_i32_0 : i32, i32
  }
  func.func @transform_9(%arg0: i32) -> (i32, i32) {
    %c0_i32 = arith.constant 0 : i32
    %c0_i32_0 = arith.constant 0 : i32
    %c0_i32_1 = arith.constant 0 : i32
    return %c0_i32, %c0_i32_0 : i32, i32
  }
  func.func @transform_10(%arg0: i32) -> (i32, i32, i32) {
    %c0_i32 = arith.constant 0 : i32
    %c0_i32_0 = arith.constant 0 : i32
    %c0_i32_1 = arith.constant 0 : i32
    %c0_i32_2 = arith.constant 0 : i32
    return %c0_i32, %c0_i32_0, %c0_i32_1 : i32, i32, i32
  }
  func.func @transform_11(%arg0: i32) -> (i32, i32) {
    %c0_i32 = arith.constant 0 : i32
    %c0_i32_0 = arith.constant 0 : i32
    %c0_i32_1 = arith.constant 0 : i32
    return %c0_i32, %c0_i32_0 : i32, i32
  }
  func.func @transform_12(%arg0: i32) -> (i32, i32, i32) {
    %c0_i32 = arith.constant 0 : i32
    %c0_i32_0 = arith.constant 0 : i32
    %c0_i32_1 = arith.constant 0 : i32
    %c0_i32_2 = arith.constant 0 : i32
    return %c0_i32, %c0_i32_0, %c0_i32_1 : i32, i32, i32
  }
  func.func @transform_13(%arg0: i32) -> (i32, i32) {
    %c0_i32 = arith.constant 0 : i32
    %c0_i32_0 = arith.constant 0 : i32
    %c0_i32_1 = arith.constant 0 : i32
    return %c0_i32, %c0_i32_0 : i32, i32
  }
  func.func @transform_14(%arg0: i32) -> (i32, i32) {
    %c0_i32 = arith.constant 0 : i32
    %c0_i32_0 = arith.constant 0 : i32
    %c0_i32_1 = arith.constant 0 : i32
    return %c0_i32, %c0_i32_0 : i32, i32
  }
  func.func @transform_15(%arg0: i32) -> (i32, i32) {
    %c0_i32 = arith.constant 0 : i32
    %c0_i32_0 = arith.constant 0 : i32
    %c0_i32_1 = arith.constant 0 : i32
    return %c0_i32, %c0_i32_0 : i32, i32
  }
  func.func @transform_16(%arg0: i32) -> (i32, i32) {
    %c0_i32 = arith.constant 0 : i32
    %c0_i32_0 = arith.constant 0 : i32
    %c0_i32_1 = arith.constant 0 : i32
    return %c0_i32, %c0_i32_0 : i32, i32
  }
  func.func @transform_17(%arg0: i32) -> (i32, i32) {
    %c0_i32 = arith.constant 0 : i32
    %c0_i32_0 = arith.constant 0 : i32
    %c0_i32_1 = arith.constant 0 : i32
    return %c0_i32, %c0_i32_0 : i32, i32
  }
  func.func @transform_18(%arg0: i32) -> (i32, i32, i32) {
    %c0_i32 = arith.constant 0 : i32
    %c0_i32_0 = arith.constant 0 : i32
    %c0_i32_1 = arith.constant 0 : i32
    return %arg0, %c0_i32, %c0_i32_0 : i32, i32, i32
  }
}

</mosaic_0001>

<llo_original>
// kernel: model_forward.1
$region0: #{model_forward.1}
  #allocation0 [shape = 'u32[]', space=smem, size = 0x4, offset = 0x4, fixed_abs, tag = 'smem constant byte address 0x4 - core index']
  #allocation1 [shape = 'u32[144,128]{1,0:T(1,128)}', space=vmem, size = 0x12000, scoped, tag = 'internal scratch']
  %s0 = inlined_call_operand.vmem [shape: bf16[2,8,32], index: 0, kind: input, shape index: {}]
  %s1 = inlined_call_operand.vmem [shape: f32[8,128], index: 1, kind: input, shape index: {}]
  %s2 = inlined_call_operand.vmem [shape: f32[8,8], index: 2, kind: input, shape index: {}]
  %s3 = inlined_call_operand.vmem [shape: bf16[32,128], index: 3, kind: input, shape index: {}]
  %s4 = inlined_call_operand.vmem [shape: bf16[3,128,384], index: 4, kind: input, shape index: {}]
  %s5 = inlined_call_operand.vmem [shape: f32[3,384], index: 5, kind: input, shape index: {}]
  %s6 = inlined_call_operand.vmem [shape: bf16[3,128,128], index: 6, kind: input, shape index: {}]
  %s7 = inlined_call_operand.vmem [shape: f32[3,128], index: 7, kind: input, shape index: {}]
  %s8 = inlined_call_operand.vmem [shape: f32[3,128], index: 8, kind: input, shape index: {}]
  %s9 = inlined_call_operand.vmem [shape: f32[3,128], index: 9, kind: input, shape index: {}]
  %s10 = inlined_call_operand.vmem [shape: bf16[3,128,512], index: 10, kind: input, shape index: {}]
  %s11 = inlined_call_operand.vmem [shape: f32[3,512], index: 11, kind: input, shape index: {}]
  %s12 = inlined_call_operand.vmem [shape: bf16[3,512,128], index: 12, kind: input, shape index: {}]
  %s13 = inlined_call_operand.vmem [shape: f32[3,128], index: 13, kind: input, shape index: {}]
  %s14 = inlined_call_operand.vmem [shape: f32[3,128], index: 14, kind: input, shape index: {}]
  %s15 = inlined_call_operand.vmem [shape: f32[3,128], index: 15, kind: input, shape index: {}]
  %s16 = inlined_call_operand.vmem [shape: bf16[128,128], index: 16, kind: input, shape index: {}]
  %s17 = inlined_call_operand.vmem [shape: f32[1,128], index: 17, kind: input, shape index: {}]
  %s18 = inlined_call_operand.hbm [shape: f32[2,1,128], index: 18, kind: output, shape index: {}]
  %s19 = sld [smem:[#allocation0]]
  $region105: #{model_forward.1} parent=0
    _
  %s21 = ssub.s32 1, %s19
  %s22 = scalar_select 0, %s21, %s19
  $region1: #{model_forward.1} parent=0
    #allocation2 [shape = 'u8[1024]{0}', space=vmem, size = 0x400, scoped, tag = 'output window, operand 0']
    #allocation3 [shape = 's32[2]{0}', space=sflag, size = 0x8, scoped, tag = 'scoped memory for model_forward.1']
    %23 = vsyncpa [#allocation3], 0
    %s24 = scalar_lea.sflag [#allocation3], 1
    %25 = vsyncpa %s24, 0
    loop: start=0, step=1, limit=4
    $region2: #{model_forward.1} parent=1 // loop_pre_header
      _
    $region3: #{model_forward.1} parent=1 // loop_header
      %s27 = sphi 0, %s31
      %p28 = scmp.ge.s32.totalorder %s27, 4
      %s37 = sphi 0, %s39
      %s40 = sphi 0, %s37
      %s41 = sphi 0, %s40
      %s57 = sphi 0, %s41
      %s61 = sphi 0, %s61
      %s63 = sphi 0, %s61
      %s64 = sphi 0, %s63
      %s78 = sphi 0, %s64
      %s82 = sphi 0, %s82
      %s84 = sphi 0, %s82
      %s85 = sphi 0, %s84
      %s99 = sphi 0, %s85
      %s103 = sphi 0, %s103
      %s105 = sphi 0, %s103
      %s106 = sphi 0, %s105
      %s120 = sphi 0, %s106
      %s124 = sphi 0, %s124
      %s126 = sphi 0, %s124
      %s127 = sphi 0, %s126
      %s141 = sphi 0, %s127
      %s145 = sphi 0, %s145
      %s147 = sphi 0, %s145
      %s148 = sphi 0, %s147
      %s162 = sphi 0, %s148
      %s166 = sphi 0, %s166
      %s168 = sphi 0, %s166
      %s169 = sphi 0, %s168
      %s183 = sphi 0, %s169
      %s187 = sphi 0, %s187
      %s189 = sphi 0, %s187
      %s190 = sphi 0, %s189
      %s204 = sphi 0, %s190
      %s208 = sphi 0, %s208
      %s210 = sphi 0, %s208
      %s211 = sphi 0, %s210
      %s225 = sphi 0, %s211
      %s229 = sphi 0, %s229
      %s231 = sphi 0, %s229
      %s232 = sphi 0, %s231
      %s246 = sphi 0, %s232
      %s250 = sphi 0, %s250
      %s252 = sphi 0, %s250
      %s253 = sphi 0, %s252
      %s267 = sphi 0, %s253
      %s271 = sphi 0, %s271
      %s273 = sphi 0, %s271
      %s274 = sphi 0, %s273
      %s288 = sphi 0, %s274
      %s292 = sphi 0, %s292
      %s294 = sphi 0, %s292
      %s295 = sphi 0, %s294
      %s309 = sphi 0, %s295
      %s313 = sphi 0, %s313
      %s315 = sphi 0, %s313
      %s316 = sphi 0, %s315
      %s330 = sphi 0, %s316
      %s334 = sphi 0, %s334
      %s336 = sphi 0, %s334
      %s337 = sphi 0, %s336
      %s351 = sphi 0, %s337
      %s355 = sphi 0, %s355
      %s357 = sphi 0, %s355
      %s358 = sphi 0, %s357
      %s372 = sphi 0, %s358
      %s376 = sphi 0, %s376
      %s378 = sphi 0, %s376
      %s379 = sphi 0, %s378
      %s393 = sphi 0, %s379
      %s397 = sphi 0, %s397
      %s399 = sphi 0, %s397
      %s400 = sphi 0, %s399
      %s414 = sphi 0, %s400
      %s420 = sphi 0, %s422
      %s423 = sphi 0, %s420
      %s424 = sphi 0, %s423
      %s440 = sphi 0, %s424
    $region4: #{model_forward.1} parent=1 // loop_header_branch
      %30 = sbr.rel (%p28) target = $region8
    $region5: #{model_forward.1} parent=1 // loop_body
      %s32 = ssub.s32 %s27, 1
      %s33 = ssub.s32 %s27, 2
      %s34 = sadd.s32 %s27, 1
      %s35 = ssub.s32 %s27, %s34
      %p36 = scmp.eq.s32.totalorder %s35, 0
      %s38 = sadd.s32 %s37, 1
      %s39 = scalar_select %p36, %s37, %s38
      %p42 = pneg %p36
      %p43 = scmp.eq.s32.totalorder %s27, 1
      %p44 = por %p42, %p43
      %p45 = scmp.ne.s32.totalorder %s37, %s40
      %p46 = scmp.eq.s32.totalorder %s27, 0
      %p47 = por %p45, %p46
      %p48 = scmp.ne.s32.totalorder %s37, %s40
      %p49 = scmp.eq.s32.totalorder %s32, 1
      %p50 = por %p48, %p49
      %p51 = scmp.ne.s32.totalorder %s40, %s41
      %p52 = scmp.eq.s32.totalorder %s32, 0
      %p53 = por %p51, %p52
      %p54 = scmp.ne.s32.totalorder %s40, %s41
      %p55 = scmp.eq.s32.totalorder %s33, 1
      %p56 = por %p54, %p55
      %p58 = scmp.ne.s32.totalorder %s41, %s57
      %p59 = scmp.eq.s32.totalorder %s33, 0
      %p60 = por %p58, %p59
      %s62 = sadd.s32 %s61, 1
      %p65 = scmp.eq.s32.totalorder %s27, 1
      %p66 = scmp.ne.s32.totalorder %s61, %s63
      %p67 = scmp.eq.s32.totalorder %s27, 0
      %p68 = por %p66, %p67
      %p69 = scmp.ne.s32.totalorder %s61, %s63
      %p70 = scmp.eq.s32.totalorder %s32, 1
      %p71 = por %p69, %p70
      %p72 = scmp.ne.s32.totalorder %s63, %s64
      %p73 = scmp.eq.s32.totalorder %s32, 0
      %p74 = por %p72, %p73
      %p75 = scmp.ne.s32.totalorder %s63, %s64
      %p76 = scmp.eq.s32.totalorder %s33, 1
      %p77 = por %p75, %p76
      %p79 = scmp.ne.s32.totalorder %s64, %s78
      %p80 = scmp.eq.s32.totalorder %s33, 0
      %p81 = por %p79, %p80
      %s83 = sadd.s32 %s82, 1
      %p86 = scmp.eq.s32.totalorder %s27, 1
      %p87 = scmp.ne.s32.totalorder %s82, %s84
      %p88 = scmp.eq.s32.totalorder %s27, 0
      %p89 = por %p87, %p88
      %p90 = scmp.ne.s32.totalorder %s82, %s84
      %p91 = scmp.eq.s32.totalorder %s32, 1
      %p92 = por %p90, %p91
      %p93 = scmp.ne.s32.totalorder %s84, %s85
      %p94 = scmp.eq.s32.totalorder %s32, 0
      %p95 = por %p93, %p94
      %p96 = scmp.ne.s32.totalorder %s84, %s85
      %p97 = scmp.eq.s32.totalorder %s33, 1
      %p98 = por %p96, %p97
      %p100 = scmp.ne.s32.totalorder %s85, %s99
      %p101 = scmp.eq.s32.totalorder %s33, 0
      %p102 = por %p100, %p101
      %s104 = sadd.s32 %s103, 1
      %p107 = scmp.eq.s32.totalorder %s27, 1
      %p108 = scmp.ne.s32.totalorder %s103, %s105
      %p109 = scmp.eq.s32.totalorder %s27, 0
      %p110 = por %p108, %p109
      %p111 = scmp.ne.s32.totalorder %s103, %s105
      %p112 = scmp.eq.s32.totalorder %s32, 1
      %p113 = por %p111, %p112
      %p114 = scmp.ne.s32.totalorder %s105, %s106
      %p115 = scmp.eq.s32.totalorder %s32, 0
      %p116 = por %p114, %p115
      %p117 = scmp.ne.s32.totalorder %s105, %s106
      %p118 = scmp.eq.s32.totalorder %s33, 1
      %p119 = por %p117, %p118
      %p121 = scmp.ne.s32.totalorder %s106, %s120
      %p122 = scmp.eq.s32.totalorder %s33, 0
      %p123 = por %p121, %p122
      %s125 = sadd.s32 %s124, 1
      %p128 = scmp.eq.s32.totalorder %s27, 1
      %p129 = scmp.ne.s32.totalorder %s124, %s126
      %p130 = scmp.eq.s32.totalorder %s27, 0
      %p131 = por %p129, %p130
      %p132 = scmp.ne.s32.totalorder %s124, %s126
      %p133 = scmp.eq.s32.totalorder %s32, 1
      %p134 = por %p132, %p133
      %p135 = scmp.ne.s32.totalorder %s126, %s127
      %p136 = scmp.eq.s32.totalorder %s32, 0
      %p137 = por %p135, %p136
      %p138 = scmp.ne.s32.totalorder %s126, %s127
      %p139 = scmp.eq.s32.totalorder %s33, 1
      %p140 = por %p138, %p139
      %p142 = scmp.ne.s32.totalorder %s127, %s141
      %p143 = scmp.eq.s32.totalorder %s33, 0
      %p144 = por %p142, %p143
      %s146 = sadd.s32 %s145, 1
      %p149 = scmp.eq.s32.totalorder %s27, 1
      %p150 = scmp.ne.s32.totalorder %s145, %s147
      %p151 = scmp.eq.s32.totalorder %s27, 0
      %p152 = por %p150, %p151
      %p153 = scmp.ne.s32.totalorder %s145, %s147
      %p154 = scmp.eq.s32.totalorder %s32, 1
      %p155 = por %p153, %p154
      %p156 = scmp.ne.s32.totalorder %s147, %s148
      %p157 = scmp.eq.s32.totalorder %s32, 0
      %p158 = por %p156, %p157
      %p159 = scmp.ne.s32.totalorder %s147, %s148
      %p160 = scmp.eq.s32.totalorder %s33, 1
      %p161 = por %p159, %p160
      %p163 = scmp.ne.s32.totalorder %s148, %s162
      %p164 = scmp.eq.s32.totalorder %s33, 0
      %p165 = por %p163, %p164
      %s167 = sadd.s32 %s166, 1
      %p170 = scmp.eq.s32.totalorder %s27, 1
      %p171 = scmp.ne.s32.totalorder %s166, %s168
      %p172 = scmp.eq.s32.totalorder %s27, 0
      %p173 = por %p171, %p172
      %p174 = scmp.ne.s32.totalorder %s166, %s168
      %p175 = scmp.eq.s32.totalorder %s32, 1
      %p176 = por %p174, %p175
      %p177 = scmp.ne.s32.totalorder %s168, %s169
      %p178 = scmp.eq.s32.totalorder %s32, 0
      %p179 = por %p177, %p178
      %p180 = scmp.ne.s32.totalorder %s168, %s169
      %p181 = scmp.eq.s32.totalorder %s33, 1
      %p182 = por %p180, %p181
      %p184 = scmp.ne.s32.totalorder %s169, %s183
      %p185 = scmp.eq.s32.totalorder %s33, 0
      %p186 = por %p184, %p185
      %s188 = sadd.s32 %s187, 1
      %p191 = scmp.eq.s32.totalorder %s27, 1
      %p192 = scmp.ne.s32.totalorder %s187, %s189
      %p193 = scmp.eq.s32.totalorder %s27, 0
      %p194 = por %p192, %p193
      %p195 = scmp.ne.s32.totalorder %s187, %s189
      %p196 = scmp.eq.s32.totalorder %s32, 1
      %p197 = por %p195, %p196
      %p198 = scmp.ne.s32.totalorder %s189, %s190
      %p199 = scmp.eq.s32.totalorder %s32, 0
      %p200 = por %p198, %p199
      %p201 = scmp.ne.s32.totalorder %s189, %s190
      %p202 = scmp.eq.s32.totalorder %s33, 1
      %p203 = por %p201, %p202
      %p205 = scmp.ne.s32.totalorder %s190, %s204
      %p206 = scmp.eq.s32.totalorder %s33, 0
      %p207 = por %p205, %p206
      %s209 = sadd.s32 %s208, 1
      %p212 = scmp.eq.s32.totalorder %s27, 1
      %p213 = scmp.ne.s32.totalorder %s208, %s210
      %p214 = scmp.eq.s32.totalorder %s27, 0
      %p215 = por %p213, %p214
      %p216 = scmp.ne.s32.totalorder %s208, %s210
      %p217 = scmp.eq.s32.totalorder %s32, 1
      %p218 = por %p216, %p217
      %p219 = scmp.ne.s32.totalorder %s210, %s211
      %p220 = scmp.eq.s32.totalorder %s32, 0
      %p221 = por %p219, %p220
      %p222 = scmp.ne.s32.totalorder %s210, %s211
      %p223 = scmp.eq.s32.totalorder %s33, 1
      %p224 = por %p222, %p223
      %p226 = scmp.ne.s32.totalorder %s211, %s225
      %p227 = scmp.eq.s32.totalorder %s33, 0
      %p228 = por %p226, %p227
      %s230 = sadd.s32 %s229, 1
      %p233 = scmp.eq.s32.totalorder %s27, 1
      %p234 = scmp.ne.s32.totalorder %s229, %s231
      %p235 = scmp.eq.s32.totalorder %s27, 0
      %p236 = por %p234, %p235
      %p237 = scmp.ne.s32.totalorder %s229, %s231
      %p238 = scmp.eq.s32.totalorder %s32, 1
      %p239 = por %p237, %p238
      %p240 = scmp.ne.s32.totalorder %s231, %s232
      %p241 = scmp.eq.s32.totalorder %s32, 0
      %p242 = por %p240, %p241
      %p243 = scmp.ne.s32.totalorder %s231, %s232
      %p244 = scmp.eq.s32.totalorder %s33, 1
      %p245 = por %p243, %p244
      %p247 = scmp.ne.s32.totalorder %s232, %s246
      %p248 = scmp.eq.s32.totalorder %s33, 0
      %p249 = por %p247, %p248
      %s251 = sadd.s32 %s250, 1
      %p254 = scmp.eq.s32.totalorder %s27, 1
      %p255 = scmp.ne.s32.totalorder %s250, %s252
      %p256 = scmp.eq.s32.totalorder %s27, 0
      %p257 = por %p255, %p256
      %p258 = scmp.ne.s32.totalorder %s250, %s252
      %p259 = scmp.eq.s32.totalorder %s32, 1
      %p260 = por %p258, %p259
      %p261 = scmp.ne.s32.totalorder %s252, %s253
      %p262 = scmp.eq.s32.totalorder %s32, 0
      %p263 = por %p261, %p262
      %p264 = scmp.ne.s32.totalorder %s252, %s253
      %p265 = scmp.eq.s32.totalorder %s33, 1
      %p266 = por %p264, %p265
      %p268 = scmp.ne.s32.totalorder %s253, %s267
      %p269 = scmp.eq.s32.totalorder %s33, 0
      %p270 = por %p268, %p269
      %s272 = sadd.s32 %s271, 1
      %p275 = scmp.eq.s32.totalorder %s27, 1
      %p276 = scmp.ne.s32.totalorder %s271, %s273
      %p277 = scmp.eq.s32.totalorder %s27, 0
      %p278 = por %p276, %p277
      %p279 = scmp.ne.s32.totalorder %s271, %s273
      %p280 = scmp.eq.s32.totalorder %s32, 1
      %p281 = por %p279, %p280
      %p282 = scmp.ne.s32.totalorder %s273, %s274
      %p283 = scmp.eq.s32.totalorder %s32, 0
      %p284 = por %p282, %p283
      %p285 = scmp.ne.s32.totalorder %s273, %s274
      %p286 = scmp.eq.s32.totalorder %s33, 1
      %p287 = por %p285, %p286
      %p289 = scmp.ne.s32.totalorder %s274, %s288
      %p290 = scmp.eq.s32.totalorder %s33, 0
      %p291 = por %p289, %p290
      %s293 = sadd.s32 %s292, 1
      %p296 = scmp.eq.s32.totalorder %s27, 1
      %p297 = scmp.ne.s32.totalorder %s292, %s294
      %p298 = scmp.eq.s32.totalorder %s27, 0
      %p299 = por %p297, %p298
      %p300 = scmp.ne.s32.totalorder %s292, %s294
      %p301 = scmp.eq.s32.totalorder %s32, 1
      %p302 = por %p300, %p301
      %p303 = scmp.ne.s32.totalorder %s294, %s295
      %p304 = scmp.eq.s32.totalorder %s32, 0
      %p305 = por %p303, %p304
      %p306 = scmp.ne.s32.totalorder %s294, %s295
      %p307 = scmp.eq.s32.totalorder %s33, 1
      %p308 = por %p306, %p307
      %p310 = scmp.ne.s32.totalorder %s295, %s309
      %p311 = scmp.eq.s32.totalorder %s33, 0
      %p312 = por %p310, %p311
      %s314 = sadd.s32 %s313, 1
      %p317 = scmp.eq.s32.totalorder %s27, 1
      %p318 = scmp.ne.s32.totalorder %s313, %s315
      %p319 = scmp.eq.s32.totalorder %s27, 0
      %p320 = por %p318, %p319
      %p321 = scmp.ne.s32.totalorder %s313, %s315
      %p322 = scmp.eq.s32.totalorder %s32, 1
      %p323 = por %p321, %p322
      %p324 = scmp.ne.s32.totalorder %s315, %s316
      %p325 = scmp.eq.s32.totalorder %s32, 0
      %p326 = por %p324, %p325
      %p327 = scmp.ne.s32.totalorder %s315, %s316
      %p328 = scmp.eq.s32.totalorder %s33, 1
      %p329 = por %p327, %p328
      %p331 = scmp.ne.s32.totalorder %s316, %s330
      %p332 = scmp.eq.s32.totalorder %s33, 0
      %p333 = por %p331, %p332
      %s335 = sadd.s32 %s334, 1
      %p338 = scmp.eq.s32.totalorder %s27, 1
      %p339 = scmp.ne.s32.totalorder %s334, %s336
      %p340 = scmp.eq.s32.totalorder %s27, 0
      %p341 = por %p339, %p340
      %p342 = scmp.ne.s32.totalorder %s334, %s336
      %p343 = scmp.eq.s32.totalorder %s32, 1
      %p344 = por %p342, %p343
      %p345 = scmp.ne.s32.totalorder %s336, %s337
      %p346 = scmp.eq.s32.totalorder %s32, 0
      %p347 = por %p345, %p346
      %p348 = scmp.ne.s32.totalorder %s336, %s337
      %p349 = scmp.eq.s32.totalorder %s33, 1
      %p350 = por %p348, %p349
      %p352 = scmp.ne.s32.totalorder %s337, %s351
      %p353 = scmp.eq.s32.totalorder %s33, 0
      %p354 = por %p352, %p353
      %s356 = sadd.s32 %s355, 1
      %p359 = scmp.eq.s32.totalorder %s27, 1
      %p360 = scmp.ne.s32.totalorder %s355, %s357
      %p361 = scmp.eq.s32.totalorder %s27, 0
      %p362 = por %p360, %p361
      %p363 = scmp.ne.s32.totalorder %s355, %s357
      %p364 = scmp.eq.s32.totalorder %s32, 1
      %p365 = por %p363, %p364
      %p366 = scmp.ne.s32.totalorder %s357, %s358
      %p367 = scmp.eq.s32.totalorder %s32, 0
      %p368 = por %p366, %p367
      %p369 = scmp.ne.s32.totalorder %s357, %s358
      %p370 = scmp.eq.s32.totalorder %s33, 1
      %p371 = por %p369, %p370
      %p373 = scmp.ne.s32.totalorder %s358, %s372
      %p374 = scmp.eq.s32.totalorder %s33, 0
      %p375 = por %p373, %p374
      %s377 = sadd.s32 %s376, 1
      %p380 = scmp.eq.s32.totalorder %s27, 1
      %p381 = scmp.ne.s32.totalorder %s376, %s378
      %p382 = scmp.eq.s32.totalorder %s27, 0
      %p383 = por %p381, %p382
      %p384 = scmp.ne.s32.totalorder %s376, %s378
      %p385 = scmp.eq.s32.totalorder %s32, 1
      %p386 = por %p384, %p385
      %p387 = scmp.ne.s32.totalorder %s378, %s379
      %p388 = scmp.eq.s32.totalorder %s32, 0
      %p389 = por %p387, %p388
      %p390 = scmp.ne.s32.totalorder %s378, %s379
      %p391 = scmp.eq.s32.totalorder %s33, 1
      %p392 = por %p390, %p391
      %p394 = scmp.ne.s32.totalorder %s379, %s393
      %p395 = scmp.eq.s32.totalorder %s33, 0
      %p396 = por %p394, %p395
      %s398 = sadd.s32 %s397, 1
      %p401 = scmp.eq.s32.totalorder %s27, 1
      %p402 = scmp.ne.s32.totalorder %s397, %s399
      %p403 = scmp.eq.s32.totalorder %s27, 0
      %p404 = por %p402, %p403
      %p405 = scmp.ne.s32.totalorder %s397, %s399
      %p406 = scmp.eq.s32.totalorder %s32, 1
      %p407 = por %p405, %p406
      %p408 = scmp.ne.s32.totalorder %s399, %s400
      %p409 = scmp.eq.s32.totalorder %s32, 0
      %p410 = por %p408, %p409
      %p411 = scmp.ne.s32.totalorder %s399, %s400
      %p412 = scmp.eq.s32.totalorder %s33, 1
      %p413 = por %p411, %p412
      %p415 = scmp.ne.s32.totalorder %s400, %s414
      %p416 = scmp.eq.s32.totalorder %s33, 0
      %p417 = por %p415, %p416
      %s418 = ssub.s32 %s27, %s34
      %p419 = scmp.eq.s32.totalorder %s418, 0
      %s421 = sadd.s32 %s420, 1
      %s422 = scalar_select %p419, %s420, %s421
      %p425 = pneg %p419
      %p426 = scmp.eq.s32.totalorder %s27, 1
      %p427 = por %p425, %p426
      %p428 = scmp.ne.s32.totalorder %s420, %s423
      %p429 = scmp.eq.s32.totalorder %s27, 0
      %p430 = por %p428, %p429
      %p431 = scmp.ne.s32.totalorder %s420, %s423
      %p432 = scmp.eq.s32.totalorder %s32, 1
      %p433 = por %p431, %p432
      %p434 = scmp.ne.s32.totalorder %s423, %s424
      %p435 = scmp.eq.s32.totalorder %s32, 0
      %p436 = por %p434, %p435
      %p437 = scmp.ne.s32.totalorder %s423, %s424
      %p438 = scmp.eq.s32.totalorder %s33, 1
      %p439 = por %p437, %p438
      %p441 = scmp.ne.s32.totalorder %s424, %s440
      %p442 = scmp.eq.s32.totalorder %s33, 0
      %p443 = por %p441, %p442
      %p444 = scmp.le.s32.totalorder 1, %s27
      %p445 = scmp.lt.s32.totalorder %s27, 3
      %p446 = pnand %p444, %p445
      %p447 = pneg %p446
      // Predicated region
      $region9: #{model_forward.1} parent=5 // pred_check
        _
      $region10: #{model_forward.1} parent=5 // pred_check_branch
        %449 = sbr.rel (%p446) target = $region12
      $region11: #{model_forward.1} parent=5 // pred_region
        %s450 = ssub.s32 %s27, 1
        // Predicated region
        $region13: #{model_forward.1} parent=11 // pred_check
          %p451 = pneg %p74
        $region14: #{model_forward.1} parent=11 // pred_check_branch
          %453 = sbr.rel (%p451) target = $region16
        $region15: #{model_forward.1} parent=11 // pred_region
          _
        $region16: #{model_forward.1} parent=11 // pred_fallthru
          _
        // Predicated region
        $region17: #{model_forward.1} parent=11 // pred_check
          %p454 = pneg %p95
        $region18: #{model_forward.1} parent=11 // pred_check_branch
          %456 = sbr.rel (%p454) target = $region20
        $region19: #{model_forward.1} parent=11 // pred_region
          _
        $region20: #{model_forward.1} parent=11 // pred_fallthru
          _
        // Predicated region
        $region21: #{model_forward.1} parent=11 // pred_check
          %p457 = pneg %p116
        $region22: #{model_forward.1} parent=11 // pred_check_branch
          %459 = sbr.rel (%p457) target = $region24
        $region23: #{model_forward.1} parent=11 // pred_region
          _
        $region24: #{model_forward.1} parent=11 // pred_fallthru
          _
        // Predicated region
        $region25: #{model_forward.1} parent=11 // pred_check
          %p460 = pneg %p137
        $region26: #{model_forward.1} parent=11 // pred_check_branch
          %462 = sbr.rel (%p460) target = $region28
        $region27: #{model_forward.1} parent=11 // pred_region
          _
        $region28: #{model_forward.1} parent=11 // pred_fallthru
          _
        // Predicated region
        $region29: #{model_forward.1} parent=11 // pred_check
          %p463 = pneg %p158
        $region30: #{model_forward.1} parent=11 // pred_check_branch
          %465 = sbr.rel (%p463) target = $region32
        $region31: #{model_forward.1} parent=11 // pred_region
          _
        $region32: #{model_forward.1} parent=11 // pred_fallthru
          _
        // Predicated region
        $region33: #{model_forward.1} parent=11 // pred_check
          %p466 = pneg %p179
        $region34: #{model_forward.1} parent=11 // pred_check_branch
          %468 = sbr.rel (%p466) target = $region36
        $region35: #{model_forward.1} parent=11 // pred_region
          _
        $region36: #{model_forward.1} parent=11 // pred_fallthru
          _
        // Predicated region
        $region37: #{model_forward.1} parent=11 // pred_check
          %p469 = pneg %p200
        $region38: #{model_forward.1} parent=11 // pred_check_branch
          %471 = sbr.rel (%p469) target = $region40
        $region39: #{model_forward.1} parent=11 // pred_region
          _
        $region40: #{model_forward.1} parent=11 // pred_fallthru
          _
        // Predicated region
        $region41: #{model_forward.1} parent=11 // pred_check
          %p472 = pneg %p221
        $region42: #{model_forward.1} parent=11 // pred_check_branch
          %474 = sbr.rel (%p472) target = $region44
        $region43: #{model_forward.1} parent=11 // pred_region
          _
        $region44: #{model_forward.1} parent=11 // pred_fallthru
          _
        // Predicated region
        $region45: #{model_forward.1} parent=11 // pred_check
          %p475 = pneg %p242
        $region46: #{model_forward.1} parent=11 // pred_check_branch
          %477 = sbr.rel (%p475) target = $region48
        $region47: #{model_forward.1} parent=11 // pred_region
          _
        $region48: #{model_forward.1} parent=11 // pred_fallthru
          _
        // Predicated region
        $region49: #{model_forward.1} parent=11 // pred_check
          %p478 = pneg %p263
        $region50: #{model_forward.1} parent=11 // pred_check_branch
          %480 = sbr.rel (%p478) target = $region52
        $region51: #{model_forward.1} parent=11 // pred_region
          _
        $region52: #{model_forward.1} parent=11 // pred_fallthru
          _
        // Predicated region
        $region53: #{model_forward.1} parent=11 // pred_check
          %p481 = pneg %p284
        $region54: #{model_forward.1} parent=11 // pred_check_branch
          %483 = sbr.rel (%p481) target = $region56
        $region55: #{model_forward.1} parent=11 // pred_region
          _
        $region56: #{model_forward.1} parent=11 // pred_fallthru
          _
        // Predicated region
        $region57: #{model_forward.1} parent=11 // pred_check
          %p484 = pneg %p305
        $region58: #{model_forward.1} parent=11 // pred_check_branch
          %486 = sbr.rel (%p484) target = $region60
        $region59: #{model_forward.1} parent=11 // pred_region
          _
        $region60: #{model_forward.1} parent=11 // pred_fallthru
          _
        // Predicated region
        $region61: #{model_forward.1} parent=11 // pred_check
          %p487 = pneg %p326
        $region62: #{model_forward.1} parent=11 // pred_check_branch
          %489 = sbr.rel (%p487) target = $region64
        $region63: #{model_forward.1} parent=11 // pred_region
          _
        $region64: #{model_forward.1} parent=11 // pred_fallthru
          _
        // Predicated region
        $region65: #{model_forward.1} parent=11 // pred_check
          %p490 = pneg %p347
        $region66: #{model_forward.1} parent=11 // pred_check_branch
          %492 = sbr.rel (%p490) target = $region68
        $region67: #{model_forward.1} parent=11 // pred_region
          _
        $region68: #{model_forward.1} parent=11 // pred_fallthru
          _
        // Predicated region
        $region69: #{model_forward.1} parent=11 // pred_check
          %p493 = pneg %p368
        $region70: #{model_forward.1} parent=11 // pred_check_branch
          %495 = sbr.rel (%p493) target = $region72
        $region71: #{model_forward.1} parent=11 // pred_region
          _
        $region72: #{model_forward.1} parent=11 // pred_fallthru
          _
        // Predicated region
        $region73: #{model_forward.1} parent=11 // pred_check
          %p496 = pneg %p389
        $region74: #{model_forward.1} parent=11 // pred_check_branch
          %498 = sbr.rel (%p496) target = $region76
        $region75: #{model_forward.1} parent=11 // pred_region
          _
        $region76: #{model_forward.1} parent=11 // pred_fallthru
          _
        // Predicated region
        $region77: #{model_forward.1} parent=11 // pred_check
          %p499 = pneg %p410
        $region78: #{model_forward.1} parent=11 // pred_check_branch
          %501 = sbr.rel (%p499) target = $region80
        $region79: #{model_forward.1} parent=11 // pred_region
          _
        $region80: #{model_forward.1} parent=11 // pred_fallthru
          _
      $region12: #{model_forward.1} parent=5 // pred_fallthru
        _
      %p502 = scmp.lt.s32.totalorder %s27, 2
      // Predicated region
      $region81: #{model_forward.1} parent=5 // pred_check
        %p503 = pneg %p502
      $region82: #{model_forward.1} parent=5 // pred_check_branch
        %505 = sbr.rel (%p503) target = $region84
      $region83: #{model_forward.1} parent=5 // pred_region
        // Predicated region
        $region85: #{model_forward.1} parent=83 // pred_check
          %p506 = pneg %p47
        $region86: #{model_forward.1} parent=83 // pred_check_branch
          %508 = sbr.rel (%p506) target = $region88
        $region87: #{model_forward.1} parent=83 // pred_region
          %p509 = scmp.lt.s32.totalorder %s27, 1
          %s510 = scalar_select %p509, %s27, 1
          %s511 = smul.addr %s510, 4
          %s512 = scalar_lea.vmem %s0, %s511
        $region88: #{model_forward.1} parent=83 // pred_fallthru
          _
      $region84: #{model_forward.1} parent=5 // pred_fallthru
        _
      %p513 = scmp.le.s32.totalorder 1, %s27
      %p514 = scmp.lt.s32.totalorder %s27, 3
      %p515 = pnand %p513, %p514
      %p516 = pneg %p515
      // Predicated region
      $region89: #{model_forward.1} parent=5 // pred_check
        _
      $region90: #{model_forward.1} parent=5 // pred_check_branch
        %518 = sbr.rel (%p515) target = $region92
      $region91: #{model_forward.1} parent=5 // pred_region
        %s519 = ssub.s32 %s27, 1
        %p520 = scmp.lt.s32.totalorder %s32, 1
        %s521 = scalar_select %p520, %s32, 1
        %s522 = smul.addr %s521, 4
        %s523 = scalar_lea.vmem %s0, %s522
        %p524 = pneg %p53
        %p525 = pneg %p50
        %p526 = pneg %p74
        %p527 = pneg %p71
        %p528 = pneg %p95
        %p529 = pneg %p92
        %p530 = pneg %p116
        %p531 = pneg %p113
        %p532 = pneg %p137
        %p533 = pneg %p134
        %p534 = pneg %p158
        %p535 = pneg %p155
        %p536 = pneg %p179
        %p537 = pneg %p176
        %p538 = pneg %p200
        %p539 = pneg %p197
        %p540 = pneg %p221
        %p541 = pneg %p218
        %p542 = pneg %p242
        %p543 = pneg %p239
        %p544 = pneg %p263
        %p545 = pneg %p260
        %p546 = pneg %p284
        %p547 = pneg %p281
        %p548 = pneg %p305
        %p549 = pneg %p302
        %p550 = pneg %p326
        %p551 = pneg %p323
        %p552 = pneg %p347
        %p553 = pneg %p344
        %p554 = pneg %p368
        %p555 = pneg %p365
        %p556 = pneg %p389
        %p557 = pneg %p386
        %p558 = pneg %p410
        %p559 = pneg %p407
        %p560 = pneg %p436
        %p561 = pneg %p433
        %s562 = sand.u32 %s423, 1
        %s563 = scalar_lea.sflag [#allocation3], %s562
        %s564 = sand.u32 %s423, 1
        %s565 = scalar_lea.vmem [#allocation2], %s564
        %p566 = scmp.lt.s32.totalorder %s32, 1
        %s567 = scalar_select %p566, %s32, 1
        %s568 = smul.addr %s567, 4
        %s569 = scalar_lea.vmem %s0, %s568
        %v571 = vld [vmem:[%s569] sm:$0xf]
        %v572 = vld [vmem:[%s3] sm:$0xf]
        %v573 = vld [vmem:[%s3 + $0x4] sm:$0xf]
        %v574 = vld [vmem:[%s3 + $0x8] sm:$0xf]
        %v575 = vld [vmem:[%s3 + $0xc] sm:$0xf]
        %v580 = vunpack.c.l.b16 %v572
        %v581 = vunpack.c.l.b16 %v573
        %v582 = vunpack.c.l.b16 %v574
        %v583 = vunpack.c.l.b16 %v575
        %v584 = vpack.c.b16 %v581, %v580
        %v585 = vpack.c.b16 %v583, %v582
        %vm588 = vcmask 261120
        %v590 = vsel %vm588, %v571, 0
        %592 = vmatprep.subr.bf16.mxu0 0
        %593 = vmatpush1.bf16.msra.mxu0 %v584
        %594 = vmatprep.subr.bf16.mxu0 0
        %595 = vmatpush1.bf16.msra.mxu0 %v585
        %596 = vmatprep.subr.bf16.mxu0 0
        %597 = vmatpush1.bf16.msra.mxu0 0
        %598 = vmatprep.subr.bf16.mxu0 0
        %599 = vmatpush1.bf16.msra.mxu0 0
        %600 = vmatprep.subr.bf16.mxu0 0
        %601 = vmatpush1.bf16.msra.mxu0 0
        %602 = vmatprep.subr.bf16.mxu0 0
        %603 = vmatpush1.bf16.msra.mxu0 0
        %604 = vmatprep.subr.bf16.mxu0 0
        %605 = vmatpush1.bf16.msra.mxu0 0
        %606 = vmatprep.subr.bf16.mxu0 0
        %607 = vmatpush1.bf16.msra.mxu0 0
        %608 = vmatprep.subr.bf16.mxu0 0
        %609 = vmatpush1.bf16.msra.mxu0 0
        %610 = vmatprep.subr.bf16.mxu0 0
        %611 = vmatpush1.bf16.msra.mxu0 0
        %612 = vmatprep.subr.bf16.mxu0 0
        %613 = vmatpush1.bf16.msra.mxu0 0
        %614 = vmatprep.subr.bf16.mxu0 0
        %615 = vmatpush1.bf16.msra.mxu0 0
        %616 = vmatprep.subr.bf16.mxu0 0
        %617 = vmatpush1.bf16.msra.mxu0 0
        %618 = vmatprep.subr.bf16.mxu0 0
        %619 = vmatpush1.bf16.msra.mxu0 0
        %620 = vmatprep.subr.bf16.mxu0 0
        %621 = vmatpush1.bf16.msra.mxu0 0
        %622 = vmatprep.subr.bf16.mxu0 0
        %623 = vmatpush1.bf16.msra.mxu0 0
        %624 = vmatprep.mubr.bf16.mxu0 0
        %625 = vmatmul.mubr.bf16.gmra.mrb[0].mxu0 %v590
        %v626 = vpop.f32.mrb[0].mxu0
        %v627 = vadd.f32 0.0, %v626
        %v628 = vpop.f32.mrb[0].mxu0
        %v629 = vpop.f32.mrb[0].mxu0
        %v630 = vpop.f32.mrb[0].mxu0
        %631 = vdwg.mxu0
        %v632 = vld [vmem:[%s1] sm:$0xff]
        %v633 = vadd.f32 %v627, %v632
        %v634 = vld [vmem:[%s2] sm:$0xff]
        %v635 = vld [vmem:[%s4] sm:$0xff]
        %v636 = vld [vmem:[%s4 + $0x8] sm:$0xf]
        %v637 = vld [vmem:[%s4 + $0xc] sm:$0xff]
        %v638 = vld [vmem:[%s4 + $0x14] sm:$0xf]
        %v639 = vld [vmem:[%s4 + $0x18] sm:$0xff]
        %v640 = vld [vmem:[%s4 + $0x20] sm:$0xf]
        %v641 = vld [vmem:[%s4 + $0x24] sm:$0xff]
        %v642 = vld [vmem:[%s4 + $0x2c] sm:$0xf]
        %v643 = vld [vmem:[%s4 + $0x30] sm:$0xff]
        %v644 = vld [vmem:[%s4 + $0x38] sm:$0xf]
        %v645 = vld [vmem:[%s4 + $0x3c] sm:$0xff]
        %v646 = vld [vmem:[%s4 + $0x44] sm:$0xf]
        %v647 = vld [vmem:[%s4 + $0x48] sm:$0xff]
        %v648 = vld [vmem:[%s4 + $0x50] sm:$0xf]
        %v649 = vld [vmem:[%s4 + $0x54] sm:$0xff]
        %v650 = vld [vmem:[%s4 + $0x5c] sm:$0xf]
        %v651 = vld [vmem:[%s4 + $0x60] sm:$0xff]
        %v652 = vld [vmem:[%s4 + $0x68] sm:$0xf]
        %v653 = vld [vmem:[%s4 + $0x6c] sm:$0xff]
        %v654 = vld [vmem:[%s4 + $0x74] sm:$0xf]
        %v655 = vld [vmem:[%s4 + $0x78] sm:$0xff]
        %v656 = vld [vmem:[%s4 + $0x80] sm:$0xf]
        %v657 = vld [vmem:[%s4 + $0x84] sm:$0xff]
        %v658 = vld [vmem:[%s4 + $0x8c] sm:$0xf]
        %v659 = vld [vmem:[%s4 + $0x90] sm:$0xff]
        %v660 = vld [vmem:[%s4 + $0x98] sm:$0xf]
        %v661 = vld [vmem:[%s4 + $0x9c] sm:$0xff]
        %v662 = vld [vmem:[%s4 + $0xa4] sm:$0xf]
        %v663 = vld [vmem:[%s4 + $0xa8] sm:$0xff]
        %v664 = vld [vmem:[%s4 + $0xb0] sm:$0xf]
        %v665 = vld [vmem:[%s4 + $0xb4] sm:$0xff]
        %v666 = vld [vmem:[%s4 + $0xbc] sm:$0xf]
        %v667 = vpack.c.bf16 %v633, %v633
        %v668 = vld [vmem:[%s5] ss:$4 sm:$0x7]
        %v670 = vlaneseq
        %v671 = vshrl.u32 %v670, 7
        %v672 = vsub.s32 0, %v671
        %v673 = vrot.slane %v668, %v672
        %v674 = vlaneseq
        %v675 = vshrl.u32 %v674, 7
        %v676 = vsub.s32 1, %v675
        %v677 = vrot.slane %v668, %v676
        %v678 = vlaneseq
        %v679 = vshrl.u32 %v678, 7
        %v680 = vsub.s32 2, %v679
        %v681 = vrot.slane %v668, %v680
        %v717 = vunpack.c.l.b16 %v635
        %v718 = vunpack.c.h.b16 %v635
        %v719 = vunpack.c.l.b16 %v636
        %v720 = vunpack.c.l.b16 %v637
        %v721 = vunpack.c.h.b16 %v637
        %v722 = vunpack.c.l.b16 %v638
        %v723 = vunpack.c.l.b16 %v639
        %v724 = vunpack.c.h.b16 %v639
        %v725 = vunpack.c.l.b16 %v640
        %v726 = vunpack.c.l.b16 %v641
        %v727 = vunpack.c.h.b16 %v641
        %v728 = vunpack.c.l.b16 %v642
        %v729 = vunpack.c.l.b16 %v643
        %v730 = vunpack.c.h.b16 %v643
        %v731 = vunpack.c.l.b16 %v644
        %v732 = vunpack.c.l.b16 %v645
        %v733 = vunpack.c.h.b16 %v645
        %v734 = vunpack.c.l.b16 %v646
        %v735 = vunpack.c.l.b16 %v647
        %v736 = vunpack.c.h.b16 %v647
        %v737 = vunpack.c.l.b16 %v648
        %v738 = vunpack.c.l.b16 %v649
        %v739 = vunpack.c.h.b16 %v649
        %v740 = vunpack.c.l.b16 %v650
        %v741 = vunpack.c.l.b16 %v651
        %v742 = vunpack.c.h.b16 %v651
        %v743 = vunpack.c.l.b16 %v652
        %v744 = vunpack.c.l.b16 %v653
        %v745 = vunpack.c.h.b16 %v653
        %v746 = vunpack.c.l.b16 %v654
        %v747 = vunpack.c.l.b16 %v655
        %v748 = vunpack.c.h.b16 %v655
        %v749 = vunpack.c.l.b16 %v656
        %v750 = vunpack.c.l.b16 %v657
        %v751 = vunpack.c.h.b16 %v657
        %v752 = vunpack.c.l.b16 %v658
        %v753 = vunpack.c.l.b16 %v659
        %v754 = vunpack.c.h.b16 %v659
        %v755 = vunpack.c.l.b16 %v660
        %v756 = vunpack.c.l.b16 %v661
        %v757 = vunpack.c.h.b16 %v661
        %v758 = vunpack.c.l.b16 %v662
        %v759 = vunpack.c.l.b16 %v663
        %v760 = vunpack.c.h.b16 %v663
        %v761 = vunpack.c.l.b16 %v664
        %v762 = vunpack.c.l.b16 %v665
        %v763 = vunpack.c.h.b16 %v665
        %v764 = vunpack.c.l.b16 %v666
        %v765 = vpack.c.b16 %v720, %v717
        %v766 = vpack.c.b16 %v721, %v718
        %v767 = vpack.c.b16 %v722, %v719
        %v768 = vpack.c.b16 %v726, %v723
        %v769 = vpack.c.b16 %v727, %v724
        %v770 = vpack.c.b16 %v728, %v725
        %v771 = vpack.c.b16 %v732, %v729
        %v772 = vpack.c.b16 %v733, %v730
        %v773 = vpack.c.b16 %v734, %v731
        %v774 = vpack.c.b16 %v738, %v735
        %v775 = vpack.c.b16 %v739, %v736
        %v776 = vpack.c.b16 %v740, %v737
        %v777 = vpack.c.b16 %v744, %v741
        %v778 = vpack.c.b16 %v745, %v742
        %v779 = vpack.c.b16 %v746, %v743
        %v780 = vpack.c.b16 %v750, %v747
        %v781 = vpack.c.b16 %v751, %v748
        %v782 = vpack.c.b16 %v752, %v749
        %v783 = vpack.c.b16 %v756, %v753
        %v784 = vpack.c.b16 %v757, %v754
        %v785 = vpack.c.b16 %v758, %v755
        %v786 = vpack.c.b16 %v762, %v759
        %v787 = vpack.c.b16 %v763, %v760
        %v788 = vpack.c.b16 %v764, %v761
        %813 = vmatprep.subr.bf16.mxu0 %v766
        %814 = vmatpush1.bf16.msra.mxu0 %v765
        %815 = vmatprep.subr.bf16.mxu0 %v769
        %816 = vmatpush1.bf16.msra.mxu0 %v768
        %817 = vmatprep.subr.bf16.mxu0 %v772
        %818 = vmatpush1.bf16.msra.mxu0 %v771
        %819 = vmatprep.subr.bf16.mxu0 %v775
        %820 = vmatpush1.bf16.msra.mxu0 %v774
        %821 = vmatprep.subr.bf16.mxu0 %v778
        %822 = vmatpush1.bf16.msra.mxu0 %v777
        %823 = vmatprep.subr.bf16.mxu0 %v781
        %824 = vmatpush1.bf16.msra.mxu0 %v780
        %825 = vmatprep.subr.bf16.mxu0 %v784
        %826 = vmatpush1.bf16.msra.mxu0 %v783
        %827 = vmatprep.subr.bf16.mxu0 %v787
        %828 = vmatpush1.bf16.msra.mxu0 %v786
        %829 = vmatprep.subr.bf16.mxu0 0
        %830 = vmatpush1.bf16.msra.mxu0 0
        %831 = vmatprep.subr.bf16.mxu0 0
        %832 = vmatpush1.bf16.msra.mxu0 0
        %833 = vmatprep.subr.bf16.mxu0 0
        %834 = vmatpush1.bf16.msra.mxu0 0
        %835 = vmatprep.subr.bf16.mxu0 0
        %836 = vmatpush1.bf16.msra.mxu0 0
        %837 = vmatprep.subr.bf16.mxu0 0
        %838 = vmatpush1.bf16.msra.mxu0 0
        %839 = vmatprep.subr.bf16.mxu0 0
        %840 = vmatpush1.bf16.msra.mxu0 0
        %841 = vmatprep.subr.bf16.mxu0 0
        %842 = vmatpush1.bf16.msra.mxu0 0
        %843 = vmatprep.subr.bf16.mxu0 0
        %844 = vmatpush1.bf16.msra.mxu0 0
        %845 = vmatprep.mubr.bf16.mxu0 0
        %846 = vmatmul.mubr.bf16.gmra.mrb[0].mxu0 %v667
        %v847 = vpop.f32.mrb[0].mxu0
        %v848 = vadd.f32 %v673, %v847
        %v849 = vpop.f32.mrb[0].mxu0
        %v850 = vadd.f32 %v677, %v849
        %v851 = vpop.f32.mrb[0].mxu0
        %v852 = vpop.f32.mrb[0].mxu0
        %853 = vdwg.mxu0
        %854 = vmatprep.subr.bf16.mxu0 0
        %855 = vmatpush1.bf16.msra.mxu0 %v767
        %856 = vmatprep.subr.bf16.mxu0 0
        %857 = vmatpush1.bf16.msra.mxu0 %v770
        %858 = vmatprep.subr.bf16.mxu0 0
        %859 = vmatpush1.bf16.msra.mxu0 %v773
        %860 = vmatprep.subr.bf16.mxu0 0
        %861 = vmatpush1.bf16.msra.mxu0 %v776
        %862 = vmatprep.subr.bf16.mxu0 0
        %863 = vmatpush1.bf16.msra.mxu0 %v779
        %864 = vmatprep.subr.bf16.mxu0 0
        %865 = vmatpush1.bf16.msra.mxu0 %v782
        %866 = vmatprep.subr.bf16.mxu0 0
        %867 = vmatpush1.bf16.msra.mxu0 %v785
        %868 = vmatprep.subr.bf16.mxu0 0
        %869 = vmatpush1.bf16.msra.mxu0 %v788
        %870 = vmatprep.subr.bf16.mxu0 0
        %871 = vmatpush1.bf16.msra.mxu0 0
        %872 = vmatprep.subr.bf16.mxu0 0
        %873 = vmatpush1.bf16.msra.mxu0 0
        %874 = vmatprep.subr.bf16.mxu0 0
        %875 = vmatpush1.bf16.msra.mxu0 0
        %876 = vmatprep.subr.bf16.mxu0 0
        %877 = vmatpush1.bf16.msra.mxu0 0
        %878 = vmatprep.subr.bf16.mxu0 0
        %879 = vmatpush1.bf16.msra.mxu0 0
        %880 = vmatprep.subr.bf16.mxu0 0
        %881 = vmatpush1.bf16.msra.mxu0 0
        %882 = vmatprep.subr.bf16.mxu0 0
        %883 = vmatpush1.bf16.msra.mxu0 0
        %884 = vmatprep.subr.bf16.mxu0 0
        %885 = vmatpush1.bf16.msra.mxu0 0
        %886 = vmatprep.mubr.bf16.mxu0 0
        %887 = vmatmul.mubr.bf16.gmra.mrb[0].mxu0 %v667
        %v888 = vpop.f32.mrb[0].mxu0
        %v889 = vadd.f32 %v681, %v888
        %v890 = vpop.f32.mrb[0].mxu0
        %v891 = vpop.f32.mrb[0].mxu0
        %v892 = vpop.f32.mrb[0].mxu0
        %893 = vdwg.mxu0
        %v894 = vld [vmem:[%s6] sm:$0xf]
        %v895 = vld [vmem:[%s6 + $0x4] sm:$0xf]
        %v896 = vld [vmem:[%s6 + $0x8] sm:$0xf]
        %v897 = vld [vmem:[%s6 + $0xc] sm:$0xf]
        %v898 = vld [vmem:[%s6 + $0x10] sm:$0xf]
        %v899 = vld [vmem:[%s6 + $0x14] sm:$0xf]
        %v900 = vld [vmem:[%s6 + $0x18] sm:$0xf]
        %v901 = vld [vmem:[%s6 + $0x1c] sm:$0xf]
        %v902 = vld [vmem:[%s6 + $0x20] sm:$0xf]
        %v903 = vld [vmem:[%s6 + $0x24] sm:$0xf]
        %v904 = vld [vmem:[%s6 + $0x28] sm:$0xf]
        %v905 = vld [vmem:[%s6 + $0x2c] sm:$0xf]
        %v906 = vld [vmem:[%s6 + $0x30] sm:$0xf]
        %v907 = vld [vmem:[%s6 + $0x34] sm:$0xf]
        %v908 = vld [vmem:[%s6 + $0x38] sm:$0xf]
        %v909 = vld [vmem:[%s6 + $0x3c] sm:$0xf]
        %v910 = vpack.c.bf16 %v848, %v848
        %v911 = vpack.c.bf16 %v850, %v850
        %v912 = vpack.c.bf16 %v889, %v889
        %v914 = vsel %vm588, %v910, 0
        %v917 = vsel %vm588, %v911, 0
        %919 = vmatprep.subr.bf16.mxu0 0
        %920 = vmatpush1.bf16.xpose.msra.mxu0 %v917
        %921 = vmatprep.subr.bf16.mxu0 0
        %922 = vmatpush1.bf16.xpose.msra.mxu0 0
        %923 = vmatprep.subr.bf16.mxu0 0
        %924 = vmatpush1.bf16.xpose.msra.mxu0 0
        %925 = vmatprep.subr.bf16.mxu0 0
        %926 = vmatpush1.bf16.xpose.msra.mxu0 0
        %927 = vmatprep.subr.bf16.mxu0 0
        %928 = vmatpush1.bf16.xpose.msra.mxu0 0
        %929 = vmatprep.subr.bf16.mxu0 0
        %930 = vmatpush1.bf16.xpose.msra.mxu0 0
        %931 = vmatprep.subr.bf16.mxu0 0
        %932 = vmatpush1.bf16.xpose.msra.mxu0 0
        %933 = vmatprep.subr.bf16.mxu0 0
        %934 = vmatpush1.bf16.xpose.msra.mxu0 0
        %935 = vmatprep.subr.bf16.mxu0 0
        %936 = vmatpush1.bf16.xpose.msra.mxu0 0
        %937 = vmatprep.subr.bf16.mxu0 0
        %938 = vmatpush1.bf16.xpose.msra.mxu0 0
        %939 = vmatprep.subr.bf16.mxu0 0
        %940 = vmatpush1.bf16.xpose.msra.mxu0 0
        %941 = vmatprep.subr.bf16.mxu0 0
        %942 = vmatpush1.bf16.xpose.msra.mxu0 0
        %943 = vmatprep.subr.bf16.mxu0 0
        %944 = vmatpush1.bf16.xpose.msra.mxu0 0
        %945 = vmatprep.subr.bf16.mxu0 0
        %946 = vmatpush1.bf16.xpose.msra.mxu0 0
        %947 = vmatprep.subr.bf16.mxu0 0
        %948 = vmatpush1.bf16.xpose.msra.mxu0 0
        %949 = vmatprep.subr.bf16.mxu0 0
        %950 = vmatpush1.bf16.xpose.msra.mxu0 0
        %951 = vmatprep.mubr.bf16.mxu0 0
        %952 = vmatmul.mubr.bf16.gmra.mrb[0].mxu0 %v914
        %v953 = vpop.f32.mrb[0].mxu0
        %v954 = vadd.f32 %v634, %v953
        %v955 = vpop.f32.mrb[0].mxu0
        %v956 = vpop.f32.mrb[0].mxu0
        %v957 = vpop.f32.mrb[0].mxu0
        %958 = vdwg.mxu0
        %vm959 = vcmask 64512
        %v960 = vsel %vm959, %v954, -inf
        %961 = vmax.xlane.f32.xlu0 %v960
        %v962 = vpop.xlane.xlu0 %961
        %v963 = vsub.f32 %v954, %v962
        %v964 = vmul.f32 %v963, 1.442695
        %v965 = vpow.pop %v964
        %v966 = vsel %vm959, %v965, 0.0
        %967 = vadd.xlane.f32.xlu0 %v966
        %v968 = vpop.xlane.xlu0 %967
        %v969 = vrcp.pop %v968
        %v970 = vmul.f32 %v965, %v969
        %v971 = vpack.c.bf16 %v970, %v970
        %v973 = vsel %vm959, %v971, 0
        %vm975 = vcmask 1043456
        %v977 = vsel %vm975, %v912, 0
        %979 = vmatprep.subr.bf16.mxu0 0
        %980 = vmatpush1.bf16.msra.mxu0 %v977
        %981 = vmatprep.subr.bf16.mxu0 0
        %982 = vmatpush1.bf16.msra.mxu0 0
        %983 = vmatprep.subr.bf16.mxu0 0
        %984 = vmatpush1.bf16.msra.mxu0 0
        %985 = vmatprep.subr.bf16.mxu0 0
        %986 = vmatpush1.bf16.msra.mxu0 0
        %987 = vmatprep.subr.bf16.mxu0 0
        %988 = vmatpush1.bf16.msra.mxu0 0
        %989 = vmatprep.subr.bf16.mxu0 0
        %990 = vmatpush1.bf16.msra.mxu0 0
        %991 = vmatprep.subr.bf16.mxu0 0
        %992 = vmatpush1.bf16.msra.mxu0 0
        %993 = vmatprep.subr.bf16.mxu0 0
        %994 = vmatpush1.bf16.msra.mxu0 0
        %995 = vmatprep.subr.bf16.mxu0 0
        %996 = vmatpush1.bf16.msra.mxu0 0
        %997 = vmatprep.subr.bf16.mxu0 0
        %998 = vmatpush1.bf16.msra.mxu0 0
        %999 = vmatprep.subr.bf16.mxu0 0
        %1000 = vmatpush1.bf16.msra.mxu0 0
        %1001 = vmatprep.subr.bf16.mxu0 0
        %1002 = vmatpush1.bf16.msra.mxu0 0
        %1003 = vmatprep.subr.bf16.mxu0 0
        %1004 = vmatpush1.bf16.msra.mxu0 0
        %1005 = vmatprep.subr.bf16.mxu0 0
        %1006 = vmatpush1.bf16.msra.mxu0 0
        %1007 = vmatprep.subr.bf16.mxu0 0
        %1008 = vmatpush1.bf16.msra.mxu0 0
        %1009 = vmatprep.subr.bf16.mxu0 0
        %1010 = vmatpush1.bf16.msra.mxu0 0
        %1011 = vmatprep.mubr.bf16.mxu0 0
        %1012 = vmatmul.mubr.bf16.gmra.mrb[0].mxu0 %v973
        %v1013 = vpop.f32.mrb[0].mxu0
        %v1014 = vadd.f32 0.0, %v1013
        %v1015 = vpop.f32.mrb[0].mxu0
        %v1016 = vpop.f32.mrb[0].mxu0
        %v1017 = vpop.f32.mrb[0].mxu0
        %1018 = vdwg.mxu0
        %v1019 = vpack.c.bf16 %v1014, %v1014
        %1021 = vrot.lane.b32.xlu0 %v910, 96
        %v1022 = vpop.permute.xlu0 %1021
        %1024 = vrot.lane.b32.xlu0 %v911, 96
        %v1025 = vpop.permute.xlu0 %1024
        %v1027 = vsel %vm588, %v1022, 0
        %v1030 = vsel %vm588, %v1025, 0
        %1032 = vmatprep.subr.bf16.mxu0 0
        %1033 = vmatpush1.bf16.xpose.msra.mxu0 %v1030
        %1034 = vmatprep.subr.bf16.mxu0 0
        %1035 = vmatpush1.bf16.xpose.msra.mxu0 0
        %1036 = vmatprep.subr.bf16.mxu0 0
        %1037 = vmatpush1.bf16.xpose.msra.mxu0 0
        %1038 = vmatprep.subr.bf16.mxu0 0
        %1039 = vmatpush1.bf16.xpose.msra.mxu0 0
        %1040 = vmatprep.subr.bf16.mxu0 0
        %1041 = vmatpush1.bf16.xpose.msra.mxu0 0
        %1042 = vmatprep.subr.bf16.mxu0 0
        %1043 = vmatpush1.bf16.xpose.msra.mxu0 0
        %1044 = vmatprep.subr.bf16.mxu0 0
        %1045 = vmatpush1.bf16.xpose.msra.mxu0 0
        %1046 = vmatprep.subr.bf16.mxu0 0
        %1047 = vmatpush1.bf16.xpose.msra.mxu0 0
        %1048 = vmatprep.subr.bf16.mxu0 0
        %1049 = vmatpush1.bf16.xpose.msra.mxu0 0
        %1050 = vmatprep.subr.bf16.mxu0 0
        %1051 = vmatpush1.bf16.xpose.msra.mxu0 0
        %1052 = vmatprep.subr.bf16.mxu0 0
        %1053 = vmatpush1.bf16.xpose.msra.mxu0 0
        %1054 = vmatprep.subr.bf16.mxu0 0
        %1055 = vmatpush1.bf16.xpose.msra.mxu0 0
        %1056 = vmatprep.subr.bf16.mxu0 0
        %1057 = vmatpush1.bf16.xpose.msra.mxu0 0
        %1058 = vmatprep.subr.bf16.mxu0 0
        %1059 = vmatpush1.bf16.xpose.msra.mxu0 0
        %1060 = vmatprep.subr.bf16.mxu0 0
        %1061 = vmatpush1.bf16.xpose.msra.mxu0 0
        %1062 = vmatprep.subr.bf16.mxu0 0
        %1063 = vmatpush1.bf16.xpose.msra.mxu0 0
        %1064 = vmatprep.mubr.bf16.mxu0 0
        %1065 = vmatmul.mubr.bf16.gmra.mrb[0].mxu0 %v1027
        %v1066 = vpop.f32.mrb[0].mxu0
        %v1067 = vadd.f32 %v634, %v1066
        %v1068 = vpop.f32.mrb[0].mxu0
        %v1069 = vpop.f32.mrb[0].mxu0
        %v1070 = vpop.f32.mrb[0].mxu0
        %1071 = vdwg.mxu0
        %v1072 = vsel %vm959, %v1067, -inf
        %1073 = vmax.xlane.f32.xlu0 %v1072
        %v1074 = vpop.xlane.xlu0 %1073
        %v1075 = vsub.f32 %v1067, %v1074
        %v1076 = vmul.f32 %v1075, 1.442695
        %v1077 = vpow.pop %v1076
        %v1078 = vsel %vm959, %v1077, 0.0
        %1079 = vadd.xlane.f32.xlu0 %v1078
        %v1080 = vpop.xlane.xlu0 %1079
        %v1081 = vrcp.pop %v1080
        %v1082 = vmul.f32 %v1077, %v1081
        %v1083 = vpack.c.bf16 %v1082, %v1082
        %1085 = vrot.lane.b32.xlu0 %v912, 96
        %v1086 = vpop.permute.xlu0 %1085
        %v1088 = vsel %vm959, %v1083, 0
        %v1091 = vsel %vm975, %v1086, 0
        %1093 = vmatprep.subr.bf16.mxu0 0
        %1094 = vmatpush1.bf16.msra.mxu0 %v1091
        %1095 = vmatprep.subr.bf16.mxu0 0
        %1096 = vmatpush1.bf16.msra.mxu0 0
        %1097 = vmatprep.subr.bf16.mxu0 0
        %1098 = vmatpush1.bf16.msra.mxu0 0
        %1099 = vmatprep.subr.bf16.mxu0 0
        %1100 = vmatpush1.bf16.msra.mxu0 0
        %1101 = vmatprep.subr.bf16.mxu0 0
        %1102 = vmatpush1.bf16.msra.mxu0 0
        %1103 = vmatprep.subr.bf16.mxu0 0
        %1104 = vmatpush1.bf16.msra.mxu0 0
        %1105 = vmatprep.subr.bf16.mxu0 0
        %1106 = vmatpush1.bf16.msra.mxu0 0
        %1107 = vmatprep.subr.bf16.mxu0 0
        %1108 = vmatpush1.bf16.msra.mxu0 0
        %1109 = vmatprep.subr.bf16.mxu0 0
        %1110 = vmatpush1.bf16.msra.mxu0 0
        %1111 = vmatprep.subr.bf16.mxu0 0
        %1112 = vmatpush1.bf16.msra.mxu0 0
        %1113 = vmatprep.subr.bf16.mxu0 0
        %1114 = vmatpush1.bf16.msra.mxu0 0
        %1115 = vmatprep.subr.bf16.mxu0 0
        %1116 = vmatpush1.bf16.msra.mxu0 0
        %1117 = vmatprep.subr.bf16.mxu0 0
        %1118 = vmatpush1.bf16.msra.mxu0 0
        %1119 = vmatprep.subr.bf16.mxu0 0
        %1120 = vmatpush1.bf16.msra.mxu0 0
        %1121 = vmatprep.subr.bf16.mxu0 0
        %1122 = vmatpush1.bf16.msra.mxu0 0
        %1123 = vmatprep.subr.bf16.mxu0 0
        %1124 = vmatpush1.bf16.msra.mxu0 0
        %1125 = vmatprep.mubr.bf16.mxu0 0
        %1126 = vmatmul.mubr.bf16.gmra.mrb[0].mxu0 %v1088
        %v1127 = vpop.f32.mrb[0].mxu0
        %v1128 = vadd.f32 0.0, %v1127
        %v1129 = vpop.f32.mrb[0].mxu0
        %v1130 = vpop.f32.mrb[0].mxu0
        %v1131 = vpop.f32.mrb[0].mxu0
        %1132 = vdwg.mxu0
        %v1133 = vpack.c.bf16 %v1128, %v1128
        %v1138 = vunpack.c.l.b16 %v898
        %v1139 = vunpack.c.l.b16 %v899
        %v1140 = vunpack.c.l.b16 %v900
        %v1141 = vunpack.c.l.b16 %v901
        %v1142 = vpack.c.b16 %v1139, %v1138
        %v1143 = vpack.c.b16 %v1141, %v1140
        %v1147 = vsel %vm588, %v1133, 0
        %1149 = vmatprep.subr.bf16.mxu0 0
        %1150 = vmatpush1.bf16.msra.mxu0 %v1142
        %1151 = vmatprep.subr.bf16.mxu0 0
        %1152 = vmatpush1.bf16.msra.mxu0 %v1143
        %1153 = vmatprep.subr.bf16.mxu0 0
        %1154 = vmatpush1.bf16.msra.mxu0 0
        %1155 = vmatprep.subr.bf16.mxu0 0
        %1156 = vmatpush1.bf16.msra.mxu0 0
        %1157 = vmatprep.subr.bf16.mxu0 0
        %1158 = vmatpush1.bf16.msra.mxu0 0
        %1159 = vmatprep.subr.bf16.mxu0 0
        %1160 = vmatpush1.bf16.msra.mxu0 0
        %1161 = vmatprep.subr.bf16.mxu0 0
        %1162 = vmatpush1.bf16.msra.mxu0 0
        %1163 = vmatprep.subr.bf16.mxu0 0
        %1164 = vmatpush1.bf16.msra.mxu0 0
        %1165 = vmatprep.subr.bf16.mxu0 0
        %1166 = vmatpush1.bf16.msra.mxu0 0
        %1167 = vmatprep.subr.bf16.mxu0 0
        %1168 = vmatpush1.bf16.msra.mxu0 0
        %1169 = vmatprep.subr.bf16.mxu0 0
        %1170 = vmatpush1.bf16.msra.mxu0 0
        %1171 = vmatprep.subr.bf16.mxu0 0
        %1172 = vmatpush1.bf16.msra.mxu0 0
        %1173 = vmatprep.subr.bf16.mxu0 0
        %1174 = vmatpush1.bf16.msra.mxu0 0
        %1175 = vmatprep.subr.bf16.mxu0 0
        %1176 = vmatpush1.bf16.msra.mxu0 0
        %1177 = vmatprep.subr.bf16.mxu0 0
        %1178 = vmatpush1.bf16.msra.mxu0 0
        %1179 = vmatprep.subr.bf16.mxu0 0
        %1180 = vmatpush1.bf16.msra.mxu0 0
        %1181 = vmatprep.mubr.bf16.mxu0 0
        %1182 = vmatmul.mubr.bf16.gmra.mrb[0].mxu0 %v1147
        %v1183 = vpop.f32.mrb[0].mxu0
        %v1184 = vadd.f32 0.0, %v1183
        %v1185 = vpop.f32.mrb[0].mxu0
        %v1186 = vpop.f32.mrb[0].mxu0
        %v1187 = vpop.f32.mrb[0].mxu0
        %1188 = vdwg.mxu0
        %v1193 = vunpack.c.l.b16 %v894
        %v1194 = vunpack.c.l.b16 %v895
        %v1195 = vunpack.c.l.b16 %v896
        %v1196 = vunpack.c.l.b16 %v897
        %v1197 = vpack.c.b16 %v1194, %v1193
        %v1198 = vpack.c.b16 %v1196, %v1195
        %v1202 = vsel %vm588, %v1019, 0
        %1204 = vmatprep.subr.bf16.mxu0 0
        %1205 = vmatpush1.bf16.msra.mxu0 %v1197
        %1206 = vmatprep.subr.bf16.mxu0 0
        %1207 = vmatpush1.bf16.msra.mxu0 %v1198
        %1208 = vmatprep.subr.bf16.mxu0 0
        %1209 = vmatpush1.bf16.msra.mxu0 0
        %1210 = vmatprep.subr.bf16.mxu0 0
        %1211 = vmatpush1.bf16.msra.mxu0 0
        %1212 = vmatprep.subr.bf16.mxu0 0
        %1213 = vmatpush1.bf16.msra.mxu0 0
        %1214 = vmatprep.subr.bf16.mxu0 0
        %1215 = vmatpush1.bf16.msra.mxu0 0
        %1216 = vmatprep.subr.bf16.mxu0 0
        %1217 = vmatpush1.bf16.msra.mxu0 0
        %1218 = vmatprep.subr.bf16.mxu0 0
        %1219 = vmatpush1.bf16.msra.mxu0 0
        %1220 = vmatprep.subr.bf16.mxu0 0
        %1221 = vmatpush1.bf16.msra.mxu0 0
        %1222 = vmatprep.subr.bf16.mxu0 0
        %1223 = vmatpush1.bf16.msra.mxu0 0
        %1224 = vmatprep.subr.bf16.mxu0 0
        %1225 = vmatpush1.bf16.msra.mxu0 0
        %1226 = vmatprep.subr.bf16.mxu0 0
        %1227 = vmatpush1.bf16.msra.mxu0 0
        %1228 = vmatprep.subr.bf16.mxu0 0
        %1229 = vmatpush1.bf16.msra.mxu0 0
        %1230 = vmatprep.subr.bf16.mxu0 0
        %1231 = vmatpush1.bf16.msra.mxu0 0
        %1232 = vmatprep.subr.bf16.mxu0 0
        %1233 = vmatpush1.bf16.msra.mxu0 0
        %1234 = vmatprep.subr.bf16.mxu0 0
        %1235 = vmatpush1.bf16.msra.mxu0 0
        %1236 = vmatprep.mubr.bf16.mxu0 0
        %1237 = vmatmul.mubr.bf16.gmra.mrb[0].mxu0 %v1202
        %v1238 = vpop.f32.mrb[0].mxu0
        %v1239 = vadd.f32 %v1184, %v1238
        %v1240 = vpop.f32.mrb[0].mxu0
        %v1241 = vpop.f32.mrb[0].mxu0
        %v1242 = vpop.f32.mrb[0].mxu0
        %1243 = vdwg.mxu0
        %1244 = vrot.lane.b32.xlu0 %v910, 64
        %v1245 = vpop.permute.xlu0 %1244
        %1246 = vrot.lane.b32.xlu0 %v911, 64
        %v1247 = vpop.permute.xlu0 %1246
        %v1249 = vsel %vm588, %v1245, 0
        %v1252 = vsel %vm588, %v1247, 0
        %1254 = vmatprep.subr.bf16.mxu0 0
        %1255 = vmatpush1.bf16.xpose.msra.mxu0 %v1252
        %1256 = vmatprep.subr.bf16.mxu0 0
        %1257 = vmatpush1.bf16.xpose.msra.mxu0 0
        %1258 = vmatprep.subr.bf16.mxu0 0
        %1259 = vmatpush1.bf16.xpose.msra.mxu0 0
        %1260 = vmatprep.subr.bf16.mxu0 0
        %1261 = vmatpush1.bf16.xpose.msra.mxu0 0
        %1262 = vmatprep.subr.bf16.mxu0 0
        %1263 = vmatpush1.bf16.xpose.msra.mxu0 0
        %1264 = vmatprep.subr.bf16.mxu0 0
        %1265 = vmatpush1.bf16.xpose.msra.mxu0 0
        %1266 = vmatprep.subr.bf16.mxu0 0
        %1267 = vmatpush1.bf16.xpose.msra.mxu0 0
        %1268 = vmatprep.subr.bf16.mxu0 0
        %1269 = vmatpush1.bf16.xpose.msra.mxu0 0
        %1270 = vmatprep.subr.bf16.mxu0 0
        %1271 = vmatpush1.bf16.xpose.msra.mxu0 0
        %1272 = vmatprep.subr.bf16.mxu0 0
        %1273 = vmatpush1.bf16.xpose.msra.mxu0 0
        %1274 = vmatprep.subr.bf16.mxu0 0
        %1275 = vmatpush1.bf16.xpose.msra.mxu0 0
        %1276 = vmatprep.subr.bf16.mxu0 0
        %1277 = vmatpush1.bf16.xpose.msra.mxu0 0
        %1278 = vmatprep.subr.bf16.mxu0 0
        %1279 = vmatpush1.bf16.xpose.msra.mxu0 0
        %1280 = vmatprep.subr.bf16.mxu0 0
        %1281 = vmatpush1.bf16.xpose.msra.mxu0 0
        %1282 = vmatprep.subr.bf16.mxu0 0
        %1283 = vmatpush1.bf16.xpose.msra.mxu0 0
        %1284 = vmatprep.subr.bf16.mxu0 0
        %1285 = vmatpush1.bf16.xpose.msra.mxu0 0
        %1286 = vmatprep.mubr.bf16.mxu0 0
        %1287 = vmatmul.mubr.bf16.gmra.mrb[0].mxu0 %v1249
        %v1288 = vpop.f32.mrb[0].mxu0
        %v1289 = vadd.f32 %v634, %v1288
        %v1290 = vpop.f32.mrb[0].mxu0
        %v1291 = vpop.f32.mrb[0].mxu0
        %v1292 = vpop.f32.mrb[0].mxu0
        %1293 = vdwg.mxu0
        %v1294 = vsel %vm959, %v1289, -inf
        %1295 = vmax.xlane.f32.xlu0 %v1294
        %v1296 = vpop.xlane.xlu0 %1295
        %v1297 = vsub.f32 %v1289, %v1296
        %v1298 = vmul.f32 %v1297, 1.442695
        %v1299 = vpow.pop %v1298
        %v1300 = vsel %vm959, %v1299, 0.0
        %1301 = vadd.xlane.f32.xlu0 %v1300
        %v1302 = vpop.xlane.xlu0 %1301
        %v1303 = vrcp.pop %v1302
        %v1304 = vmul.f32 %v1299, %v1303
        %v1305 = vpack.c.bf16 %v1304, %v1304
        %1306 = vrot.lane.b32.xlu0 %v912, 64
        %v1307 = vpop.permute.xlu0 %1306
        %v1309 = vsel %vm959, %v1305, 0
        %v1312 = vsel %vm975, %v1307, 0
        %1314 = vmatprep.subr.bf16.mxu0 0
        %1315 = vmatpush1.bf16.msra.mxu0 %v1312
        %1316 = vmatprep.subr.bf16.mxu0 0
        %1317 = vmatpush1.bf16.msra.mxu0 0
        %1318 = vmatprep.subr.bf16.mxu0 0
        %1319 = vmatpush1.bf16.msra.mxu0 0
        %1320 = vmatprep.subr.bf16.mxu0 0
        %1321 = vmatpush1.bf16.msra.mxu0 0
        %1322 = vmatprep.subr.bf16.mxu0 0
        %1323 = vmatpush1.bf16.msra.mxu0 0
        %1324 = vmatprep.subr.bf16.mxu0 0
        %1325 = vmatpush1.bf16.msra.mxu0 0
        %1326 = vmatprep.subr.bf16.mxu0 0
        %1327 = vmatpush1.bf16.msra.mxu0 0
        %1328 = vmatprep.subr.bf16.mxu0 0
        %1329 = vmatpush1.bf16.msra.mxu0 0
        %1330 = vmatprep.subr.bf16.mxu0 0
        %1331 = vmatpush1.bf16.msra.mxu0 0
        %1332 = vmatprep.subr.bf16.mxu0 0
        %1333 = vmatpush1.bf16.msra.mxu0 0
        %1334 = vmatprep.subr.bf16.mxu0 0
        %1335 = vmatpush1.bf16.msra.mxu0 0
        %1336 = vmatprep.subr.bf16.mxu0 0
        %1337 = vmatpush1.bf16.msra.mxu0 0
        %1338 = vmatprep.subr.bf16.mxu0 0
        %1339 = vmatpush1.bf16.msra.mxu0 0
        %1340 = vmatprep.subr.bf16.mxu0 0
        %1341 = vmatpush1.bf16.msra.mxu0 0
        %1342 = vmatprep.subr.bf16.mxu0 0
        %1343 = vmatpush1.bf16.msra.mxu0 0
        %1344 = vmatprep.subr.bf16.mxu0 0
        %1345 = vmatpush1.bf16.msra.mxu0 0
        %1346 = vmatprep.mubr.bf16.mxu0 0
        %1347 = vmatmul.mubr.bf16.gmra.mrb[0].mxu0 %v1309
        %v1348 = vpop.f32.mrb[0].mxu0
        %v1349 = vadd.f32 0.0, %v1348
        %v1350 = vpop.f32.mrb[0].mxu0
        %v1351 = vpop.f32.mrb[0].mxu0
        %v1352 = vpop.f32.mrb[0].mxu0
        %1353 = vdwg.mxu0
        %v1354 = vpack.c.bf16 %v1349, %v1349
        %v1359 = vunpack.c.l.b16 %v902
        %v1360 = vunpack.c.l.b16 %v903
        %v1361 = vunpack.c.l.b16 %v904
        %v1362 = vunpack.c.l.b16 %v905
        %v1363 = vpack.c.b16 %v1360, %v1359
        %v1364 = vpack.c.b16 %v1362, %v1361
        %v1368 = vsel %vm588, %v1354, 0
        %1370 = vmatprep.subr.bf16.mxu0 0
        %1371 = vmatpush1.bf16.msra.mxu0 %v1363
        %1372 = vmatprep.subr.bf16.mxu0 0
        %1373 = vmatpush1.bf16.msra.mxu0 %v1364
        %1374 = vmatprep.subr.bf16.mxu0 0
        %1375 = vmatpush1.bf16.msra.mxu0 0
        %1376 = vmatprep.subr.bf16.mxu0 0
        %1377 = vmatpush1.bf16.msra.mxu0 0
        %1378 = vmatprep.subr.bf16.mxu0 0
        %1379 = vmatpush1.bf16.msra.mxu0 0
        %1380 = vmatprep.subr.bf16.mxu0 0
        %1381 = vmatpush1.bf16.msra.mxu0 0
        %1382 = vmatprep.subr.bf16.mxu0 0
        %1383 = vmatpush1.bf16.msra.mxu0 0
        %1384 = vmatprep.subr.bf16.mxu0 0
        %1385 = vmatpush1.bf16.msra.mxu0 0
        %1386 = vmatprep.subr.bf16.mxu0 0
        %1387 = vmatpush1.bf16.msra.mxu0 0
        %1388 = vmatprep.subr.bf16.mxu0 0
        %1389 = vmatpush1.bf16.msra.mxu0 0
        %1390 = vmatprep.subr.bf16.mxu0 0
        %1391 = vmatpush1.bf16.msra.mxu0 0
        %1392 = vmatprep.subr.bf16.mxu0 0
        %1393 = vmatpush1.bf16.msra.mxu0 0
        %1394 = vmatprep.subr.bf16.mxu0 0
        %1395 = vmatpush1.bf16.msra.mxu0 0
        %1396 = vmatprep.subr.bf16.mxu0 0
        %1397 = vmatpush1.bf16.msra.mxu0 0
        %1398 = vmatprep.subr.bf16.mxu0 0
        %1399 = vmatpush1.bf16.msra.mxu0 0
        %1400 = vmatprep.subr.bf16.mxu0 0
        %1401 = vmatpush1.bf16.msra.mxu0 0
        %1402 = vmatprep.mubr.bf16.mxu0 0
        %1403 = vmatmul.mubr.bf16.gmra.mrb[0].mxu0 %v1368
        %v1404 = vpop.f32.mrb[0].mxu0
        %v1405 = vadd.f32 0.0, %v1404
        %v1406 = vpop.f32.mrb[0].mxu0
        %v1407 = vpop.f32.mrb[0].mxu0
        %v1408 = vpop.f32.mrb[0].mxu0
        %1409 = vdwg.mxu0
        %v1410 = vadd.f32 %v1239, %v1405
        %1411 = vrot.lane.b32.xlu0 %v910, 32
        %v1412 = vpop.permute.xlu0 %1411
        %1413 = vrot.lane.b32.xlu0 %v911, 32
        %v1414 = vpop.permute.xlu0 %1413
        %v1416 = vsel %vm588, %v1412, 0
        %v1419 = vsel %vm588, %v1414, 0
        %1421 = vmatprep.subr.bf16.mxu0 0
        %1422 = vmatpush1.bf16.xpose.msra.mxu0 %v1419
        %1423 = vmatprep.subr.bf16.mxu0 0
        %1424 = vmatpush1.bf16.xpose.msra.mxu0 0
        %1425 = vmatprep.subr.bf16.mxu0 0
        %1426 = vmatpush1.bf16.xpose.msra.mxu0 0
        %1427 = vmatprep.subr.bf16.mxu0 0
        %1428 = vmatpush1.bf16.xpose.msra.mxu0 0
        %1429 = vmatprep.subr.bf16.mxu0 0
        %1430 = vmatpush1.bf16.xpose.msra.mxu0 0
        %1431 = vmatprep.subr.bf16.mxu0 0
        %1432 = vmatpush1.bf16.xpose.msra.mxu0 0
        %1433 = vmatprep.subr.bf16.mxu0 0
        %1434 = vmatpush1.bf16.xpose.msra.mxu0 0
        %1435 = vmatprep.subr.bf16.mxu0 0
        %1436 = vmatpush1.bf16.xpose.msra.mxu0 0
        %1437 = vmatprep.subr.bf16.mxu0 0
        %1438 = vmatpush1.bf16.xpose.msra.mxu0 0
        %1439 = vmatprep.subr.bf16.mxu0 0
        %1440 = vmatpush1.bf16.xpose.msra.mxu0 0
        %1441 = vmatprep.subr.bf16.mxu0 0
        %1442 = vmatpush1.bf16.xpose.msra.mxu0 0
        %1443 = vmatprep.subr.bf16.mxu0 0
        %1444 = vmatpush1.bf16.xpose.msra.mxu0 0
        %1445 = vmatprep.subr.bf16.mxu0 0
        %1446 = vmatpush1.bf16.xpose.msra.mxu0 0
        %1447 = vmatprep.subr.bf16.mxu0 0
        %1448 = vmatpush1.bf16.xpose.msra.mxu0 0
        %1449 = vmatprep.subr.bf16.mxu0 0
        %1450 = vmatpush1.bf16.xpose.msra.mxu0 0
        %1451 = vmatprep.subr.bf16.mxu0 0
        %1452 = vmatpush1.bf16.xpose.msra.mxu0 0
        %1453 = vmatprep.mubr.bf16.mxu0 0
        %1454 = vmatmul.mubr.bf16.gmra.mrb[0].mxu0 %v1416
        %v1455 = vpop.f32.mrb[0].mxu0
        %v1456 = vadd.f32 %v634, %v1455
        %v1457 = vpop.f32.mrb[0].mxu0
        %v1458 = vpop.f32.mrb[0].mxu0
        %v1459 = vpop.f32.mrb[0].mxu0
        %1460 = vdwg.mxu0
        %v1461 = vsel %vm959, %v1456, -inf
        %1462 = vmax.xlane.f32.xlu0 %v1461
        %v1463 = vpop.xlane.xlu0 %1462
        %v1464 = vsub.f32 %v1456, %v1463
        %v1465 = vmul.f32 %v1464, 1.442695
        %v1466 = vpow.pop %v1465
        %v1467 = vsel %vm959, %v1466, 0.0
        %1468 = vadd.xlane.f32.xlu0 %v1467
        %v1469 = vpop.xlane.xlu0 %1468
        %v1470 = vrcp.pop %v1469
        %v1471 = vmul.f32 %v1466, %v1470
        %v1472 = vpack.c.bf16 %v1471, %v1471
        %1473 = vrot.lane.b32.xlu0 %v912, 32
        %v1474 = vpop.permute.xlu0 %1473
        %v1476 = vsel %vm959, %v1472, 0
        %v1479 = vsel %vm975, %v1474, 0
        %1481 = vmatprep.subr.bf16.mxu0 0
        %1482 = vmatpush1.bf16.msra.mxu0 %v1479
        %1483 = vmatprep.subr.bf16.mxu0 0
        %1484 = vmatpush1.bf16.msra.mxu0 0
        %1485 = vmatprep.subr.bf16.mxu0 0
        %1486 = vmatpush1.bf16.msra.mxu0 0
        %1487 = vmatprep.subr.bf16.mxu0 0
        %1488 = vmatpush1.bf16.msra.mxu0 0
        %1489 = vmatprep.subr.bf16.mxu0 0
        %1490 = vmatpush1.bf16.msra.mxu0 0
        %1491 = vmatprep.subr.bf16.mxu0 0
        %1492 = vmatpush1.bf16.msra.mxu0 0
        %1493 = vmatprep.subr.bf16.mxu0 0
        %1494 = vmatpush1.bf16.msra.mxu0 0
        %1495 = vmatprep.subr.bf16.mxu0 0
        %1496 = vmatpush1.bf16.msra.mxu0 0
        %1497 = vmatprep.subr.bf16.mxu0 0
        %1498 = vmatpush1.bf16.msra.mxu0 0
        %1499 = vmatprep.subr.bf16.mxu0 0
        %1500 = vmatpush1.bf16.msra.mxu0 0
        %1501 = vmatprep.subr.bf16.mxu0 0
        %1502 = vmatpush1.bf16.msra.mxu0 0
        %1503 = vmatprep.subr.bf16.mxu0 0
        %1504 = vmatpush1.bf16.msra.mxu0 0
        %1505 = vmatprep.subr.bf16.mxu0 0
        %1506 = vmatpush1.bf16.msra.mxu0 0
        %1507 = vmatprep.subr.bf16.mxu0 0
        %1508 = vmatpush1.bf16.msra.mxu0 0
        %1509 = vmatprep.subr.bf16.mxu0 0
        %1510 = vmatpush1.bf16.msra.mxu0 0
        %1511 = vmatprep.subr.bf16.mxu0 0
        %1512 = vmatpush1.bf16.msra.mxu0 0
        %1513 = vmatprep.mubr.bf16.mxu0 0
        %1514 = vmatmul.mubr.bf16.gmra.mrb[0].mxu0 %v1476
        %v1515 = vpop.f32.mrb[0].mxu0
        %v1516 = vadd.f32 0.0, %v1515
        %v1517 = vpop.f32.mrb[0].mxu0
        %v1518 = vpop.f32.mrb[0].mxu0
        %v1519 = vpop.f32.mrb[0].mxu0
        %1520 = vdwg.mxu0
        %v1521 = vpack.c.bf16 %v1516, %v1516
        %v1526 = vunpack.c.l.b16 %v906
        %v1527 = vunpack.c.l.b16 %v907
        %v1528 = vunpack.c.l.b16 %v908
        %v1529 = vunpack.c.l.b16 %v909
        %v1530 = vpack.c.b16 %v1527, %v1526
        %v1531 = vpack.c.b16 %v1529, %v1528
        %v1535 = vsel %vm588, %v1521, 0
        %1537 = vmatprep.subr.bf16.mxu0 0
        %1538 = vmatpush1.bf16.msra.mxu0 %v1530
        %1539 = vmatprep.subr.bf16.mxu0 0
        %1540 = vmatpush1.bf16.msra.mxu0 %v1531
        %1541 = vmatprep.subr.bf16.mxu0 0
        %1542 = vmatpush1.bf16.msra.mxu0 0
        %1543 = vmatprep.subr.bf16.mxu0 0
        %1544 = vmatpush1.bf16.msra.mxu0 0
        %1545 = vmatprep.subr.bf16.mxu0 0
        %1546 = vmatpush1.bf16.msra.mxu0 0
        %1547 = vmatprep.subr.bf16.mxu0 0
        %1548 = vmatpush1.bf16.msra.mxu0 0
        %1549 = vmatprep.subr.bf16.mxu0 0
        %1550 = vmatpush1.bf16.msra.mxu0 0
        %1551 = vmatprep.subr.bf16.mxu0 0
        %1552 = vmatpush1.bf16.msra.mxu0 0
        %1553 = vmatprep.subr.bf16.mxu0 0
        %1554 = vmatpush1.bf16.msra.mxu0 0
        %1555 = vmatprep.subr.bf16.mxu0 0
        %1556 = vmatpush1.bf16.msra.mxu0 0
        %1557 = vmatprep.subr.bf16.mxu0 0
        %1558 = vmatpush1.bf16.msra.mxu0 0
        %1559 = vmatprep.subr.bf16.mxu0 0
        %1560 = vmatpush1.bf16.msra.mxu0 0
        %1561 = vmatprep.subr.bf16.mxu0 0
        %1562 = vmatpush1.bf16.msra.mxu0 0
        %1563 = vmatprep.subr.bf16.mxu0 0
        %1564 = vmatpush1.bf16.msra.mxu0 0
        %1565 = vmatprep.subr.bf16.mxu0 0
        %1566 = vmatpush1.bf16.msra.mxu0 0
        %1567 = vmatprep.subr.bf16.mxu0 0
        %1568 = vmatpush1.bf16.msra.mxu0 0
        %1569 = vmatprep.mubr.bf16.mxu0 0
        %1570 = vmatmul.mubr.bf16.gmra.mrb[0].mxu0 %v1535
        %v1571 = vpop.f32.mrb[0].mxu0
        %v1572 = vadd.f32 0.0, %v1571
        %v1573 = vpop.f32.mrb[0].mxu0
        %v1574 = vpop.f32.mrb[0].mxu0
        %v1575 = vpop.f32.mrb[0].mxu0
        %1576 = vdwg.mxu0
        %v1577 = vadd.f32 %v1410, %v1572
        %v1578 = vld [vmem:[%s7] sm:$0x1]
        %v1579 = vlaneseq
        %v1580 = vshrl.u32 %v1579, 7
        %v1581 = vsub.s32 0, %v1580
        %v1582 = vrot.slane %v1578, %v1581
        %v1583 = vadd.f32 %v1577, %v1582
        %v1584 = vadd.f32 %v633, %v1583
        %v1585 = vld [vmem:[%s8] sm:$0x1]
        %v1586 = vld [vmem:[%s9] sm:$0x1]
        %1587 = vadd.xlane.f32.xlu0 %v1584
        %v1588 = vpop.xlane.xlu0 %1587
        %v1589 = vrcp.pop 128.0
        %v1590 = vmul.f32 %v1588, %v1589
        %v1591 = vsub.f32 %v1584, %v1590
        %v1592 = vmul.f32 %v1591, %v1591
        %1593 = vadd.xlane.f32.xlu0 %v1592
        %v1594 = vpop.xlane.xlu0 %1593
        %v1595 = vmul.f32 %v1594, %v1589
        %v1596 = vadd.f32 %v1595, 1e-05
        %v1597 = vrsqrt.pop %v1596
        %v1598 = vmul.f32 %v1591, %v1597
        %v1599 = vlaneseq
        %v1600 = vshrl.u32 %v1599, 7
        %v1601 = vsub.s32 0, %v1600
        %v1602 = vrot.slane %v1585, %v1601
        %v1603 = vmul.f32 %v1598, %v1602
        %v1604 = vlaneseq
        %v1605 = vshrl.u32 %v1604, 7
        %v1606 = vsub.s32 0, %v1605
        %v1607 = vrot.slane %v1586, %v1606
        %v1608 = vadd.f32 %v1603, %v1607
        %v1609 = vld [vmem:[%s10] sm:$0xff]
        %v1610 = vld [vmem:[%s10 + $0x8] sm:$0xff]
        %v1611 = vld [vmem:[%s10 + $0x10] sm:$0xff]
        %v1612 = vld [vmem:[%s10 + $0x18] sm:$0xff]
        %v1613 = vld [vmem:[%s10 + $0x20] sm:$0xff]
        %v1614 = vld [vmem:[%s10 + $0x28] sm:$0xff]
        %v1615 = vld [vmem:[%s10 + $0x30] sm:$0xff]
        %v1616 = vld [vmem:[%s10 + $0x38] sm:$0xff]
        %v1617 = vld [vmem:[%s10 + $0x40] sm:$0xff]
        %v1618 = vld [vmem:[%s10 + $0x48] sm:$0xff]
        %v1619 = vld [vmem:[%s10 + $0x50] sm:$0xff]
        %v1620 = vld [vmem:[%s10 + $0x58] sm:$0xff]
        %v1621 = vld [vmem:[%s10 + $0x60] sm:$0xff]
        %v1622 = vld [vmem:[%s10 + $0x68] sm:$0xff]
        %v1623 = vld [vmem:[%s10 + $0x70] sm:$0xff]
        %v1624 = vld [vmem:[%s10 + $0x78] sm:$0xff]
        %v1625 = vld [vmem:[%s10 + $0x80] sm:$0xff]
        %v1626 = vld [vmem:[%s10 + $0x88] sm:$0xff]
        %v1627 = vld [vmem:[%s10 + $0x90] sm:$0xff]
        %v1628 = vld [vmem:[%s10 + $0x98] sm:$0xff]
        %v1629 = vld [vmem:[%s10 + $0xa0] sm:$0xff]
        %v1630 = vld [vmem:[%s10 + $0xa8] sm:$0xff]
        %v1631 = vld [vmem:[%s10 + $0xb0] sm:$0xff]
        %v1632 = vld [vmem:[%s10 + $0xb8] sm:$0xff]
        %v1633 = vld [vmem:[%s10 + $0xc0] sm:$0xff]
        %v1634 = vld [vmem:[%s10 + $0xc8] sm:$0xff]
        %v1635 = vld [vmem:[%s10 + $0xd0] sm:$0xff]
        %v1636 = vld [vmem:[%s10 + $0xd8] sm:$0xff]
        %v1637 = vld [vmem:[%s10 + $0xe0] sm:$0xff]
        %v1638 = vld [vmem:[%s10 + $0xe8] sm:$0xff]
        %v1639 = vld [vmem:[%s10 + $0xf0] sm:$0xff]
        %v1640 = vld [vmem:[%s10 + $0xf8] sm:$0xff]
        %v1641 = vpack.c.bf16 %v1608, %v1608
        %v1642 = vld [vmem:[%s11] ss:$4 sm:$0xf]
        %v1644 = vlaneseq
        %v1645 = vshrl.u32 %v1644, 7
        %v1646 = vsub.s32 0, %v1645
        %v1647 = vrot.slane %v1642, %v1646
        %v1648 = vlaneseq
        %v1649 = vshrl.u32 %v1648, 7
        %v1650 = vsub.s32 1, %v1649
        %v1651 = vrot.slane %v1642, %v1650
        %v1652 = vlaneseq
        %v1653 = vshrl.u32 %v1652, 7
        %v1654 = vsub.s32 2, %v1653
        %v1655 = vrot.slane %v1642, %v1654
        %v1656 = vlaneseq
        %v1657 = vshrl.u32 %v1656, 7
        %v1658 = vsub.s32 3, %v1657
        %v1659 = vrot.slane %v1642, %v1658
        %v1696 = vunpack.c.l.b16 %v1609
        %v1697 = vunpack.c.h.b16 %v1609
        %v1698 = vunpack.c.l.b16 %v1610
        %v1699 = vunpack.c.h.b16 %v1610
        %v1700 = vunpack.c.l.b16 %v1611
        %v1701 = vunpack.c.h.b16 %v1611
        %v1702 = vunpack.c.l.b16 %v1612
        %v1703 = vunpack.c.h.b16 %v1612
        %v1704 = vunpack.c.l.b16 %v1613
        %v1705 = vunpack.c.h.b16 %v1613
        %v1706 = vunpack.c.l.b16 %v1614
        %v1707 = vunpack.c.h.b16 %v1614
        %v1708 = vunpack.c.l.b16 %v1615
        %v1709 = vunpack.c.h.b16 %v1615
        %v1710 = vunpack.c.l.b16 %v1616
        %v1711 = vunpack.c.h.b16 %v1616
        %v1712 = vunpack.c.l.b16 %v1617
        %v1713 = vunpack.c.h.b16 %v1617
        %v1714 = vunpack.c.l.b16 %v1618
        %v1715 = vunpack.c.h.b16 %v1618
        %v1716 = vunpack.c.l.b16 %v1619
        %v1717 = vunpack.c.h.b16 %v1619
        %v1718 = vunpack.c.l.b16 %v1620
        %v1719 = vunpack.c.h.b16 %v1620
        %v1720 = vunpack.c.l.b16 %v1621
        %v1721 = vunpack.c.h.b16 %v1621
        %v1722 = vunpack.c.l.b16 %v1622
        %v1723 = vunpack.c.h.b16 %v1622
        %v1724 = vunpack.c.l.b16 %v1623
        %v1725 = vunpack.c.h.b16 %v1623
        %v1726 = vunpack.c.l.b16 %v1624
        %v1727 = vunpack.c.h.b16 %v1624
        %v1728 = vunpack.c.l.b16 %v1625
        %v1729 = vunpack.c.h.b16 %v1625
        %v1730 = vunpack.c.l.b16 %v1626
        %v1731 = vunpack.c.h.b16 %v1626
        %v1732 = vunpack.c.l.b16 %v1627
        %v1733 = vunpack.c.h.b16 %v1627
        %v1734 = vunpack.c.l.b16 %v1628
        %v1735 = vunpack.c.h.b16 %v1628
        %v1736 = vunpack.c.l.b16 %v1629
        %v1737 = vunpack.c.h.b16 %v1629
        %v1738 = vunpack.c.l.b16 %v1630
        %v1739 = vunpack.c.h.b16 %v1630
        %v1740 = vunpack.c.l.b16 %v1631
        %v1741 = vunpack.c.h.b16 %v1631
        %v1742 = vunpack.c.l.b16 %v1632
        %v1743 = vunpack.c.h.b16 %v1632
        %v1744 = vunpack.c.l.b16 %v1633
        %v1745 = vunpack.c.h.b16 %v1633
        %v1746 = vunpack.c.l.b16 %v1634
        %v1747 = vunpack.c.h.b16 %v1634
        %v1748 = vunpack.c.l.b16 %v1635
        %v1749 = vunpack.c.h.b16 %v1635
        %v1750 = vunpack.c.l.b16 %v1636
        %v1751 = vunpack.c.h.b16 %v1636
        %v1752 = vunpack.c.l.b16 %v1637
        %v1753 = vunpack.c.h.b16 %v1637
        %v1754 = vunpack.c.l.b16 %v1638
        %v1755 = vunpack.c.h.b16 %v1638
        %v1756 = vunpack.c.l.b16 %v1639
        %v1757 = vunpack.c.h.b16 %v1639
        %v1758 = vunpack.c.l.b16 %v1640
        %v1759 = vunpack.c.h.b16 %v1640
        %v1760 = vpack.c.b16 %v1700, %v1696
        %v1761 = vpack.c.b16 %v1701, %v1697
        %v1762 = vpack.c.b16 %v1702, %v1698
        %v1763 = vpack.c.b16 %v1703, %v1699
        %v1764 = vpack.c.b16 %v1708, %v1704
        %v1765 = vpack.c.b16 %v1709, %v1705
        %v1766 = vpack.c.b16 %v1710, %v1706
        %v1767 = vpack.c.b16 %v1711, %v1707
        %v1768 = vpack.c.b16 %v1716, %v1712
        %v1769 = vpack.c.b16 %v1717, %v1713
        %v1770 = vpack.c.b16 %v1718, %v1714
        %v1771 = vpack.c.b16 %v1719, %v1715
        %v1772 = vpack.c.b16 %v1724, %v1720
        %v1773 = vpack.c.b16 %v1725, %v1721
        %v1774 = vpack.c.b16 %v1726, %v1722
        %v1775 = vpack.c.b16 %v1727, %v1723
        %v1776 = vpack.c.b16 %v1732, %v1728
        %v1777 = vpack.c.b16 %v1733, %v1729
        %v1778 = vpack.c.b16 %v1734, %v1730
        %v1779 = vpack.c.b16 %v1735, %v1731
        %v1780 = vpack.c.b16 %v1740, %v1736
        %v1781 = vpack.c.b16 %v1741, %v1737
        %v1782 = vpack.c.b16 %v1742, %v1738
        %v1783 = vpack.c.b16 %v1743, %v1739
        %v1784 = vpack.c.b16 %v1748, %v1744
        %v1785 = vpack.c.b16 %v1749, %v1745
        %v1786 = vpack.c.b16 %v1750, %v1746
        %v1787 = vpack.c.b16 %v1751, %v1747
        %v1788 = vpack.c.b16 %v1756, %v1752
        %v1789 = vpack.c.b16 %v1757, %v1753
        %v1790 = vpack.c.b16 %v1758, %v1754
        %v1791 = vpack.c.b16 %v1759, %v1755
        %1824 = vmatprep.subr.bf16.mxu0 %v1761
        %1825 = vmatpush1.bf16.msra.mxu0 %v1760
        %1826 = vmatprep.subr.bf16.mxu0 %v1765
        %1827 = vmatpush1.bf16.msra.mxu0 %v1764
        %1828 = vmatprep.subr.bf16.mxu0 %v1769
        %1829 = vmatpush1.bf16.msra.mxu0 %v1768
        %1830 = vmatprep.subr.bf16.mxu0 %v1773
        %1831 = vmatpush1.bf16.msra.mxu0 %v1772
        %1832 = vmatprep.subr.bf16.mxu0 %v1777
        %1833 = vmatpush1.bf16.msra.mxu0 %v1776
        %1834 = vmatprep.subr.bf16.mxu0 %v1781
        %1835 = vmatpush1.bf16.msra.mxu0 %v1780
        %1836 = vmatprep.subr.bf16.mxu0 %v1785
        %1837 = vmatpush1.bf16.msra.mxu0 %v1784
        %1838 = vmatprep.subr.bf16.mxu0 %v1789
        %1839 = vmatpush1.bf16.msra.mxu0 %v1788
        %1840 = vmatprep.subr.bf16.mxu0 0
        %1841 = vmatpush1.bf16.msra.mxu0 0
        %1842 = vmatprep.subr.bf16.mxu0 0
        %1843 = vmatpush1.bf16.msra.mxu0 0
        %1844 = vmatprep.subr.bf16.mxu0 0
        %1845 = vmatpush1.bf16.msra.mxu0 0
        %1846 = vmatprep.subr.bf16.mxu0 0
        %1847 = vmatpush1.bf16.msra.mxu0 0
        %1848 = vmatprep.subr.bf16.mxu0 0
        %1849 = vmatpush1.bf16.msra.mxu0 0
        %1850 = vmatprep.subr.bf16.mxu0 0
        %1851 = vmatpush1.bf16.msra.mxu0 0
        %1852 = vmatprep.subr.bf16.mxu0 0
        %1853 = vmatpush1.bf16.msra.mxu0 0
        %1854 = vmatprep.subr.bf16.mxu0 0
        %1855 = vmatpush1.bf16.msra.mxu0 0
        %1856 = vmatprep.mubr.bf16.mxu0 0
        %1857 = vmatmul.mubr.bf16.gmra.mrb[0].mxu0 %v1641
        %v1858 = vpop.f32.mrb[0].mxu0
        %v1859 = vadd.f32 %v1647, %v1858
        %v1860 = vpop.f32.mrb[0].mxu0
        %v1861 = vadd.f32 %v1651, %v1860
        %v1862 = vpop.f32.mrb[0].mxu0
        %v1863 = vpop.f32.mrb[0].mxu0
        %1864 = vdwg.mxu0
        %1865 = vmatprep.subr.bf16.mxu0 %v1763
        %1866 = vmatpush1.bf16.msra.mxu0 %v1762
        %1867 = vmatprep.subr.bf16.mxu0 %v1767
        %1868 = vmatpush1.bf16.msra.mxu0 %v1766
        %1869 = vmatprep.subr.bf16.mxu0 %v1771
        %1870 = vmatpush1.bf16.msra.mxu0 %v1770
        %1871 = vmatprep.subr.bf16.mxu0 %v1775
        %1872 = vmatpush1.bf16.msra.mxu0 %v1774
        %1873 = vmatprep.subr.bf16.mxu0 %v1779
        %1874 = vmatpush1.bf16.msra.mxu0 %v1778
        %1875 = vmatprep.subr.bf16.mxu0 %v1783
        %1876 = vmatpush1.bf16.msra.mxu0 %v1782
        %1877 = vmatprep.subr.bf16.mxu0 %v1787
        %1878 = vmatpush1.bf16.msra.mxu0 %v1786
        %1879 = vmatprep.subr.bf16.mxu0 %v1791
        %1880 = vmatpush1.bf16.msra.mxu0 %v1790
        %1881 = vmatprep.subr.bf16.mxu0 0
        %1882 = vmatpush1.bf16.msra.mxu0 0
        %1883 = vmatprep.subr.bf16.mxu0 0
        %1884 = vmatpush1.bf16.msra.mxu0 0
        %1885 = vmatprep.subr.bf16.mxu0 0
        %1886 = vmatpush1.bf16.msra.mxu0 0
        %1887 = vmatprep.subr.bf16.mxu0 0
        %1888 = vmatpush1.bf16.msra.mxu0 0
        %1889 = vmatprep.subr.bf16.mxu0 0
        %1890 = vmatpush1.bf16.msra.mxu0 0
        %1891 = vmatprep.subr.bf16.mxu0 0
        %1892 = vmatpush1.bf16.msra.mxu0 0
        %1893 = vmatprep.subr.bf16.mxu0 0
        %1894 = vmatpush1.bf16.msra.mxu0 0
        %1895 = vmatprep.subr.bf16.mxu0 0
        %1896 = vmatpush1.bf16.msra.mxu0 0
        %1897 = vmatprep.mubr.bf16.mxu0 0
        %1898 = vmatmul.mubr.bf16.gmra.mrb[0].mxu0 %v1641
        %v1899 = vpop.f32.mrb[0].mxu0
        %v1900 = vadd.f32 %v1655, %v1899
        %v1901 = vpop.f32.mrb[0].mxu0
        %v1902 = vadd.f32 %v1659, %v1901
        %v1903 = vpop.f32.mrb[0].mxu0
        %v1904 = vpop.f32.mrb[0].mxu0
        %1905 = vdwg.mxu0
        %v1906 = vmax.f32 %v1859, 0.0
        %v1907 = vmax.f32 %v1861, 0.0
        %v1908 = vmax.f32 %v1900, 0.0
        %v1909 = vmax.f32 %v1902, 0.0
        %v1910 = vld [vmem:[%s12] sm:$0xf]
        %v1911 = vld [vmem:[%s12 + $0x4] sm:$0xf]
        %v1912 = vld [vmem:[%s12 + $0x8] sm:$0xf]
        %v1913 = vld [vmem:[%s12 + $0xc] sm:$0xf]
        %v1914 = vld [vmem:[%s12 + $0x10] sm:$0xf]
        %v1915 = vld [vmem:[%s12 + $0x14] sm:$0xf]
        %v1916 = vld [vmem:[%s12 + $0x18] sm:$0xf]
        %v1917 = vld [vmem:[%s12 + $0x1c] sm:$0xf]
        %v1918 = vld [vmem:[%s12 + $0x20] sm:$0xf]
        %v1919 = vld [vmem:[%s12 + $0x24] sm:$0xf]
        %v1920 = vld [vmem:[%s12 + $0x28] sm:$0xf]
        %v1921 = vld [vmem:[%s12 + $0x2c] sm:$0xf]
        %v1922 = vld [vmem:[%s12 + $0x30] sm:$0xf]
        %v1923 = vld [vmem:[%s12 + $0x34] sm:$0xf]
        %v1924 = vld [vmem:[%s12 + $0x38] sm:$0xf]
        %v1925 = vld [vmem:[%s12 + $0x3c] sm:$0xf]
        %v1926 = vld [vmem:[%s12 + $0x40] sm:$0xf]
        %v1927 = vld [vmem:[%s12 + $0x44] sm:$0xf]
        %v1928 = vld [vmem:[%s12 + $0x48] sm:$0xf]
        %v1929 = vld [vmem:[%s12 + $0x4c] sm:$0xf]
        %v1930 = vld [vmem:[%s12 + $0x50] sm:$0xf]
        %v1931 = vld [vmem:[%s12 + $0x54] sm:$0xf]
        %v1932 = vld [vmem:[%s12 + $0x58] sm:$0xf]
        %v1933 = vld [vmem:[%s12 + $0x5c] sm:$0xf]
        %v1934 = vld [vmem:[%s12 + $0x60] sm:$0xf]
        %v1935 = vld [vmem:[%s12 + $0x64] sm:$0xf]
        %v1936 = vld [vmem:[%s12 + $0x68] sm:$0xf]
        %v1937 = vld [vmem:[%s12 + $0x6c] sm:$0xf]
        %v1938 = vld [vmem:[%s12 + $0x70] sm:$0xf]
        %v1939 = vld [vmem:[%s12 + $0x74] sm:$0xf]
        %v1940 = vld [vmem:[%s12 + $0x78] sm:$0xf]
        %v1941 = vld [vmem:[%s12 + $0x7c] sm:$0xf]
        %v1942 = vld [vmem:[%s12 + $0x80] sm:$0xf]
        %v1943 = vld [vmem:[%s12 + $0x84] sm:$0xf]
        %v1944 = vld [vmem:[%s12 + $0x88] sm:$0xf]
        %v1945 = vld [vmem:[%s12 + $0x8c] sm:$0xf]
        %v1946 = vld [vmem:[%s12 + $0x90] sm:$0xf]
        %v1947 = vld [vmem:[%s12 + $0x94] sm:$0xf]
        %v1948 = vld [vmem:[%s12 + $0x98] sm:$0xf]
        %v1949 = vld [vmem:[%s12 + $0x9c] sm:$0xf]
        %v1950 = vld [vmem:[%s12 + $0xa0] sm:$0xf]
        %v1951 = vld [vmem:[%s12 + $0xa4] sm:$0xf]
        %v1952 = vld [vmem:[%s12 + $0xa8] sm:$0xf]
        %v1953 = vld [vmem:[%s12 + $0xac] sm:$0xf]
        %v1954 = vld [vmem:[%s12 + $0xb0] sm:$0xf]
        %v1955 = vld [vmem:[%s12 + $0xb4] sm:$0xf]
        %v1956 = vld [vmem:[%s12 + $0xb8] sm:$0xf]
        %v1957 = vld [vmem:[%s12 + $0xbc] sm:$0xf]
        %v1958 = vld [vmem:[%s12 + $0xc0] sm:$0xf]
        %v1959 = vld [vmem:[%s12 + $0xc4] sm:$0xf]
        %v1960 = vld [vmem:[%s12 + $0xc8] sm:$0xf]
        %v1961 = vld [vmem:[%s12 + $0xcc] sm:$0xf]
        %v1962 = vld [vmem:[%s12 + $0xd0] sm:$0xf]
        %v1963 = vld [vmem:[%s12 + $0xd4] sm:$0xf]
        %v1964 = vld [vmem:[%s12 + $0xd8] sm:$0xf]
        %v1965 = vld [vmem:[%s12 + $0xdc] sm:$0xf]
        %v1966 = vld [vmem:[%s12 + $0xe0] sm:$0xf]
        %v1967 = vld [vmem:[%s12 + $0xe4] sm:$0xf]
        %v1968 = vld [vmem:[%s12 + $0xe8] sm:$0xf]
        %v1969 = vld [vmem:[%s12 + $0xec] sm:$0xf]
        %v1970 = vld [vmem:[%s12 + $0xf0] sm:$0xf]
        %v1971 = vld [vmem:[%s12 + $0xf4] sm:$0xf]
        %v1972 = vld [vmem:[%s12 + $0xf8] sm:$0xf]
        %v1973 = vld [vmem:[%s12 + $0xfc] sm:$0xf]
        %v1974 = vpack.c.bf16 %v1906, %v1906
        %v1975 = vpack.c.bf16 %v1907, %v1907
        %v1976 = vpack.c.bf16 %v1908, %v1908
        %v1977 = vpack.c.bf16 %v1909, %v1909
        %v1978 = vld [vmem:[%s13] sm:$0x1]
        %v1979 = vlaneseq
        %v1980 = vshrl.u32 %v1979, 7
        %v1981 = vsub.s32 0, %v1980
        %v1982 = vrot.slane %v1978, %v1981
        %v2047 = vunpack.c.l.b16 %v1910
        %v2048 = vunpack.c.l.b16 %v1911
        %v2049 = vunpack.c.l.b16 %v1912
        %v2050 = vunpack.c.l.b16 %v1913
        %v2051 = vunpack.c.l.b16 %v1914
        %v2052 = vunpack.c.l.b16 %v1915
        %v2053 = vunpack.c.l.b16 %v1916
        %v2054 = vunpack.c.l.b16 %v1917
        %v2055 = vunpack.c.l.b16 %v1918
        %v2056 = vunpack.c.l.b16 %v1919
        %v2057 = vunpack.c.l.b16 %v1920
        %v2058 = vunpack.c.l.b16 %v1921
        %v2059 = vunpack.c.l.b16 %v1922
        %v2060 = vunpack.c.l.b16 %v1923
        %v2061 = vunpack.c.l.b16 %v1924
        %v2062 = vunpack.c.l.b16 %v1925
        %v2063 = vunpack.c.l.b16 %v1926
        %v2064 = vunpack.c.l.b16 %v1927
        %v2065 = vunpack.c.l.b16 %v1928
        %v2066 = vunpack.c.l.b16 %v1929
        %v2067 = vunpack.c.l.b16 %v1930
        %v2068 = vunpack.c.l.b16 %v1931
        %v2069 = vunpack.c.l.b16 %v1932
        %v2070 = vunpack.c.l.b16 %v1933
        %v2071 = vunpack.c.l.b16 %v1934
        %v2072 = vunpack.c.l.b16 %v1935
        %v2073 = vunpack.c.l.b16 %v1936
        %v2074 = vunpack.c.l.b16 %v1937
        %v2075 = vunpack.c.l.b16 %v1938
        %v2076 = vunpack.c.l.b16 %v1939
        %v2077 = vunpack.c.l.b16 %v1940
        %v2078 = vunpack.c.l.b16 %v1941
        %v2079 = vunpack.c.l.b16 %v1942
        %v2080 = vunpack.c.l.b16 %v1943
        %v2081 = vunpack.c.l.b16 %v1944
        %v2082 = vunpack.c.l.b16 %v1945
        %v2083 = vunpack.c.l.b16 %v1946
        %v2084 = vunpack.c.l.b16 %v1947
        %v2085 = vunpack.c.l.b16 %v1948
        %v2086 = vunpack.c.l.b16 %v1949
        %v2087 = vunpack.c.l.b16 %v1950
        %v2088 = vunpack.c.l.b16 %v1951
        %v2089 = vunpack.c.l.b16 %v1952
        %v2090 = vunpack.c.l.b16 %v1953
        %v2091 = vunpack.c.l.b16 %v1954
        %v2092 = vunpack.c.l.b16 %v1955
        %v2093 = vunpack.c.l.b16 %v1956
        %v2094 = vunpack.c.l.b16 %v1957
        %v2095 = vunpack.c.l.b16 %v1958
        %v2096 = vunpack.c.l.b16 %v1959
        %v2097 = vunpack.c.l.b16 %v1960
        %v2098 = vunpack.c.l.b16 %v1961
        %v2099 = vunpack.c.l.b16 %v1962
        %v2100 = vunpack.c.l.b16 %v1963
        %v2101 = vunpack.c.l.b16 %v1964
        %v2102 = vunpack.c.l.b16 %v1965
        %v2103 = vunpack.c.l.b16 %v1966
        %v2104 = vunpack.c.l.b16 %v1967
        %v2105 = vunpack.c.l.b16 %v1968
        %v2106 = vunpack.c.l.b16 %v1969
        %v2107 = vunpack.c.l.b16 %v1970
        %v2108 = vunpack.c.l.b16 %v1971
        %v2109 = vunpack.c.l.b16 %v1972
        %v2110 = vunpack.c.l.b16 %v1973
        %v2111 = vpack.c.b16 %v2048, %v2047
        %v2112 = vpack.c.b16 %v2050, %v2049
        %v2113 = vpack.c.b16 %v2052, %v2051
        %v2114 = vpack.c.b16 %v2054, %v2053
        %v2115 = vpack.c.b16 %v2056, %v2055
        %v2116 = vpack.c.b16 %v2058, %v2057
        %v2117 = vpack.c.b16 %v2060, %v2059
        %v2118 = vpack.c.b16 %v2062, %v2061
        %v2119 = vpack.c.b16 %v2064, %v2063
        %v2120 = vpack.c.b16 %v2066, %v2065
        %v2121 = vpack.c.b16 %v2068, %v2067
        %v2122 = vpack.c.b16 %v2070, %v2069
        %v2123 = vpack.c.b16 %v2072, %v2071
        %v2124 = vpack.c.b16 %v2074, %v2073
        %v2125 = vpack.c.b16 %v2076, %v2075
        %v2126 = vpack.c.b16 %v2078, %v2077
        %v2127 = vpack.c.b16 %v2080, %v2079
        %v2128 = vpack.c.b16 %v2082, %v2081
        %v2129 = vpack.c.b16 %v2084, %v2083
        %v2130 = vpack.c.b16 %v2086, %v2085
        %v2131 = vpack.c.b16 %v2088, %v2087
        %v2132 = vpack.c.b16 %v2090, %v2089
        %v2133 = vpack.c.b16 %v2092, %v2091
        %v2134 = vpack.c.b16 %v2094, %v2093
        %v2135 = vpack.c.b16 %v2096, %v2095
        %v2136 = vpack.c.b16 %v2098, %v2097
        %v2137 = vpack.c.b16 %v2100, %v2099
        %v2138 = vpack.c.b16 %v2102, %v2101
        %v2139 = vpack.c.b16 %v2104, %v2103
        %v2140 = vpack.c.b16 %v2106, %v2105
        %v2141 = vpack.c.b16 %v2108, %v2107
        %v2142 = vpack.c.b16 %v2110, %v2109
        %2175 = vmatprep.subr.bf16.mxu0 0
        %2176 = vmatpush1.bf16.msra.mxu0 %v2111
        %2177 = vmatprep.subr.bf16.mxu0 0
        %2178 = vmatpush1.bf16.msra.mxu0 %v2112
        %2179 = vmatprep.subr.bf16.mxu0 0
        %2180 = vmatpush1.bf16.msra.mxu0 %v2113
        %2181 = vmatprep.subr.bf16.mxu0 0
        %2182 = vmatpush1.bf16.msra.mxu0 %v2114
        %2183 = vmatprep.subr.bf16.mxu0 0
        %2184 = vmatpush1.bf16.msra.mxu0 %v2115
        %2185 = vmatprep.subr.bf16.mxu0 0
        %2186 = vmatpush1.bf16.msra.mxu0 %v2116
        %2187 = vmatprep.subr.bf16.mxu0 0
        %2188 = vmatpush1.bf16.msra.mxu0 %v2117
        %2189 = vmatprep.subr.bf16.mxu0 0
        %2190 = vmatpush1.bf16.msra.mxu0 %v2118
        %2191 = vmatprep.subr.bf16.mxu0 0
        %2192 = vmatpush1.bf16.msra.mxu0 %v2119
        %2193 = vmatprep.subr.bf16.mxu0 0
        %2194 = vmatpush1.bf16.msra.mxu0 %v2120
        %2195 = vmatprep.subr.bf16.mxu0 0
        %2196 = vmatpush1.bf16.msra.mxu0 %v2121
        %2197 = vmatprep.subr.bf16.mxu0 0
        %2198 = vmatpush1.bf16.msra.mxu0 %v2122
        %2199 = vmatprep.subr.bf16.mxu0 0
        %2200 = vmatpush1.bf16.msra.mxu0 %v2123
        %2201 = vmatprep.subr.bf16.mxu0 0
        %2202 = vmatpush1.bf16.msra.mxu0 %v2124
        %2203 = vmatprep.subr.bf16.mxu0 0
        %2204 = vmatpush1.bf16.msra.mxu0 %v2125
        %2205 = vmatprep.subr.bf16.mxu0 0
        %2206 = vmatpush1.bf16.msra.mxu0 %v2126
        %2207 = vmatprep.mubr.bf16.mxu0 %v1975
        %2208 = vmatmul.mubr.bf16.gmra.mrb[0].mxu0 %v1974
        %v2209 = vpop.f32.mrb[0].mxu0
        %v2210 = vadd.f32 %v1982, %v2209
        %v2211 = vpop.f32.mrb[0].mxu0
        %v2212 = vpop.f32.mrb[0].mxu0
        %v2213 = vpop.f32.mrb[0].mxu0
        %2214 = vdwg.mxu0
        %2215 = vmatprep.subr.bf16.mxu0 0
        %2216 = vmatpush1.bf16.msra.mxu0 %v2127
        %2217 = vmatprep.subr.bf16.mxu0 0
        %2218 = vmatpush1.bf16.msra.mxu0 %v2128
        %2219 = vmatprep.subr.bf16.mxu0 0
        %2220 = vmatpush1.bf16.msra.mxu0 %v2129
        %2221 = vmatprep.subr.bf16.mxu0 0
        %2222 = vmatpush1.bf16.msra.mxu0 %v2130
        %2223 = vmatprep.subr.bf16.mxu0 0
        %2224 = vmatpush1.bf16.msra.mxu0 %v2131
        %2225 = vmatprep.subr.bf16.mxu0 0
        %2226 = vmatpush1.bf16.msra.mxu0 %v2132
        %2227 = vmatprep.subr.bf16.mxu0 0
        %2228 = vmatpush1.bf16.msra.mxu0 %v2133
        %2229 = vmatprep.subr.bf16.mxu0 0
        %2230 = vmatpush1.bf16.msra.mxu0 %v2134
        %2231 = vmatprep.subr.bf16.mxu0 0
        %2232 = vmatpush1.bf16.msra.mxu0 %v2135
        %2233 = vmatprep.subr.bf16.mxu0 0
        %2234 = vmatpush1.bf16.msra.mxu0 %v2136
        %2235 = vmatprep.subr.bf16.mxu0 0
        %2236 = vmatpush1.bf16.msra.mxu0 %v2137
        %2237 = vmatprep.subr.bf16.mxu0 0
        %2238 = vmatpush1.bf16.msra.mxu0 %v2138
        %2239 = vmatprep.subr.bf16.mxu0 0
        %2240 = vmatpush1.bf16.msra.mxu0 %v2139
        %2241 = vmatprep.subr.bf16.mxu0 0
        %2242 = vmatpush1.bf16.msra.mxu0 %v2140
        %2243 = vmatprep.subr.bf16.mxu0 0
        %2244 = vmatpush1.bf16.msra.mxu0 %v2141
        %2245 = vmatprep.subr.bf16.mxu0 0
        %2246 = vmatpush1.bf16.msra.mxu0 %v2142
        %2247 = vmatprep.mubr.bf16.mxu0 %v1977
        %2248 = vmatmul.mubr.bf16.gmra.mrb[0].mxu0 %v1976
        %v2249 = vpop.f32.mrb[0].mxu0
        %v2250 = vadd.f32 %v2210, %v2249
        %v2251 = vpop.f32.mrb[0].mxu0
        %v2252 = vpop.f32.mrb[0].mxu0
        %v2253 = vpop.f32.mrb[0].mxu0
        %2254 = vdwg.mxu0
        %v2255 = vadd.f32 %v1608, %v2250
        %v2256 = vld [vmem:[%s14] sm:$0x1]
        %v2257 = vld [vmem:[%s15] sm:$0x1]
        %2258 = vadd.xlane.f32.xlu0 %v2255
        %v2259 = vpop.xlane.xlu0 %2258
        %v2260 = vmul.f32 %v2259, %v1589
        %v2261 = vsub.f32 %v2255, %v2260
        %v2262 = vmul.f32 %v2261, %v2261
        %2263 = vadd.xlane.f32.xlu0 %v2262
        %v2264 = vpop.xlane.xlu0 %2263
        %v2265 = vmul.f32 %v2264, %v1589
        %v2266 = vadd.f32 %v2265, 1e-05
        %v2267 = vrsqrt.pop %v2266
        %v2268 = vmul.f32 %v2261, %v2267
        %v2269 = vlaneseq
        %v2270 = vshrl.u32 %v2269, 7
        %v2271 = vsub.s32 0, %v2270
        %v2272 = vrot.slane %v2256, %v2271
        %v2273 = vmul.f32 %v2268, %v2272
        %v2274 = vlaneseq
        %v2275 = vshrl.u32 %v2274, 7
        %v2276 = vsub.s32 0, %v2275
        %v2277 = vrot.slane %v2257, %v2276
        %v2278 = vadd.f32 %v2273, %v2277
        %s2279 = scalar_lea.vmem %s4, 192
        %v2280 = vld [vmem:[%s2279] sm:$0xff]
        %v2281 = vld [vmem:[%s2279 + $0x8] sm:$0xf]
        %v2282 = vld [vmem:[%s2279 + $0xc] sm:$0xff]
        %v2283 = vld [vmem:[%s2279 + $0x14] sm:$0xf]
        %v2284 = vld [vmem:[%s2279 + $0x18] sm:$0xff]
        %v2285 = vld [vmem:[%s2279 + $0x20] sm:$0xf]
        %v2286 = vld [vmem:[%s2279 + $0x24] sm:$0xff]
        %v2287 = vld [vmem:[%s2279 + $0x2c] sm:$0xf]
        %v2288 = vld [vmem:[%s2279 + $0x30] sm:$0xff]
        %v2289 = vld [vmem:[%s2279 + $0x38] sm:$0xf]
        %v2290 = vld [vmem:[%s2279 + $0x3c] sm:$0xff]
        %v2291 = vld [vmem:[%s2279 + $0x44] sm:$0xf]
        %v2292 = vld [vmem:[%s2279 + $0x48] sm:$0xff]
        %v2293 = vld [vmem:[%s2279 + $0x50] sm:$0xf]
        %v2294 = vld [vmem:[%s2279 + $0x54] sm:$0xff]
        %v2295 = vld [vmem:[%s2279 + $0x5c] sm:$0xf]
        %v2296 = vld [vmem:[%s2279 + $0x60] sm:$0xff]
        %v2297 = vld [vmem:[%s2279 + $0x68] sm:$0xf]
        %v2298 = vld [vmem:[%s2279 + $0x6c] sm:$0xff]
        %v2299 = vld [vmem:[%s2279 + $0x74] sm:$0xf]
        %v2300 = vld [vmem:[%s2279 + $0x78] sm:$0xff]
        %v2301 = vld [vmem:[%s2279 + $0x80] sm:$0xf]
        %v2302 = vld [vmem:[%s2279 + $0x84] sm:$0xff]
        %v2303 = vld [vmem:[%s2279 + $0x8c] sm:$0xf]
        %v2304 = vld [vmem:[%s2279 + $0x90] sm:$0xff]
        %v2305 = vld [vmem:[%s2279 + $0x98] sm:$0xf]
        %v2306 = vld [vmem:[%s2279 + $0x9c] sm:$0xff]
        %v2307 = vld [vmem:[%s2279 + $0xa4] sm:$0xf]
        %v2308 = vld [vmem:[%s2279 + $0xa8] sm:$0xff]
        %v2309 = vld [vmem:[%s2279 + $0xb0] sm:$0xf]
        %v2310 = vld [vmem:[%s2279 + $0xb4] sm:$0xff]
        %v2311 = vld [vmem:[%s2279 + $0xbc] sm:$0xf]
        %v2312 = vpack.c.bf16 %v2278, %v2278
        %s2313 = scalar_lea.vmem %s5, 1
        %v2314 = vld [vmem:[%s2313] ss:$4 sm:$0x7]
        %v2316 = vlaneseq
        %v2317 = vshrl.u32 %v2316, 7
        %v2318 = vsub.s32 0, %v2317
        %v2319 = vrot.slane %v2314, %v2318
        %v2320 = vlaneseq
        %v2321 = vshrl.u32 %v2320, 7
        %v2322 = vsub.s32 1, %v2321
        %v2323 = vrot.slane %v2314, %v2322
        %v2324 = vlaneseq
        %v2325 = vshrl.u32 %v2324, 7
        %v2326 = vsub.s32 2, %v2325
        %v2327 = vrot.slane %v2314, %v2326
        %v2363 = vunpack.c.l.b16 %v2280
        %v2364 = vunpack.c.h.b16 %v2280
        %v2365 = vunpack.c.l.b16 %v2281
        %v2366 = vunpack.c.l.b16 %v2282
        %v2367 = vunpack.c.h.b16 %v2282
        %v2368 = vunpack.c.l.b16 %v2283
        %v2369 = vunpack.c.l.b16 %v2284
        %v2370 = vunpack.c.h.b16 %v2284
        %v2371 = vunpack.c.l.b16 %v2285
        %v2372 = vunpack.c.l.b16 %v2286
        %v2373 = vunpack.c.h.b16 %v2286
        %v2374 = vunpack.c.l.b16 %v2287
        %v2375 = vunpack.c.l.b16 %v2288
        %v2376 = vunpack.c.h.b16 %v2288
        %v2377 = vunpack.c.l.b16 %v2289
        %v2378 = vunpack.c.l.b16 %v2290
        %v2379 = vunpack.c.h.b16 %v2290
        %v2380 = vunpack.c.l.b16 %v2291
        %v2381 = vunpack.c.l.b16 %v2292
        %v2382 = vunpack.c.h.b16 %v2292
        %v2383 = vunpack.c.l.b16 %v2293
        %v2384 = vunpack.c.l.b16 %v2294
        %v2385 = vunpack.c.h.b16 %v2294
        %v2386 = vunpack.c.l.b16 %v2295
        %v2387 = vunpack.c.l.b16 %v2296
        %v2388 = vunpack.c.h.b16 %v2296
        %v2389 = vunpack.c.l.b16 %v2297
        %v2390 = vunpack.c.l.b16 %v2298
        %v2391 = vunpack.c.h.b16 %v2298
        %v2392 = vunpack.c.l.b16 %v2299
        %v2393 = vunpack.c.l.b16 %v2300
        %v2394 = vunpack.c.h.b16 %v2300
        %v2395 = vunpack.c.l.b16 %v2301
        %v2396 = vunpack.c.l.b16 %v2302
        %v2397 = vunpack.c.h.b16 %v2302
        %v2398 = vunpack.c.l.b16 %v2303
        %v2399 = vunpack.c.l.b16 %v2304
        %v2400 = vunpack.c.h.b16 %v2304
        %v2401 = vunpack.c.l.b16 %v2305
        %v2402 = vunpack.c.l.b16 %v2306
        %v2403 = vunpack.c.h.b16 %v2306
        %v2404 = vunpack.c.l.b16 %v2307
        %v2405 = vunpack.c.l.b16 %v2308
        %v2406 = vunpack.c.h.b16 %v2308
        %v2407 = vunpack.c.l.b16 %v2309
        %v2408 = vunpack.c.l.b16 %v2310
        %v2409 = vunpack.c.h.b16 %v2310
        %v2410 = vunpack.c.l.b16 %v2311
        %v2411 = vpack.c.b16 %v2366, %v2363
        %v2412 = vpack.c.b16 %v2367, %v2364
        %v2413 = vpack.c.b16 %v2368, %v2365
        %v2414 = vpack.c.b16 %v2372, %v2369
        %v2415 = vpack.c.b16 %v2373, %v2370
        %v2416 = vpack.c.b16 %v2374, %v2371
        %v2417 = vpack.c.b16 %v2378, %v2375
        %v2418 = vpack.c.b16 %v2379, %v2376
        %v2419 = vpack.c.b16 %v2380, %v2377
        %v2420 = vpack.c.b16 %v2384, %v2381
        %v2421 = vpack.c.b16 %v2385, %v2382
        %v2422 = vpack.c.b16 %v2386, %v2383
        %v2423 = vpack.c.b16 %v2390, %v2387
        %v2424 = vpack.c.b16 %v2391, %v2388
        %v2425 = vpack.c.b16 %v2392, %v2389
        %v2426 = vpack.c.b16 %v2396, %v2393
        %v2427 = vpack.c.b16 %v2397, %v2394
        %v2428 = vpack.c.b16 %v2398, %v2395
        %v2429 = vpack.c.b16 %v2402, %v2399
        %v2430 = vpack.c.b16 %v2403, %v2400
        %v2431 = vpack.c.b16 %v2404, %v2401
        %v2432 = vpack.c.b16 %v2408, %v2405
        %v2433 = vpack.c.b16 %v2409, %v2406
        %v2434 = vpack.c.b16 %v2410, %v2407
        %2459 = vmatprep.subr.bf16.mxu0 %v2412
        %2460 = vmatpush1.bf16.msra.mxu0 %v2411
        %2461 = vmatprep.subr.bf16.mxu0 %v2415
        %2462 = vmatpush1.bf16.msra.mxu0 %v2414
        %2463 = vmatprep.subr.bf16.mxu0 %v2418
        %2464 = vmatpush1.bf16.msra.mxu0 %v2417
        %2465 = vmatprep.subr.bf16.mxu0 %v2421
        %2466 = vmatpush1.bf16.msra.mxu0 %v2420
        %2467 = vmatprep.subr.bf16.mxu0 %v2424
        %2468 = vmatpush1.bf16.msra.mxu0 %v2423
        %2469 = vmatprep.subr.bf16.mxu0 %v2427
        %2470 = vmatpush1.bf16.msra.mxu0 %v2426
        %2471 = vmatprep.subr.bf16.mxu0 %v2430
        %2472 = vmatpush1.bf16.msra.mxu0 %v2429
        %2473 = vmatprep.subr.bf16.mxu0 %v2433
        %2474 = vmatpush1.bf16.msra.mxu0 %v2432
        %2475 = vmatprep.subr.bf16.mxu0 0
        %2476 = vmatpush1.bf16.msra.mxu0 0
        %2477 = vmatprep.subr.bf16.mxu0 0
        %2478 = vmatpush1.bf16.msra.mxu0 0
        %2479 = vmatprep.subr.bf16.mxu0 0
        %2480 = vmatpush1.bf16.msra.mxu0 0
        %2481 = vmatprep.subr.bf16.mxu0 0
        %2482 = vmatpush1.bf16.msra.mxu0 0
        %2483 = vmatprep.subr.bf16.mxu0 0
        %2484 = vmatpush1.bf16.msra.mxu0 0
        %2485 = vmatprep.subr.bf16.mxu0 0
        %2486 = vmatpush1.bf16.msra.mxu0 0
        %2487 = vmatprep.subr.bf16.mxu0 0
        %2488 = vmatpush1.bf16.msra.mxu0 0
        %2489 = vmatprep.subr.bf16.mxu0 0
        %2490 = vmatpush1.bf16.msra.mxu0 0
        %2491 = vmatprep.mubr.bf16.mxu0 0
        %2492 = vmatmul.mubr.bf16.gmra.mrb[0].mxu0 %v2312
        %v2493 = vpop.f32.mrb[0].mxu0
        %v2494 = vadd.f32 %v2319, %v2493
        %v2495 = vpop.f32.mrb[0].mxu0
        %v2496 = vadd.f32 %v2323, %v2495
        %v2497 = vpop.f32.mrb[0].mxu0
        %v2498 = vpop.f32.mrb[0].mxu0
        %2499 = vdwg.mxu0
        %2500 = vmatprep.subr.bf16.mxu0 0
        %2501 = vmatpush1.bf16.msra.mxu0 %v2413
        %2502 = vmatprep.subr.bf16.mxu0 0
        %2503 = vmatpush1.bf16.msra.mxu0 %v2416
        %2504 = vmatprep.subr.bf16.mxu0 0
        %2505 = vmatpush1.bf16.msra.mxu0 %v2419
        %2506 = vmatprep.subr.bf16.mxu0 0
        %2507 = vmatpush1.bf16.msra.mxu0 %v2422
        %2508 = vmatprep.subr.bf16.mxu0 0
        %2509 = vmatpush1.bf16.msra.mxu0 %v2425
        %2510 = vmatprep.subr.bf16.mxu0 0
        %2511 = vmatpush1.bf16.msra.mxu0 %v2428
        %2512 = vmatprep.subr.bf16.mxu0 0
        %2513 = vmatpush1.bf16.msra.mxu0 %v2431
        %2514 = vmatprep.subr.bf16.mxu0 0
        %2515 = vmatpush1.bf16.msra.mxu0 %v2434
        %2516 = vmatprep.subr.bf16.mxu0 0
        %2517 = vmatpush1.bf16.msra.mxu0 0
        %2518 = vmatprep.subr.bf16.mxu0 0
        %2519 = vmatpush1.bf16.msra.mxu0 0
        %2520 = vmatprep.subr.bf16.mxu0 0
        %2521 = vmatpush1.bf16.msra.mxu0 0
        %2522 = vmatprep.subr.bf16.mxu0 0
        %2523 = vmatpush1.bf16.msra.mxu0 0
        %2524 = vmatprep.subr.bf16.mxu0 0
        %2525 = vmatpush1.bf16.msra.mxu0 0
        %2526 = vmatprep.subr.bf16.mxu0 0
        %2527 = vmatpush1.bf16.msra.mxu0 0
        %2528 = vmatprep.subr.bf16.mxu0 0
        %2529 = vmatpush1.bf16.msra.mxu0 0
        %2530 = vmatprep.subr.bf16.mxu0 0
        %2531 = vmatpush1.bf16.msra.mxu0 0
        %2532 = vmatprep.mubr.bf16.mxu0 0
        %2533 = vmatmul.mubr.bf16.gmra.mrb[0].mxu0 %v2312
        %v2534 = vpop.f32.mrb[0].mxu0
        %v2535 = vadd.f32 %v2327, %v2534
        %v2536 = vpop.f32.mrb[0].mxu0
        %v2537 = vpop.f32.mrb[0].mxu0
        %v2538 = vpop.f32.mrb[0].mxu0
        %2539 = vdwg.mxu0
        %s2540 = scalar_lea.vmem %s6, 64
        %v2541 = vld [vmem:[%s2540] sm:$0xf]
        %v2542 = vld [vmem:[%s2540 + $0x4] sm:$0xf]
        %v2543 = vld [vmem:[%s2540 + $0x8] sm:$0xf]
        %v2544 = vld [vmem:[%s2540 + $0xc] sm:$0xf]
        %v2545 = vld [vmem:[%s2540 + $0x10] sm:$0xf]
        %v2546 = vld [vmem:[%s2540 + $0x14] sm:$0xf]
        %v2547 = vld [vmem:[%s2540 + $0x18] sm:$0xf]
        %v2548 = vld [vmem:[%s2540 + $0x1c] sm:$0xf]
        %v2549 = vld [vmem:[%s2540 + $0x20] sm:$0xf]
        %v2550 = vld [vmem:[%s2540 + $0x24] sm:$0xf]
        %v2551 = vld [vmem:[%s2540 + $0x28] sm:$0xf]
        %v2552 = vld [vmem:[%s2540 + $0x2c] sm:$0xf]
        %v2553 = vld [vmem:[%s2540 + $0x30] sm:$0xf]
        %v2554 = vld [vmem:[%s2540 + $0x34] sm:$0xf]
        %v2555 = vld [vmem:[%s2540 + $0x38] sm:$0xf]
        %v2556 = vld [vmem:[%s2540 + $0x3c] sm:$0xf]
        %v2557 = vpack.c.bf16 %v2494, %v2494
        %v2558 = vpack.c.bf16 %v2496, %v2496
        %v2559 = vpack.c.bf16 %v2535, %v2535
        %v2561 = vsel %vm588, %v2557, 0
        %v2564 = vsel %vm588, %v2558, 0
        %2566 = vmatprep.subr.bf16.mxu0 0
        %2567 = vmatpush1.bf16.xpose.msra.mxu0 %v2564
        %2568 = vmatprep.subr.bf16.mxu0 0
        %2569 = vmatpush1.bf16.xpose.msra.mxu0 0
        %2570 = vmatprep.subr.bf16.mxu0 0
        %2571 = vmatpush1.bf16.xpose.msra.mxu0 0
        %2572 = vmatprep.subr.bf16.mxu0 0
        %2573 = vmatpush1.bf16.xpose.msra.mxu0 0
        %2574 = vmatprep.subr.bf16.mxu0 0
        %2575 = vmatpush1.bf16.xpose.msra.mxu0 0
        %2576 = vmatprep.subr.bf16.mxu0 0
        %2577 = vmatpush1.bf16.xpose.msra.mxu0 0
        %2578 = vmatprep.subr.bf16.mxu0 0
        %2579 = vmatpush1.bf16.xpose.msra.mxu0 0
        %2580 = vmatprep.subr.bf16.mxu0 0
        %2581 = vmatpush1.bf16.xpose.msra.mxu0 0
        %2582 = vmatprep.subr.bf16.mxu0 0
        %2583 = vmatpush1.bf16.xpose.msra.mxu0 0
        %2584 = vmatprep.subr.bf16.mxu0 0
        %2585 = vmatpush1.bf16.xpose.msra.mxu0 0
        %2586 = vmatprep.subr.bf16.mxu0 0
        %2587 = vmatpush1.bf16.xpose.msra.mxu0 0
        %2588 = vmatprep.subr.bf16.mxu0 0
        %2589 = vmatpush1.bf16.xpose.msra.mxu0 0
        %2590 = vmatprep.subr.bf16.mxu0 0
        %2591 = vmatpush1.bf16.xpose.msra.mxu0 0
        %2592 = vmatprep.subr.bf16.mxu0 0
        %2593 = vmatpush1.bf16.xpose.msra.mxu0 0
        %2594 = vmatprep.subr.bf16.mxu0 0
        %2595 = vmatpush1.bf16.xpose.msra.mxu0 0
        %2596 = vmatprep.subr.bf16.mxu0 0
        %2597 = vmatpush1.bf16.xpose.msra.mxu0 0
        %2598 = vmatprep.mubr.bf16.mxu0 0
        %2599 = vmatmul.mubr.bf16.gmra.mrb[0].mxu0 %v2561
        %v2600 = vpop.f32.mrb[0].mxu0
        %v2601 = vadd.f32 %v634, %v2600
        %v2602 = vpop.f32.mrb[0].mxu0
        %v2603 = vpop.f32.mrb[0].mxu0
        %v2604 = vpop.f32.mrb[0].mxu0
        %2605 = vdwg.mxu0
        %v2606 = vsel %vm959, %v2601, -inf
        %2607 = vmax.xlane.f32.xlu0 %v2606
        %v2608 = vpop.xlane.xlu0 %2607
        %v2609 = vsub.f32 %v2601, %v2608
        %v2610 = vmul.f32 %v2609, 1.442695
        %v2611 = vpow.pop %v2610
        %v2612 = vsel %vm959, %v2611, 0.0
        %2613 = vadd.xlane.f32.xlu0 %v2612
        %v2614 = vpop.xlane.xlu0 %2613
        %v2615 = vrcp.pop %v2614
        %v2616 = vmul.f32 %v2611, %v2615
        %v2617 = vpack.c.bf16 %v2616, %v2616
        %v2619 = vsel %vm959, %v2617, 0
        %v2622 = vsel %vm975, %v2559, 0
        %2624 = vmatprep.subr.bf16.mxu0 0
        %2625 = vmatpush1.bf16.msra.mxu0 %v2622
        %2626 = vmatprep.subr.bf16.mxu0 0
        %2627 = vmatpush1.bf16.msra.mxu0 0
        %2628 = vmatprep.subr.bf16.mxu0 0
        %2629 = vmatpush1.bf16.msra.mxu0 0
        %2630 = vmatprep.subr.bf16.mxu0 0
        %2631 = vmatpush1.bf16.msra.mxu0 0
        %2632 = vmatprep.subr.bf16.mxu0 0
        %2633 = vmatpush1.bf16.msra.mxu0 0
        %2634 = vmatprep.subr.bf16.mxu0 0
        %2635 = vmatpush1.bf16.msra.mxu0 0
        %2636 = vmatprep.subr.bf16.mxu0 0
        %2637 = vmatpush1.bf16.msra.mxu0 0
        %2638 = vmatprep.subr.bf16.mxu0 0
        %2639 = vmatpush1.bf16.msra.mxu0 0
        %2640 = vmatprep.subr.bf16.mxu0 0
        %2641 = vmatpush1.bf16.msra.mxu0 0
        %2642 = vmatprep.subr.bf16.mxu0 0
        %2643 = vmatpush1.bf16.msra.mxu0 0
        %2644 = vmatprep.subr.bf16.mxu0 0
        %2645 = vmatpush1.bf16.msra.mxu0 0
        %2646 = vmatprep.subr.bf16.mxu0 0
        %2647 = vmatpush1.bf16.msra.mxu0 0
        %2648 = vmatprep.subr.bf16.mxu0 0
        %2649 = vmatpush1.bf16.msra.mxu0 0
        %2650 = vmatprep.subr.bf16.mxu0 0
        %2651 = vmatpush1.bf16.msra.mxu0 0
        %2652 = vmatprep.subr.bf16.mxu0 0
        %2653 = vmatpush1.bf16.msra.mxu0 0
        %2654 = vmatprep.subr.bf16.mxu0 0
        %2655 = vmatpush1.bf16.msra.mxu0 0
        %2656 = vmatprep.mubr.bf16.mxu0 0
        %2657 = vmatmul.mubr.bf16.gmra.mrb[0].mxu0 %v2619
        %v2658 = vpop.f32.mrb[0].mxu0
        %v2659 = vadd.f32 0.0, %v2658
        %v2660 = vpop.f32.mrb[0].mxu0
        %v2661 = vpop.f32.mrb[0].mxu0
        %v2662 = vpop.f32.mrb[0].mxu0
        %2663 = vdwg.mxu0
        %v2664 = vpack.c.bf16 %v2659, %v2659
        %2666 = vrot.lane.b32.xlu0 %v2557, 96
        %v2667 = vpop.permute.xlu0 %2666
        %2669 = vrot.lane.b32.xlu0 %v2558, 96
        %v2670 = vpop.permute.xlu0 %2669
        %v2672 = vsel %vm588, %v2667, 0
        %v2675 = vsel %vm588, %v2670, 0
        %2677 = vmatprep.subr.bf16.mxu0 0
        %2678 = vmatpush1.bf16.xpose.msra.mxu0 %v2675
        %2679 = vmatprep.subr.bf16.mxu0 0
        %2680 = vmatpush1.bf16.xpose.msra.mxu0 0
        %2681 = vmatprep.subr.bf16.mxu0 0
        %2682 = vmatpush1.bf16.xpose.msra.mxu0 0
        %2683 = vmatprep.subr.bf16.mxu0 0
        %2684 = vmatpush1.bf16.xpose.msra.mxu0 0
        %2685 = vmatprep.subr.bf16.mxu0 0
        %2686 = vmatpush1.bf16.xpose.msra.mxu0 0
        %2687 = vmatprep.subr.bf16.mxu0 0
        %2688 = vmatpush1.bf16.xpose.msra.mxu0 0
        %2689 = vmatprep.subr.bf16.mxu0 0
        %2690 = vmatpush1.bf16.xpose.msra.mxu0 0
        %2691 = vmatprep.subr.bf16.mxu0 0
        %2692 = vmatpush1.bf16.xpose.msra.mxu0 0
        %2693 = vmatprep.subr.bf16.mxu0 0
        %2694 = vmatpush1.bf16.xpose.msra.mxu0 0
        %2695 = vmatprep.subr.bf16.mxu0 0
        %2696 = vmatpush1.bf16.xpose.msra.mxu0 0
        %2697 = vmatprep.subr.bf16.mxu0 0
        %2698 = vmatpush1.bf16.xpose.msra.mxu0 0
        %2699 = vmatprep.subr.bf16.mxu0 0
        %2700 = vmatpush1.bf16.xpose.msra.mxu0 0
        %2701 = vmatprep.subr.bf16.mxu0 0
        %2702 = vmatpush1.bf16.xpose.msra.mxu0 0
        %2703 = vmatprep.subr.bf16.mxu0 0
        %2704 = vmatpush1.bf16.xpose.msra.mxu0 0
        %2705 = vmatprep.subr.bf16.mxu0 0
        %2706 = vmatpush1.bf16.xpose.msra.mxu0 0
        %2707 = vmatprep.subr.bf16.mxu0 0
        %2708 = vmatpush1.bf16.xpose.msra.mxu0 0
        %2709 = vmatprep.mubr.bf16.mxu0 0
        %2710 = vmatmul.mubr.bf16.gmra.mrb[0].mxu0 %v2672
        %v2711 = vpop.f32.mrb[0].mxu0
        %v2712 = vadd.f32 %v634, %v2711
        %v2713 = vpop.f32.mrb[0].mxu0
        %v2714 = vpop.f32.mrb[0].mxu0
        %v2715 = vpop.f32.mrb[0].mxu0
        %2716 = vdwg.mxu0
        %v2717 = vsel %vm959, %v2712, -inf
        %2718 = vmax.xlane.f32.xlu0 %v2717
        %v2719 = vpop.xlane.xlu0 %2718
        %v2720 = vsub.f32 %v2712, %v2719
        %v2721 = vmul.f32 %v2720, 1.442695
        %v2722 = vpow.pop %v2721
        %v2723 = vsel %vm959, %v2722, 0.0
        %2724 = vadd.xlane.f32.xlu0 %v2723
        %v2725 = vpop.xlane.xlu0 %2724
        %v2726 = vrcp.pop %v2725
        %v2727 = vmul.f32 %v2722, %v2726
        %v2728 = vpack.c.bf16 %v2727, %v2727
        %2730 = vrot.lane.b32.xlu0 %v2559, 96
        %v2731 = vpop.permute.xlu0 %2730
        %v2733 = vsel %vm959, %v2728, 0
        %v2736 = vsel %vm975, %v2731, 0
        %2738 = vmatprep.subr.bf16.mxu0 0
        %2739 = vmatpush1.bf16.msra.mxu0 %v2736
        %2740 = vmatprep.subr.bf16.mxu0 0
        %2741 = vmatpush1.bf16.msra.mxu0 0
        %2742 = vmatprep.subr.bf16.mxu0 0
        %2743 = vmatpush1.bf16.msra.mxu0 0
        %2744 = vmatprep.subr.bf16.mxu0 0
        %2745 = vmatpush1.bf16.msra.mxu0 0
        %2746 = vmatprep.subr.bf16.mxu0 0
        %2747 = vmatpush1.bf16.msra.mxu0 0
        %2748 = vmatprep.subr.bf16.mxu0 0
        %2749 = vmatpush1.bf16.msra.mxu0 0
        %2750 = vmatprep.subr.bf16.mxu0 0
        %2751 = vmatpush1.bf16.msra.mxu0 0
        %2752 = vmatprep.subr.bf16.mxu0 0
        %2753 = vmatpush1.bf16.msra.mxu0 0
        %2754 = vmatprep.subr.bf16.mxu0 0
        %2755 = vmatpush1.bf16.msra.mxu0 0
        %2756 = vmatprep.subr.bf16.mxu0 0
        %2757 = vmatpush1.bf16.msra.mxu0 0
        %2758 = vmatprep.subr.bf16.mxu0 0
        %2759 = vmatpush1.bf16.msra.mxu0 0
        %2760 = vmatprep.subr.bf16.mxu0 0
        %2761 = vmatpush1.bf16.msra.mxu0 0
        %2762 = vmatprep.subr.bf16.mxu0 0
        %2763 = vmatpush1.bf16.msra.mxu0 0
        %2764 = vmatprep.subr.bf16.mxu0 0
        %2765 = vmatpush1.bf16.msra.mxu0 0
        %2766 = vmatprep.subr.bf16.mxu0 0
        %2767 = vmatpush1.bf16.msra.mxu0 0
        %2768 = vmatprep.subr.bf16.mxu0 0
        %2769 = vmatpush1.bf16.msra.mxu0 0
        %2770 = vmatprep.mubr.bf16.mxu0 0
        %2771 = vmatmul.mubr.bf16.gmra.mrb[0].mxu0 %v2733
        %v2772 = vpop.f32.mrb[0].mxu0
        %v2773 = vadd.f32 0.0, %v2772
        %v2774 = vpop.f32.mrb[0].mxu0
        %v2775 = vpop.f32.mrb[0].mxu0
        %v2776 = vpop.f32.mrb[0].mxu0
        %2777 = vdwg.mxu0
        %v2778 = vpack.c.bf16 %v2773, %v2773
        %v2783 = vunpack.c.l.b16 %v2545
        %v2784 = vunpack.c.l.b16 %v2546
        %v2785 = vunpack.c.l.b16 %v2547
        %v2786 = vunpack.c.l.b16 %v2548
        %v2787 = vpack.c.b16 %v2784, %v2783
        %v2788 = vpack.c.b16 %v2786, %v2785
        %v2792 = vsel %vm588, %v2778, 0
        %2794 = vmatprep.subr.bf16.mxu0 0
        %2795 = vmatpush1.bf16.msra.mxu0 %v2787
        %2796 = vmatprep.subr.bf16.mxu0 0
        %2797 = vmatpush1.bf16.msra.mxu0 %v2788
        %2798 = vmatprep.subr.bf16.mxu0 0
        %2799 = vmatpush1.bf16.msra.mxu0 0
        %2800 = vmatprep.subr.bf16.mxu0 0
        %2801 = vmatpush1.bf16.msra.mxu0 0
        %2802 = vmatprep.subr.bf16.mxu0 0
        %2803 = vmatpush1.bf16.msra.mxu0 0
        %2804 = vmatprep.subr.bf16.mxu0 0
        %2805 = vmatpush1.bf16.msra.mxu0 0
        %2806 = vmatprep.subr.bf16.mxu0 0
        %2807 = vmatpush1.bf16.msra.mxu0 0
        %2808 = vmatprep.subr.bf16.mxu0 0
        %2809 = vmatpush1.bf16.msra.mxu0 0
        %2810 = vmatprep.subr.bf16.mxu0 0
        %2811 = vmatpush1.bf16.msra.mxu0 0
        %2812 = vmatprep.subr.bf16.mxu0 0
        %2813 = vmatpush1.bf16.msra.mxu0 0
        %2814 = vmatprep.subr.bf16.mxu0 0
        %2815 = vmatpush1.bf16.msra.mxu0 0
        %2816 = vmatprep.subr.bf16.mxu0 0
        %2817 = vmatpush1.bf16.msra.mxu0 0
        %2818 = vmatprep.subr.bf16.mxu0 0
        %2819 = vmatpush1.bf16.msra.mxu0 0
        %2820 = vmatprep.subr.bf16.mxu0 0
        %2821 = vmatpush1.bf16.msra.mxu0 0
        %2822 = vmatprep.subr.bf16.mxu0 0
        %2823 = vmatpush1.bf16.msra.mxu0 0
        %2824 = vmatprep.subr.bf16.mxu0 0
        %2825 = vmatpush1.bf16.msra.mxu0 0
        %2826 = vmatprep.mubr.bf16.mxu0 0
        %2827 = vmatmul.mubr.bf16.gmra.mrb[0].mxu0 %v2792
        %v2828 = vpop.f32.mrb[0].mxu0
        %v2829 = vadd.f32 0.0, %v2828
        %v2830 = vpop.f32.mrb[0].mxu0
        %v2831 = vpop.f32.mrb[0].mxu0
        %v2832 = vpop.f32.mrb[0].mxu0
        %2833 = vdwg.mxu0
        %v2838 = vunpack.c.l.b16 %v2541
        %v2839 = vunpack.c.l.b16 %v2542
        %v2840 = vunpack.c.l.b16 %v2543
        %v2841 = vunpack.c.l.b16 %v2544
        %v2842 = vpack.c.b16 %v2839, %v2838
        %v2843 = vpack.c.b16 %v2841, %v2840
        %v2847 = vsel %vm588, %v2664, 0
        %2849 = vmatprep.subr.bf16.mxu0 0
        %2850 = vmatpush1.bf16.msra.mxu0 %v2842
        %2851 = vmatprep.subr.bf16.mxu0 0
        %2852 = vmatpush1.bf16.msra.mxu0 %v2843
        %2853 = vmatprep.subr.bf16.mxu0 0
        %2854 = vmatpush1.bf16.msra.mxu0 0
        %2855 = vmatprep.subr.bf16.mxu0 0
        %2856 = vmatpush1.bf16.msra.mxu0 0
        %2857 = vmatprep.subr.bf16.mxu0 0
        %2858 = vmatpush1.bf16.msra.mxu0 0
        %2859 = vmatprep.subr.bf16.mxu0 0
        %2860 = vmatpush1.bf16.msra.mxu0 0
        %2861 = vmatprep.subr.bf16.mxu0 0
        %2862 = vmatpush1.bf16.msra.mxu0 0
        %2863 = vmatprep.subr.bf16.mxu0 0
        %2864 = vmatpush1.bf16.msra.mxu0 0
        %2865 = vmatprep.subr.bf16.mxu0 0
        %2866 = vmatpush1.bf16.msra.mxu0 0
        %2867 = vmatprep.subr.bf16.mxu0 0
        %2868 = vmatpush1.bf16.msra.mxu0 0
        %2869 = vmatprep.subr.bf16.mxu0 0
        %2870 = vmatpush1.bf16.msra.mxu0 0
        %2871 = vmatprep.subr.bf16.mxu0 0
        %2872 = vmatpush1.bf16.msra.mxu0 0
        %2873 = vmatprep.subr.bf16.mxu0 0
        %2874 = vmatpush1.bf16.msra.mxu0 0
        %2875 = vmatprep.subr.bf16.mxu0 0
        %2876 = vmatpush1.bf16.msra.mxu0 0
        %2877 = vmatprep.subr.bf16.mxu0 0
        %2878 = vmatpush1.bf16.msra.mxu0 0
        %2879 = vmatprep.subr.bf16.mxu0 0
        %2880 = vmatpush1.bf16.msra.mxu0 0
        %2881 = vmatprep.mubr.bf16.mxu0 0
        %2882 = vmatmul.mubr.bf16.gmra.mrb[0].mxu0 %v2847
        %v2883 = vpop.f32.mrb[0].mxu0
        %v2884 = vadd.f32 %v2829, %v2883
        %v2885 = vpop.f32.mrb[0].mxu0
        %v2886 = vpop.f32.mrb[0].mxu0
        %v2887 = vpop.f32.mrb[0].mxu0
        %2888 = vdwg.mxu0
        %2889 = vrot.lane.b32.xlu0 %v2557, 64
        %v2890 = vpop.permute.xlu0 %2889
        %2891 = vrot.lane.b32.xlu0 %v2558, 64
        %v2892 = vpop.permute.xlu0 %2891
        %v2894 = vsel %vm588, %v2890, 0
        %v2897 = vsel %vm588, %v2892, 0
        %2899 = vmatprep.subr.bf16.mxu0 0
        %2900 = vmatpush1.bf16.xpose.msra.mxu0 %v2897
        %2901 = vmatprep.subr.bf16.mxu0 0
        %2902 = vmatpush1.bf16.xpose.msra.mxu0 0
        %2903 = vmatprep.subr.bf16.mxu0 0
        %2904 = vmatpush1.bf16.xpose.msra.mxu0 0
        %2905 = vmatprep.subr.bf16.mxu0 0
        %2906 = vmatpush1.bf16.xpose.msra.mxu0 0
        %2907 = vmatprep.subr.bf16.mxu0 0
        %2908 = vmatpush1.bf16.xpose.msra.mxu0 0
        %2909 = vmatprep.subr.bf16.mxu0 0
        %2910 = vmatpush1.bf16.xpose.msra.mxu0 0
        %2911 = vmatprep.subr.bf16.mxu0 0
        %2912 = vmatpush1.bf16.xpose.msra.mxu0 0
        %2913 = vmatprep.subr.bf16.mxu0 0
        %2914 = vmatpush1.bf16.xpose.msra.mxu0 0
        %2915 = vmatprep.subr.bf16.mxu0 0
        %2916 = vmatpush1.bf16.xpose.msra.mxu0 0
        %2917 = vmatprep.subr.bf16.mxu0 0
        %2918 = vmatpush1.bf16.xpose.msra.mxu0 0
        %2919 = vmatprep.subr.bf16.mxu0 0
        %2920 = vmatpush1.bf16.xpose.msra.mxu0 0
        %2921 = vmatprep.subr.bf16.mxu0 0
        %2922 = vmatpush1.bf16.xpose.msra.mxu0 0
        %2923 = vmatprep.subr.bf16.mxu0 0
        %2924 = vmatpush1.bf16.xpose.msra.mxu0 0
        %2925 = vmatprep.subr.bf16.mxu0 0
        %2926 = vmatpush1.bf16.xpose.msra.mxu0 0
        %2927 = vmatprep.subr.bf16.mxu0 0
        %2928 = vmatpush1.bf16.xpose.msra.mxu0 0
        %2929 = vmatprep.subr.bf16.mxu0 0
        %2930 = vmatpush1.bf16.xpose.msra.mxu0 0
        %2931 = vmatprep.mubr.bf16.mxu0 0
        %2932 = vmatmul.mubr.bf16.gmra.mrb[0].mxu0 %v2894
        %v2933 = vpop.f32.mrb[0].mxu0
        %v2934 = vadd.f32 %v634, %v2933
        %v2935 = vpop.f32.mrb[0].mxu0
        %v2936 = vpop.f32.mrb[0].mxu0
        %v2937 = vpop.f32.mrb[0].mxu0
        %2938 = vdwg.mxu0
        %v2939 = vsel %vm959, %v2934, -inf
        %2940 = vmax.xlane.f32.xlu0 %v2939
        %v2941 = vpop.xlane.xlu0 %2940
        %v2942 = vsub.f32 %v2934, %v2941
        %v2943 = vmul.f32 %v2942, 1.442695
        %v2944 = vpow.pop %v2943
        %v2945 = vsel %vm959, %v2944, 0.0
        %2946 = vadd.xlane.f32.xlu0 %v2945
        %v2947 = vpop.xlane.xlu0 %2946
        %v2948 = vrcp.pop %v2947
        %v2949 = vmul.f32 %v2944, %v2948
        %v2950 = vpack.c.bf16 %v2949, %v2949
        %2951 = vrot.lane.b32.xlu0 %v2559, 64
        %v2952 = vpop.permute.xlu0 %2951
        %v2954 = vsel %vm959, %v2950, 0
        %v2957 = vsel %vm975, %v2952, 0
        %2959 = vmatprep.subr.bf16.mxu0 0
        %2960 = vmatpush1.bf16.msra.mxu0 %v2957
        %2961 = vmatprep.subr.bf16.mxu0 0
        %2962 = vmatpush1.bf16.msra.mxu0 0
        %2963 = vmatprep.subr.bf16.mxu0 0
        %2964 = vmatpush1.bf16.msra.mxu0 0
        %2965 = vmatprep.subr.bf16.mxu0 0
        %2966 = vmatpush1.bf16.msra.mxu0 0
        %2967 = vmatprep.subr.bf16.mxu0 0
        %2968 = vmatpush1.bf16.msra.mxu0 0
        %2969 = vmatprep.subr.bf16.mxu0 0
        %2970 = vmatpush1.bf16.msra.mxu0 0
        %2971 = vmatprep.subr.bf16.mxu0 0
        %2972 = vmatpush1.bf16.msra.mxu0 0
        %2973 = vmatprep.subr.bf16.mxu0 0
        %2974 = vmatpush1.bf16.msra.mxu0 0
        %2975 = vmatprep.subr.bf16.mxu0 0
        %2976 = vmatpush1.bf16.msra.mxu0 0
        %2977 = vmatprep.subr.bf16.mxu0 0
        %2978 = vmatpush1.bf16.msra.mxu0 0
        %2979 = vmatprep.subr.bf16.mxu0 0
        %2980 = vmatpush1.bf16.msra.mxu0 0
        %2981 = vmatprep.subr.bf16.mxu0 0
        %2982 = vmatpush1.bf16.msra.mxu0 0
        %2983 = vmatprep.subr.bf16.mxu0 0
        %2984 = vmatpush1.bf16.msra.mxu0 0
        %2985 = vmatprep.subr.bf16.mxu0 0
        %2986 = vmatpush1.bf16.msra.mxu0 0
        %2987 = vmatprep.subr.bf16.mxu0 0
        %2988 = vmatpush1.bf16.msra.mxu0 0
        %2989 = vmatprep.subr.bf16.mxu0 0
        %2990 = vmatpush1.bf16.msra.mxu0 0
        %2991 = vmatprep.mubr.bf16.mxu0 0
        %2992 = vmatmul.mubr.bf16.gmra.mrb[0].mxu0 %v2954
        %v2993 = vpop.f32.mrb[0].mxu0
        %v2994 = vadd.f32 0.0, %v2993
        %v2995 = vpop.f32.mrb[0].mxu0
        %v2996 = vpop.f32.mrb[0].mxu0
        %v2997 = vpop.f32.mrb[0].mxu0
        %2998 = vdwg.mxu0
        %v2999 = vpack.c.bf16 %v2994, %v2994
        %v3004 = vunpack.c.l.b16 %v2549
        %v3005 = vunpack.c.l.b16 %v2550
        %v3006 = vunpack.c.l.b16 %v2551
        %v3007 = vunpack.c.l.b16 %v2552
        %v3008 = vpack.c.b16 %v3005, %v3004
        %v3009 = vpack.c.b16 %v3007, %v3006
        %v3013 = vsel %vm588, %v2999, 0
        %3015 = vmatprep.subr.bf16.mxu0 0
        %3016 = vmatpush1.bf16.msra.mxu0 %v3008
        %3017 = vmatprep.subr.bf16.mxu0 0
        %3018 = vmatpush1.bf16.msra.mxu0 %v3009
        %3019 = vmatprep.subr.bf16.mxu0 0
        %3020 = vmatpush1.bf16.msra.mxu0 0
        %3021 = vmatprep.subr.bf16.mxu0 0
        %3022 = vmatpush1.bf16.msra.mxu0 0
        %3023 = vmatprep.subr.bf16.mxu0 0
        %3024 = vmatpush1.bf16.msra.mxu0 0
        %3025 = vmatprep.subr.bf16.mxu0 0
        %3026 = vmatpush1.bf16.msra.mxu0 0
        %3027 = vmatprep.subr.bf16.mxu0 0
        %3028 = vmatpush1.bf16.msra.mxu0 0
        %3029 = vmatprep.subr.bf16.mxu0 0
        %3030 = vmatpush1.bf16.msra.mxu0 0
        %3031 = vmatprep.subr.bf16.mxu0 0
        %3032 = vmatpush1.bf16.msra.mxu0 0
        %3033 = vmatprep.subr.bf16.mxu0 0
        %3034 = vmatpush1.bf16.msra.mxu0 0
        %3035 = vmatprep.subr.bf16.mxu0 0
        %3036 = vmatpush1.bf16.msra.mxu0 0
        %3037 = vmatprep.subr.bf16.mxu0 0
        %3038 = vmatpush1.bf16.msra.mxu0 0
        %3039 = vmatprep.subr.bf16.mxu0 0
        %3040 = vmatpush1.bf16.msra.mxu0 0
        %3041 = vmatprep.subr.bf16.mxu0 0
        %3042 = vmatpush1.bf16.msra.mxu0 0
        %3043 = vmatprep.subr.bf16.mxu0 0
        %3044 = vmatpush1.bf16.msra.mxu0 0
        %3045 = vmatprep.subr.bf16.mxu0 0
        %3046 = vmatpush1.bf16.msra.mxu0 0
        %3047 = vmatprep.mubr.bf16.mxu0 0
        %3048 = vmatmul.mubr.bf16.gmra.mrb[0].mxu0 %v3013
        %v3049 = vpop.f32.mrb[0].mxu0
        %v3050 = vadd.f32 0.0, %v3049
        %v3051 = vpop.f32.mrb[0].mxu0
        %v3052 = vpop.f32.mrb[0].mxu0
        %v3053 = vpop.f32.mrb[0].mxu0
        %3054 = vdwg.mxu0
        %v3055 = vadd.f32 %v2884, %v3050
        %3056 = vrot.lane.b32.xlu0 %v2557, 32
        %v3057 = vpop.permute.xlu0 %3056
        %3058 = vrot.lane.b32.xlu0 %v2558, 32
        %v3059 = vpop.permute.xlu0 %3058
        %v3061 = vsel %vm588, %v3057, 0
        %v3064 = vsel %vm588, %v3059, 0
        %3066 = vmatprep.subr.bf16.mxu0 0
        %3067 = vmatpush1.bf16.xpose.msra.mxu0 %v3064
        %3068 = vmatprep.subr.bf16.mxu0 0
        %3069 = vmatpush1.bf16.xpose.msra.mxu0 0
        %3070 = vmatprep.subr.bf16.mxu0 0
        %3071 = vmatpush1.bf16.xpose.msra.mxu0 0
        %3072 = vmatprep.subr.bf16.mxu0 0
        %3073 = vmatpush1.bf16.xpose.msra.mxu0 0
        %3074 = vmatprep.subr.bf16.mxu0 0
        %3075 = vmatpush1.bf16.xpose.msra.mxu0 0
        %3076 = vmatprep.subr.bf16.mxu0 0
        %3077 = vmatpush1.bf16.xpose.msra.mxu0 0
        %3078 = vmatprep.subr.bf16.mxu0 0
        %3079 = vmatpush1.bf16.xpose.msra.mxu0 0
        %3080 = vmatprep.subr.bf16.mxu0 0
        %3081 = vmatpush1.bf16.xpose.msra.mxu0 0
        %3082 = vmatprep.subr.bf16.mxu0 0
        %3083 = vmatpush1.bf16.xpose.msra.mxu0 0
        %3084 = vmatprep.subr.bf16.mxu0 0
        %3085 = vmatpush1.bf16.xpose.msra.mxu0 0
        %3086 = vmatprep.subr.bf16.mxu0 0
        %3087 = vmatpush1.bf16.xpose.msra.mxu0 0
        %3088 = vmatprep.subr.bf16.mxu0 0
        %3089 = vmatpush1.bf16.xpose.msra.mxu0 0
        %3090 = vmatprep.subr.bf16.mxu0 0
        %3091 = vmatpush1.bf16.xpose.msra.mxu0 0
        %3092 = vmatprep.subr.bf16.mxu0 0
        %3093 = vmatpush1.bf16.xpose.msra.mxu0 0
        %3094 = vmatprep.subr.bf16.mxu0 0
        %3095 = vmatpush1.bf16.xpose.msra.mxu0 0
        %3096 = vmatprep.subr.bf16.mxu0 0
        %3097 = vmatpush1.bf16.xpose.msra.mxu0 0
        %3098 = vmatprep.mubr.bf16.mxu0 0
        %3099 = vmatmul.mubr.bf16.gmra.mrb[0].mxu0 %v3061
        %v3100 = vpop.f32.mrb[0].mxu0
        %v3101 = vadd.f32 %v634, %v3100
        %v3102 = vpop.f32.mrb[0].mxu0
        %v3103 = vpop.f32.mrb[0].mxu0
        %v3104 = vpop.f32.mrb[0].mxu0
        %3105 = vdwg.mxu0
        %v3106 = vsel %vm959, %v3101, -inf
        %3107 = vmax.xlane.f32.xlu0 %v3106
        %v3108 = vpop.xlane.xlu0 %3107
        %v3109 = vsub.f32 %v3101, %v3108
        %v3110 = vmul.f32 %v3109, 1.442695
        %v3111 = vpow.pop %v3110
        %v3112 = vsel %vm959, %v3111, 0.0
        %3113 = vadd.xlane.f32.xlu0 %v3112
        %v3114 = vpop.xlane.xlu0 %3113
        %v3115 = vrcp.pop %v3114
        %v3116 = vmul.f32 %v3111, %v3115
        %v3117 = vpack.c.bf16 %v3116, %v3116
        %3118 = vrot.lane.b32.xlu0 %v2559, 32
        %v3119 = vpop.permute.xlu0 %3118
        %v3121 = vsel %vm959, %v3117, 0
        %v3124 = vsel %vm975, %v3119, 0
        %3126 = vmatprep.subr.bf16.mxu0 0
        %3127 = vmatpush1.bf16.msra.mxu0 %v3124
        %3128 = vmatprep.subr.bf16.mxu0 0
        %3129 = vmatpush1.bf16.msra.mxu0 0
        %3130 = vmatprep.subr.bf16.mxu0 0
        %3131 = vmatpush1.bf16.msra.mxu0 0
        %3132 = vmatprep.subr.bf16.mxu0 0
        %3133 = vmatpush1.bf16.msra.mxu0 0
        %3134 = vmatprep.subr.bf16.mxu0 0
        %3135 = vmatpush1.bf16.msra.mxu0 0
        %3136 = vmatprep.subr.bf16.mxu0 0
        %3137 = vmatpush1.bf16.msra.mxu0 0
        %3138 = vmatprep.subr.bf16.mxu0 0
        %3139 = vmatpush1.bf16.msra.mxu0 0
        %3140 = vmatprep.subr.bf16.mxu0 0
        %3141 = vmatpush1.bf16.msra.mxu0 0
        %3142 = vmatprep.subr.bf16.mxu0 0
        %3143 = vmatpush1.bf16.msra.mxu0 0
        %3144 = vmatprep.subr.bf16.mxu0 0
        %3145 = vmatpush1.bf16.msra.mxu0 0
        %3146 = vmatprep.subr.bf16.mxu0 0
        %3147 = vmatpush1.bf16.msra.mxu0 0
        %3148 = vmatprep.subr.bf16.mxu0 0
        %3149 = vmatpush1.bf16.msra.mxu0 0
        %3150 = vmatprep.subr.bf16.mxu0 0
        %3151 = vmatpush1.bf16.msra.mxu0 0
        %3152 = vmatprep.subr.bf16.mxu0 0
        %3153 = vmatpush1.bf16.msra.mxu0 0
        %3154 = vmatprep.subr.bf16.mxu0 0
        %3155 = vmatpush1.bf16.msra.mxu0 0
        %3156 = vmatprep.subr.bf16.mxu0 0
        %3157 = vmatpush1.bf16.msra.mxu0 0
        %3158 = vmatprep.mubr.bf16.mxu0 0
        %3159 = vmatmul.mubr.bf16.gmra.mrb[0].mxu0 %v3121
        %v3160 = vpop.f32.mrb[0].mxu0
        %v3161 = vadd.f32 0.0, %v3160
        %v3162 = vpop.f32.mrb[0].mxu0
        %v3163 = vpop.f32.mrb[0].mxu0
        %v3164 = vpop.f32.mrb[0].mxu0
        %3165 = vdwg.mxu0
        %v3166 = vpack.c.bf16 %v3161, %v3161
        %v3171 = vunpack.c.l.b16 %v2553
        %v3172 = vunpack.c.l.b16 %v2554
        %v3173 = vunpack.c.l.b16 %v2555
        %v3174 = vunpack.c.l.b16 %v2556
        %v3175 = vpack.c.b16 %v3172, %v3171
        %v3176 = vpack.c.b16 %v3174, %v3173
        %v3180 = vsel %vm588, %v3166, 0
        %3182 = vmatprep.subr.bf16.mxu0 0
        %3183 = vmatpush1.bf16.msra.mxu0 %v3175
        %3184 = vmatprep.subr.bf16.mxu0 0
        %3185 = vmatpush1.bf16.msra.mxu0 %v3176
        %3186 = vmatprep.subr.bf16.mxu0 0
        %3187 = vmatpush1.bf16.msra.mxu0 0
        %3188 = vmatprep.subr.bf16.mxu0 0
        %3189 = vmatpush1.bf16.msra.mxu0 0
        %3190 = vmatprep.subr.bf16.mxu0 0
        %3191 = vmatpush1.bf16.msra.mxu0 0
        %3192 = vmatprep.subr.bf16.mxu0 0
        %3193 = vmatpush1.bf16.msra.mxu0 0
        %3194 = vmatprep.subr.bf16.mxu0 0
        %3195 = vmatpush1.bf16.msra.mxu0 0
        %3196 = vmatprep.subr.bf16.mxu0 0
        %3197 = vmatpush1.bf16.msra.mxu0 0
        %3198 = vmatprep.subr.bf16.mxu0 0
        %3199 = vmatpush1.bf16.msra.mxu0 0
        %3200 = vmatprep.subr.bf16.mxu0 0
        %3201 = vmatpush1.bf16.msra.mxu0 0
        %3202 = vmatprep.subr.bf16.mxu0 0
        %3203 = vmatpush1.bf16.msra.mxu0 0
        %3204 = vmatprep.subr.bf16.mxu0 0
        %3205 = vmatpush1.bf16.msra.mxu0 0
        %3206 = vmatprep.subr.bf16.mxu0 0
        %3207 = vmatpush1.bf16.msra.mxu0 0
        %3208 = vmatprep.subr.bf16.mxu0 0
        %3209 = vmatpush1.bf16.msra.mxu0 0
        %3210 = vmatprep.subr.bf16.mxu0 0
        %3211 = vmatpush1.bf16.msra.mxu0 0
        %3212 = vmatprep.subr.bf16.mxu0 0
        %3213 = vmatpush1.bf16.msra.mxu0 0
        %3214 = vmatprep.mubr.bf16.mxu0 0
        %3215 = vmatmul.mubr.bf16.gmra.mrb[0].mxu0 %v3180
        %v3216 = vpop.f32.mrb[0].mxu0
        %v3217 = vadd.f32 0.0, %v3216
        %v3218 = vpop.f32.mrb[0].mxu0
        %v3219 = vpop.f32.mrb[0].mxu0
        %v3220 = vpop.f32.mrb[0].mxu0
        %3221 = vdwg.mxu0
        %v3222 = vadd.f32 %v3055, %v3217
        %v3223 = vld [vmem:[%s7 + $0x1] sm:$0x1]
        %v3224 = vlaneseq
        %v3225 = vshrl.u32 %v3224, 7
        %v3226 = vsub.s32 0, %v3225
        %v3227 = vrot.slane %v3223, %v3226
        %v3228 = vadd.f32 %v3222, %v3227
        %v3229 = vadd.f32 %v2278, %v3228
        %v3230 = vld [vmem:[%s8 + $0x1] sm:$0x1]
        %v3231 = vld [vmem:[%s9 + $0x1] sm:$0x1]
        %3232 = vadd.xlane.f32.xlu0 %v3229
        %v3233 = vpop.xlane.xlu0 %3232
        %v3234 = vmul.f32 %v3233, %v1589
        %v3235 = vsub.f32 %v3229, %v3234
        %v3236 = vmul.f32 %v3235, %v3235
        %3237 = vadd.xlane.f32.xlu0 %v3236
        %v3238 = vpop.xlane.xlu0 %3237
        %v3239 = vmul.f32 %v3238, %v1589
        %v3240 = vadd.f32 %v3239, 1e-05
        %v3241 = vrsqrt.pop %v3240
        %v3242 = vmul.f32 %v3235, %v3241
        %v3243 = vlaneseq
        %v3244 = vshrl.u32 %v3243, 7
        %v3245 = vsub.s32 0, %v3244
        %v3246 = vrot.slane %v3230, %v3245
        %v3247 = vmul.f32 %v3242, %v3246
        %v3248 = vlaneseq
        %v3249 = vshrl.u32 %v3248, 7
        %v3250 = vsub.s32 0, %v3249
        %v3251 = vrot.slane %v3231, %v3250
        %v3252 = vadd.f32 %v3247, %v3251
        %s3253 = scalar_lea.vmem %s10, 256
        %v3254 = vld [vmem:[%s3253] sm:$0xff]
        %v3255 = vld [vmem:[%s3253 + $0x8] sm:$0xff]
        %v3256 = vld [vmem:[%s3253 + $0x10] sm:$0xff]
        %v3257 = vld [vmem:[%s3253 + $0x18] sm:$0xff]
        %v3258 = vld [vmem:[%s3253 + $0x20] sm:$0xff]
        %v3259 = vld [vmem:[%s3253 + $0x28] sm:$0xff]
        %v3260 = vld [vmem:[%s3253 + $0x30] sm:$0xff]
        %v3261 = vld [vmem:[%s3253 + $0x38] sm:$0xff]
        %v3262 = vld [vmem:[%s3253 + $0x40] sm:$0xff]
        %v3263 = vld [vmem:[%s3253 + $0x48] sm:$0xff]
        %v3264 = vld [vmem:[%s3253 + $0x50] sm:$0xff]
        %v3265 = vld [vmem:[%s3253 + $0x58] sm:$0xff]
        %v3266 = vld [vmem:[%s3253 + $0x60] sm:$0xff]
        %v3267 = vld [vmem:[%s3253 + $0x68] sm:$0xff]
        %v3268 = vld [vmem:[%s3253 + $0x70] sm:$0xff]
        %v3269 = vld [vmem:[%s3253 + $0x78] sm:$0xff]
        %v3270 = vld [vmem:[%s3253 + $0x80] sm:$0xff]
        %v3271 = vld [vmem:[%s3253 + $0x88] sm:$0xff]
        %v3272 = vld [vmem:[%s3253 + $0x90] sm:$0xff]
        %v3273 = vld [vmem:[%s3253 + $0x98] sm:$0xff]
        %v3274 = vld [vmem:[%s3253 + $0xa0] sm:$0xff]
        %v3275 = vld [vmem:[%s3253 + $0xa8] sm:$0xff]
        %v3276 = vld [vmem:[%s3253 + $0xb0] sm:$0xff]
        %v3277 = vld [vmem:[%s3253 + $0xb8] sm:$0xff]
        %v3278 = vld [vmem:[%s3253 + $0xc0] sm:$0xff]
        %v3279 = vld [vmem:[%s3253 + $0xc8] sm:$0xff]
        %v3280 = vld [vmem:[%s3253 + $0xd0] sm:$0xff]
        %v3281 = vld [vmem:[%s3253 + $0xd8] sm:$0xff]
        %v3282 = vld [vmem:[%s3253 + $0xe0] sm:$0xff]
        %v3283 = vld [vmem:[%s3253 + $0xe8] sm:$0xff]
        %v3284 = vld [vmem:[%s3253 + $0xf0] sm:$0xff]
        %v3285 = vld [vmem:[%s3253 + $0xf8] sm:$0xff]
        %v3286 = vpack.c.bf16 %v3252, %v3252
        %s3287 = scalar_lea.vmem %s11, 1
        %v3288 = vld [vmem:[%s3287] ss:$4 sm:$0xf]
        %v3290 = vlaneseq
        %v3291 = vshrl.u32 %v3290, 7
        %v3292 = vsub.s32 0, %v3291
        %v3293 = vrot.slane %v3288, %v3292
        %v3294 = vlaneseq
        %v3295 = vshrl.u32 %v3294, 7
        %v3296 = vsub.s32 1, %v3295
        %v3297 = vrot.slane %v3288, %v3296
        %v3298 = vlaneseq
        %v3299 = vshrl.u32 %v3298, 7
        %v3300 = vsub.s32 2, %v3299
        %v3301 = vrot.slane %v3288, %v3300
        %v3302 = vlaneseq
        %v3303 = vshrl.u32 %v3302, 7
        %v3304 = vsub.s32 3, %v3303
        %v3305 = vrot.slane %v3288, %v3304
        %v3342 = vunpack.c.l.b16 %v3254
        %v3343 = vunpack.c.h.b16 %v3254
        %v3344 = vunpack.c.l.b16 %v3255
        %v3345 = vunpack.c.h.b16 %v3255
        %v3346 = vunpack.c.l.b16 %v3256
        %v3347 = vunpack.c.h.b16 %v3256
        %v3348 = vunpack.c.l.b16 %v3257
        %v3349 = vunpack.c.h.b16 %v3257
        %v3350 = vunpack.c.l.b16 %v3258
        %v3351 = vunpack.c.h.b16 %v3258
        %v3352 = vunpack.c.l.b16 %v3259
        %v3353 = vunpack.c.h.b16 %v3259
        %v3354 = vunpack.c.l.b16 %v3260
        %v3355 = vunpack.c.h.b16 %v3260
        %v3356 = vunpack.c.l.b16 %v3261
        %v3357 = vunpack.c.h.b16 %v3261
        %v3358 = vunpack.c.l.b16 %v3262
        %v3359 = vunpack.c.h.b16 %v3262
        %v3360 = vunpack.c.l.b16 %v3263
        %v3361 = vunpack.c.h.b16 %v3263
        %v3362 = vunpack.c.l.b16 %v3264
        %v3363 = vunpack.c.h.b16 %v3264
        %v3364 = vunpack.c.l.b16 %v3265
        %v3365 = vunpack.c.h.b16 %v3265
        %v3366 = vunpack.c.l.b16 %v3266
        %v3367 = vunpack.c.h.b16 %v3266
        %v3368 = vunpack.c.l.b16 %v3267
        %v3369 = vunpack.c.h.b16 %v3267
        %v3370 = vunpack.c.l.b16 %v3268
        %v3371 = vunpack.c.h.b16 %v3268
        %v3372 = vunpack.c.l.b16 %v3269
        %v3373 = vunpack.c.h.b16 %v3269
        %v3374 = vunpack.c.l.b16 %v3270
        %v3375 = vunpack.c.h.b16 %v3270
        %v3376 = vunpack.c.l.b16 %v3271
        %v3377 = vunpack.c.h.b16 %v3271
        %v3378 = vunpack.c.l.b16 %v3272
        %v3379 = vunpack.c.h.b16 %v3272
        %v3380 = vunpack.c.l.b16 %v3273
        %v3381 = vunpack.c.h.b16 %v3273
        %v3382 = vunpack.c.l.b16 %v3274
        %v3383 = vunpack.c.h.b16 %v3274
        %v3384 = vunpack.c.l.b16 %v3275
        %v3385 = vunpack.c.h.b16 %v3275
        %v3386 = vunpack.c.l.b16 %v3276
        %v3387 = vunpack.c.h.b16 %v3276
        %v3388 = vunpack.c.l.b16 %v3277
        %v3389 = vunpack.c.h.b16 %v3277
        %v3390 = vunpack.c.l.b16 %v3278
        %v3391 = vunpack.c.h.b16 %v3278
        %v3392 = vunpack.c.l.b16 %v3279
        %v3393 = vunpack.c.h.b16 %v3279
        %v3394 = vunpack.c.l.b16 %v3280
        %v3395 = vunpack.c.h.b16 %v3280
        %v3396 = vunpack.c.l.b16 %v3281
        %v3397 = vunpack.c.h.b16 %v3281
        %v3398 = vunpack.c.l.b16 %v3282
        %v3399 = vunpack.c.h.b16 %v3282
        %v3400 = vunpack.c.l.b16 %v3283
        %v3401 = vunpack.c.h.b16 %v3283
        %v3402 = vunpack.c.l.b16 %v3284
        %v3403 = vunpack.c.h.b16 %v3284
        %v3404 = vunpack.c.l.b16 %v3285
        %v3405 = vunpack.c.h.b16 %v3285
        %v3406 = vpack.c.b16 %v3346, %v3342
        %v3407 = vpack.c.b16 %v3347, %v3343
        %v3408 = vpack.c.b16 %v3348, %v3344
        %v3409 = vpack.c.b16 %v3349, %v3345
        %v3410 = vpack.c.b16 %v3354, %v3350
        %v3411 = vpack.c.b16 %v3355, %v3351
        %v3412 = vpack.c.b16 %v3356, %v3352
        %v3413 = vpack.c.b16 %v3357, %v3353
        %v3414 = vpack.c.b16 %v3362, %v3358
        %v3415 = vpack.c.b16 %v3363, %v3359
        %v3416 = vpack.c.b16 %v3364, %v3360
        %v3417 = vpack.c.b16 %v3365, %v3361
        %v3418 = vpack.c.b16 %v3370, %v3366
        %v3419 = vpack.c.b16 %v3371, %v3367
        %v3420 = vpack.c.b16 %v3372, %v3368
        %v3421 = vpack.c.b16 %v3373, %v3369
        %v3422 = vpack.c.b16 %v3378, %v3374
        %v3423 = vpack.c.b16 %v3379, %v3375
        %v3424 = vpack.c.b16 %v3380, %v3376
        %v3425 = vpack.c.b16 %v3381, %v3377
        %v3426 = vpack.c.b16 %v3386, %v3382
        %v3427 = vpack.c.b16 %v3387, %v3383
        %v3428 = vpack.c.b16 %v3388, %v3384
        %v3429 = vpack.c.b16 %v3389, %v3385
        %v3430 = vpack.c.b16 %v3394, %v3390
        %v3431 = vpack.c.b16 %v3395, %v3391
        %v3432 = vpack.c.b16 %v3396, %v3392
        %v3433 = vpack.c.b16 %v3397, %v3393
        %v3434 = vpack.c.b16 %v3402, %v3398
        %v3435 = vpack.c.b16 %v3403, %v3399
        %v3436 = vpack.c.b16 %v3404, %v3400
        %v3437 = vpack.c.b16 %v3405, %v3401
        %3470 = vmatprep.subr.bf16.mxu0 %v3407
        %3471 = vmatpush1.bf16.msra.mxu0 %v3406
        %3472 = vmatprep.subr.bf16.mxu0 %v3411
        %3473 = vmatpush1.bf16.msra.mxu0 %v3410
        %3474 = vmatprep.subr.bf16.mxu0 %v3415
        %3475 = vmatpush1.bf16.msra.mxu0 %v3414
        %3476 = vmatprep.subr.bf16.mxu0 %v3419
        %3477 = vmatpush1.bf16.msra.mxu0 %v3418
        %3478 = vmatprep.subr.bf16.mxu0 %v3423
        %3479 = vmatpush1.bf16.msra.mxu0 %v3422
        %3480 = vmatprep.subr.bf16.mxu0 %v3427
        %3481 = vmatpush1.bf16.msra.mxu0 %v3426
        %3482 = vmatprep.subr.bf16.mxu0 %v3431
        %3483 = vmatpush1.bf16.msra.mxu0 %v3430
        %3484 = vmatprep.subr.bf16.mxu0 %v3435
        %3485 = vmatpush1.bf16.msra.mxu0 %v3434
        %3486 = vmatprep.subr.bf16.mxu0 0
        %3487 = vmatpush1.bf16.msra.mxu0 0
        %3488 = vmatprep.subr.bf16.mxu0 0
        %3489 = vmatpush1.bf16.msra.mxu0 0
        %3490 = vmatprep.subr.bf16.mxu0 0
        %3491 = vmatpush1.bf16.msra.mxu0 0
        %3492 = vmatprep.subr.bf16.mxu0 0
        %3493 = vmatpush1.bf16.msra.mxu0 0
        %3494 = vmatprep.subr.bf16.mxu0 0
        %3495 = vmatpush1.bf16.msra.mxu0 0
        %3496 = vmatprep.subr.bf16.mxu0 0
        %3497 = vmatpush1.bf16.msra.mxu0 0
        %3498 = vmatprep.subr.bf16.mxu0 0
        %3499 = vmatpush1.bf16.msra.mxu0 0
        %3500 = vmatprep.subr.bf16.mxu0 0
        %3501 = vmatpush1.bf16.msra.mxu0 0
        %3502 = vmatprep.mubr.bf16.mxu0 0
        %3503 = vmatmul.mubr.bf16.gmra.mrb[0].mxu0 %v3286
        %v3504 = vpop.f32.mrb[0].mxu0
        %v3505 = vadd.f32 %v3293, %v3504
        %v3506 = vpop.f32.mrb[0].mxu0
        %v3507 = vadd.f32 %v3297, %v3506
        %v3508 = vpop.f32.mrb[0].mxu0
        %v3509 = vpop.f32.mrb[0].mxu0
        %3510 = vdwg.mxu0
        %3511 = vmatprep.subr.bf16.mxu0 %v3409
        %3512 = vmatpush1.bf16.msra.mxu0 %v3408
        %3513 = vmatprep.subr.bf16.mxu0 %v3413
        %3514 = vmatpush1.bf16.msra.mxu0 %v3412
        %3515 = vmatprep.subr.bf16.mxu0 %v3417
        %3516 = vmatpush1.bf16.msra.mxu0 %v3416
        %3517 = vmatprep.subr.bf16.mxu0 %v3421
        %3518 = vmatpush1.bf16.msra.mxu0 %v3420
        %3519 = vmatprep.subr.bf16.mxu0 %v3425
        %3520 = vmatpush1.bf16.msra.mxu0 %v3424
        %3521 = vmatprep.subr.bf16.mxu0 %v3429
        %3522 = vmatpush1.bf16.msra.mxu0 %v3428
        %3523 = vmatprep.subr.bf16.mxu0 %v3433
        %3524 = vmatpush1.bf16.msra.mxu0 %v3432
        %3525 = vmatprep.subr.bf16.mxu0 %v3437
        %3526 = vmatpush1.bf16.msra.mxu0 %v3436
        %3527 = vmatprep.subr.bf16.mxu0 0
        %3528 = vmatpush1.bf16.msra.mxu0 0
        %3529 = vmatprep.subr.bf16.mxu0 0
        %3530 = vmatpush1.bf16.msra.mxu0 0
        %3531 = vmatprep.subr.bf16.mxu0 0
        %3532 = vmatpush1.bf16.msra.mxu0 0
        %3533 = vmatprep.subr.bf16.mxu0 0
        %3534 = vmatpush1.bf16.msra.mxu0 0
        %3535 = vmatprep.subr.bf16.mxu0 0
        %3536 = vmatpush1.bf16.msra.mxu0 0
        %3537 = vmatprep.subr.bf16.mxu0 0
        %3538 = vmatpush1.bf16.msra.mxu0 0
        %3539 = vmatprep.subr.bf16.mxu0 0
        %3540 = vmatpush1.bf16.msra.mxu0 0
        %3541 = vmatprep.subr.bf16.mxu0 0
        %3542 = vmatpush1.bf16.msra.mxu0 0
        %3543 = vmatprep.mubr.bf16.mxu0 0
        %3544 = vmatmul.mubr.bf16.gmra.mrb[0].mxu0 %v3286
        %v3545 = vpop.f32.mrb[0].mxu0
        %v3546 = vadd.f32 %v3301, %v3545
        %v3547 = vpop.f32.mrb[0].mxu0
        %v3548 = vadd.f32 %v3305, %v3547
        %v3549 = vpop.f32.mrb[0].mxu0
        %v3550 = vpop.f32.mrb[0].mxu0
        %3551 = vdwg.mxu0
        %v3552 = vmax.f32 %v3505, 0.0
        %v3553 = vmax.f32 %v3507, 0.0
        %v3554 = vmax.f32 %v3546, 0.0
        %v3555 = vmax.f32 %v3548, 0.0
        %s3556 = scalar_lea.vmem %s12, 256
        %v3557 = vld [vmem:[%s3556] sm:$0xf]
        %v3558 = vld [vmem:[%s3556 + $0x4] sm:$0xf]
        %v3559 = vld [vmem:[%s3556 + $0x8] sm:$0xf]
        %v3560 = vld [vmem:[%s3556 + $0xc] sm:$0xf]
        %v3561 = vld [vmem:[%s3556 + $0x10] sm:$0xf]
        %v3562 = vld [vmem:[%s3556 + $0x14] sm:$0xf]
        %v3563 = vld [vmem:[%s3556 + $0x18] sm:$0xf]
        %v3564 = vld [vmem:[%s3556 + $0x1c] sm:$0xf]
        %v3565 = vld [vmem:[%s3556 + $0x20] sm:$0xf]
        %v3566 = vld [vmem:[%s3556 + $0x24] sm:$0xf]
        %v3567 = vld [vmem:[%s3556 + $0x28] sm:$0xf]
        %v3568 = vld [vmem:[%s3556 + $0x2c] sm:$0xf]
        %v3569 = vld [vmem:[%s3556 + $0x30] sm:$0xf]
        %v3570 = vld [vmem:[%s3556 + $0x34] sm:$0xf]
        %v3571 = vld [vmem:[%s3556 + $0x38] sm:$0xf]
        %v3572 = vld [vmem:[%s3556 + $0x3c] sm:$0xf]
        %v3573 = vld [vmem:[%s3556 + $0x40] sm:$0xf]
        %v3574 = vld [vmem:[%s3556 + $0x44] sm:$0xf]
        %v3575 = vld [vmem:[%s3556 + $0x48] sm:$0xf]
        %v3576 = vld [vmem:[%s3556 + $0x4c] sm:$0xf]
        %v3577 = vld [vmem:[%s3556 + $0x50] sm:$0xf]
        %v3578 = vld [vmem:[%s3556 + $0x54] sm:$0xf]
        %v3579 = vld [vmem:[%s3556 + $0x58] sm:$0xf]
        %v3580 = vld [vmem:[%s3556 + $0x5c] sm:$0xf]
        %v3581 = vld [vmem:[%s3556 + $0x60] sm:$0xf]
        %v3582 = vld [vmem:[%s3556 + $0x64] sm:$0xf]
        %v3583 = vld [vmem:[%s3556 + $0x68] sm:$0xf]
        %v3584 = vld [vmem:[%s3556 + $0x6c] sm:$0xf]
        %v3585 = vld [vmem:[%s3556 + $0x70] sm:$0xf]
        %v3586 = vld [vmem:[%s3556 + $0x74] sm:$0xf]
        %v3587 = vld [vmem:[%s3556 + $0x78] sm:$0xf]
        %v3588 = vld [vmem:[%s3556 + $0x7c] sm:$0xf]
        %v3589 = vld [vmem:[%s3556 + $0x80] sm:$0xf]
        %v3590 = vld [vmem:[%s3556 + $0x84] sm:$0xf]
        %v3591 = vld [vmem:[%s3556 + $0x88] sm:$0xf]
        %v3592 = vld [vmem:[%s3556 + $0x8c] sm:$0xf]
        %v3593 = vld [vmem:[%s3556 + $0x90] sm:$0xf]
        %v3594 = vld [vmem:[%s3556 + $0x94] sm:$0xf]
        %v3595 = vld [vmem:[%s3556 + $0x98] sm:$0xf]
        %v3596 = vld [vmem:[%s3556 + $0x9c] sm:$0xf]
        %v3597 = vld [vmem:[%s3556 + $0xa0] sm:$0xf]
        %v3598 = vld [vmem:[%s3556 + $0xa4] sm:$0xf]
        %v3599 = vld [vmem:[%s3556 + $0xa8] sm:$0xf]
        %v3600 = vld [vmem:[%s3556 + $0xac] sm:$0xf]
        %v3601 = vld [vmem:[%s3556 + $0xb0] sm:$0xf]
        %v3602 = vld [vmem:[%s3556 + $0xb4] sm:$0xf]
        %v3603 = vld [vmem:[%s3556 + $0xb8] sm:$0xf]
        %v3604 = vld [vmem:[%s3556 + $0xbc] sm:$0xf]
        %v3605 = vld [vmem:[%s3556 + $0xc0] sm:$0xf]
        %v3606 = vld [vmem:[%s3556 + $0xc4] sm:$0xf]
        %v3607 = vld [vmem:[%s3556 + $0xc8] sm:$0xf]
        %v3608 = vld [vmem:[%s3556 + $0xcc] sm:$0xf]
        %v3609 = vld [vmem:[%s3556 + $0xd0] sm:$0xf]
        %v3610 = vld [vmem:[%s3556 + $0xd4] sm:$0xf]
        %v3611 = vld [vmem:[%s3556 + $0xd8] sm:$0xf]
        %v3612 = vld [vmem:[%s3556 + $0xdc] sm:$0xf]
        %v3613 = vld [vmem:[%s3556 + $0xe0] sm:$0xf]
        %v3614 = vld [vmem:[%s3556 + $0xe4] sm:$0xf]
        %v3615 = vld [vmem:[%s3556 + $0xe8] sm:$0xf]
        %v3616 = vld [vmem:[%s3556 + $0xec] sm:$0xf]
        %v3617 = vld [vmem:[%s3556 + $0xf0] sm:$0xf]
        %v3618 = vld [vmem:[%s3556 + $0xf4] sm:$0xf]
        %v3619 = vld [vmem:[%s3556 + $0xf8] sm:$0xf]
        %v3620 = vld [vmem:[%s3556 + $0xfc] sm:$0xf]
        %v3621 = vpack.c.bf16 %v3552, %v3552
        %v3622 = vpack.c.bf16 %v3553, %v3553
        %v3623 = vpack.c.bf16 %v3554, %v3554
        %v3624 = vpack.c.bf16 %v3555, %v3555
        %v3625 = vld [vmem:[%s13 + $0x1] sm:$0x1]
        %v3626 = vlaneseq
        %v3627 = vshrl.u32 %v3626, 7
        %v3628 = vsub.s32 0, %v3627
        %v3629 = vrot.slane %v3625, %v3628
        %v3694 = vunpack.c.l.b16 %v3557
        %v3695 = vunpack.c.l.b16 %v3558
        %v3696 = vunpack.c.l.b16 %v3559
        %v3697 = vunpack.c.l.b16 %v3560
        %v3698 = vunpack.c.l.b16 %v3561
        %v3699 = vunpack.c.l.b16 %v3562
        %v3700 = vunpack.c.l.b16 %v3563
        %v3701 = vunpack.c.l.b16 %v3564
        %v3702 = vunpack.c.l.b16 %v3565
        %v3703 = vunpack.c.l.b16 %v3566
        %v3704 = vunpack.c.l.b16 %v3567
        %v3705 = vunpack.c.l.b16 %v3568
        %v3706 = vunpack.c.l.b16 %v3569
        %v3707 = vunpack.c.l.b16 %v3570
        %v3708 = vunpack.c.l.b16 %v3571
        %v3709 = vunpack.c.l.b16 %v3572
        %v3710 = vunpack.c.l.b16 %v3573
        %v3711 = vunpack.c.l.b16 %v3574
        %v3712 = vunpack.c.l.b16 %v3575
        %v3713 = vunpack.c.l.b16 %v3576
        %v3714 = vunpack.c.l.b16 %v3577
        %v3715 = vunpack.c.l.b16 %v3578
        %v3716 = vunpack.c.l.b16 %v3579
        %v3717 = vunpack.c.l.b16 %v3580
        %v3718 = vunpack.c.l.b16 %v3581
        %v3719 = vunpack.c.l.b16 %v3582
        %v3720 = vunpack.c.l.b16 %v3583
        %v3721 = vunpack.c.l.b16 %v3584
        %v3722 = vunpack.c.l.b16 %v3585
        %v3723 = vunpack.c.l.b16 %v3586
        %v3724 = vunpack.c.l.b16 %v3587
        %v3725 = vunpack.c.l.b16 %v3588
        %v3726 = vunpack.c.l.b16 %v3589
        %v3727 = vunpack.c.l.b16 %v3590
        %v3728 = vunpack.c.l.b16 %v3591
        %v3729 = vunpack.c.l.b16 %v3592
        %v3730 = vunpack.c.l.b16 %v3593
        %v3731 = vunpack.c.l.b16 %v3594
        %v3732 = vunpack.c.l.b16 %v3595
        %v3733 = vunpack.c.l.b16 %v3596
        %v3734 = vunpack.c.l.b16 %v3597
        %v3735 = vunpack.c.l.b16 %v3598
        %v3736 = vunpack.c.l.b16 %v3599
        %v3737 = vunpack.c.l.b16 %v3600
        %v3738 = vunpack.c.l.b16 %v3601
        %v3739 = vunpack.c.l.b16 %v3602
        %v3740 = vunpack.c.l.b16 %v3603
        %v3741 = vunpack.c.l.b16 %v3604
        %v3742 = vunpack.c.l.b16 %v3605
        %v3743 = vunpack.c.l.b16 %v3606
        %v3744 = vunpack.c.l.b16 %v3607
        %v3745 = vunpack.c.l.b16 %v3608
        %v3746 = vunpack.c.l.b16 %v3609
        %v3747 = vunpack.c.l.b16 %v3610
        %v3748 = vunpack.c.l.b16 %v3611
        %v3749 = vunpack.c.l.b16 %v3612
        %v3750 = vunpack.c.l.b16 %v3613
        %v3751 = vunpack.c.l.b16 %v3614
        %v3752 = vunpack.c.l.b16 %v3615
        %v3753 = vunpack.c.l.b16 %v3616
        %v3754 = vunpack.c.l.b16 %v3617
        %v3755 = vunpack.c.l.b16 %v3618
        %v3756 = vunpack.c.l.b16 %v3619
        %v3757 = vunpack.c.l.b16 %v3620
        %v3758 = vpack.c.b16 %v3695, %v3694
        %v3759 = vpack.c.b16 %v3697, %v3696
        %v3760 = vpack.c.b16 %v3699, %v3698
        %v3761 = vpack.c.b16 %v3701, %v3700
        %v3762 = vpack.c.b16 %v3703, %v3702
        %v3763 = vpack.c.b16 %v3705, %v3704
        %v3764 = vpack.c.b16 %v3707, %v3706
        %v3765 = vpack.c.b16 %v3709, %v3708
        %v3766 = vpack.c.b16 %v3711, %v3710
        %v3767 = vpack.c.b16 %v3713, %v3712
        %v3768 = vpack.c.b16 %v3715, %v3714
        %v3769 = vpack.c.b16 %v3717, %v3716
        %v3770 = vpack.c.b16 %v3719, %v3718
        %v3771 = vpack.c.b16 %v3721, %v3720
        %v3772 = vpack.c.b16 %v3723, %v3722
        %v3773 = vpack.c.b16 %v3725, %v3724
        %v3774 = vpack.c.b16 %v3727, %v3726
        %v3775 = vpack.c.b16 %v3729, %v3728
        %v3776 = vpack.c.b16 %v3731, %v3730
        %v3777 = vpack.c.b16 %v3733, %v3732
        %v3778 = vpack.c.b16 %v3735, %v3734
        %v3779 = vpack.c.b16 %v3737, %v3736
        %v3780 = vpack.c.b16 %v3739, %v3738
        %v3781 = vpack.c.b16 %v3741, %v3740
        %v3782 = vpack.c.b16 %v3743, %v3742
        %v3783 = vpack.c.b16 %v3745, %v3744
        %v3784 = vpack.c.b16 %v3747, %v3746
        %v3785 = vpack.c.b16 %v3749, %v3748
        %v3786 = vpack.c.b16 %v3751, %v3750
        %v3787 = vpack.c.b16 %v3753, %v3752
        %v3788 = vpack.c.b16 %v3755, %v3754
        %v3789 = vpack.c.b16 %v3757, %v3756
        %3822 = vmatprep.subr.bf16.mxu0 0
        %3823 = vmatpush1.bf16.msra.mxu0 %v3758
        %3824 = vmatprep.subr.bf16.mxu0 0
        %3825 = vmatpush1.bf16.msra.mxu0 %v3759
        %3826 = vmatprep.subr.bf16.mxu0 0
        %3827 = vmatpush1.bf16.msra.mxu0 %v3760
        %3828 = vmatprep.subr.bf16.mxu0 0
        %3829 = vmatpush1.bf16.msra.mxu0 %v3761
        %3830 = vmatprep.subr.bf16.mxu0 0
        %3831 = vmatpush1.bf16.msra.mxu0 %v3762
        %3832 = vmatprep.subr.bf16.mxu0 0
        %3833 = vmatpush1.bf16.msra.mxu0 %v3763
        %3834 = vmatprep.subr.bf16.mxu0 0
        %3835 = vmatpush1.bf16.msra.mxu0 %v3764
        %3836 = vmatprep.subr.bf16.mxu0 0
        %3837 = vmatpush1.bf16.msra.mxu0 %v3765
        %3838 = vmatprep.subr.bf16.mxu0 0
        %3839 = vmatpush1.bf16.msra.mxu0 %v3766
        %3840 = vmatprep.subr.bf16.mxu0 0
        %3841 = vmatpush1.bf16.msra.mxu0 %v3767
        %3842 = vmatprep.subr.bf16.mxu0 0
        %3843 = vmatpush1.bf16.msra.mxu0 %v3768
        %3844 = vmatprep.subr.bf16.mxu0 0
        %3845 = vmatpush1.bf16.msra.mxu0 %v3769
        %3846 = vmatprep.subr.bf16.mxu0 0
        %3847 = vmatpush1.bf16.msra.mxu0 %v3770
        %3848 = vmatprep.subr.bf16.mxu0 0
        %3849 = vmatpush1.bf16.msra.mxu0 %v3771
        %3850 = vmatprep.subr.bf16.mxu0 0
        %3851 = vmatpush1.bf16.msra.mxu0 %v3772
        %3852 = vmatprep.subr.bf16.mxu0 0
        %3853 = vmatpush1.bf16.msra.mxu0 %v3773
        %3854 = vmatprep.mubr.bf16.mxu0 %v3622
        %3855 = vmatmul.mubr.bf16.gmra.mrb[0].mxu0 %v3621
        %v3856 = vpop.f32.mrb[0].mxu0
        %v3857 = vadd.f32 %v3629, %v3856
        %v3858 = vpop.f32.mrb[0].mxu0
        %v3859 = vpop.f32.mrb[0].mxu0
        %v3860 = vpop.f32.mrb[0].mxu0
        %3861 = vdwg.mxu0
        %3862 = vmatprep.subr.bf16.mxu0 0
        %3863 = vmatpush1.bf16.msra.mxu0 %v3774
        %3864 = vmatprep.subr.bf16.mxu0 0
        %3865 = vmatpush1.bf16.msra.mxu0 %v3775
        %3866 = vmatprep.subr.bf16.mxu0 0
        %3867 = vmatpush1.bf16.msra.mxu0 %v3776
        %3868 = vmatprep.subr.bf16.mxu0 0
        %3869 = vmatpush1.bf16.msra.mxu0 %v3777
        %3870 = vmatprep.subr.bf16.mxu0 0
        %3871 = vmatpush1.bf16.msra.mxu0 %v3778
        %3872 = vmatprep.subr.bf16.mxu0 0
        %3873 = vmatpush1.bf16.msra.mxu0 %v3779
        %3874 = vmatprep.subr.bf16.mxu0 0
        %3875 = vmatpush1.bf16.msra.mxu0 %v3780
        %3876 = vmatprep.subr.bf16.mxu0 0
        %3877 = vmatpush1.bf16.msra.mxu0 %v3781
        %3878 = vmatprep.subr.bf16.mxu0 0
        %3879 = vmatpush1.bf16.msra.mxu0 %v3782
        %3880 = vmatprep.subr.bf16.mxu0 0
        %3881 = vmatpush1.bf16.msra.mxu0 %v3783
        %3882 = vmatprep.subr.bf16.mxu0 0
        %3883 = vmatpush1.bf16.msra.mxu0 %v3784
        %3884 = vmatprep.subr.bf16.mxu0 0
        %3885 = vmatpush1.bf16.msra.mxu0 %v3785
        %3886 = vmatprep.subr.bf16.mxu0 0
        %3887 = vmatpush1.bf16.msra.mxu0 %v3786
        %3888 = vmatprep.subr.bf16.mxu0 0
        %3889 = vmatpush1.bf16.msra.mxu0 %v3787
        %3890 = vmatprep.subr.bf16.mxu0 0
        %3891 = vmatpush1.bf16.msra.mxu0 %v3788
        %3892 = vmatprep.subr.bf16.mxu0 0
        %3893 = vmatpush1.bf16.msra.mxu0 %v3789
        %3894 = vmatprep.mubr.bf16.mxu0 %v3624
        %3895 = vmatmul.mubr.bf16.gmra.mrb[0].mxu0 %v3623
        %v3896 = vpop.f32.mrb[0].mxu0
        %v3897 = vadd.f32 %v3857, %v3896
        %v3898 = vpop.f32.mrb[0].mxu0
        %v3899 = vpop.f32.mrb[0].mxu0
        %v3900 = vpop.f32.mrb[0].mxu0
        %3901 = vdwg.mxu0
        %v3902 = vadd.f32 %v3252, %v3897
        %v3903 = vld [vmem:[%s14 + $0x1] sm:$0x1]
        %v3904 = vld [vmem:[%s15 + $0x1] sm:$0x1]
        %3905 = vadd.xlane.f32.xlu0 %v3902
        %v3906 = vpop.xlane.xlu0 %3905
        %v3907 = vmul.f32 %v3906, %v1589
        %v3908 = vsub.f32 %v3902, %v3907
        %v3909 = vmul.f32 %v3908, %v3908
        %3910 = vadd.xlane.f32.xlu0 %v3909
        %v3911 = vpop.xlane.xlu0 %3910
        %v3912 = vmul.f32 %v3911, %v1589
        %v3913 = vadd.f32 %v3912, 1e-05
        %v3914 = vrsqrt.pop %v3913
        %v3915 = vmul.f32 %v3908, %v3914
        %v3916 = vlaneseq
        %v3917 = vshrl.u32 %v3916, 7
        %v3918 = vsub.s32 0, %v3917
        %v3919 = vrot.slane %v3903, %v3918
        %v3920 = vmul.f32 %v3915, %v3919
        %v3921 = vlaneseq
        %v3922 = vshrl.u32 %v3921, 7
        %v3923 = vsub.s32 0, %v3922
        %v3924 = vrot.slane %v3904, %v3923
        %v3925 = vadd.f32 %v3920, %v3924
        %s3926 = scalar_lea.vmem %s4, 384
        %v3927 = vld [vmem:[%s3926] sm:$0xff]
        %v3928 = vld [vmem:[%s3926 + $0x8] sm:$0xf]
        %v3929 = vld [vmem:[%s3926 + $0xc] sm:$0xff]
        %v3930 = vld [vmem:[%s3926 + $0x14] sm:$0xf]
        %v3931 = vld [vmem:[%s3926 + $0x18] sm:$0xff]
        %v3932 = vld [vmem:[%s3926 + $0x20] sm:$0xf]
        %v3933 = vld [vmem:[%s3926 + $0x24] sm:$0xff]
        %v3934 = vld [vmem:[%s3926 + $0x2c] sm:$0xf]
        %v3935 = vld [vmem:[%s3926 + $0x30] sm:$0xff]
        %v3936 = vld [vmem:[%s3926 + $0x38] sm:$0xf]
        %v3937 = vld [vmem:[%s3926 + $0x3c] sm:$0xff]
        %v3938 = vld [vmem:[%s3926 + $0x44] sm:$0xf]
        %v3939 = vld [vmem:[%s3926 + $0x48] sm:$0xff]
        %v3940 = vld [vmem:[%s3926 + $0x50] sm:$0xf]
        %v3941 = vld [vmem:[%s3926 + $0x54] sm:$0xff]
        %v3942 = vld [vmem:[%s3926 + $0x5c] sm:$0xf]
        %v3943 = vld [vmem:[%s3926 + $0x60] sm:$0xff]
        %v3944 = vld [vmem:[%s3926 + $0x68] sm:$0xf]
        %v3945 = vld [vmem:[%s3926 + $0x6c] sm:$0xff]
        %v3946 = vld [vmem:[%s3926 + $0x74] sm:$0xf]
        %v3947 = vld [vmem:[%s3926 + $0x78] sm:$0xff]
        %v3948 = vld [vmem:[%s3926 + $0x80] sm:$0xf]
        %v3949 = vld [vmem:[%s3926 + $0x84] sm:$0xff]
        %v3950 = vld [vmem:[%s3926 + $0x8c] sm:$0xf]
        %v3951 = vld [vmem:[%s3926 + $0x90] sm:$0xff]
        %v3952 = vld [vmem:[%s3926 + $0x98] sm:$0xf]
        %v3953 = vld [vmem:[%s3926 + $0x9c] sm:$0xff]
        %v3954 = vld [vmem:[%s3926 + $0xa4] sm:$0xf]
        %v3955 = vld [vmem:[%s3926 + $0xa8] sm:$0xff]
        %v3956 = vld [vmem:[%s3926 + $0xb0] sm:$0xf]
        %v3957 = vld [vmem:[%s3926 + $0xb4] sm:$0xff]
        %v3958 = vld [vmem:[%s3926 + $0xbc] sm:$0xf]
        %v3959 = vpack.c.bf16 %v3925, %v3925
        %s3960 = scalar_lea.vmem %s5, 2
        %v3961 = vld [vmem:[%s3960] ss:$4 sm:$0x7]
        %v3963 = vlaneseq
        %v3964 = vshrl.u32 %v3963, 7
        %v3965 = vsub.s32 0, %v3964
        %v3966 = vrot.slane %v3961, %v3965
        %v3967 = vlaneseq
        %v3968 = vshrl.u32 %v3967, 7
        %v3969 = vsub.s32 1, %v3968
        %v3970 = vrot.slane %v3961, %v3969
        %v3971 = vlaneseq
        %v3972 = vshrl.u32 %v3971, 7
        %v3973 = vsub.s32 2, %v3972
        %v3974 = vrot.slane %v3961, %v3973
        %v4010 = vunpack.c.l.b16 %v3927
        %v4011 = vunpack.c.h.b16 %v3927
        %v4012 = vunpack.c.l.b16 %v3928
        %v4013 = vunpack.c.l.b16 %v3929
        %v4014 = vunpack.c.h.b16 %v3929
        %v4015 = vunpack.c.l.b16 %v3930
        %v4016 = vunpack.c.l.b16 %v3931
        %v4017 = vunpack.c.h.b16 %v3931
        %v4018 = vunpack.c.l.b16 %v3932
        %v4019 = vunpack.c.l.b16 %v3933
        %v4020 = vunpack.c.h.b16 %v3933
        %v4021 = vunpack.c.l.b16 %v3934
        %v4022 = vunpack.c.l.b16 %v3935
        %v4023 = vunpack.c.h.b16 %v3935
        %v4024 = vunpack.c.l.b16 %v3936
        %v4025 = vunpack.c.l.b16 %v3937
        %v4026 = vunpack.c.h.b16 %v3937
        %v4027 = vunpack.c.l.b16 %v3938
        %v4028 = vunpack.c.l.b16 %v3939
        %v4029 = vunpack.c.h.b16 %v3939
        %v4030 = vunpack.c.l.b16 %v3940
        %v4031 = vunpack.c.l.b16 %v3941
        %v4032 = vunpack.c.h.b16 %v3941
        %v4033 = vunpack.c.l.b16 %v3942
        %v4034 = vunpack.c.l.b16 %v3943
        %v4035 = vunpack.c.h.b16 %v3943
        %v4036 = vunpack.c.l.b16 %v3944
        %v4037 = vunpack.c.l.b16 %v3945
        %v4038 = vunpack.c.h.b16 %v3945
        %v4039 = vunpack.c.l.b16 %v3946
        %v4040 = vunpack.c.l.b16 %v3947
        %v4041 = vunpack.c.h.b16 %v3947
        %v4042 = vunpack.c.l.b16 %v3948
        %v4043 = vunpack.c.l.b16 %v3949
        %v4044 = vunpack.c.h.b16 %v3949
        %v4045 = vunpack.c.l.b16 %v3950
        %v4046 = vunpack.c.l.b16 %v3951
        %v4047 = vunpack.c.h.b16 %v3951
        %v4048 = vunpack.c.l.b16 %v3952
        %v4049 = vunpack.c.l.b16 %v3953
        %v4050 = vunpack.c.h.b16 %v3953
        %v4051 = vunpack.c.l.b16 %v3954
        %v4052 = vunpack.c.l.b16 %v3955
        %v4053 = vunpack.c.h.b16 %v3955
        %v4054 = vunpack.c.l.b16 %v3956
        %v4055 = vunpack.c.l.b16 %v3957
        %v4056 = vunpack.c.h.b16 %v3957
        %v4057 = vunpack.c.l.b16 %v3958
        %v4058 = vpack.c.b16 %v4013, %v4010
        %v4059 = vpack.c.b16 %v4014, %v4011
        %v4060 = vpack.c.b16 %v4015, %v4012
        %v4061 = vpack.c.b16 %v4019, %v4016
        %v4062 = vpack.c.b16 %v4020, %v4017
        %v4063 = vpack.c.b16 %v4021, %v4018
        %v4064 = vpack.c.b16 %v4025, %v4022
        %v4065 = vpack.c.b16 %v4026, %v4023
        %v4066 = vpack.c.b16 %v4027, %v4024
        %v4067 = vpack.c.b16 %v4031, %v4028
        %v4068 = vpack.c.b16 %v4032, %v4029
        %v4069 = vpack.c.b16 %v4033, %v4030
        %v4070 = vpack.c.b16 %v4037, %v4034
        %v4071 = vpack.c.b16 %v4038, %v4035
        %v4072 = vpack.c.b16 %v4039, %v4036
        %v4073 = vpack.c.b16 %v4043, %v4040
        %v4074 = vpack.c.b16 %v4044, %v4041
        %v4075 = vpack.c.b16 %v4045, %v4042
        %v4076 = vpack.c.b16 %v4049, %v4046
        %v4077 = vpack.c.b16 %v4050, %v4047
        %v4078 = vpack.c.b16 %v4051, %v4048
        %v4079 = vpack.c.b16 %v4055, %v4052
        %v4080 = vpack.c.b16 %v4056, %v4053
        %v4081 = vpack.c.b16 %v4057, %v4054
        %4106 = vmatprep.subr.bf16.mxu0 %v4059
        %4107 = vmatpush1.bf16.msra.mxu0 %v4058
        %4108 = vmatprep.subr.bf16.mxu0 %v4062
        %4109 = vmatpush1.bf16.msra.mxu0 %v4061
        %4110 = vmatprep.subr.bf16.mxu0 %v4065
        %4111 = vmatpush1.bf16.msra.mxu0 %v4064
        %4112 = vmatprep.subr.bf16.mxu0 %v4068
        %4113 = vmatpush1.bf16.msra.mxu0 %v4067
        %4114 = vmatprep.subr.bf16.mxu0 %v4071
        %4115 = vmatpush1.bf16.msra.mxu0 %v4070
        %4116 = vmatprep.subr.bf16.mxu0 %v4074
        %4117 = vmatpush1.bf16.msra.mxu0 %v4073
        %4118 = vmatprep.subr.bf16.mxu0 %v4077
        %4119 = vmatpush1.bf16.msra.mxu0 %v4076
        %4120 = vmatprep.subr.bf16.mxu0 %v4080
        %4121 = vmatpush1.bf16.msra.mxu0 %v4079
        %4122 = vmatprep.subr.bf16.mxu0 0
        %4123 = vmatpush1.bf16.msra.mxu0 0
        %4124 = vmatprep.subr.bf16.mxu0 0
        %4125 = vmatpush1.bf16.msra.mxu0 0
        %4126 = vmatprep.subr.bf16.mxu0 0
        %4127 = vmatpush1.bf16.msra.mxu0 0
        %4128 = vmatprep.subr.bf16.mxu0 0
        %4129 = vmatpush1.bf16.msra.mxu0 0
        %4130 = vmatprep.subr.bf16.mxu0 0
        %4131 = vmatpush1.bf16.msra.mxu0 0
        %4132 = vmatprep.subr.bf16.mxu0 0
        %4133 = vmatpush1.bf16.msra.mxu0 0
        %4134 = vmatprep.subr.bf16.mxu0 0
        %4135 = vmatpush1.bf16.msra.mxu0 0
        %4136 = vmatprep.subr.bf16.mxu0 0
        %4137 = vmatpush1.bf16.msra.mxu0 0
        %4138 = vmatprep.mubr.bf16.mxu0 0
        %4139 = vmatmul.mubr.bf16.gmra.mrb[0].mxu0 %v3959
        %v4140 = vpop.f32.mrb[0].mxu0
        %v4141 = vadd.f32 %v3966, %v4140
        %v4142 = vpop.f32.mrb[0].mxu0
        %v4143 = vadd.f32 %v3970, %v4142
        %v4144 = vpop.f32.mrb[0].mxu0
        %v4145 = vpop.f32.mrb[0].mxu0
        %4146 = vdwg.mxu0
        %4147 = vmatprep.subr.bf16.mxu0 0
        %4148 = vmatpush1.bf16.msra.mxu0 %v4060
        %4149 = vmatprep.subr.bf16.mxu0 0
        %4150 = vmatpush1.bf16.msra.mxu0 %v4063
        %4151 = vmatprep.subr.bf16.mxu0 0
        %4152 = vmatpush1.bf16.msra.mxu0 %v4066
        %4153 = vmatprep.subr.bf16.mxu0 0
        %4154 = vmatpush1.bf16.msra.mxu0 %v4069
        %4155 = vmatprep.subr.bf16.mxu0 0
        %4156 = vmatpush1.bf16.msra.mxu0 %v4072
        %4157 = vmatprep.subr.bf16.mxu0 0
        %4158 = vmatpush1.bf16.msra.mxu0 %v4075
        %4159 = vmatprep.subr.bf16.mxu0 0
        %4160 = vmatpush1.bf16.msra.mxu0 %v4078
        %4161 = vmatprep.subr.bf16.mxu0 0
        %4162 = vmatpush1.bf16.msra.mxu0 %v4081
        %4163 = vmatprep.subr.bf16.mxu0 0
        %4164 = vmatpush1.bf16.msra.mxu0 0
        %4165 = vmatprep.subr.bf16.mxu0 0
        %4166 = vmatpush1.bf16.msra.mxu0 0
        %4167 = vmatprep.subr.bf16.mxu0 0
        %4168 = vmatpush1.bf16.msra.mxu0 0
        %4169 = vmatprep.subr.bf16.mxu0 0
        %4170 = vmatpush1.bf16.msra.mxu0 0
        %4171 = vmatprep.subr.bf16.mxu0 0
        %4172 = vmatpush1.bf16.msra.mxu0 0
        %4173 = vmatprep.subr.bf16.mxu0 0
        %4174 = vmatpush1.bf16.msra.mxu0 0
        %4175 = vmatprep.subr.bf16.mxu0 0
        %4176 = vmatpush1.bf16.msra.mxu0 0
        %4177 = vmatprep.subr.bf16.mxu0 0
        %4178 = vmatpush1.bf16.msra.mxu0 0
        %4179 = vmatprep.mubr.bf16.mxu0 0
        %4180 = vmatmul.mubr.bf16.gmra.mrb[0].mxu0 %v3959
        %v4181 = vpop.f32.mrb[0].mxu0
        %v4182 = vadd.f32 %v3974, %v4181
        %v4183 = vpop.f32.mrb[0].mxu0
        %v4184 = vpop.f32.mrb[0].mxu0
        %v4185 = vpop.f32.mrb[0].mxu0
        %4186 = vdwg.mxu0
        %s4187 = scalar_lea.vmem %s6, 128
        %v4188 = vld [vmem:[%s4187] sm:$0xf]
        %v4189 = vld [vmem:[%s4187 + $0x4] sm:$0xf]
        %v4190 = vld [vmem:[%s4187 + $0x8] sm:$0xf]
        %v4191 = vld [vmem:[%s4187 + $0xc] sm:$0xf]
        %v4192 = vld [vmem:[%s4187 + $0x10] sm:$0xf]
        %v4193 = vld [vmem:[%s4187 + $0x14] sm:$0xf]
        %v4194 = vld [vmem:[%s4187 + $0x18] sm:$0xf]
        %v4195 = vld [vmem:[%s4187 + $0x1c] sm:$0xf]
        %v4196 = vld [vmem:[%s4187 + $0x20] sm:$0xf]
        %v4197 = vld [vmem:[%s4187 + $0x24] sm:$0xf]
        %v4198 = vld [vmem:[%s4187 + $0x28] sm:$0xf]
        %v4199 = vld [vmem:[%s4187 + $0x2c] sm:$0xf]
        %v4200 = vld [vmem:[%s4187 + $0x30] sm:$0xf]
        %v4201 = vld [vmem:[%s4187 + $0x34] sm:$0xf]
        %v4202 = vld [vmem:[%s4187 + $0x38] sm:$0xf]
        %v4203 = vld [vmem:[%s4187 + $0x3c] sm:$0xf]
        %v4204 = vpack.c.bf16 %v4141, %v4141
        %v4205 = vpack.c.bf16 %v4143, %v4143
        %v4206 = vpack.c.bf16 %v4182, %v4182
        %v4208 = vsel %vm588, %v4204, 0
        %v4211 = vsel %vm588, %v4205, 0
        %4213 = vmatprep.subr.bf16.mxu0 0
        %4214 = vmatpush1.bf16.xpose.msra.mxu0 %v4211
        %4215 = vmatprep.subr.bf16.mxu0 0
        %4216 = vmatpush1.bf16.xpose.msra.mxu0 0
        %4217 = vmatprep.subr.bf16.mxu0 0
        %4218 = vmatpush1.bf16.xpose.msra.mxu0 0
        %4219 = vmatprep.subr.bf16.mxu0 0
        %4220 = vmatpush1.bf16.xpose.msra.mxu0 0
        %4221 = vmatprep.subr.bf16.mxu0 0
        %4222 = vmatpush1.bf16.xpose.msra.mxu0 0
        %4223 = vmatprep.subr.bf16.mxu0 0
        %4224 = vmatpush1.bf16.xpose.msra.mxu0 0
        %4225 = vmatprep.subr.bf16.mxu0 0
        %4226 = vmatpush1.bf16.xpose.msra.mxu0 0
        %4227 = vmatprep.subr.bf16.mxu0 0
        %4228 = vmatpush1.bf16.xpose.msra.mxu0 0
        %4229 = vmatprep.subr.bf16.mxu0 0
        %4230 = vmatpush1.bf16.xpose.msra.mxu0 0
        %4231 = vmatprep.subr.bf16.mxu0 0
        %4232 = vmatpush1.bf16.xpose.msra.mxu0 0
        %4233 = vmatprep.subr.bf16.mxu0 0
        %4234 = vmatpush1.bf16.xpose.msra.mxu0 0
        %4235 = vmatprep.subr.bf16.mxu0 0
        %4236 = vmatpush1.bf16.xpose.msra.mxu0 0
        %4237 = vmatprep.subr.bf16.mxu0 0
        %4238 = vmatpush1.bf16.xpose.msra.mxu0 0
        %4239 = vmatprep.subr.bf16.mxu0 0
        %4240 = vmatpush1.bf16.xpose.msra.mxu0 0
        %4241 = vmatprep.subr.bf16.mxu0 0
        %4242 = vmatpush1.bf16.xpose.msra.mxu0 0
        %4243 = vmatprep.subr.bf16.mxu0 0
        %4244 = vmatpush1.bf16.xpose.msra.mxu0 0
        %4245 = vmatprep.mubr.bf16.mxu0 0
        %4246 = vmatmul.mubr.bf16.gmra.mrb[0].mxu0 %v4208
        %v4247 = vpop.f32.mrb[0].mxu0
        %v4248 = vadd.f32 %v634, %v4247
        %v4249 = vpop.f32.mrb[0].mxu0
        %v4250 = vpop.f32.mrb[0].mxu0
        %v4251 = vpop.f32.mrb[0].mxu0
        %4252 = vdwg.mxu0
        %v4253 = vsel %vm959, %v4248, -inf
        %4254 = vmax.xlane.f32.xlu0 %v4253
        %v4255 = vpop.xlane.xlu0 %4254
        %v4256 = vsub.f32 %v4248, %v4255
        %v4257 = vmul.f32 %v4256, 1.442695
        %v4258 = vpow.pop %v4257
        %v4259 = vsel %vm959, %v4258, 0.0
        %4260 = vadd.xlane.f32.xlu0 %v4259
        %v4261 = vpop.xlane.xlu0 %4260
        %v4262 = vrcp.pop %v4261
        %v4263 = vmul.f32 %v4258, %v4262
        %v4264 = vpack.c.bf16 %v4263, %v4263
        %v4266 = vsel %vm959, %v4264, 0
        %v4269 = vsel %vm975, %v4206, 0
        %4271 = vmatprep.subr.bf16.mxu0 0
        %4272 = vmatpush1.bf16.msra.mxu0 %v4269
        %4273 = vmatprep.subr.bf16.mxu0 0
        %4274 = vmatpush1.bf16.msra.mxu0 0
        %4275 = vmatprep.subr.bf16.mxu0 0
        %4276 = vmatpush1.bf16.msra.mxu0 0
        %4277 = vmatprep.subr.bf16.mxu0 0
        %4278 = vmatpush1.bf16.msra.mxu0 0
        %4279 = vmatprep.subr.bf16.mxu0 0
        %4280 = vmatpush1.bf16.msra.mxu0 0
        %4281 = vmatprep.subr.bf16.mxu0 0
        %4282 = vmatpush1.bf16.msra.mxu0 0
        %4283 = vmatprep.subr.bf16.mxu0 0
        %4284 = vmatpush1.bf16.msra.mxu0 0
        %4285 = vmatprep.subr.bf16.mxu0 0
        %4286 = vmatpush1.bf16.msra.mxu0 0
        %4287 = vmatprep.subr.bf16.mxu0 0
        %4288 = vmatpush1.bf16.msra.mxu0 0
        %4289 = vmatprep.subr.bf16.mxu0 0
        %4290 = vmatpush1.bf16.msra.mxu0 0
        %4291 = vmatprep.subr.bf16.mxu0 0
        %4292 = vmatpush1.bf16.msra.mxu0 0
        %4293 = vmatprep.subr.bf16.mxu0 0
        %4294 = vmatpush1.bf16.msra.mxu0 0
        %4295 = vmatprep.subr.bf16.mxu0 0
        %4296 = vmatpush1.bf16.msra.mxu0 0
        %4297 = vmatprep.subr.bf16.mxu0 0
        %4298 = vmatpush1.bf16.msra.mxu0 0
        %4299 = vmatprep.subr.bf16.mxu0 0
        %4300 = vmatpush1.bf16.msra.mxu0 0
        %4301 = vmatprep.subr.bf16.mxu0 0
        %4302 = vmatpush1.bf16.msra.mxu0 0
        %4303 = vmatprep.mubr.bf16.mxu0 0
        %4304 = vmatmul.mubr.bf16.gmra.mrb[0].mxu0 %v4266
        %v4305 = vpop.f32.mrb[0].mxu0
        %v4306 = vadd.f32 0.0, %v4305
        %v4307 = vpop.f32.mrb[0].mxu0
        %v4308 = vpop.f32.mrb[0].mxu0
        %v4309 = vpop.f32.mrb[0].mxu0
        %4310 = vdwg.mxu0
        %v4311 = vpack.c.bf16 %v4306, %v4306
        %4313 = vrot.lane.b32.xlu0 %v4204, 96
        %v4314 = vpop.permute.xlu0 %4313
        %4316 = vrot.lane.b32.xlu0 %v4205, 96
        %v4317 = vpop.permute.xlu0 %4316
        %v4319 = vsel %vm588, %v4314, 0
        %v4322 = vsel %vm588, %v4317, 0
        %4324 = vmatprep.subr.bf16.mxu0 0
        %4325 = vmatpush1.bf16.xpose.msra.mxu0 %v4322
        %4326 = vmatprep.subr.bf16.mxu0 0
        %4327 = vmatpush1.bf16.xpose.msra.mxu0 0
        %4328 = vmatprep.subr.bf16.mxu0 0
        %4329 = vmatpush1.bf16.xpose.msra.mxu0 0
        %4330 = vmatprep.subr.bf16.mxu0 0
        %4331 = vmatpush1.bf16.xpose.msra.mxu0 0
        %4332 = vmatprep.subr.bf16.mxu0 0
        %4333 = vmatpush1.bf16.xpose.msra.mxu0 0
        %4334 = vmatprep.subr.bf16.mxu0 0
        %4335 = vmatpush1.bf16.xpose.msra.mxu0 0
        %4336 = vmatprep.subr.bf16.mxu0 0
        %4337 = vmatpush1.bf16.xpose.msra.mxu0 0
        %4338 = vmatprep.subr.bf16.mxu0 0
        %4339 = vmatpush1.bf16.xpose.msra.mxu0 0
        %4340 = vmatprep.subr.bf16.mxu0 0
        %4341 = vmatpush1.bf16.xpose.msra.mxu0 0
        %4342 = vmatprep.subr.bf16.mxu0 0
        %4343 = vmatpush1.bf16.xpose.msra.mxu0 0
        %4344 = vmatprep.subr.bf16.mxu0 0
        %4345 = vmatpush1.bf16.xpose.msra.mxu0 0
        %4346 = vmatprep.subr.bf16.mxu0 0
        %4347 = vmatpush1.bf16.xpose.msra.mxu0 0
        %4348 = vmatprep.subr.bf16.mxu0 0
        %4349 = vmatpush1.bf16.xpose.msra.mxu0 0
        %4350 = vmatprep.subr.bf16.mxu0 0
        %4351 = vmatpush1.bf16.xpose.msra.mxu0 0
        %4352 = vmatprep.subr.bf16.mxu0 0
        %4353 = vmatpush1.bf16.xpose.msra.mxu0 0
        %4354 = vmatprep.subr.bf16.mxu0 0
        %4355 = vmatpush1.bf16.xpose.msra.mxu0 0
        %4356 = vmatprep.mubr.bf16.mxu0 0
        %4357 = vmatmul.mubr.bf16.gmra.mrb[0].mxu0 %v4319
        %v4358 = vpop.f32.mrb[0].mxu0
        %v4359 = vadd.f32 %v634, %v4358
        %v4360 = vpop.f32.mrb[0].mxu0
        %v4361 = vpop.f32.mrb[0].mxu0
        %v4362 = vpop.f32.mrb[0].mxu0
        %4363 = vdwg.mxu0
        %v4364 = vsel %vm959, %v4359, -inf
        %4365 = vmax.xlane.f32.xlu0 %v4364
        %v4366 = vpop.xlane.xlu0 %4365
        %v4367 = vsub.f32 %v4359, %v4366
        %v4368 = vmul.f32 %v4367, 1.442695
        %v4369 = vpow.pop %v4368
        %v4370 = vsel %vm959, %v4369, 0.0
        %4371 = vadd.xlane.f32.xlu0 %v4370
        %v4372 = vpop.xlane.xlu0 %4371
        %v4373 = vrcp.pop %v4372
        %v4374 = vmul.f32 %v4369, %v4373
        %v4375 = vpack.c.bf16 %v4374, %v4374
        %4377 = vrot.lane.b32.xlu0 %v4206, 96
        %v4378 = vpop.permute.xlu0 %4377
        %v4380 = vsel %vm959, %v4375, 0
        %v4383 = vsel %vm975, %v4378, 0
        %4385 = vmatprep.subr.bf16.mxu0 0
        %4386 = vmatpush1.bf16.msra.mxu0 %v4383
        %4387 = vmatprep.subr.bf16.mxu0 0
        %4388 = vmatpush1.bf16.msra.mxu0 0
        %4389 = vmatprep.subr.bf16.mxu0 0
        %4390 = vmatpush1.bf16.msra.mxu0 0
        %4391 = vmatprep.subr.bf16.mxu0 0
        %4392 = vmatpush1.bf16.msra.mxu0 0
        %4393 = vmatprep.subr.bf16.mxu0 0
        %4394 = vmatpush1.bf16.msra.mxu0 0
        %4395 = vmatprep.subr.bf16.mxu0 0
        %4396 = vmatpush1.bf16.msra.mxu0 0
        %4397 = vmatprep.subr.bf16.mxu0 0
        %4398 = vmatpush1.bf16.msra.mxu0 0
        %4399 = vmatprep.subr.bf16.mxu0 0
        %4400 = vmatpush1.bf16.msra.mxu0 0
        %4401 = vmatprep.subr.bf16.mxu0 0
        %4402 = vmatpush1.bf16.msra.mxu0 0
        %4403 = vmatprep.subr.bf16.mxu0 0
        %4404 = vmatpush1.bf16.msra.mxu0 0
        %4405 = vmatprep.subr.bf16.mxu0 0
        %4406 = vmatpush1.bf16.msra.mxu0 0
        %4407 = vmatprep.subr.bf16.mxu0 0
        %4408 = vmatpush1.bf16.msra.mxu0 0
        %4409 = vmatprep.subr.bf16.mxu0 0
        %4410 = vmatpush1.bf16.msra.mxu0 0
        %4411 = vmatprep.subr.bf16.mxu0 0
        %4412 = vmatpush1.bf16.msra.mxu0 0
        %4413 = vmatprep.subr.bf16.mxu0 0
        %4414 = vmatpush1.bf16.msra.mxu0 0
        %4415 = vmatprep.subr.bf16.mxu0 0
        %4416 = vmatpush1.bf16.msra.mxu0 0
        %4417 = vmatprep.mubr.bf16.mxu0 0
        %4418 = vmatmul.mubr.bf16.gmra.mrb[0].mxu0 %v4380
        %v4419 = vpop.f32.mrb[0].mxu0
        %v4420 = vadd.f32 0.0, %v4419
        %v4421 = vpop.f32.mrb[0].mxu0
        %v4422 = vpop.f32.mrb[0].mxu0
        %v4423 = vpop.f32.mrb[0].mxu0
        %4424 = vdwg.mxu0
        %v4425 = vpack.c.bf16 %v4420, %v4420
        %v4430 = vunpack.c.l.b16 %v4192
        %v4431 = vunpack.c.l.b16 %v4193
        %v4432 = vunpack.c.l.b16 %v4194
        %v4433 = vunpack.c.l.b16 %v4195
        %v4434 = vpack.c.b16 %v4431, %v4430
        %v4435 = vpack.c.b16 %v4433, %v4432
        %v4439 = vsel %vm588, %v4425, 0
        %4441 = vmatprep.subr.bf16.mxu0 0
        %4442 = vmatpush1.bf16.msra.mxu0 %v4434
        %4443 = vmatprep.subr.bf16.mxu0 0
        %4444 = vmatpush1.bf16.msra.mxu0 %v4435
        %4445 = vmatprep.subr.bf16.mxu0 0
        %4446 = vmatpush1.bf16.msra.mxu0 0
        %4447 = vmatprep.subr.bf16.mxu0 0
        %4448 = vmatpush1.bf16.msra.mxu0 0
        %4449 = vmatprep.subr.bf16.mxu0 0
        %4450 = vmatpush1.bf16.msra.mxu0 0
        %4451 = vmatprep.subr.bf16.mxu0 0
        %4452 = vmatpush1.bf16.msra.mxu0 0
        %4453 = vmatprep.subr.bf16.mxu0 0
        %4454 = vmatpush1.bf16.msra.mxu0 0
        %4455 = vmatprep.subr.bf16.mxu0 0
        %4456 = vmatpush1.bf16.msra.mxu0 0
        %4457 = vmatprep.subr.bf16.mxu0 0
        %4458 = vmatpush1.bf16.msra.mxu0 0
        %4459 = vmatprep.subr.bf16.mxu0 0
        %4460 = vmatpush1.bf16.msra.mxu0 0
        %4461 = vmatprep.subr.bf16.mxu0 0
        %4462 = vmatpush1.bf16.msra.mxu0 0
        %4463 = vmatprep.subr.bf16.mxu0 0
        %4464 = vmatpush1.bf16.msra.mxu0 0
        %4465 = vmatprep.subr.bf16.mxu0 0
        %4466 = vmatpush1.bf16.msra.mxu0 0
        %4467 = vmatprep.subr.bf16.mxu0 0
        %4468 = vmatpush1.bf16.msra.mxu0 0
        %4469 = vmatprep.subr.bf16.mxu0 0
        %4470 = vmatpush1.bf16.msra.mxu0 0
        %4471 = vmatprep.subr.bf16.mxu0 0
        %4472 = vmatpush1.bf16.msra.mxu0 0
        %4473 = vmatprep.mubr.bf16.mxu0 0
        %4474 = vmatmul.mubr.bf16.gmra.mrb[0].mxu0 %v4439
        %v4475 = vpop.f32.mrb[0].mxu0
        %v4476 = vadd.f32 0.0, %v4475
        %v4477 = vpop.f32.mrb[0].mxu0
        %v4478 = vpop.f32.mrb[0].mxu0
        %v4479 = vpop.f32.mrb[0].mxu0
        %4480 = vdwg.mxu0
        %v4485 = vunpack.c.l.b16 %v4188
        %v4486 = vunpack.c.l.b16 %v4189
        %v4487 = vunpack.c.l.b16 %v4190
        %v4488 = vunpack.c.l.b16 %v4191
        %v4489 = vpack.c.b16 %v4486, %v4485
        %v4490 = vpack.c.b16 %v4488, %v4487
        %v4494 = vsel %vm588, %v4311, 0
        %4496 = vmatprep.subr.bf16.mxu0 0
        %4497 = vmatpush1.bf16.msra.mxu0 %v4489
        %4498 = vmatprep.subr.bf16.mxu0 0
        %4499 = vmatpush1.bf16.msra.mxu0 %v4490
        %4500 = vmatprep.subr.bf16.mxu0 0
        %4501 = vmatpush1.bf16.msra.mxu0 0
        %4502 = vmatprep.subr.bf16.mxu0 0
        %4503 = vmatpush1.bf16.msra.mxu0 0
        %4504 = vmatprep.subr.bf16.mxu0 0
        %4505 = vmatpush1.bf16.msra.mxu0 0
        %4506 = vmatprep.subr.bf16.mxu0 0
        %4507 = vmatpush1.bf16.msra.mxu0 0
        %4508 = vmatprep.subr.bf16.mxu0 0
        %4509 = vmatpush1.bf16.msra.mxu0 0
        %4510 = vmatprep.subr.bf16.mxu0 0
        %4511 = vmatpush1.bf16.msra.mxu0 0
        %4512 = vmatprep.subr.bf16.mxu0 0
        %4513 = vmatpush1.bf16.msra.mxu0 0
        %4514 = vmatprep.subr.bf16.mxu0 0
        %4515 = vmatpush1.bf16.msra.mxu0 0
        %4516 = vmatprep.subr.bf16.mxu0 0
        %4517 = vmatpush1.bf16.msra.mxu0 0
        %4518 = vmatprep.subr.bf16.mxu0 0
        %4519 = vmatpush1.bf16.msra.mxu0 0
        %4520 = vmatprep.subr.bf16.mxu0 0
        %4521 = vmatpush1.bf16.msra.mxu0 0
        %4522 = vmatprep.subr.bf16.mxu0 0
        %4523 = vmatpush1.bf16.msra.mxu0 0
        %4524 = vmatprep.subr.bf16.mxu0 0
        %4525 = vmatpush1.bf16.msra.mxu0 0
        %4526 = vmatprep.subr.bf16.mxu0 0
        %4527 = vmatpush1.bf16.msra.mxu0 0
        %4528 = vmatprep.mubr.bf16.mxu0 0
        %4529 = vmatmul.mubr.bf16.gmra.mrb[0].mxu0 %v4494
        %v4530 = vpop.f32.mrb[0].mxu0
        %v4531 = vadd.f32 %v4476, %v4530
        %v4532 = vpop.f32.mrb[0].mxu0
        %v4533 = vpop.f32.mrb[0].mxu0
        %v4534 = vpop.f32.mrb[0].mxu0
        %4535 = vdwg.mxu0
        %4536 = vrot.lane.b32.xlu0 %v4204, 64
        %v4537 = vpop.permute.xlu0 %4536
        %4538 = vrot.lane.b32.xlu0 %v4205, 64
        %v4539 = vpop.permute.xlu0 %4538
        %v4541 = vsel %vm588, %v4537, 0
        %v4544 = vsel %vm588, %v4539, 0
        %4546 = vmatprep.subr.bf16.mxu0 0
        %4547 = vmatpush1.bf16.xpose.msra.mxu0 %v4544
        %4548 = vmatprep.subr.bf16.mxu0 0
        %4549 = vmatpush1.bf16.xpose.msra.mxu0 0
        %4550 = vmatprep.subr.bf16.mxu0 0
        %4551 = vmatpush1.bf16.xpose.msra.mxu0 0
        %4552 = vmatprep.subr.bf16.mxu0 0
        %4553 = vmatpush1.bf16.xpose.msra.mxu0 0
        %4554 = vmatprep.subr.bf16.mxu0 0
        %4555 = vmatpush1.bf16.xpose.msra.mxu0 0
        %4556 = vmatprep.subr.bf16.mxu0 0
        %4557 = vmatpush1.bf16.xpose.msra.mxu0 0
        %4558 = vmatprep.subr.bf16.mxu0 0
        %4559 = vmatpush1.bf16.xpose.msra.mxu0 0
        %4560 = vmatprep.subr.bf16.mxu0 0
        %4561 = vmatpush1.bf16.xpose.msra.mxu0 0
        %4562 = vmatprep.subr.bf16.mxu0 0
        %4563 = vmatpush1.bf16.xpose.msra.mxu0 0
        %4564 = vmatprep.subr.bf16.mxu0 0
        %4565 = vmatpush1.bf16.xpose.msra.mxu0 0
        %4566 = vmatprep.subr.bf16.mxu0 0
        %4567 = vmatpush1.bf16.xpose.msra.mxu0 0
        %4568 = vmatprep.subr.bf16.mxu0 0
        %4569 = vmatpush1.bf16.xpose.msra.mxu0 0
        %4570 = vmatprep.subr.bf16.mxu0 0
        %4571 = vmatpush1.bf16.xpose.msra.mxu0 0
        %4572 = vmatprep.subr.bf16.mxu0 0
        %4573 = vmatpush1.bf16.xpose.msra.mxu0 0
        %4574 = vmatprep.subr.bf16.mxu0 0
        %4575 = vmatpush1.bf16.xpose.msra.mxu0 0
        %4576 = vmatprep.subr.bf16.mxu0 0
        %4577 = vmatpush1.bf16.xpose.msra.mxu0 0
        %4578 = vmatprep.mubr.bf16.mxu0 0
        %4579 = vmatmul.mubr.bf16.gmra.mrb[0].mxu0 %v4541
        %v4580 = vpop.f32.mrb[0].mxu0
        %v4581 = vadd.f32 %v634, %v4580
        %v4582 = vpop.f32.mrb[0].mxu0
        %v4583 = vpop.f32.mrb[0].mxu0
        %v4584 = vpop.f32.mrb[0].mxu0
        %4585 = vdwg.mxu0
        %v4586 = vsel %vm959, %v4581, -inf
        %4587 = vmax.xlane.f32.xlu0 %v4586
        %v4588 = vpop.xlane.xlu0 %4587
        %v4589 = vsub.f32 %v4581, %v4588
        %v4590 = vmul.f32 %v4589, 1.442695
        %v4591 = vpow.pop %v4590
        %v4592 = vsel %vm959, %v4591, 0.0
        %4593 = vadd.xlane.f32.xlu0 %v4592
        %v4594 = vpop.xlane.xlu0 %4593
        %v4595 = vrcp.pop %v4594
        %v4596 = vmul.f32 %v4591, %v4595
        %v4597 = vpack.c.bf16 %v4596, %v4596
        %4598 = vrot.lane.b32.xlu0 %v4206, 64
        %v4599 = vpop.permute.xlu0 %4598
        %v4601 = vsel %vm959, %v4597, 0
        %v4604 = vsel %vm975, %v4599, 0
        %4606 = vmatprep.subr.bf16.mxu0 0
        %4607 = vmatpush1.bf16.msra.mxu0 %v4604
        %4608 = vmatprep.subr.bf16.mxu0 0
        %4609 = vmatpush1.bf16.msra.mxu0 0
        %4610 = vmatprep.subr.bf16.mxu0 0
        %4611 = vmatpush1.bf16.msra.mxu0 0
        %4612 = vmatprep.subr.bf16.mxu0 0
        %4613 = vmatpush1.bf16.msra.mxu0 0
        %4614 = vmatprep.subr.bf16.mxu0 0
        %4615 = vmatpush1.bf16.msra.mxu0 0
        %4616 = vmatprep.subr.bf16.mxu0 0
        %4617 = vmatpush1.bf16.msra.mxu0 0
        %4618 = vmatprep.subr.bf16.mxu0 0
        %4619 = vmatpush1.bf16.msra.mxu0 0
        %4620 = vmatprep.subr.bf16.mxu0 0
        %4621 = vmatpush1.bf16.msra.mxu0 0
        %4622 = vmatprep.subr.bf16.mxu0 0
        %4623 = vmatpush1.bf16.msra.mxu0 0
        %4624 = vmatprep.subr.bf16.mxu0 0
        %4625 = vmatpush1.bf16.msra.mxu0 0
        %4626 = vmatprep.subr.bf16.mxu0 0
        %4627 = vmatpush1.bf16.msra.mxu0 0
        %4628 = vmatprep.subr.bf16.mxu0 0
        %4629 = vmatpush1.bf16.msra.mxu0 0
        %4630 = vmatprep.subr.bf16.mxu0 0
        %4631 = vmatpush1.bf16.msra.mxu0 0
        %4632 = vmatprep.subr.bf16.mxu0 0
        %4633 = vmatpush1.bf16.msra.mxu0 0
        %4634 = vmatprep.subr.bf16.mxu0 0
        %4635 = vmatpush1.bf16.msra.mxu0 0
        %4636 = vmatprep.subr.bf16.mxu0 0
        %4637 = vmatpush1.bf16.msra.mxu0 0
        %4638 = vmatprep.mubr.bf16.mxu0 0
        %4639 = vmatmul.mubr.bf16.gmra.mrb[0].mxu0 %v4601
        %v4640 = vpop.f32.mrb[0].mxu0
        %v4641 = vadd.f32 0.0, %v4640
        %v4642 = vpop.f32.mrb[0].mxu0
        %v4643 = vpop.f32.mrb[0].mxu0
        %v4644 = vpop.f32.mrb[0].mxu0
        %4645 = vdwg.mxu0
        %v4646 = vpack.c.bf16 %v4641, %v4641
        %v4651 = vunpack.c.l.b16 %v4196
        %v4652 = vunpack.c.l.b16 %v4197
        %v4653 = vunpack.c.l.b16 %v4198
        %v4654 = vunpack.c.l.b16 %v4199
        %v4655 = vpack.c.b16 %v4652, %v4651
        %v4656 = vpack.c.b16 %v4654, %v4653
        %v4660 = vsel %vm588, %v4646, 0
        %4662 = vmatprep.subr.bf16.mxu0 0
        %4663 = vmatpush1.bf16.msra.mxu0 %v4655
        %4664 = vmatprep.subr.bf16.mxu0 0
        %4665 = vmatpush1.bf16.msra.mxu0 %v4656
        %4666 = vmatprep.subr.bf16.mxu0 0
        %4667 = vmatpush1.bf16.msra.mxu0 0
        %4668 = vmatprep.subr.bf16.mxu0 0
        %4669 = vmatpush1.bf16.msra.mxu0 0
        %4670 = vmatprep.subr.bf16.mxu0 0
        %4671 = vmatpush1.bf16.msra.mxu0 0
        %4672 = vmatprep.subr.bf16.mxu0 0
        %4673 = vmatpush1.bf16.msra.mxu0 0
        %4674 = vmatprep.subr.bf16.mxu0 0
        %4675 = vmatpush1.bf16.msra.mxu0 0
        %4676 = vmatprep.subr.bf16.mxu0 0
        %4677 = vmatpush1.bf16.msra.mxu0 0
        %4678 = vmatprep.subr.bf16.mxu0 0
        %4679 = vmatpush1.bf16.msra.mxu0 0
        %4680 = vmatprep.subr.bf16.mxu0 0
        %4681 = vmatpush1.bf16.msra.mxu0 0
        %4682 = vmatprep.subr.bf16.mxu0 0
        %4683 = vmatpush1.bf16.msra.mxu0 0
        %4684 = vmatprep.subr.bf16.mxu0 0
        %4685 = vmatpush1.bf16.msra.mxu0 0
        %4686 = vmatprep.subr.bf16.mxu0 0
        %4687 = vmatpush1.bf16.msra.mxu0 0
        %4688 = vmatprep.subr.bf16.mxu0 0
        %4689 = vmatpush1.bf16.msra.mxu0 0
        %4690 = vmatprep.subr.bf16.mxu0 0
        %4691 = vmatpush1.bf16.msra.mxu0 0
        %4692 = vmatprep.subr.bf16.mxu0 0
        %4693 = vmatpush1.bf16.msra.mxu0 0
        %4694 = vmatprep.mubr.bf16.mxu0 0
        %4695 = vmatmul.mubr.bf16.gmra.mrb[0].mxu0 %v4660
        %v4696 = vpop.f32.mrb[0].mxu0
        %v4697 = vadd.f32 0.0, %v4696
        %v4698 = vpop.f32.mrb[0].mxu0
        %v4699 = vpop.f32.mrb[0].mxu0
        %v4700 = vpop.f32.mrb[0].mxu0
        %4701 = vdwg.mxu0
        %v4702 = vadd.f32 %v4531, %v4697
        %4703 = vrot.lane.b32.xlu0 %v4204, 32
        %v4704 = vpop.permute.xlu0 %4703
        %4705 = vrot.lane.b32.xlu0 %v4205, 32
        %v4706 = vpop.permute.xlu0 %4705
        %v4708 = vsel %vm588, %v4704, 0
        %v4711 = vsel %vm588, %v4706, 0
        %4713 = vmatprep.subr.bf16.mxu0 0
        %4714 = vmatpush1.bf16.xpose.msra.mxu0 %v4711
        %4715 = vmatprep.subr.bf16.mxu0 0
        %4716 = vmatpush1.bf16.xpose.msra.mxu0 0
        %4717 = vmatprep.subr.bf16.mxu0 0
        %4718 = vmatpush1.bf16.xpose.msra.mxu0 0
        %4719 = vmatprep.subr.bf16.mxu0 0
        %4720 = vmatpush1.bf16.xpose.msra.mxu0 0
        %4721 = vmatprep.subr.bf16.mxu0 0
        %4722 = vmatpush1.bf16.xpose.msra.mxu0 0
        %4723 = vmatprep.subr.bf16.mxu0 0
        %4724 = vmatpush1.bf16.xpose.msra.mxu0 0
        %4725 = vmatprep.subr.bf16.mxu0 0
        %4726 = vmatpush1.bf16.xpose.msra.mxu0 0
        %4727 = vmatprep.subr.bf16.mxu0 0
        %4728 = vmatpush1.bf16.xpose.msra.mxu0 0
        %4729 = vmatprep.subr.bf16.mxu0 0
        %4730 = vmatpush1.bf16.xpose.msra.mxu0 0
        %4731 = vmatprep.subr.bf16.mxu0 0
        %4732 = vmatpush1.bf16.xpose.msra.mxu0 0
        %4733 = vmatprep.subr.bf16.mxu0 0
        %4734 = vmatpush1.bf16.xpose.msra.mxu0 0
        %4735 = vmatprep.subr.bf16.mxu0 0
        %4736 = vmatpush1.bf16.xpose.msra.mxu0 0
        %4737 = vmatprep.subr.bf16.mxu0 0
        %4738 = vmatpush1.bf16.xpose.msra.mxu0 0
        %4739 = vmatprep.subr.bf16.mxu0 0
        %4740 = vmatpush1.bf16.xpose.msra.mxu0 0
        %4741 = vmatprep.subr.bf16.mxu0 0
        %4742 = vmatpush1.bf16.xpose.msra.mxu0 0
        %4743 = vmatprep.subr.bf16.mxu0 0
        %4744 = vmatpush1.bf16.xpose.msra.mxu0 0
        %4745 = vmatprep.mubr.bf16.mxu0 0
        %4746 = vmatmul.mubr.bf16.gmra.mrb[0].mxu0 %v4708
        %v4747 = vpop.f32.mrb[0].mxu0
        %v4748 = vadd.f32 %v634, %v4747
        %v4749 = vpop.f32.mrb[0].mxu0
        %v4750 = vpop.f32.mrb[0].mxu0
        %v4751 = vpop.f32.mrb[0].mxu0
        %4752 = vdwg.mxu0
        %v4753 = vsel %vm959, %v4748, -inf
        %4754 = vmax.xlane.f32.xlu0 %v4753
        %v4755 = vpop.xlane.xlu0 %4754
        %v4756 = vsub.f32 %v4748, %v4755
        %v4757 = vmul.f32 %v4756, 1.442695
        %v4758 = vpow.pop %v4757
        %v4759 = vsel %vm959, %v4758, 0.0
        %4760 = vadd.xlane.f32.xlu0 %v4759
        %v4761 = vpop.xlane.xlu0 %4760
        %v4762 = vrcp.pop %v4761
        %v4763 = vmul.f32 %v4758, %v4762
        %v4764 = vpack.c.bf16 %v4763, %v4763
        %4765 = vrot.lane.b32.xlu0 %v4206, 32
        %v4766 = vpop.permute.xlu0 %4765
        %v4768 = vsel %vm959, %v4764, 0
        %v4771 = vsel %vm975, %v4766, 0
        %4773 = vmatprep.subr.bf16.mxu0 0
        %4774 = vmatpush1.bf16.msra.mxu0 %v4771
        %4775 = vmatprep.subr.bf16.mxu0 0
        %4776 = vmatpush1.bf16.msra.mxu0 0
        %4777 = vmatprep.subr.bf16.mxu0 0
        %4778 = vmatpush1.bf16.msra.mxu0 0
        %4779 = vmatprep.subr.bf16.mxu0 0
        %4780 = vmatpush1.bf16.msra.mxu0 0
        %4781 = vmatprep.subr.bf16.mxu0 0
        %4782 = vmatpush1.bf16.msra.mxu0 0
        %4783 = vmatprep.subr.bf16.mxu0 0
        %4784 = vmatpush1.bf16.msra.mxu0 0
        %4785 = vmatprep.subr.bf16.mxu0 0
        %4786 = vmatpush1.bf16.msra.mxu0 0
        %4787 = vmatprep.subr.bf16.mxu0 0
        %4788 = vmatpush1.bf16.msra.mxu0 0
        %4789 = vmatprep.subr.bf16.mxu0 0
        %4790 = vmatpush1.bf16.msra.mxu0 0
        %4791 = vmatprep.subr.bf16.mxu0 0
        %4792 = vmatpush1.bf16.msra.mxu0 0
        %4793 = vmatprep.subr.bf16.mxu0 0
        %4794 = vmatpush1.bf16.msra.mxu0 0
        %4795 = vmatprep.subr.bf16.mxu0 0
        %4796 = vmatpush1.bf16.msra.mxu0 0
        %4797 = vmatprep.subr.bf16.mxu0 0
        %4798 = vmatpush1.bf16.msra.mxu0 0
        %4799 = vmatprep.subr.bf16.mxu0 0
        %4800 = vmatpush1.bf16.msra.mxu0 0
        %4801 = vmatprep.subr.bf16.mxu0 0
        %4802 = vmatpush1.bf16.msra.mxu0 0
        %4803 = vmatprep.subr.bf16.mxu0 0
        %4804 = vmatpush1.bf16.msra.mxu0 0
        %4805 = vmatprep.mubr.bf16.mxu0 0
        %4806 = vmatmul.mubr.bf16.gmra.mrb[0].mxu0 %v4768
        %v4807 = vpop.f32.mrb[0].mxu0
        %v4808 = vadd.f32 0.0, %v4807
        %v4809 = vpop.f32.mrb[0].mxu0
        %v4810 = vpop.f32.mrb[0].mxu0
        %v4811 = vpop.f32.mrb[0].mxu0
        %4812 = vdwg.mxu0
        %v4813 = vpack.c.bf16 %v4808, %v4808
        %v4818 = vunpack.c.l.b16 %v4200
        %v4819 = vunpack.c.l.b16 %v4201
        %v4820 = vunpack.c.l.b16 %v4202
        %v4821 = vunpack.c.l.b16 %v4203
        %v4822 = vpack.c.b16 %v4819, %v4818
        %v4823 = vpack.c.b16 %v4821, %v4820
        %v4827 = vsel %vm588, %v4813, 0
        %4829 = vmatprep.subr.bf16.mxu0 0
        %4830 = vmatpush1.bf16.msra.mxu0 %v4822
        %4831 = vmatprep.subr.bf16.mxu0 0
        %4832 = vmatpush1.bf16.msra.mxu0 %v4823
        %4833 = vmatprep.subr.bf16.mxu0 0
        %4834 = vmatpush1.bf16.msra.mxu0 0
        %4835 = vmatprep.subr.bf16.mxu0 0
        %4836 = vmatpush1.bf16.msra.mxu0 0
        %4837 = vmatprep.subr.bf16.mxu0 0
        %4838 = vmatpush1.bf16.msra.mxu0 0
        %4839 = vmatprep.subr.bf16.mxu0 0
        %4840 = vmatpush1.bf16.msra.mxu0 0
        %4841 = vmatprep.subr.bf16.mxu0 0
        %4842 = vmatpush1.bf16.msra.mxu0 0
        %4843 = vmatprep.subr.bf16.mxu0 0
        %4844 = vmatpush1.bf16.msra.mxu0 0
        %4845 = vmatprep.subr.bf16.mxu0 0
        %4846 = vmatpush1.bf16.msra.mxu0 0
        %4847 = vmatprep.subr.bf16.mxu0 0
        %4848 = vmatpush1.bf16.msra.mxu0 0
        %4849 = vmatprep.subr.bf16.mxu0 0
        %4850 = vmatpush1.bf16.msra.mxu0 0
        %4851 = vmatprep.subr.bf16.mxu0 0
        %4852 = vmatpush1.bf16.msra.mxu0 0
        %4853 = vmatprep.subr.bf16.mxu0 0
        %4854 = vmatpush1.bf16.msra.mxu0 0
        %4855 = vmatprep.subr.bf16.mxu0 0
        %4856 = vmatpush1.bf16.msra.mxu0 0
        %4857 = vmatprep.subr.bf16.mxu0 0
        %4858 = vmatpush1.bf16.msra.mxu0 0
        %4859 = vmatprep.subr.bf16.mxu0 0
        %4860 = vmatpush1.bf16.msra.mxu0 0
        %4861 = vmatprep.mubr.bf16.mxu0 0
        %4862 = vmatmul.mubr.bf16.gmra.mrb[0].mxu0 %v4827
        %v4863 = vpop.f32.mrb[0].mxu0
        %v4864 = vadd.f32 0.0, %v4863
        %v4865 = vpop.f32.mrb[0].mxu0
        %v4866 = vpop.f32.mrb[0].mxu0
        %v4867 = vpop.f32.mrb[0].mxu0
        %4868 = vdwg.mxu0
        %v4869 = vadd.f32 %v4702, %v4864
        %v4870 = vld [vmem:[%s7 + $0x2] sm:$0x1]
        %v4871 = vlaneseq
        %v4872 = vshrl.u32 %v4871, 7
        %v4873 = vsub.s32 0, %v4872
        %v4874 = vrot.slane %v4870, %v4873
        %v4875 = vadd.f32 %v4869, %v4874
        %v4876 = vadd.f32 %v3925, %v4875
        %v4877 = vld [vmem:[%s8 + $0x2] sm:$0x1]
        %v4878 = vld [vmem:[%s9 + $0x2] sm:$0x1]
        %4879 = vadd.xlane.f32.xlu0 %v4876
        %v4880 = vpop.xlane.xlu0 %4879
        %v4881 = vmul.f32 %v4880, %v1589
        %v4882 = vsub.f32 %v4876, %v4881
        %v4883 = vmul.f32 %v4882, %v4882
        %4884 = vadd.xlane.f32.xlu0 %v4883
        %v4885 = vpop.xlane.xlu0 %4884
        %v4886 = vmul.f32 %v4885, %v1589
        %v4887 = vadd.f32 %v4886, 1e-05
        %v4888 = vrsqrt.pop %v4887
        %v4889 = vmul.f32 %v4882, %v4888
        %v4890 = vlaneseq
        %v4891 = vshrl.u32 %v4890, 7
        %v4892 = vsub.s32 0, %v4891
        %v4893 = vrot.slane %v4877, %v4892
        %v4894 = vmul.f32 %v4889, %v4893
        %v4895 = vlaneseq
        %v4896 = vshrl.u32 %v4895, 7
        %v4897 = vsub.s32 0, %v4896
        %v4898 = vrot.slane %v4878, %v4897
        %v4899 = vadd.f32 %v4894, %v4898
        %s4900 = scalar_lea.vmem %s10, 512
        %v4901 = vld [vmem:[%s4900] sm:$0xff]
        %v4902 = vld [vmem:[%s4900 + $0x8] sm:$0xff]
        %v4903 = vld [vmem:[%s4900 + $0x10] sm:$0xff]
        %v4904 = vld [vmem:[%s4900 + $0x18] sm:$0xff]
        %v4905 = vld [vmem:[%s4900 + $0x20] sm:$0xff]
        %v4906 = vld [vmem:[%s4900 + $0x28] sm:$0xff]
        %v4907 = vld [vmem:[%s4900 + $0x30] sm:$0xff]
        %v4908 = vld [vmem:[%s4900 + $0x38] sm:$0xff]
        %v4909 = vld [vmem:[%s4900 + $0x40] sm:$0xff]
        %v4910 = vld [vmem:[%s4900 + $0x48] sm:$0xff]
        %v4911 = vld [vmem:[%s4900 + $0x50] sm:$0xff]
        %v4912 = vld [vmem:[%s4900 + $0x58] sm:$0xff]
        %v4913 = vld [vmem:[%s4900 + $0x60] sm:$0xff]
        %v4914 = vld [vmem:[%s4900 + $0x68] sm:$0xff]
        %v4915 = vld [vmem:[%s4900 + $0x70] sm:$0xff]
        %v4916 = vld [vmem:[%s4900 + $0x78] sm:$0xff]
        %v4917 = vld [vmem:[%s4900 + $0x80] sm:$0xff]
        %v4918 = vld [vmem:[%s4900 + $0x88] sm:$0xff]
        %v4919 = vld [vmem:[%s4900 + $0x90] sm:$0xff]
        %v4920 = vld [vmem:[%s4900 + $0x98] sm:$0xff]
        %v4921 = vld [vmem:[%s4900 + $0xa0] sm:$0xff]
        %v4922 = vld [vmem:[%s4900 + $0xa8] sm:$0xff]
        %v4923 = vld [vmem:[%s4900 + $0xb0] sm:$0xff]
        %v4924 = vld [vmem:[%s4900 + $0xb8] sm:$0xff]
        %v4925 = vld [vmem:[%s4900 + $0xc0] sm:$0xff]
        %v4926 = vld [vmem:[%s4900 + $0xc8] sm:$0xff]
        %v4927 = vld [vmem:[%s4900 + $0xd0] sm:$0xff]
        %v4928 = vld [vmem:[%s4900 + $0xd8] sm:$0xff]
        %v4929 = vld [vmem:[%s4900 + $0xe0] sm:$0xff]
        %v4930 = vld [vmem:[%s4900 + $0xe8] sm:$0xff]
        %v4931 = vld [vmem:[%s4900 + $0xf0] sm:$0xff]
        %v4932 = vld [vmem:[%s4900 + $0xf8] sm:$0xff]
        %v4933 = vpack.c.bf16 %v4899, %v4899
        %s4934 = scalar_lea.vmem %s11, 2
        %v4935 = vld [vmem:[%s4934] ss:$4 sm:$0xf]
        %v4937 = vlaneseq
        %v4938 = vshrl.u32 %v4937, 7
        %v4939 = vsub.s32 0, %v4938
        %v4940 = vrot.slane %v4935, %v4939
        %v4941 = vlaneseq
        %v4942 = vshrl.u32 %v4941, 7
        %v4943 = vsub.s32 1, %v4942
        %v4944 = vrot.slane %v4935, %v4943
        %v4945 = vlaneseq
        %v4946 = vshrl.u32 %v4945, 7
        %v4947 = vsub.s32 2, %v4946
        %v4948 = vrot.slane %v4935, %v4947
        %v4949 = vlaneseq
        %v4950 = vshrl.u32 %v4949, 7
        %v4951 = vsub.s32 3, %v4950
        %v4952 = vrot.slane %v4935, %v4951
        %v4989 = vunpack.c.l.b16 %v4901
        %v4990 = vunpack.c.h.b16 %v4901
        %v4991 = vunpack.c.l.b16 %v4902
        %v4992 = vunpack.c.h.b16 %v4902
        %v4993 = vunpack.c.l.b16 %v4903
        %v4994 = vunpack.c.h.b16 %v4903
        %v4995 = vunpack.c.l.b16 %v4904
        %v4996 = vunpack.c.h.b16 %v4904
        %v4997 = vunpack.c.l.b16 %v4905
        %v4998 = vunpack.c.h.b16 %v4905
        %v4999 = vunpack.c.l.b16 %v4906
        %v5000 = vunpack.c.h.b16 %v4906
        %v5001 = vunpack.c.l.b16 %v4907
        %v5002 = vunpack.c.h.b16 %v4907
        %v5003 = vunpack.c.l.b16 %v4908
        %v5004 = vunpack.c.h.b16 %v4908
        %v5005 = vunpack.c.l.b16 %v4909
        %v5006 = vunpack.c.h.b16 %v4909
        %v5007 = vunpack.c.l.b16 %v4910
        %v5008 = vunpack.c.h.b16 %v4910
        %v5009 = vunpack.c.l.b16 %v4911
        %v5010 = vunpack.c.h.b16 %v4911
        %v5011 = vunpack.c.l.b16 %v4912
        %v5012 = vunpack.c.h.b16 %v4912
        %v5013 = vunpack.c.l.b16 %v4913
        %v5014 = vunpack.c.h.b16 %v4913
        %v5015 = vunpack.c.l.b16 %v4914
        %v5016 = vunpack.c.h.b16 %v4914
        %v5017 = vunpack.c.l.b16 %v4915
        %v5018 = vunpack.c.h.b16 %v4915
        %v5019 = vunpack.c.l.b16 %v4916
        %v5020 = vunpack.c.h.b16 %v4916
        %v5021 = vunpack.c.l.b16 %v4917
        %v5022 = vunpack.c.h.b16 %v4917
        %v5023 = vunpack.c.l.b16 %v4918
        %v5024 = vunpack.c.h.b16 %v4918
        %v5025 = vunpack.c.l.b16 %v4919
        %v5026 = vunpack.c.h.b16 %v4919
        %v5027 = vunpack.c.l.b16 %v4920
        %v5028 = vunpack.c.h.b16 %v4920
        %v5029 = vunpack.c.l.b16 %v4921
        %v5030 = vunpack.c.h.b16 %v4921
        %v5031 = vunpack.c.l.b16 %v4922
        %v5032 = vunpack.c.h.b16 %v4922
        %v5033 = vunpack.c.l.b16 %v4923
        %v5034 = vunpack.c.h.b16 %v4923
        %v5035 = vunpack.c.l.b16 %v4924
        %v5036 = vunpack.c.h.b16 %v4924
        %v5037 = vunpack.c.l.b16 %v4925
        %v5038 = vunpack.c.h.b16 %v4925
        %v5039 = vunpack.c.l.b16 %v4926
        %v5040 = vunpack.c.h.b16 %v4926
        %v5041 = vunpack.c.l.b16 %v4927
        %v5042 = vunpack.c.h.b16 %v4927
        %v5043 = vunpack.c.l.b16 %v4928
        %v5044 = vunpack.c.h.b16 %v4928
        %v5045 = vunpack.c.l.b16 %v4929
        %v5046 = vunpack.c.h.b16 %v4929
        %v5047 = vunpack.c.l.b16 %v4930
        %v5048 = vunpack.c.h.b16 %v4930
        %v5049 = vunpack.c.l.b16 %v4931
        %v5050 = vunpack.c.h.b16 %v4931
        %v5051 = vunpack.c.l.b16 %v4932
        %v5052 = vunpack.c.h.b16 %v4932
        %v5053 = vpack.c.b16 %v4993, %v4989
        %v5054 = vpack.c.b16 %v4994, %v4990
        %v5055 = vpack.c.b16 %v4995, %v4991
        %v5056 = vpack.c.b16 %v4996, %v4992
        %v5057 = vpack.c.b16 %v5001, %v4997
        %v5058 = vpack.c.b16 %v5002, %v4998
        %v5059 = vpack.c.b16 %v5003, %v4999
        %v5060 = vpack.c.b16 %v5004, %v5000
        %v5061 = vpack.c.b16 %v5009, %v5005
        %v5062 = vpack.c.b16 %v5010, %v5006
        %v5063 = vpack.c.b16 %v5011, %v5007
        %v5064 = vpack.c.b16 %v5012, %v5008
        %v5065 = vpack.c.b16 %v5017, %v5013
        %v5066 = vpack.c.b16 %v5018, %v5014
        %v5067 = vpack.c.b16 %v5019, %v5015
        %v5068 = vpack.c.b16 %v5020, %v5016
        %v5069 = vpack.c.b16 %v5025, %v5021
        %v5070 = vpack.c.b16 %v5026, %v5022
        %v5071 = vpack.c.b16 %v5027, %v5023
        %v5072 = vpack.c.b16 %v5028, %v5024
        %v5073 = vpack.c.b16 %v5033, %v5029
        %v5074 = vpack.c.b16 %v5034, %v5030
        %v5075 = vpack.c.b16 %v5035, %v5031
        %v5076 = vpack.c.b16 %v5036, %v5032
        %v5077 = vpack.c.b16 %v5041, %v5037
        %v5078 = vpack.c.b16 %v5042, %v5038
        %v5079 = vpack.c.b16 %v5043, %v5039
        %v5080 = vpack.c.b16 %v5044, %v5040
        %v5081 = vpack.c.b16 %v5049, %v5045
        %v5082 = vpack.c.b16 %v5050, %v5046
        %v5083 = vpack.c.b16 %v5051, %v5047
        %v5084 = vpack.c.b16 %v5052, %v5048
        %5117 = vmatprep.subr.bf16.mxu0 %v5054
        %5118 = vmatpush1.bf16.msra.mxu0 %v5053
        %5119 = vmatprep.subr.bf16.mxu0 %v5058
        %5120 = vmatpush1.bf16.msra.mxu0 %v5057
        %5121 = vmatprep.subr.bf16.mxu0 %v5062
        %5122 = vmatpush1.bf16.msra.mxu0 %v5061
        %5123 = vmatprep.subr.bf16.mxu0 %v5066
        %5124 = vmatpush1.bf16.msra.mxu0 %v5065
        %5125 = vmatprep.subr.bf16.mxu0 %v5070
        %5126 = vmatpush1.bf16.msra.mxu0 %v5069
        %5127 = vmatprep.subr.bf16.mxu0 %v5074
        %5128 = vmatpush1.bf16.msra.mxu0 %v5073
        %5129 = vmatprep.subr.bf16.mxu0 %v5078
        %5130 = vmatpush1.bf16.msra.mxu0 %v5077
        %5131 = vmatprep.subr.bf16.mxu0 %v5082
        %5132 = vmatpush1.bf16.msra.mxu0 %v5081
        %5133 = vmatprep.subr.bf16.mxu0 0
        %5134 = vmatpush1.bf16.msra.mxu0 0
        %5135 = vmatprep.subr.bf16.mxu0 0
        %5136 = vmatpush1.bf16.msra.mxu0 0
        %5137 = vmatprep.subr.bf16.mxu0 0
        %5138 = vmatpush1.bf16.msra.mxu0 0
        %5139 = vmatprep.subr.bf16.mxu0 0
        %5140 = vmatpush1.bf16.msra.mxu0 0
        %5141 = vmatprep.subr.bf16.mxu0 0
        %5142 = vmatpush1.bf16.msra.mxu0 0
        %5143 = vmatprep.subr.bf16.mxu0 0
        %5144 = vmatpush1.bf16.msra.mxu0 0
        %5145 = vmatprep.subr.bf16.mxu0 0
        %5146 = vmatpush1.bf16.msra.mxu0 0
        %5147 = vmatprep.subr.bf16.mxu0 0
        %5148 = vmatpush1.bf16.msra.mxu0 0
        %5149 = vmatprep.mubr.bf16.mxu0 0
        %5150 = vmatmul.mubr.bf16.gmra.mrb[0].mxu0 %v4933
        %v5151 = vpop.f32.mrb[0].mxu0
        %v5152 = vadd.f32 %v4940, %v5151
        %v5153 = vpop.f32.mrb[0].mxu0
        %v5154 = vadd.f32 %v4944, %v5153
        %v5155 = vpop.f32.mrb[0].mxu0
        %v5156 = vpop.f32.mrb[0].mxu0
        %5157 = vdwg.mxu0
        %5158 = vmatprep.subr.bf16.mxu0 %v5056
        %5159 = vmatpush1.bf16.msra.mxu0 %v5055
        %5160 = vmatprep.subr.bf16.mxu0 %v5060
        %5161 = vmatpush1.bf16.msra.mxu0 %v5059
        %5162 = vmatprep.subr.bf16.mxu0 %v5064
        %5163 = vmatpush1.bf16.msra.mxu0 %v5063
        %5164 = vmatprep.subr.bf16.mxu0 %v5068
        %5165 = vmatpush1.bf16.msra.mxu0 %v5067
        %5166 = vmatprep.subr.bf16.mxu0 %v5072
        %5167 = vmatpush1.bf16.msra.mxu0 %v5071
        %5168 = vmatprep.subr.bf16.mxu0 %v5076
        %5169 = vmatpush1.bf16.msra.mxu0 %v5075
        %5170 = vmatprep.subr.bf16.mxu0 %v5080
        %5171 = vmatpush1.bf16.msra.mxu0 %v5079
        %5172 = vmatprep.subr.bf16.mxu0 %v5084
        %5173 = vmatpush1.bf16.msra.mxu0 %v5083
        %5174 = vmatprep.subr.bf16.mxu0 0
        %5175 = vmatpush1.bf16.msra.mxu0 0
        %5176 = vmatprep.subr.bf16.mxu0 0
        %5177 = vmatpush1.bf16.msra.mxu0 0
        %5178 = vmatprep.subr.bf16.mxu0 0
        %5179 = vmatpush1.bf16.msra.mxu0 0
        %5180 = vmatprep.subr.bf16.mxu0 0
        %5181 = vmatpush1.bf16.msra.mxu0 0
        %5182 = vmatprep.subr.bf16.mxu0 0
        %5183 = vmatpush1.bf16.msra.mxu0 0
        %5184 = vmatprep.subr.bf16.mxu0 0
        %5185 = vmatpush1.bf16.msra.mxu0 0
        %5186 = vmatprep.subr.bf16.mxu0 0
        %5187 = vmatpush1.bf16.msra.mxu0 0
        %5188 = vmatprep.subr.bf16.mxu0 0
        %5189 = vmatpush1.bf16.msra.mxu0 0
        %5190 = vmatprep.mubr.bf16.mxu0 0
        %5191 = vmatmul.mubr.bf16.gmra.mrb[0].mxu0 %v4933
        %v5192 = vpop.f32.mrb[0].mxu0
        %v5193 = vadd.f32 %v4948, %v5192
        %v5194 = vpop.f32.mrb[0].mxu0
        %v5195 = vadd.f32 %v4952, %v5194
        %v5196 = vpop.f32.mrb[0].mxu0
        %v5197 = vpop.f32.mrb[0].mxu0
        %5198 = vdwg.mxu0
        %v5199 = vmax.f32 %v5152, 0.0
        %v5200 = vmax.f32 %v5154, 0.0
        %v5201 = vmax.f32 %v5193, 0.0
        %v5202 = vmax.f32 %v5195, 0.0
        %s5203 = scalar_lea.vmem %s12, 512
        %v5204 = vld [vmem:[%s5203] sm:$0xf]
        %v5205 = vld [vmem:[%s5203 + $0x4] sm:$0xf]
        %v5206 = vld [vmem:[%s5203 + $0x8] sm:$0xf]
        %v5207 = vld [vmem:[%s5203 + $0xc] sm:$0xf]
        %v5208 = vld [vmem:[%s5203 + $0x10] sm:$0xf]
        %v5209 = vld [vmem:[%s5203 + $0x14] sm:$0xf]
        %v5210 = vld [vmem:[%s5203 + $0x18] sm:$0xf]
        %v5211 = vld [vmem:[%s5203 + $0x1c] sm:$0xf]
        %v5212 = vld [vmem:[%s5203 + $0x20] sm:$0xf]
        %v5213 = vld [vmem:[%s5203 + $0x24] sm:$0xf]
        %v5214 = vld [vmem:[%s5203 + $0x28] sm:$0xf]
        %v5215 = vld [vmem:[%s5203 + $0x2c] sm:$0xf]
        %v5216 = vld [vmem:[%s5203 + $0x30] sm:$0xf]
        %v5217 = vld [vmem:[%s5203 + $0x34] sm:$0xf]
        %v5218 = vld [vmem:[%s5203 + $0x38] sm:$0xf]
        %v5219 = vld [vmem:[%s5203 + $0x3c] sm:$0xf]
        %v5220 = vld [vmem:[%s5203 + $0x40] sm:$0xf]
        %v5221 = vld [vmem:[%s5203 + $0x44] sm:$0xf]
        %v5222 = vld [vmem:[%s5203 + $0x48] sm:$0xf]
        %v5223 = vld [vmem:[%s5203 + $0x4c] sm:$0xf]
        %v5224 = vld [vmem:[%s5203 + $0x50] sm:$0xf]
        %v5225 = vld [vmem:[%s5203 + $0x54] sm:$0xf]
        %v5226 = vld [vmem:[%s5203 + $0x58] sm:$0xf]
        %v5227 = vld [vmem:[%s5203 + $0x5c] sm:$0xf]
        %v5228 = vld [vmem:[%s5203 + $0x60] sm:$0xf]
        %v5229 = vld [vmem:[%s5203 + $0x64] sm:$0xf]
        %v5230 = vld [vmem:[%s5203 + $0x68] sm:$0xf]
        %v5231 = vld [vmem:[%s5203 + $0x6c] sm:$0xf]
        %v5232 = vld [vmem:[%s5203 + $0x70] sm:$0xf]
        %v5233 = vld [vmem:[%s5203 + $0x74] sm:$0xf]
        %v5234 = vld [vmem:[%s5203 + $0x78] sm:$0xf]
        %v5235 = vld [vmem:[%s5203 + $0x7c] sm:$0xf]
        %v5236 = vld [vmem:[%s5203 + $0x80] sm:$0xf]
        %v5237 = vld [vmem:[%s5203 + $0x84] sm:$0xf]
        %v5238 = vld [vmem:[%s5203 + $0x88] sm:$0xf]
        %v5239 = vld [vmem:[%s5203 + $0x8c] sm:$0xf]
        %v5240 = vld [vmem:[%s5203 + $0x90] sm:$0xf]
        %v5241 = vld [vmem:[%s5203 + $0x94] sm:$0xf]
        %v5242 = vld [vmem:[%s5203 + $0x98] sm:$0xf]
        %v5243 = vld [vmem:[%s5203 + $0x9c] sm:$0xf]
        %v5244 = vld [vmem:[%s5203 + $0xa0] sm:$0xf]
        %v5245 = vld [vmem:[%s5203 + $0xa4] sm:$0xf]
        %v5246 = vld [vmem:[%s5203 + $0xa8] sm:$0xf]
        %v5247 = vld [vmem:[%s5203 + $0xac] sm:$0xf]
        %v5248 = vld [vmem:[%s5203 + $0xb0] sm:$0xf]
        %v5249 = vld [vmem:[%s5203 + $0xb4] sm:$0xf]
        %v5250 = vld [vmem:[%s5203 + $0xb8] sm:$0xf]
        %v5251 = vld [vmem:[%s5203 + $0xbc] sm:$0xf]
        %v5252 = vld [vmem:[%s5203 + $0xc0] sm:$0xf]
        %v5253 = vld [vmem:[%s5203 + $0xc4] sm:$0xf]
        %v5254 = vld [vmem:[%s5203 + $0xc8] sm:$0xf]
        %v5255 = vld [vmem:[%s5203 + $0xcc] sm:$0xf]
        %v5256 = vld [vmem:[%s5203 + $0xd0] sm:$0xf]
        %v5257 = vld [vmem:[%s5203 + $0xd4] sm:$0xf]
        %v5258 = vld [vmem:[%s5203 + $0xd8] sm:$0xf]
        %v5259 = vld [vmem:[%s5203 + $0xdc] sm:$0xf]
        %v5260 = vld [vmem:[%s5203 + $0xe0] sm:$0xf]
        %v5261 = vld [vmem:[%s5203 + $0xe4] sm:$0xf]
        %v5262 = vld [vmem:[%s5203 + $0xe8] sm:$0xf]
        %v5263 = vld [vmem:[%s5203 + $0xec] sm:$0xf]
        %v5264 = vld [vmem:[%s5203 + $0xf0] sm:$0xf]
        %v5265 = vld [vmem:[%s5203 + $0xf4] sm:$0xf]
        %v5266 = vld [vmem:[%s5203 + $0xf8] sm:$0xf]
        %v5267 = vld [vmem:[%s5203 + $0xfc] sm:$0xf]
        %v5268 = vpack.c.bf16 %v5199, %v5199
        %v5269 = vpack.c.bf16 %v5200, %v5200
        %v5270 = vpack.c.bf16 %v5201, %v5201
        %v5271 = vpack.c.bf16 %v5202, %v5202
        %v5272 = vld [vmem:[%s13 + $0x2] sm:$0x1]
        %v5273 = vlaneseq
        %v5274 = vshrl.u32 %v5273, 7
        %v5275 = vsub.s32 0, %v5274
        %v5276 = vrot.slane %v5272, %v5275
        %v5341 = vunpack.c.l.b16 %v5204
        %v5342 = vunpack.c.l.b16 %v5205
        %v5343 = vunpack.c.l.b16 %v5206
        %v5344 = vunpack.c.l.b16 %v5207
        %v5345 = vunpack.c.l.b16 %v5208
        %v5346 = vunpack.c.l.b16 %v5209
        %v5347 = vunpack.c.l.b16 %v5210
        %v5348 = vunpack.c.l.b16 %v5211
        %v5349 = vunpack.c.l.b16 %v5212
        %v5350 = vunpack.c.l.b16 %v5213
        %v5351 = vunpack.c.l.b16 %v5214
        %v5352 = vunpack.c.l.b16 %v5215
        %v5353 = vunpack.c.l.b16 %v5216
        %v5354 = vunpack.c.l.b16 %v5217
        %v5355 = vunpack.c.l.b16 %v5218
        %v5356 = vunpack.c.l.b16 %v5219
        %v5357 = vunpack.c.l.b16 %v5220
        %v5358 = vunpack.c.l.b16 %v5221
        %v5359 = vunpack.c.l.b16 %v5222
        %v5360 = vunpack.c.l.b16 %v5223
        %v5361 = vunpack.c.l.b16 %v5224
        %v5362 = vunpack.c.l.b16 %v5225
        %v5363 = vunpack.c.l.b16 %v5226
        %v5364 = vunpack.c.l.b16 %v5227
        %v5365 = vunpack.c.l.b16 %v5228
        %v5366 = vunpack.c.l.b16 %v5229
        %v5367 = vunpack.c.l.b16 %v5230
        %v5368 = vunpack.c.l.b16 %v5231
        %v5369 = vunpack.c.l.b16 %v5232
        %v5370 = vunpack.c.l.b16 %v5233
        %v5371 = vunpack.c.l.b16 %v5234
        %v5372 = vunpack.c.l.b16 %v5235
        %v5373 = vunpack.c.l.b16 %v5236
        %v5374 = vunpack.c.l.b16 %v5237
        %v5375 = vunpack.c.l.b16 %v5238
        %v5376 = vunpack.c.l.b16 %v5239
        %v5377 = vunpack.c.l.b16 %v5240
        %v5378 = vunpack.c.l.b16 %v5241
        %v5379 = vunpack.c.l.b16 %v5242
        %v5380 = vunpack.c.l.b16 %v5243
        %v5381 = vunpack.c.l.b16 %v5244
        %v5382 = vunpack.c.l.b16 %v5245
        %v5383 = vunpack.c.l.b16 %v5246
        %v5384 = vunpack.c.l.b16 %v5247
        %v5385 = vunpack.c.l.b16 %v5248
        %v5386 = vunpack.c.l.b16 %v5249
        %v5387 = vunpack.c.l.b16 %v5250
        %v5388 = vunpack.c.l.b16 %v5251
        %v5389 = vunpack.c.l.b16 %v5252
        %v5390 = vunpack.c.l.b16 %v5253
        %v5391 = vunpack.c.l.b16 %v5254
        %v5392 = vunpack.c.l.b16 %v5255
        %v5393 = vunpack.c.l.b16 %v5256
        %v5394 = vunpack.c.l.b16 %v5257
        %v5395 = vunpack.c.l.b16 %v5258
        %v5396 = vunpack.c.l.b16 %v5259
        %v5397 = vunpack.c.l.b16 %v5260
        %v5398 = vunpack.c.l.b16 %v5261
        %v5399 = vunpack.c.l.b16 %v5262
        %v5400 = vunpack.c.l.b16 %v5263
        %v5401 = vunpack.c.l.b16 %v5264
        %v5402 = vunpack.c.l.b16 %v5265
        %v5403 = vunpack.c.l.b16 %v5266
        %v5404 = vunpack.c.l.b16 %v5267
        %v5405 = vpack.c.b16 %v5342, %v5341
        %v5406 = vpack.c.b16 %v5344, %v5343
        %v5407 = vpack.c.b16 %v5346, %v5345
        %v5408 = vpack.c.b16 %v5348, %v5347
        %v5409 = vpack.c.b16 %v5350, %v5349
        %v5410 = vpack.c.b16 %v5352, %v5351
        %v5411 = vpack.c.b16 %v5354, %v5353
        %v5412 = vpack.c.b16 %v5356, %v5355
        %v5413 = vpack.c.b16 %v5358, %v5357
        %v5414 = vpack.c.b16 %v5360, %v5359
        %v5415 = vpack.c.b16 %v5362, %v5361
        %v5416 = vpack.c.b16 %v5364, %v5363
        %v5417 = vpack.c.b16 %v5366, %v5365
        %v5418 = vpack.c.b16 %v5368, %v5367
        %v5419 = vpack.c.b16 %v5370, %v5369
        %v5420 = vpack.c.b16 %v5372, %v5371
        %v5421 = vpack.c.b16 %v5374, %v5373
        %v5422 = vpack.c.b16 %v5376, %v5375
        %v5423 = vpack.c.b16 %v5378, %v5377
        %v5424 = vpack.c.b16 %v5380, %v5379
        %v5425 = vpack.c.b16 %v5382, %v5381
        %v5426 = vpack.c.b16 %v5384, %v5383
        %v5427 = vpack.c.b16 %v5386, %v5385
        %v5428 = vpack.c.b16 %v5388, %v5387
        %v5429 = vpack.c.b16 %v5390, %v5389
        %v5430 = vpack.c.b16 %v5392, %v5391
        %v5431 = vpack.c.b16 %v5394, %v5393
        %v5432 = vpack.c.b16 %v5396, %v5395
        %v5433 = vpack.c.b16 %v5398, %v5397
        %v5434 = vpack.c.b16 %v5400, %v5399
        %v5435 = vpack.c.b16 %v5402, %v5401
        %v5436 = vpack.c.b16 %v5404, %v5403
        %5469 = vmatprep.subr.bf16.mxu0 0
        %5470 = vmatpush1.bf16.msra.mxu0 %v5405
        %5471 = vmatprep.subr.bf16.mxu0 0
        %5472 = vmatpush1.bf16.msra.mxu0 %v5406
        %5473 = vmatprep.subr.bf16.mxu0 0
        %5474 = vmatpush1.bf16.msra.mxu0 %v5407
        %5475 = vmatprep.subr.bf16.mxu0 0
        %5476 = vmatpush1.bf16.msra.mxu0 %v5408
        %5477 = vmatprep.subr.bf16.mxu0 0
        %5478 = vmatpush1.bf16.msra.mxu0 %v5409
        %5479 = vmatprep.subr.bf16.mxu0 0
        %5480 = vmatpush1.bf16.msra.mxu0 %v5410
        %5481 = vmatprep.subr.bf16.mxu0 0
        %5482 = vmatpush1.bf16.msra.mxu0 %v5411
        %5483 = vmatprep.subr.bf16.mxu0 0
        %5484 = vmatpush1.bf16.msra.mxu0 %v5412
        %5485 = vmatprep.subr.bf16.mxu0 0
        %5486 = vmatpush1.bf16.msra.mxu0 %v5413
        %5487 = vmatprep.subr.bf16.mxu0 0
        %5488 = vmatpush1.bf16.msra.mxu0 %v5414
        %5489 = vmatprep.subr.bf16.mxu0 0
        %5490 = vmatpush1.bf16.msra.mxu0 %v5415
        %5491 = vmatprep.subr.bf16.mxu0 0
        %5492 = vmatpush1.bf16.msra.mxu0 %v5416
        %5493 = vmatprep.subr.bf16.mxu0 0
        %5494 = vmatpush1.bf16.msra.mxu0 %v5417
        %5495 = vmatprep.subr.bf16.mxu0 0
        %5496 = vmatpush1.bf16.msra.mxu0 %v5418
        %5497 = vmatprep.subr.bf16.mxu0 0
        %5498 = vmatpush1.bf16.msra.mxu0 %v5419
        %5499 = vmatprep.subr.bf16.mxu0 0
        %5500 = vmatpush1.bf16.msra.mxu0 %v5420
        %5501 = vmatprep.mubr.bf16.mxu0 %v5269
        %5502 = vmatmul.mubr.bf16.gmra.mrb[0].mxu0 %v5268
        %v5503 = vpop.f32.mrb[0].mxu0
        %v5504 = vadd.f32 %v5276, %v5503
        %v5505 = vpop.f32.mrb[0].mxu0
        %v5506 = vpop.f32.mrb[0].mxu0
        %v5507 = vpop.f32.mrb[0].mxu0
        %5508 = vdwg.mxu0
        %5509 = vmatprep.subr.bf16.mxu0 0
        %5510 = vmatpush1.bf16.msra.mxu0 %v5421
        %5511 = vmatprep.subr.bf16.mxu0 0
        %5512 = vmatpush1.bf16.msra.mxu0 %v5422
        %5513 = vmatprep.subr.bf16.mxu0 0
        %5514 = vmatpush1.bf16.msra.mxu0 %v5423
        %5515 = vmatprep.subr.bf16.mxu0 0
        %5516 = vmatpush1.bf16.msra.mxu0 %v5424
        %5517 = vmatprep.subr.bf16.mxu0 0
        %5518 = vmatpush1.bf16.msra.mxu0 %v5425
        %5519 = vmatprep.subr.bf16.mxu0 0
        %5520 = vmatpush1.bf16.msra.mxu0 %v5426
        %5521 = vmatprep.subr.bf16.mxu0 0
        %5522 = vmatpush1.bf16.msra.mxu0 %v5427
        %5523 = vmatprep.subr.bf16.mxu0 0
        %5524 = vmatpush1.bf16.msra.mxu0 %v5428
        %5525 = vmatprep.subr.bf16.mxu0 0
        %5526 = vmatpush1.bf16.msra.mxu0 %v5429
        %5527 = vmatprep.subr.bf16.mxu0 0
        %5528 = vmatpush1.bf16.msra.mxu0 %v5430
        %5529 = vmatprep.subr.bf16.mxu0 0
        %5530 = vmatpush1.bf16.msra.mxu0 %v5431
        %5531 = vmatprep.subr.bf16.mxu0 0
        %5532 = vmatpush1.bf16.msra.mxu0 %v5432
        %5533 = vmatprep.subr.bf16.mxu0 0
        %5534 = vmatpush1.bf16.msra.mxu0 %v5433
        %5535 = vmatprep.subr.bf16.mxu0 0
        %5536 = vmatpush1.bf16.msra.mxu0 %v5434
        %5537 = vmatprep.subr.bf16.mxu0 0
        %5538 = vmatpush1.bf16.msra.mxu0 %v5435
        %5539 = vmatprep.subr.bf16.mxu0 0
        %5540 = vmatpush1.bf16.msra.mxu0 %v5436
        %5541 = vmatprep.mubr.bf16.mxu0 %v5271
        %5542 = vmatmul.mubr.bf16.gmra.mrb[0].mxu0 %v5270
        %v5543 = vpop.f32.mrb[0].mxu0
        %v5544 = vadd.f32 %v5504, %v5543
        %v5545 = vpop.f32.mrb[0].mxu0
        %v5546 = vpop.f32.mrb[0].mxu0
        %v5547 = vpop.f32.mrb[0].mxu0
        %5548 = vdwg.mxu0
        %v5549 = vadd.f32 %v4899, %v5544
        %v5550 = vld [vmem:[%s14 + $0x2] sm:$0x1]
        %v5551 = vld [vmem:[%s15 + $0x2] sm:$0x1]
        %5552 = vadd.xlane.f32.xlu0 %v5549
        %v5553 = vpop.xlane.xlu0 %5552
        %v5554 = vmul.f32 %v5553, %v1589
        %v5555 = vsub.f32 %v5549, %v5554
        %v5556 = vmul.f32 %v5555, %v5555
        %5557 = vadd.xlane.f32.xlu0 %v5556
        %v5558 = vpop.xlane.xlu0 %5557
        %v5559 = vmul.f32 %v5558, %v1589
        %v5560 = vadd.f32 %v5559, 1e-05
        %v5561 = vrsqrt.pop %v5560
        %v5562 = vmul.f32 %v5555, %v5561
        %v5563 = vlaneseq
        %v5564 = vshrl.u32 %v5563, 7
        %v5565 = vsub.s32 0, %v5564
        %v5566 = vrot.slane %v5550, %v5565
        %v5567 = vmul.f32 %v5562, %v5566
        %v5568 = vlaneseq
        %v5569 = vshrl.u32 %v5568, 7
        %v5570 = vsub.s32 0, %v5569
        %v5571 = vrot.slane %v5551, %v5570
        %v5572 = vadd.f32 %v5567, %v5571
        %v5573 = vrot.slane %v5572, 4
        %v5574 = vadd.f32 %v5572, %v5573
        %v5575 = vrot.slane %v5574, 2
        %v5576 = vadd.f32 %v5574, %v5575
        %v5577 = vrot.slane %v5576, 1
        %v5578 = vadd.f32 %v5576, %v5577
        %v5579 = vrcp.pop 8.0
        %v5580 = vmul.f32 %v5578, %v5579
        %v5581 = vld [vmem:[%s16] sm:$0xf]
        %v5582 = vld [vmem:[%s16 + $0x4] sm:$0xf]
        %v5583 = vld [vmem:[%s16 + $0x8] sm:$0xf]
        %v5584 = vld [vmem:[%s16 + $0xc] sm:$0xf]
        %v5585 = vld [vmem:[%s16 + $0x10] sm:$0xf]
        %v5586 = vld [vmem:[%s16 + $0x14] sm:$0xf]
        %v5587 = vld [vmem:[%s16 + $0x18] sm:$0xf]
        %v5588 = vld [vmem:[%s16 + $0x1c] sm:$0xf]
        %v5589 = vld [vmem:[%s16 + $0x20] sm:$0xf]
        %v5590 = vld [vmem:[%s16 + $0x24] sm:$0xf]
        %v5591 = vld [vmem:[%s16 + $0x28] sm:$0xf]
        %v5592 = vld [vmem:[%s16 + $0x2c] sm:$0xf]
        %v5593 = vld [vmem:[%s16 + $0x30] sm:$0xf]
        %v5594 = vld [vmem:[%s16 + $0x34] sm:$0xf]
        %v5595 = vld [vmem:[%s16 + $0x38] sm:$0xf]
        %v5596 = vld [vmem:[%s16 + $0x3c] sm:$0xf]
        %v5597 = vpack.c.bf16 %v5580, %v5580
        %v5598 = vld [vmem:[%s17] sm:$0x1]
        %v5615 = vunpack.c.l.b16 %v5581
        %v5616 = vunpack.c.l.b16 %v5582
        %v5617 = vunpack.c.l.b16 %v5583
        %v5618 = vunpack.c.l.b16 %v5584
        %v5619 = vunpack.c.l.b16 %v5585
        %v5620 = vunpack.c.l.b16 %v5586
        %v5621 = vunpack.c.l.b16 %v5587
        %v5622 = vunpack.c.l.b16 %v5588
        %v5623 = vunpack.c.l.b16 %v5589
        %v5624 = vunpack.c.l.b16 %v5590
        %v5625 = vunpack.c.l.b16 %v5591
        %v5626 = vunpack.c.l.b16 %v5592
        %v5627 = vunpack.c.l.b16 %v5593
        %v5628 = vunpack.c.l.b16 %v5594
        %v5629 = vunpack.c.l.b16 %v5595
        %v5630 = vunpack.c.l.b16 %v5596
        %v5631 = vpack.c.b16 %v5616, %v5615
        %v5632 = vpack.c.b16 %v5618, %v5617
        %v5633 = vpack.c.b16 %v5620, %v5619
        %v5634 = vpack.c.b16 %v5622, %v5621
        %v5635 = vpack.c.b16 %v5624, %v5623
        %v5636 = vpack.c.b16 %v5626, %v5625
        %v5637 = vpack.c.b16 %v5628, %v5627
        %v5638 = vpack.c.b16 %v5630, %v5629
        %5647 = vmatprep.subr.bf16.mxu0 0
        %5648 = vmatpush1.bf16.msra.mxu0 %v5631
        %5649 = vmatprep.subr.bf16.mxu0 0
        %5650 = vmatpush1.bf16.msra.mxu0 %v5632
        %5651 = vmatprep.subr.bf16.mxu0 0
        %5652 = vmatpush1.bf16.msra.mxu0 %v5633
        %5653 = vmatprep.subr.bf16.mxu0 0
        %5654 = vmatpush1.bf16.msra.mxu0 %v5634
        %5655 = vmatprep.subr.bf16.mxu0 0
        %5656 = vmatpush1.bf16.msra.mxu0 %v5635
        %5657 = vmatprep.subr.bf16.mxu0 0
        %5658 = vmatpush1.bf16.msra.mxu0 %v5636
        %5659 = vmatprep.subr.bf16.mxu0 0
        %5660 = vmatpush1.bf16.msra.mxu0 %v5637
        %5661 = vmatprep.subr.bf16.mxu0 0
        %5662 = vmatpush1.bf16.msra.mxu0 %v5638
        %5663 = vmatprep.subr.bf16.mxu0 0
        %5664 = vmatpush1.bf16.msra.mxu0 0
        %5665 = vmatprep.subr.bf16.mxu0 0
        %5666 = vmatpush1.bf16.msra.mxu0 0
        %5667 = vmatprep.subr.bf16.mxu0 0
        %5668 = vmatpush1.bf16.msra.mxu0 0
        %5669 = vmatprep.subr.bf16.mxu0 0
        %5670 = vmatpush1.bf16.msra.mxu0 0
        %5671 = vmatprep.subr.bf16.mxu0 0
        %5672 = vmatpush1.bf16.msra.mxu0 0
        %5673 = vmatprep.subr.bf16.mxu0 0
        %5674 = vmatpush1.bf16.msra.mxu0 0
        %5675 = vmatprep.subr.bf16.mxu0 0
        %5676 = vmatpush1.bf16.msra.mxu0 0
        %5677 = vmatprep.subr.bf16.mxu0 0
        %5678 = vmatpush1.bf16.msra.mxu0 0
        %5679 = vmatprep.mubr.bf16.mxu0 0
        %5680 = vmatmul.mubr.bf16.gmra.mrb[0].mxu0 %v5597
        %v5681 = vpop.f32.mrb[0].mxu0
        %v5682 = vadd.f32 %v5598, %v5681
        %v5683 = vpop.f32.mrb[0].mxu0
        %v5684 = vpop.f32.mrb[0].mxu0
        %v5685 = vpop.f32.mrb[0].mxu0
        %5686 = vdwg.mxu0
        %5687 = vst [vmem:[%s565] sm:$0x1] %v5682
        %s5688 = sand.u32 %s423, 1
        %s5689 = scalar_lea.sflag [#allocation3], %s5688
        %s5690 = sand.u32 %s423, 1
        %s5691 = scalar_lea.vmem [#allocation2], %s5690
        // Predicated region
        $region93: #{model_forward.1} parent=91 // pred_check
          %p5692 = pneg %p433
        $region94: #{model_forward.1} parent=91 // pred_check_branch
          %5694 = sbr.rel (%p5692) target = $region96
        $region95: #{model_forward.1} parent=91 // pred_region
          %s5696 = ssub.s32 16, 16
          %5697 = vsyncadd %s5689, %s5696
          %s5698 = smul.addr %s32, 16
          %s5699 = scalar_lea.hbm %s18, %s5698
          %s5701 = sshll.u32 %s5691, 4
          %s5702 = int_to_ptr.vmem [resolvable:$true] %s5701
          %5704 = dma.vmem_to_hbm [thread:$0]  %s5702, 16, %s5699, %s5689
        $region96: #{model_forward.1} parent=91 // pred_fallthru
          _
      $region92: #{model_forward.1} parent=5 // pred_fallthru
        _
      %p5705 = scmp.le.s32.totalorder 2, %s27
      // Predicated region
      $region97: #{model_forward.1} parent=5 // pred_check
        %p5706 = pneg %p5705
      $region98: #{model_forward.1} parent=5 // pred_check_branch
        %5708 = sbr.rel (%p5706) target = $region100
      $region99: #{model_forward.1} parent=5 // pred_region
        %s5709 = ssub.s32 %s27, 2
        // Predicated region
        $region101: #{model_forward.1} parent=99 // pred_check
          %p5710 = pneg %p439
        $region102: #{model_forward.1} parent=99 // pred_check_branch
          %5712 = sbr.rel (%p5710) target = $region104
        $region103: #{model_forward.1} parent=99 // pred_region
          %s5713 = sand.u32 %s424, 1
          %s5714 = scalar_lea.sflag [#allocation3], %s5713
          %s5715 = sand.u32 %s424, 1
          %s5716 = scalar_lea.vmem [#allocation2], %s5715
          %5717 = dma.done %s5714, 16
        $region104: #{model_forward.1} parent=99 // pred_fallthru
          _
      $region100: #{model_forward.1} parent=5 // pred_fallthru
        _
    $region6: #{model_forward.1} parent=1 // loop_footer
      %s31 = sadd.s32 1, %s27
    $region7: #{model_forward.1} parent=1 // loop_footer_branch
      %26 = sbr.rel target = $region3
    $region8: #{model_forward.1} parent=1 // loop_exit
      _
    %5718 = vsyncpa [#allocation3], 1
    %s5719 = scalar_lea.sflag [#allocation3], 1
    %5720 = vsyncpa %s5719, 1

</llo_original>
